<compile_context>
chip_gen: v6e
topology: v6e:2x2x1
jax: 0.10.0
libtpu: 0.0.40
codegen_flags: <defaults>
</compile_context>

<pallas_src>
import functools

import jax
import jax.numpy as jnp
from jax.experimental import pallas as pl
from jax.experimental.pallas import tpu as pltpu


def _round_up(x: int, m: int) -> int:
    return ((x + m - 1) // m) * m


# ----------------------------------------------------------------------------
# Kernel 1: fused GEMM
#   y = relu(a * col_scale + col_bias) @ w         (BN-apply + ReLU prologue)
# and, from the epilogue, per-M-tile partial column sums / sums-of-squares of
# y (BatchNorm batch statistics of the conv output).  M-padding rows are
# masked to exact zero so they contribute nothing to the output or the stats.
# K and N fit in a single block (K = 36 / 27, N padded to one 128-lane tile),
# so the grid is 1-D over M and fully "parallel" (megacore friendly); there is
# no accumulator scratch and the output tile is written exactly once.
# ----------------------------------------------------------------------------
def _relu_bn_gemm_kernel(a_ref, s_ref, b_ref, w_ref, o_ref, sum_ref, sq_ref,
                         *, tm, m_true):
    i = pl.program_id(0)
    act = jnp.maximum(a_ref[...] * s_ref[...] + b_ref[...], 0.0)
    row = i * tm + jax.lax.broadcasted_iota(jnp.int32, (tm, 1), 0)
    act = jnp.where(row < m_true, act, 0.0)          # zero the M-padding rows
    y = jnp.dot(act, w_ref[...], preferred_element_type=jnp.float32)
    o_ref[...] = y
    n = y.shape[1]
    sum_ref[...] = jnp.broadcast_to(jnp.sum(y, axis=0, keepdims=True), (8, n))
    sq_ref[...] = jnp.broadcast_to(jnp.sum(y * y, axis=0, keepdims=True), (8, n))


def relu_bn_gemm(a, w, col_scale, col_bias, *, tm=1024):
    """Returns (y_padded (Mp, Np) f32, per-column mean (N,), biased var (N,)).

    y = relu(a * col_scale + col_bias) @ w ; stats are over the true M rows
    and true N columns.  The padded region of y is exactly zero.
    """
    M, K = a.shape
    K2, N = w.shape
    assert K == K2
    tm = min(tm, _round_up(M, 8))
    Mp = _round_up(M, tm)
    Np = _round_up(N, 128)
    if Mp != M:
        a = jnp.pad(a, ((0, Mp - M), (0, 0)))        # K is NOT padded
    if Np != N:
        w = jnp.pad(w, ((0, 0), (0, Np - N)))
    s = col_scale.reshape(1, K).astype(jnp.float32)
    b = col_bias.reshape(1, K).astype(jnp.float32)
    n_mt = Mp // tm

    y_pad, sums, sqs = pl.pallas_call(
        functools.partial(_relu_bn_gemm_kernel, tm=tm, m_true=M),
        out_shape=(jax.ShapeDtypeStruct((Mp, Np), jnp.float32),
                   jax.ShapeDtypeStruct((n_mt * 8, Np), jnp.float32),
                   jax.ShapeDtypeStruct((n_mt * 8, Np), jnp.float32)),
        grid_spec=pltpu.PrefetchScalarGridSpec(
            num_scalar_prefetch=0,
            grid=(n_mt,),
            in_specs=[pl.BlockSpec((tm, K), lambda i: (i, 0)),
                      pl.BlockSpec((1, K), lambda i: (0, 0)),
                      pl.BlockSpec((1, K), lambda i: (0, 0)),
                      pl.BlockSpec((K, Np), lambda i: (0, 0))],
            out_specs=(pl.BlockSpec((tm, Np), lambda i: (i, 0)),
                       pl.BlockSpec((8, Np), lambda i: (i, 0)),
                       pl.BlockSpec((8, Np), lambda i: (i, 0))),
        ),
        compiler_params=pltpu.CompilerParams(
            dimension_semantics=("parallel",)),
    )(a, s, b, w)

    col_sum = sums.reshape(n_mt, 8, Np)[:, 0, :N].sum(axis=0)
    col_sq = sqs.reshape(n_mt, 8, Np)[:, 0, :N].sum(axis=0)
    mean = col_sum / M
    var = jnp.maximum(col_sq / M - mean * mean, 0.0)   # clamp one-pass variance
    return y_pad, mean, var


# ----------------------------------------------------------------------------
# Kernel 2: lane-dense per-column scale + shift (final BatchNorm application).
# Operates directly on the padded (Mp, Np) activation produced by the GEMM
# (pad columns have zero scale/bias so they stay zero); caller slices once.
# ----------------------------------------------------------------------------
def _scale_shift_kernel(x_ref, s_ref, b_ref, o_ref):
    o_ref[...] = x_ref[...] * s_ref[...] + b_ref[...]


def scale_shift_padded(x_pad, scale, bias, *, tm=1024):
    Mp, Np = x_pad.shape
    C = scale.shape[0]
    bm = min(tm, Mp)
    bm -= bm % 8
    while Mp % bm:                      # Mp is always a multiple of 8
        bm -= 8
    s_p = jnp.pad(scale.reshape(1, C).astype(jnp.float32), ((0, 0), (0, Np - C)))
    b_p = jnp.pad(bias.reshape(1, C).astype(jnp.float32), ((0, 0), (0, Np - C)))
    return pl.pallas_call(
        _scale_shift_kernel,
        out_shape=jax.ShapeDtypeStruct((Mp, Np), x_pad.dtype),
        grid_spec=pltpu.PrefetchScalarGridSpec(
            num_scalar_prefetch=0,
            grid=(Mp // bm,),
            in_specs=[pl.BlockSpec((bm, Np), lambda i: (i, 0)),
                      pl.BlockSpec((1, Np), lambda i: (0, 0)),
                      pl.BlockSpec((1, Np), lambda i: (0, 0))],
            out_specs=pl.BlockSpec((bm, Np), lambda i: (i, 0)),
        ),
        compiler_params=pltpu.CompilerParams(
            dimension_semantics=("parallel",)),
    )(x_pad, s_p, b_p)


# ----------------------------------------------------------------------------
# im2col layout glue (plain JAX).
# TODO(synk): patch extraction is still materialized in XLA; could be replaced
# by tap-summed shifted-window GEMMs or in-kernel strided pl.ds gathers.
# ----------------------------------------------------------------------------
def _im2col_2d(x, t, stride, padding):
    N, C, H, W = x.shape
    xp = jnp.pad(x, ((0, 0), (0, 0), (padding, padding), (padding, padding)))
    Hp, Wp = H + 2 * padding, W + 2 * padding
    Ho = (Hp - t) // stride + 1
    Wo = (Wp - t) // stride + 1
    patches = []
    for ki in range(t):
        for kj in range(t):
            patches.append(xp[:, :,
                              ki:ki + (Ho - 1) * stride + 1:stride,
                              kj:kj + (Wo - 1) * stride + 1:stride])
    cols = jnp.stack(patches, axis=2)                      # (N, C, t*t, Ho, Wo)
    cols = cols.reshape(N, C * t * t, Ho, Wo)              # K order = (c, ki, kj)
    cols = cols.transpose(0, 2, 3, 1).reshape(N * Ho * Wo, C * t * t)
    return cols, Ho, Wo


def _im2col_1d_valpad(x, d, stride, padding, pad_val):
    """im2col for the 1D conv, padding the time axis with a per-channel value.

    Padding the *raw* signal with pad_val = -b/s is equivalent to zero-padding
    the normalized signal, which lets bn1-apply + relu2 be folded into the
    GEMM prologue exactly.
    """
    N, C, L = x.shape
    if padding > 0:
        pad_blk = jnp.broadcast_to(pad_val.reshape(1, C, 1),
                                   (N, C, padding)).astype(x.dtype)
        xp = jnp.concatenate([pad_blk, x, pad_blk], axis=2)
    else:
        xp = x
    Lp = L + 2 * padding
    Lo = (Lp - d) // stride + 1
    patches = [xp[:, :, k:k + (Lo - 1) * stride + 1:stride] for k in range(d)]
    cols = jnp.stack(patches, axis=2)                      # (N, C, d, Lo)
    cols = cols.reshape(N, C * d, Lo)                      # K order = (c, k)
    cols = cols.transpose(0, 2, 1).reshape(N * Lo, C * d)
    return cols, Lo


# ----------------------------------------------------------------------------
# Full Conv2_1D forward.
# ----------------------------------------------------------------------------
def conv2_1d_forward(x, w2d, w1d, gamma1, beta1, gamma2, beta2,
                     *, stride, padding, eps=1e-5):
    B, C_in, T, H, W = x.shape
    hidden, _, t, _ = w2d.shape
    C_out, _, d = w1d.shape

    # (B, C, T, H, W) -> (B*T, C, H, W)
    x2 = jnp.transpose(x, (0, 2, 1, 3, 4)).reshape(B * T, C_in, H, W)

    # relu1 + conv2d as one fused GEMM; bn1 batch stats come out of its epilogue.
    cols2, Hh, Ww = _im2col_2d(x2, t, stride, padding)
    K1 = C_in * t * t
    w2 = w2d.reshape(hidden, K1).T
    y1_pad, mean1, var1 = relu_bn_gemm(
        cols2, w2, jnp.ones((K1,), jnp.float32), jnp.zeros((K1,), jnp.float32))
    M1 = B * T * Hh * Ww

    # bn1 affine folded into the *next* GEMM's prologue.
    s1 = gamma1 / jnp.sqrt(var1 + eps)
    b1 = beta1 - mean1 * s1

    # slice once; reshape so the temporal axis becomes the conv axis.
    y1 = y1_pad[:M1, :hidden]
    y1 = (y1.reshape(B, T, Hh, Ww, hidden)
            .transpose(0, 2, 3, 4, 1)
            .reshape(B * Hh * Ww, hidden, T))

    # conv1d zero-padding in the normalized domain == padding raw y1 with -b1/s1
    # (s1 = gamma1/sqrt(var+eps) is zero only for gamma1 == 0; guarded).
    pad_val = jnp.where(s1 != 0, -b1 / jnp.where(s1 != 0, s1, 1.0), 0.0)
    cols1, Lo = _im2col_1d_valpad(y1, d, stride, padding, pad_val)
    w1 = w1d.reshape(C_out, hidden * d).T
    # (bn1-apply + relu2) fused into the GEMM's A-load; bn2 stats from epilogue.
    y2_pad, mean2, var2 = relu_bn_gemm(
        cols1, w1, jnp.repeat(s1, d), jnp.repeat(b1, d))
    M2 = B * Hh * Ww * Lo

    # bn2 apply (needs full-batch stats first, so one lane-dense pass).
    s2 = gamma2 / jnp.sqrt(var2 + eps)
    b2 = beta2 - mean2 * s2
    y2_pad = scale_shift_padded(y2_pad, s2, b2)

    # (B, Hh, Ww, Lo, C_out) -> (B, C_out, Lo, Hh, Ww)
    out = (y2_pad[:M2, :C_out]
           .reshape(B, Hh, Ww, Lo, C_out)
           .transpose(0, 4, 3, 1, 2))
    return out


# ----------------------------------------------------------------------------
# Pure-JAX reference (lax conv) for a correctness check.
# ----------------------------------------------------------------------------
def _reference_forward(x, w2d, w1d, gamma1, beta1, gamma2, beta2,
                       *, stride, padding, eps=1e-5):
    B, C_in, T, H, W = x.shape
    y = jnp.transpose(x, (0, 2, 1, 3, 4)).reshape(B * T, C_in, H, W)
    y = jnp.maximum(y, 0.0)
    y = jax.lax.conv_general_dilated(
        y, w2d, window_strides=(stride, stride),
        padding=[(padding, padding), (padding, padding)],
        dimension_numbers=("NCHW", "OIHW", "NCHW"))
    m = y.mean(axis=(0, 2, 3)); v = y.var(axis=(0, 2, 3))
    y = (y - m[None, :, None, None]) / jnp.sqrt(v + eps)[None, :, None, None]
    y = y * gamma1[None, :, None, None] + beta1[None, :, None, None]
    c, h, w = y.shape[1:]
    y = y.reshape(B, T, c, h, w).transpose(0, 3, 4, 2, 1).reshape(B * h * w, c, T)
    y = jnp.maximum(y, 0.0)
    y = jax.lax.conv_general_dilated(
        y, w1d, window_strides=(stride,), padding=[(padding, padding)],
        dimension_numbers=("NCH", "OIH", "NCH"))
    m2 = y.mean(axis=(0, 2)); v2 = y.var(axis=(0, 2))
    y = (y - m2[None, :, None]) / jnp.sqrt(v2 + eps)[None, :, None]
    y = y * gamma2[None, :, None] + beta2[None, :, None]
    oc, ot = y.shape[1:]
    return y.reshape(B, h, w, oc, ot).transpose(0, 3, 4, 1, 2)


if __name__ == "__main__":
    key = jax.random.PRNGKey(0)
    k1, k2, k3 = jax.random.split(key, 3)

    B, C_in, T, H, W = 2, 4, 8, 16, 16
    C_out, kernel_size, stride, padding = 4, 3, 1, 1
    t = d = kernel_size
    hidden = int(t * d * d * C_in * C_out / (d * d * C_in + t * C_out))  # = 9

    x = jax.random.normal(k1, (B, C_in, T, H, W), dtype=jnp.float32)
    w2d = 0.1 * jax.random.normal(k2, (hidden, C_in, t, t), dtype=jnp.float32)
    w1d = 0.1 * jax.random.normal(k3, (C_out, hidden, d), dtype=jnp.float32)
    gamma1 = jnp.ones((hidden,), jnp.float32)
    beta1 = jnp.zeros((hidden,), jnp.float32)
    gamma2 = jnp.ones((C_out,), jnp.float32)
    beta2 = jnp.zeros((C_out,), jnp.float32)

    fwd = jax.jit(conv2_1d_forward, static_argnames=("stride", "padding"))
    out = jax.block_until_ready(
        fwd(x, w2d, w1d, gamma1, beta1, gamma2, beta2,
            stride=stride, padding=padding))

    assert out.shape == (B, C_out, T, H, W), out.shape
    assert bool(jnp.all(jnp.isfinite(out)))

    ref = _reference_forward(x, w2d, w1d, gamma1, beta1, gamma2, beta2,
                             stride=stride, padding=padding)
    max_err = float(jnp.max(jnp.abs(out - ref)))
    assert max_err < 5e-2, f"max abs error vs reference: {max_err}"

    print("KERNEL_OK")
</pallas_src>

<mosaic_0001>
module attributes {stable_mosaic.version = 11 : i64} {
  func.func @_relu_bn_gemm_kernel(%arg0: i32, %arg1: memref<1024x36xf32, #tpu.memory_space<vmem>>, %arg2: memref<1x36xf32, #tpu.memory_space<vmem>>, %arg3: memref<1x36xf32, #tpu.memory_space<vmem>>, %arg4: memref<36x128xf32, #tpu.memory_space<vmem>>, %arg5: memref<1024x128xf32, #tpu.memory_space<vmem>>, %arg6: memref<8x128xf32, #tpu.memory_space<vmem>>, %arg7: memref<8x128xf32, #tpu.memory_space<vmem>>) attributes {dimension_semantics = [#tpu.dimension_semantics<parallel>], iteration_bounds = array<i64: 4>, scalar_prefetch = 0 : i64, scratch_operands = 0 : i64, tpu.core_type = #tpu.core_type<tc>, window_params = [{transform_indices = @transform_0, window_bounds = array<i64: 1024, 36>}, {pipeline_mode = #tpu.pipeline_mode<synchronous>, transform_indices = @transform_1, window_bounds = array<i64: 1, 36>}, {pipeline_mode = #tpu.pipeline_mode<synchronous>, transform_indices = @transform_2, window_bounds = array<i64: 1, 36>}, {pipeline_mode = #tpu.pipeline_mode<synchronous>, transform_indices = @transform_3, window_bounds = array<i64: 36, 128>}, {transform_indices = @transform_4, window_bounds = array<i64: 1024, 128>}, {transform_indices = @transform_5, window_bounds = array<i64: 8, 128>}, {transform_indices = @transform_6, window_bounds = array<i64: 8, 128>}]} {
    %c0 = arith.constant 0 : index
    %c0_0 = arith.constant 0 : index
    %0 = vector.load %arg1[%c0, %c0_0] : memref<1024x36xf32, #tpu.memory_space<vmem>>, vector<1024x36xf32>
    %c0_1 = arith.constant 0 : index
    %c0_2 = arith.constant 0 : index
    %1 = vector.load %arg2[%c0_1, %c0_2] : memref<1x36xf32, #tpu.memory_space<vmem>>, vector<1x36xf32>
    %2 = vector.broadcast %1 : vector<1x36xf32> to vector<1024x36xf32>
    %3 = arith.mulf %0, %2 : vector<1024x36xf32>
    %c0_3 = arith.constant 0 : index
    %c0_4 = arith.constant 0 : index
    %4 = vector.load %arg3[%c0_3, %c0_4] : memref<1x36xf32, #tpu.memory_space<vmem>>, vector<1x36xf32>
    %5 = vector.broadcast %4 : vector<1x36xf32> to vector<1024x36xf32>
    %6 = arith.addf %3, %5 : vector<1024x36xf32>
    %cst = arith.constant 0.000000e+00 : f32
    %7 = vector.broadcast %cst : f32 to vector<1024x36xf32>
    %8 = arith.maximumf %6, %7 : vector<1024x36xf32>
    %c1024_i32 = arith.constant 1024 : i32
    %9 = arith.muli %arg0, %c1024_i32 : i32
    %10 = tpu.iota {dimensions = array<i32: 0>} : vector<1024x1xi32>
    %11 = vector.broadcast %9 : i32 to vector<1024x1xi32>
    %12 = arith.addi %11, %10 : vector<1024x1xi32>
    %c4096_i32 = arith.constant 4096 : i32
    %13 = vector.broadcast %c4096_i32 : i32 to vector<1024x1xi32>
    %14 = arith.cmpi slt, %12, %13 : vector<1024x1xi32>
    %cst_5 = arith.constant 0.000000e+00 : f32
    %15 = vector.shape_cast %14 : vector<1024x1xi1> to vector<1024x1xi1>
    %16 = vector.broadcast %15 : vector<1024x1xi1> to vector<1024x36xi1>
    %17 = vector.broadcast %cst_5 : f32 to vector<1024x36xf32>
    %18 = arith.select %16, %8, %17 : vector<1024x36xi1>, vector<1024x36xf32>
    %c0_6 = arith.constant 0 : index
    %c0_7 = arith.constant 0 : index
    %19 = vector.load %arg4[%c0_6, %c0_7] : memref<36x128xf32, #tpu.memory_space<vmem>>, vector<36x128xf32>
    %cst_8 = arith.constant dense<0.000000e+00> : vector<1024x128xf32>
    %20 = tpu.matmul %18, %19, %cst_8 {dimension_numbers = #tpu.dot_dimension_numbers<[1], [0], [0], [1], [0, 0, 1, 1], [], []>} : vector<1024x36xf32>, vector<36x128xf32>, vector<1024x128xf32> -> vector<1024x128xf32>
    %c0_9 = arith.constant 0 : index
    %c0_10 = arith.constant 0 : index
    %21 = vector.load %arg5[%c0_9, %c0_10] : memref<1024x128xf32, #tpu.memory_space<vmem>>, vector<1024x128xf32>
    tpu.vector_store %arg5[%c0_9, %c0_10], %20 {strides = array<i32>} : memref<1024x128xf32, #tpu.memory_space<vmem>>, vector<1024x128xf32>,
    %cst_11 = arith.constant dense<0.000000e+00> : vector<128xf32>
    %22 = vector.multi_reduction <add>, %20, %cst_11 [0] : vector<1024x128xf32> to vector<128xf32>
    %23 = vector.shape_cast %22 : vector<128xf32> to vector<1x128xf32>
    %24 = vector.shape_cast %23 : vector<1x128xf32> to vector<1x128xf32>
    %25 = vector.broadcast %24 : vector<1x128xf32> to vector<8x128xf32>
    %c0_12 = arith.constant 0 : index
    %c0_13 = arith.constant 0 : index
    %26 = vector.load %arg6[%c0_12, %c0_13] : memref<8x128xf32, #tpu.memory_space<vmem>>, vector<8x128xf32>
    tpu.vector_store %arg6[%c0_12, %c0_13], %25 {strides = array<i32>} : memref<8x128xf32, #tpu.memory_space<vmem>>, vector<8x128xf32>,
    %27 = arith.mulf %20, %20 : vector<1024x128xf32>
    %cst_14 = arith.constant dense<0.000000e+00> : vector<128xf32>
    %28 = vector.multi_reduction <add>, %27, %cst_14 [0] : vector<1024x128xf32> to vector<128xf32>
    %29 = vector.shape_cast %28 : vector<128xf32> to vector<1x128xf32>
    %30 = vector.shape_cast %29 : vector<1x128xf32> to vector<1x128xf32>
    %31 = vector.broadcast %30 : vector<1x128xf32> to vector<8x128xf32>
    %c0_15 = arith.constant 0 : index
    %c0_16 = arith.constant 0 : index
    %32 = vector.load %arg7[%c0_15, %c0_16] : memref<8x128xf32, #tpu.memory_space<vmem>>, vector<8x128xf32>
    tpu.vector_store %arg7[%c0_15, %c0_16], %31 {strides = array<i32>} : memref<8x128xf32, #tpu.memory_space<vmem>>, vector<8x128xf32>,
    return
  }
  func.func @transform_0(%arg0: i32) -> (i32, i32) {
    %c0_i32 = arith.constant 0 : i32
    %c0_i32_0 = arith.constant 0 : i32
    return %arg0, %c0_i32 : i32, i32
  }
  func.func @transform_1(%arg0: i32) -> (i32, i32) {
    %c0_i32 = arith.constant 0 : i32
    %c0_i32_0 = arith.constant 0 : i32
    %c0_i32_1 = arith.constant 0 : i32
    return %c0_i32, %c0_i32_0 : i32, i32
  }
  func.func @transform_2(%arg0: i32) -> (i32, i32) {
    %c0_i32 = arith.constant 0 : i32
    %c0_i32_0 = arith.constant 0 : i32
    %c0_i32_1 = arith.constant 0 : i32
    return %c0_i32, %c0_i32_0 : i32, i32
  }
  func.func @transform_3(%arg0: i32) -> (i32, i32) {
    %c0_i32 = arith.constant 0 : i32
    %c0_i32_0 = arith.constant 0 : i32
    %c0_i32_1 = arith.constant 0 : i32
    return %c0_i32, %c0_i32_0 : i32, i32
  }
  func.func @transform_4(%arg0: i32) -> (i32, i32) {
    %c0_i32 = arith.constant 0 : i32
    %c0_i32_0 = arith.constant 0 : i32
    return %arg0, %c0_i32 : i32, i32
  }
  func.func @transform_5(%arg0: i32) -> (i32, i32) {
    %c0_i32 = arith.constant 0 : i32
    %c0_i32_0 = arith.constant 0 : i32
    return %arg0, %c0_i32 : i32, i32
  }
  func.func @transform_6(%arg0: i32) -> (i32, i32) {
    %c0_i32 = arith.constant 0 : i32
    %c0_i32_0 = arith.constant 0 : i32
    return %arg0, %c0_i32 : i32, i32
  }
}

module attributes {stable_mosaic.version = 11 : i64} {
  func.func @_relu_bn_gemm_kernel(%arg0: i32, %arg1: memref<1024x27xf32, #tpu.memory_space<vmem>>, %arg2: memref<1x27xf32, #tpu.memory_space<vmem>>, %arg3: memref<1x27xf32, #tpu.memory_space<vmem>>, %arg4: memref<27x128xf32, #tpu.memory_space<vmem>>, %arg5: memref<1024x128xf32, #tpu.memory_space<vmem>>, %arg6: memref<8x128xf32, #tpu.memory_space<vmem>>, %arg7: memref<8x128xf32, #tpu.memory_space<vmem>>) attributes {dimension_semantics = [#tpu.dimension_semantics<parallel>], iteration_bounds = array<i64: 4>, scalar_prefetch = 0 : i64, scratch_operands = 0 : i64, tpu.core_type = #tpu.core_type<tc>, window_params = [{transform_indices = @transform_0, window_bounds = array<i64: 1024, 27>}, {pipeline_mode = #tpu.pipeline_mode<synchronous>, transform_indices = @transform_1, window_bounds = array<i64: 1, 27>}, {pipeline_mode = #tpu.pipeline_mode<synchronous>, transform_indices = @transform_2, window_bounds = array<i64: 1, 27>}, {pipeline_mode = #tpu.pipeline_mode<synchronous>, transform_indices = @transform_3, window_bounds = array<i64: 27, 128>}, {transform_indices = @transform_4, window_bounds = array<i64: 1024, 128>}, {transform_indices = @transform_5, window_bounds = array<i64: 8, 128>}, {transform_indices = @transform_6, window_bounds = array<i64: 8, 128>}]} {
    %c0 = arith.constant 0 : index
    %c0_0 = arith.constant 0 : index
    %0 = vector.load %arg1[%c0, %c0_0] : memref<1024x27xf32, #tpu.memory_space<vmem>>, vector<1024x27xf32>
    %c0_1 = arith.constant 0 : index
    %c0_2 = arith.constant 0 : index
    %1 = vector.load %arg2[%c0_1, %c0_2] : memref<1x27xf32, #tpu.memory_space<vmem>>, vector<1x27xf32>
    %2 = vector.broadcast %1 : vector<1x27xf32> to vector<1024x27xf32>
    %3 = arith.mulf %0, %2 : vector<1024x27xf32>
    %c0_3 = arith.constant 0 : index
    %c0_4 = arith.constant 0 : index
    %4 = vector.load %arg3[%c0_3, %c0_4] : memref<1x27xf32, #tpu.memory_space<vmem>>, vector<1x27xf32>
    %5 = vector.broadcast %4 : vector<1x27xf32> to vector<1024x27xf32>
    %6 = arith.addf %3, %5 : vector<1024x27xf32>
    %cst = arith.constant 0.000000e+00 : f32
    %7 = vector.broadcast %cst : f32 to vector<1024x27xf32>
    %8 = arith.maximumf %6, %7 : vector<1024x27xf32>
    %c1024_i32 = arith.constant 1024 : i32
    %9 = arith.muli %arg0, %c1024_i32 : i32
    %10 = tpu.iota {dimensions = array<i32: 0>} : vector<1024x1xi32>
    %11 = vector.broadcast %9 : i32 to vector<1024x1xi32>
    %12 = arith.addi %11, %10 : vector<1024x1xi32>
    %c4096_i32 = arith.constant 4096 : i32
    %13 = vector.broadcast %c4096_i32 : i32 to vector<1024x1xi32>
    %14 = arith.cmpi slt, %12, %13 : vector<1024x1xi32>
    %cst_5 = arith.constant 0.000000e+00 : f32
    %15 = vector.shape_cast %14 : vector<1024x1xi1> to vector<1024x1xi1>
    %16 = vector.broadcast %15 : vector<1024x1xi1> to vector<1024x27xi1>
    %17 = vector.broadcast %cst_5 : f32 to vector<1024x27xf32>
    %18 = arith.select %16, %8, %17 : vector<1024x27xi1>, vector<1024x27xf32>
    %c0_6 = arith.constant 0 : index
    %c0_7 = arith.constant 0 : index
    %19 = vector.load %arg4[%c0_6, %c0_7] : memref<27x128xf32, #tpu.memory_space<vmem>>, vector<27x128xf32>
    %cst_8 = arith.constant dense<0.000000e+00> : vector<1024x128xf32>
    %20 = tpu.matmul %18, %19, %cst_8 {dimension_numbers = #tpu.dot_dimension_numbers<[1], [0], [0], [1], [0, 0, 1, 1], [], []>} : vector<1024x27xf32>, vector<27x128xf32>, vector<1024x128xf32> -> vector<1024x128xf32>
    %c0_9 = arith.constant 0 : index
    %c0_10 = arith.constant 0 : index
    %21 = vector.load %arg5[%c0_9, %c0_10] : memref<1024x128xf32, #tpu.memory_space<vmem>>, vector<1024x128xf32>
    tpu.vector_store %arg5[%c0_9, %c0_10], %20 {strides = array<i32>} : memref<1024x128xf32, #tpu.memory_space<vmem>>, vector<1024x128xf32>,
    %cst_11 = arith.constant dense<0.000000e+00> : vector<128xf32>
    %22 = vector.multi_reduction <add>, %20, %cst_11 [0] : vector<1024x128xf32> to vector<128xf32>
    %23 = vector.shape_cast %22 : vector<128xf32> to vector<1x128xf32>
    %24 = vector.shape_cast %23 : vector<1x128xf32> to vector<1x128xf32>
    %25 = vector.broadcast %24 : vector<1x128xf32> to vector<8x128xf32>
    %c0_12 = arith.constant 0 : index
    %c0_13 = arith.constant 0 : index
    %26 = vector.load %arg6[%c0_12, %c0_13] : memref<8x128xf32, #tpu.memory_space<vmem>>, vector<8x128xf32>
    tpu.vector_store %arg6[%c0_12, %c0_13], %25 {strides = array<i32>} : memref<8x128xf32, #tpu.memory_space<vmem>>, vector<8x128xf32>,
    %27 = arith.mulf %20, %20 : vector<1024x128xf32>
    %cst_14 = arith.constant dense<0.000000e+00> : vector<128xf32>
    %28 = vector.multi_reduction <add>, %27, %cst_14 [0] : vector<1024x128xf32> to vector<128xf32>
    %29 = vector.shape_cast %28 : vector<128xf32> to vector<1x128xf32>
    %30 = vector.shape_cast %29 : vector<1x128xf32> to vector<1x128xf32>
    %31 = vector.broadcast %30 : vector<1x128xf32> to vector<8x128xf32>
    %c0_15 = arith.constant 0 : index
    %c0_16 = arith.constant 0 : index
    %32 = vector.load %arg7[%c0_15, %c0_16] : memref<8x128xf32, #tpu.memory_space<vmem>>, vector<8x128xf32>
    tpu.vector_store %arg7[%c0_15, %c0_16], %31 {strides = array<i32>} : memref<8x128xf32, #tpu.memory_space<vmem>>, vector<8x128xf32>,
    return
  }
  func.func @transform_0(%arg0: i32) -> (i32, i32) {
    %c0_i32 = arith.constant 0 : i32
    %c0_i32_0 = arith.constant 0 : i32
    return %arg0, %c0_i32 : i32, i32
  }
  func.func @transform_1(%arg0: i32) -> (i32, i32) {
    %c0_i32 = arith.constant 0 : i32
    %c0_i32_0 = arith.constant 0 : i32
    %c0_i32_1 = arith.constant 0 : i32
    return %c0_i32, %c0_i32_0 : i32, i32
  }
  func.func @transform_2(%arg0: i32) -> (i32, i32) {
    %c0_i32 = arith.constant 0 : i32
    %c0_i32_0 = arith.constant 0 : i32
    %c0_i32_1 = arith.constant 0 : i32
    return %c0_i32, %c0_i32_0 : i32, i32
  }
  func.func @transform_3(%arg0: i32) -> (i32, i32) {
    %c0_i32 = arith.constant 0 : i32
    %c0_i32_0 = arith.constant 0 : i32
    %c0_i32_1 = arith.constant 0 : i32
    return %c0_i32, %c0_i32_0 : i32, i32
  }
  func.func @transform_4(%arg0: i32) -> (i32, i32) {
    %c0_i32 = arith.constant 0 : i32
    %c0_i32_0 = arith.constant 0 : i32
    return %arg0, %c0_i32 : i32, i32
  }
  func.func @transform_5(%arg0: i32) -> (i32, i32) {
    %c0_i32 = arith.constant 0 : i32
    %c0_i32_0 = arith.constant 0 : i32
    return %arg0, %c0_i32 : i32, i32
  }
  func.func @transform_6(%arg0: i32) -> (i32, i32) {
    %c0_i32 = arith.constant 0 : i32
    %c0_i32_0 = arith.constant 0 : i32
    return %arg0, %c0_i32 : i32, i32
  }
}

module attributes {stable_mosaic.version = 11 : i64} {
  func.func @_scale_shift_kernel(%arg0: i32, %arg1: memref<1024x128xf32, #tpu.memory_space<vmem>>, %arg2: memref<1x128xf32, #tpu.memory_space<vmem>>, %arg3: memref<1x128xf32, #tpu.memory_space<vmem>>, %arg4: memref<1024x128xf32, #tpu.memory_space<vmem>>) attributes {dimension_semantics = [#tpu.dimension_semantics<parallel>], iteration_bounds = array<i64: 4>, scalar_prefetch = 0 : i64, scratch_operands = 0 : i64, tpu.core_type = #tpu.core_type<tc>, window_params = [{transform_indices = @transform_0, window_bounds = array<i64: 1024, 128>}, {pipeline_mode = #tpu.pipeline_mode<synchronous>, transform_indices = @transform_1, window_bounds = array<i64: 1, 128>}, {pipeline_mode = #tpu.pipeline_mode<synchronous>, transform_indices = @transform_2, window_bounds = array<i64: 1, 128>}, {transform_indices = @transform_3, window_bounds = array<i64: 1024, 128>}]} {
    %c0 = arith.constant 0 : index
    %c0_0 = arith.constant 0 : index
    %0 = vector.load %arg1[%c0, %c0_0] : memref<1024x128xf32, #tpu.memory_space<vmem>>, vector<1024x128xf32>
    %c0_1 = arith.constant 0 : index
    %c0_2 = arith.constant 0 : index
    %1 = vector.load %arg2[%c0_1, %c0_2] : memref<1x128xf32, #tpu.memory_space<vmem>>, vector<1x128xf32>
    %2 = vector.broadcast %1 : vector<1x128xf32> to vector<1024x128xf32>
    %3 = arith.mulf %0, %2 : vector<1024x128xf32>
    %c0_3 = arith.constant 0 : index
    %c0_4 = arith.constant 0 : index
    %4 = vector.load %arg3[%c0_3, %c0_4] : memref<1x128xf32, #tpu.memory_space<vmem>>, vector<1x128xf32>
    %5 = vector.broadcast %4 : vector<1x128xf32> to vector<1024x128xf32>
    %6 = arith.addf %3, %5 : vector<1024x128xf32>
    %c0_5 = arith.constant 0 : index
    %c0_6 = arith.constant 0 : index
    %7 = vector.load %arg4[%c0_5, %c0_6] : memref<1024x128xf32, #tpu.memory_space<vmem>>, vector<1024x128xf32>
    tpu.vector_store %arg4[%c0_5, %c0_6], %6 {strides = array<i32>} : memref<1024x128xf32, #tpu.memory_space<vmem>>, vector<1024x128xf32>,
    return
  }
  func.func @transform_0(%arg0: i32) -> (i32, i32) {
    %c0_i32 = arith.constant 0 : i32
    %c0_i32_0 = arith.constant 0 : i32
    return %arg0, %c0_i32 : i32, i32
  }
  func.func @transform_1(%arg0: i32) -> (i32, i32) {
    %c0_i32 = arith.constant 0 : i32
    %c0_i32_0 = arith.constant 0 : i32
    %c0_i32_1 = arith.constant 0 : i32
    return %c0_i32, %c0_i32_0 : i32, i32
  }
  func.func @transform_2(%arg0: i32) -> (i32, i32) {
    %c0_i32 = arith.constant 0 : i32
    %c0_i32_0 = arith.constant 0 : i32
    %c0_i32_1 = arith.constant 0 : i32
    return %c0_i32, %c0_i32_0 : i32, i32
  }
  func.func @transform_3(%arg0: i32) -> (i32, i32) {
    %c0_i32 = arith.constant 0 : i32
    %c0_i32_0 = arith.constant 0 : i32
    return %arg0, %c0_i32 : i32, i32
  }
}

</mosaic_0001>

<llo_original>
// kernel: conv2_1d_forward.3
$region0: #{conv2_1d_forward.3}
  #allocation0 [shape = 'u32[]', space=smem, size = 0x4, offset = 0x4, fixed_abs, tag = 'smem constant byte address 0x4 - core index']
  #allocation1 [shape = 'u32[144,128]{1,0:T(1,128)}', space=vmem, size = 0x12000, scoped, tag = 'internal scratch']
  %s0 = inlined_call_operand.vmem [shape: f32[4096,36], index: 0, kind: input, shape index: {}]
  %s1 = inlined_call_operand.vmem [shape: f32[1,36], index: 1, kind: input, shape index: {}]
  %s2 = inlined_call_operand.vmem [shape: f32[1,36], index: 2, kind: input, shape index: {}]
  %s3 = inlined_call_operand.vmem [shape: f32[36,128], index: 3, kind: input, shape index: {}]
  %s4 = inlined_call_operand.vmem [shape: f32[4096,128], index: 4, kind: output, shape index: {0}]
  %s5 = inlined_call_operand.vmem [shape: f32[32,128], index: 5, kind: output, shape index: {1}]
  %s6 = inlined_call_operand.vmem [shape: f32[32,128], index: 6, kind: output, shape index: {2}]
  %7 = xla_tuple %s4, %s5, %s6
  %s8 = sld [smem:[#allocation0]]
  $region65: #{conv2_1d_forward.3} parent=0
    _
  %s10 = ssub.s32 1, %s8
  %s11 = scalar_select 0, %s10, %s8
  loop: start=0, step=1, limit=6
  $region2: #{conv2_1d_forward.3} parent=0 // loop_pre_header
    _
  $region3: #{conv2_1d_forward.3} parent=0 // loop_header
    %s13 = sphi 0, %s17
    %p14 = scmp.ge.s32.totalorder %s13, 6
    %s23 = sphi 0, %s25
    %s26 = sphi 0, %s23
    %s27 = sphi 0, %s26
    %s43 = sphi 0, %s27
    %s47 = sphi 0, %s47
    %s49 = sphi 0, %s47
    %s50 = sphi 0, %s49
    %s64 = sphi 0, %s50
    %s68 = sphi 0, %s68
    %s70 = sphi 0, %s68
    %s71 = sphi 0, %s70
    %s85 = sphi 0, %s71
    %s89 = sphi 0, %s89
    %s91 = sphi 0, %s89
    %s92 = sphi 0, %s91
    %s106 = sphi 0, %s92
    %s112 = sphi 0, %s114
    %s115 = sphi 0, %s112
    %s116 = sphi 0, %s115
    %s132 = sphi 0, %s116
    %s138 = sphi 0, %s140
    %s141 = sphi 0, %s138
    %s142 = sphi 0, %s141
    %s158 = sphi 0, %s142
    %s164 = sphi 0, %s166
    %s167 = sphi 0, %s164
    %s168 = sphi 0, %s167
    %s184 = sphi 0, %s168
  $region4: #{conv2_1d_forward.3} parent=0 // loop_header_branch
    %16 = sbr.rel (%p14) target = $region8
  $region5: #{conv2_1d_forward.3} parent=0 // loop_body
    %s18 = ssub.s32 %s13, 1
    %s19 = ssub.s32 %s13, 2
    %s20 = sadd.s32 %s13, 1
    %s21 = ssub.s32 %s13, %s20
    %p22 = scmp.eq.s32.totalorder %s21, 0
    %s24 = sadd.s32 %s23, 1
    %s25 = scalar_select %p22, %s23, %s24
    %p28 = pneg %p22
    %p29 = scmp.eq.s32.totalorder %s13, 3
    %p30 = por %p28, %p29
    %p31 = scmp.ne.s32.totalorder %s23, %s26
    %p32 = scmp.eq.s32.totalorder %s13, 0
    %p33 = por %p31, %p32
    %p34 = scmp.ne.s32.totalorder %s23, %s26
    %p35 = scmp.eq.s32.totalorder %s18, 3
    %p36 = por %p34, %p35
    %p37 = scmp.ne.s32.totalorder %s26, %s27
    %p38 = scmp.eq.s32.totalorder %s18, 0
    %p39 = por %p37, %p38
    %p40 = scmp.ne.s32.totalorder %s26, %s27
    %p41 = scmp.eq.s32.totalorder %s19, 3
    %p42 = por %p40, %p41
    %p44 = scmp.ne.s32.totalorder %s27, %s43
    %p45 = scmp.eq.s32.totalorder %s19, 0
    %p46 = por %p44, %p45
    %s48 = sadd.s32 %s47, 1
    %p51 = scmp.eq.s32.totalorder %s13, 3
    %p52 = scmp.ne.s32.totalorder %s47, %s49
    %p53 = scmp.eq.s32.totalorder %s13, 0
    %p54 = por %p52, %p53
    %p55 = scmp.ne.s32.totalorder %s47, %s49
    %p56 = scmp.eq.s32.totalorder %s18, 3
    %p57 = por %p55, %p56
    %p58 = scmp.ne.s32.totalorder %s49, %s50
    %p59 = scmp.eq.s32.totalorder %s18, 0
    %p60 = por %p58, %p59
    %p61 = scmp.ne.s32.totalorder %s49, %s50
    %p62 = scmp.eq.s32.totalorder %s19, 3
    %p63 = por %p61, %p62
    %p65 = scmp.ne.s32.totalorder %s50, %s64
    %p66 = scmp.eq.s32.totalorder %s19, 0
    %p67 = por %p65, %p66
    %s69 = sadd.s32 %s68, 1
    %p72 = scmp.eq.s32.totalorder %s13, 3
    %p73 = scmp.ne.s32.totalorder %s68, %s70
    %p74 = scmp.eq.s32.totalorder %s13, 0
    %p75 = por %p73, %p74
    %p76 = scmp.ne.s32.totalorder %s68, %s70
    %p77 = scmp.eq.s32.totalorder %s18, 3
    %p78 = por %p76, %p77
    %p79 = scmp.ne.s32.totalorder %s70, %s71
    %p80 = scmp.eq.s32.totalorder %s18, 0
    %p81 = por %p79, %p80
    %p82 = scmp.ne.s32.totalorder %s70, %s71
    %p83 = scmp.eq.s32.totalorder %s19, 3
    %p84 = por %p82, %p83
    %p86 = scmp.ne.s32.totalorder %s71, %s85
    %p87 = scmp.eq.s32.totalorder %s19, 0
    %p88 = por %p86, %p87
    %s90 = sadd.s32 %s89, 1
    %p93 = scmp.eq.s32.totalorder %s13, 3
    %p94 = scmp.ne.s32.totalorder %s89, %s91
    %p95 = scmp.eq.s32.totalorder %s13, 0
    %p96 = por %p94, %p95
    %p97 = scmp.ne.s32.totalorder %s89, %s91
    %p98 = scmp.eq.s32.totalorder %s18, 3
    %p99 = por %p97, %p98
    %p100 = scmp.ne.s32.totalorder %s91, %s92
    %p101 = scmp.eq.s32.totalorder %s18, 0
    %p102 = por %p100, %p101
    %p103 = scmp.ne.s32.totalorder %s91, %s92
    %p104 = scmp.eq.s32.totalorder %s19, 3
    %p105 = por %p103, %p104
    %p107 = scmp.ne.s32.totalorder %s92, %s106
    %p108 = scmp.eq.s32.totalorder %s19, 0
    %p109 = por %p107, %p108
    %s110 = ssub.s32 %s13, %s20
    %p111 = scmp.eq.s32.totalorder %s110, 0
    %s113 = sadd.s32 %s112, 1
    %s114 = scalar_select %p111, %s112, %s113
    %p117 = pneg %p111
    %p118 = scmp.eq.s32.totalorder %s13, 3
    %p119 = por %p117, %p118
    %p120 = scmp.ne.s32.totalorder %s112, %s115
    %p121 = scmp.eq.s32.totalorder %s13, 0
    %p122 = por %p120, %p121
    %p123 = scmp.ne.s32.totalorder %s112, %s115
    %p124 = scmp.eq.s32.totalorder %s18, 3
    %p125 = por %p123, %p124
    %p126 = scmp.ne.s32.totalorder %s115, %s116
    %p127 = scmp.eq.s32.totalorder %s18, 0
    %p128 = por %p126, %p127
    %p129 = scmp.ne.s32.totalorder %s115, %s116
    %p130 = scmp.eq.s32.totalorder %s19, 3
    %p131 = por %p129, %p130
    %p133 = scmp.ne.s32.totalorder %s116, %s132
    %p134 = scmp.eq.s32.totalorder %s19, 0
    %p135 = por %p133, %p134
    %s136 = ssub.s32 %s13, %s20
    %p137 = scmp.eq.s32.totalorder %s136, 0
    %s139 = sadd.s32 %s138, 1
    %s140 = scalar_select %p137, %s138, %s139
    %p143 = pneg %p137
    %p144 = scmp.eq.s32.totalorder %s13, 3
    %p145 = por %p143, %p144
    %p146 = scmp.ne.s32.totalorder %s138, %s141
    %p147 = scmp.eq.s32.totalorder %s13, 0
    %p148 = por %p146, %p147
    %p149 = scmp.ne.s32.totalorder %s138, %s141
    %p150 = scmp.eq.s32.totalorder %s18, 3
    %p151 = por %p149, %p150
    %p152 = scmp.ne.s32.totalorder %s141, %s142
    %p153 = scmp.eq.s32.totalorder %s18, 0
    %p154 = por %p152, %p153
    %p155 = scmp.ne.s32.totalorder %s141, %s142
    %p156 = scmp.eq.s32.totalorder %s19, 3
    %p157 = por %p155, %p156
    %p159 = scmp.ne.s32.totalorder %s142, %s158
    %p160 = scmp.eq.s32.totalorder %s19, 0
    %p161 = por %p159, %p160
    %s162 = ssub.s32 %s13, %s20
    %p163 = scmp.eq.s32.totalorder %s162, 0
    %s165 = sadd.s32 %s164, 1
    %s166 = scalar_select %p163, %s164, %s165
    %p169 = pneg %p163
    %p170 = scmp.eq.s32.totalorder %s13, 3
    %p171 = por %p169, %p170
    %p172 = scmp.ne.s32.totalorder %s164, %s167
    %p173 = scmp.eq.s32.totalorder %s13, 0
    %p174 = por %p172, %p173
    %p175 = scmp.ne.s32.totalorder %s164, %s167
    %p176 = scmp.eq.s32.totalorder %s18, 3
    %p177 = por %p175, %p176
    %p178 = scmp.ne.s32.totalorder %s167, %s168
    %p179 = scmp.eq.s32.totalorder %s18, 0
    %p180 = por %p178, %p179
    %p181 = scmp.ne.s32.totalorder %s167, %s168
    %p182 = scmp.eq.s32.totalorder %s19, 3
    %p183 = por %p181, %p182
    %p185 = scmp.ne.s32.totalorder %s168, %s184
    %p186 = scmp.eq.s32.totalorder %s19, 0
    %p187 = por %p185, %p186
    %p188 = scmp.le.s32.totalorder 1, %s13
    %p189 = scmp.lt.s32.totalorder %s13, 5
    %p190 = pnand %p188, %p189
    %p191 = pneg %p190
    // Predicated region
    $region9: #{conv2_1d_forward.3} parent=5 // pred_check
      _
    $region10: #{conv2_1d_forward.3} parent=5 // pred_check_branch
      %193 = sbr.rel (%p190) target = $region12
    $region11: #{conv2_1d_forward.3} parent=5 // pred_region
      %s194 = ssub.s32 %s13, 1
      // Predicated region
      $region13: #{conv2_1d_forward.3} parent=11 // pred_check
        %p195 = pneg %p60
      $region14: #{conv2_1d_forward.3} parent=11 // pred_check_branch
        %197 = sbr.rel (%p195) target = $region16
      $region15: #{conv2_1d_forward.3} parent=11 // pred_region
        _
      $region16: #{conv2_1d_forward.3} parent=11 // pred_fallthru
        _
      // Predicated region
      $region17: #{conv2_1d_forward.3} parent=11 // pred_check
        %p198 = pneg %p81
      $region18: #{conv2_1d_forward.3} parent=11 // pred_check_branch
        %200 = sbr.rel (%p198) target = $region20
      $region19: #{conv2_1d_forward.3} parent=11 // pred_region
        _
      $region20: #{conv2_1d_forward.3} parent=11 // pred_fallthru
        _
      // Predicated region
      $region21: #{conv2_1d_forward.3} parent=11 // pred_check
        %p201 = pneg %p102
      $region22: #{conv2_1d_forward.3} parent=11 // pred_check_branch
        %203 = sbr.rel (%p201) target = $region24
      $region23: #{conv2_1d_forward.3} parent=11 // pred_region
        _
      $region24: #{conv2_1d_forward.3} parent=11 // pred_fallthru
        _
    $region12: #{conv2_1d_forward.3} parent=5 // pred_fallthru
      _
    %p204 = scmp.lt.s32.totalorder %s13, 4
    // Predicated region
    $region25: #{conv2_1d_forward.3} parent=5 // pred_check
      %p205 = pneg %p204
    $region26: #{conv2_1d_forward.3} parent=5 // pred_check_branch
      %207 = sbr.rel (%p205) target = $region28
    $region27: #{conv2_1d_forward.3} parent=5 // pred_region
      // Predicated region
      $region29: #{conv2_1d_forward.3} parent=27 // pred_check
        %p208 = pneg %p33
      $region30: #{conv2_1d_forward.3} parent=27 // pred_check_branch
        %210 = sbr.rel (%p208) target = $region32
      $region31: #{conv2_1d_forward.3} parent=27 // pred_region
        %s211 = smul.u32 128, %s13
        %p212 = scmp.lt.s32.totalorder %s211, 511
        %s213 = scalar_select %p212, %s211, 511
        %s214 = smul.addr %s213, 8
        %s215 = scalar_lea.vmem %s0, %s214
        %s216 = smul.u32 128, %s13
      $region32: #{conv2_1d_forward.3} parent=27 // pred_fallthru
        _
    $region28: #{conv2_1d_forward.3} parent=5 // pred_fallthru
      _
    %p217 = scmp.le.s32.totalorder 1, %s13
    %p218 = scmp.lt.s32.totalorder %s13, 5
    %p219 = pnand %p217, %p218
    %p220 = pneg %p219
    // Predicated region
    $region33: #{conv2_1d_forward.3} parent=5 // pred_check
      _
    $region34: #{conv2_1d_forward.3} parent=5 // pred_check_branch
      %222 = sbr.rel (%p219) target = $region36
    $region35: #{conv2_1d_forward.3} parent=5 // pred_region
      %s223 = ssub.s32 %s13, 1
      %s224 = smul.u32 128, %s18
      %p225 = scmp.lt.s32.totalorder %s224, 511
      %s226 = scalar_select %p225, %s224, 511
      %s227 = smul.addr %s226, 8
      %s228 = scalar_lea.vmem %s0, %s227
      %p229 = pneg %p39
      %p230 = pneg %p36
      %p231 = pneg %p60
      %p232 = pneg %p57
      %p233 = pneg %p81
      %p234 = pneg %p78
      %p235 = pneg %p102
      %p236 = pneg %p99
      %p237 = pneg %p128
      %p238 = pneg %p125
      %s239 = smul.u32 128, %s18
      %p240 = scmp.lt.s32.totalorder %s239, 511
      %s241 = scalar_select %p240, %s239, 511
      %s242 = smul.addr %s241, 8
      %s243 = scalar_lea.vmem %s4, %s242
      %p244 = pneg %p154
      %p245 = pneg %p151
      %p246 = scmp.lt.s32.totalorder %s18, 3
      %s247 = scalar_select %p246, %s18, 3
      %s248 = smul.addr %s247, 8
      %s249 = scalar_lea.vmem %s5, %s248
      %p250 = pneg %p180
      %p251 = pneg %p177
      %p252 = scmp.lt.s32.totalorder %s18, 3
      %s253 = scalar_select %p252, %s18, 3
      %s254 = smul.addr %s253, 8
      %s255 = scalar_lea.vmem %s6, %s254
      %s256 = smul.u32 128, %s18
      %p257 = scmp.lt.s32.totalorder %s256, 511
      %s258 = scalar_select %p257, %s256, 511
      %s259 = smul.addr %s258, 8
      %s260 = scalar_lea.vmem %s0, %s259
      %s261 = smul.u32 128, %s18
      %s262 = smul.u32 128, %s18
      %p263 = scmp.lt.s32.totalorder %s262, 511
      %s264 = scalar_select %p263, %s262, 511
      %s265 = smul.addr %s264, 8
      %s266 = scalar_lea.vmem %s4, %s265
      %s267 = smul.u32 128, %s18
      %p268 = scmp.lt.s32.totalorder %s18, 3
      %s269 = scalar_select %p268, %s18, 3
      %s270 = smul.addr %s269, 8
      %s271 = scalar_lea.vmem %s5, %s270
      %p272 = scmp.lt.s32.totalorder %s18, 3
      %s273 = scalar_select %p272, %s18, 3
      %s274 = smul.addr %s273, 8
      %s275 = scalar_lea.vmem %s6, %s274
      %v276 = vld [vmem:[%s260] sm:$0xff]
      %v277 = vld [vmem:[%s260 + $0x8] sm:$0xff]
      %v278 = vld [vmem:[%s260 + $0x10] sm:$0xff]
      %v279 = vld [vmem:[%s260 + $0x18] sm:$0xff]
      %v280 = vld [vmem:[%s260 + $0x20] sm:$0xff]
      %v281 = vld [vmem:[%s260 + $0x28] sm:$0xff]
      %v282 = vld [vmem:[%s260 + $0x30] sm:$0xff]
      %v283 = vld [vmem:[%s260 + $0x38] sm:$0xff]
      %v284 = vld [vmem:[%s260 + $0x40] sm:$0xff]
      %v285 = vld [vmem:[%s260 + $0x48] sm:$0xff]
      %v286 = vld [vmem:[%s260 + $0x50] sm:$0xff]
      %v287 = vld [vmem:[%s260 + $0x58] sm:$0xff]
      %v288 = vld [vmem:[%s260 + $0x60] sm:$0xff]
      %v289 = vld [vmem:[%s260 + $0x68] sm:$0xff]
      %v290 = vld [vmem:[%s260 + $0x70] sm:$0xff]
      %v291 = vld [vmem:[%s260 + $0x78] sm:$0xff]
      %v292 = vld [vmem:[%s260 + $0x80] sm:$0xff]
      %v293 = vld [vmem:[%s260 + $0x88] sm:$0xff]
      %v294 = vld [vmem:[%s260 + $0x90] sm:$0xff]
      %v295 = vld [vmem:[%s260 + $0x98] sm:$0xff]
      %v296 = vld [vmem:[%s260 + $0xa0] sm:$0xff]
      %v297 = vld [vmem:[%s260 + $0xa8] sm:$0xff]
      %v298 = vld [vmem:[%s260 + $0xb0] sm:$0xff]
      %v299 = vld [vmem:[%s260 + $0xb8] sm:$0xff]
      %v300 = vld [vmem:[%s260 + $0xc0] sm:$0xff]
      %v301 = vld [vmem:[%s260 + $0xc8] sm:$0xff]
      %v302 = vld [vmem:[%s260 + $0xd0] sm:$0xff]
      %v303 = vld [vmem:[%s260 + $0xd8] sm:$0xff]
      %v304 = vld [vmem:[%s260 + $0xe0] sm:$0xff]
      %v305 = vld [vmem:[%s260 + $0xe8] sm:$0xff]
      %v306 = vld [vmem:[%s260 + $0xf0] sm:$0xff]
      %v307 = vld [vmem:[%s260 + $0xf8] sm:$0xff]
      %v308 = vld [vmem:[%s260 + $0x100] sm:$0xff]
      %v309 = vld [vmem:[%s260 + $0x108] sm:$0xff]
      %v310 = vld [vmem:[%s260 + $0x110] sm:$0xff]
      %v311 = vld [vmem:[%s260 + $0x118] sm:$0xff]
      %v312 = vld [vmem:[%s260 + $0x120] sm:$0xff]
      %v313 = vld [vmem:[%s260 + $0x128] sm:$0xff]
      %v314 = vld [vmem:[%s260 + $0x130] sm:$0xff]
      %v315 = vld [vmem:[%s260 + $0x138] sm:$0xff]
      %v316 = vld [vmem:[%s260 + $0x140] sm:$0xff]
      %v317 = vld [vmem:[%s260 + $0x148] sm:$0xff]
      %v318 = vld [vmem:[%s260 + $0x150] sm:$0xff]
      %v319 = vld [vmem:[%s260 + $0x158] sm:$0xff]
      %v320 = vld [vmem:[%s260 + $0x160] sm:$0xff]
      %v321 = vld [vmem:[%s260 + $0x168] sm:$0xff]
      %v322 = vld [vmem:[%s260 + $0x170] sm:$0xff]
      %v323 = vld [vmem:[%s260 + $0x178] sm:$0xff]
      %v324 = vld [vmem:[%s260 + $0x180] sm:$0xff]
      %v325 = vld [vmem:[%s260 + $0x188] sm:$0xff]
      %v326 = vld [vmem:[%s260 + $0x190] sm:$0xff]
      %v327 = vld [vmem:[%s260 + $0x198] sm:$0xff]
      %v328 = vld [vmem:[%s260 + $0x1a0] sm:$0xff]
      %v329 = vld [vmem:[%s260 + $0x1a8] sm:$0xff]
      %v330 = vld [vmem:[%s260 + $0x1b0] sm:$0xff]
      %v331 = vld [vmem:[%s260 + $0x1b8] sm:$0xff]
      %v332 = vld [vmem:[%s260 + $0x1c0] sm:$0xff]
      %v333 = vld [vmem:[%s260 + $0x1c8] sm:$0xff]
      %v334 = vld [vmem:[%s260 + $0x1d0] sm:$0xff]
      %v335 = vld [vmem:[%s260 + $0x1d8] sm:$0xff]
      %v336 = vld [vmem:[%s260 + $0x1e0] sm:$0xff]
      %v337 = vld [vmem:[%s260 + $0x1e8] sm:$0xff]
      %v338 = vld [vmem:[%s260 + $0x1f0] sm:$0xff]
      %v339 = vld [vmem:[%s260 + $0x1f8] sm:$0xff]
      %v340 = vld [vmem:[%s260 + $0x200] sm:$0xff]
      %v341 = vld [vmem:[%s260 + $0x208] sm:$0xff]
      %v342 = vld [vmem:[%s260 + $0x210] sm:$0xff]
      %v343 = vld [vmem:[%s260 + $0x218] sm:$0xff]
      %v344 = vld [vmem:[%s260 + $0x220] sm:$0xff]
      %v345 = vld [vmem:[%s260 + $0x228] sm:$0xff]
      %v346 = vld [vmem:[%s260 + $0x230] sm:$0xff]
      %v347 = vld [vmem:[%s260 + $0x238] sm:$0xff]
      %v348 = vld [vmem:[%s260 + $0x240] sm:$0xff]
      %v349 = vld [vmem:[%s260 + $0x248] sm:$0xff]
      %v350 = vld [vmem:[%s260 + $0x250] sm:$0xff]
      %v351 = vld [vmem:[%s260 + $0x258] sm:$0xff]
      %v352 = vld [vmem:[%s260 + $0x260] sm:$0xff]
      %v353 = vld [vmem:[%s260 + $0x268] sm:$0xff]
      %v354 = vld [vmem:[%s260 + $0x270] sm:$0xff]
      %v355 = vld [vmem:[%s260 + $0x278] sm:$0xff]
      %v356 = vld [vmem:[%s260 + $0x280] sm:$0xff]
      %v357 = vld [vmem:[%s260 + $0x288] sm:$0xff]
      %v358 = vld [vmem:[%s260 + $0x290] sm:$0xff]
      %v359 = vld [vmem:[%s260 + $0x298] sm:$0xff]
      %v360 = vld [vmem:[%s260 + $0x2a0] sm:$0xff]
      %v361 = vld [vmem:[%s260 + $0x2a8] sm:$0xff]
      %v362 = vld [vmem:[%s260 + $0x2b0] sm:$0xff]
      %v363 = vld [vmem:[%s260 + $0x2b8] sm:$0xff]
      %v364 = vld [vmem:[%s260 + $0x2c0] sm:$0xff]
      %v365 = vld [vmem:[%s260 + $0x2c8] sm:$0xff]
      %v366 = vld [vmem:[%s260 + $0x2d0] sm:$0xff]
      %v367 = vld [vmem:[%s260 + $0x2d8] sm:$0xff]
      %v368 = vld [vmem:[%s260 + $0x2e0] sm:$0xff]
      %v369 = vld [vmem:[%s260 + $0x2e8] sm:$0xff]
      %v370 = vld [vmem:[%s260 + $0x2f0] sm:$0xff]
      %v371 = vld [vmem:[%s260 + $0x2f8] sm:$0xff]
      %v372 = vld [vmem:[%s260 + $0x300] sm:$0xff]
      %v373 = vld [vmem:[%s260 + $0x308] sm:$0xff]
      %v374 = vld [vmem:[%s260 + $0x310] sm:$0xff]
      %v375 = vld [vmem:[%s260 + $0x318] sm:$0xff]
      %v376 = vld [vmem:[%s260 + $0x320] sm:$0xff]
      %v377 = vld [vmem:[%s260 + $0x328] sm:$0xff]
      %v378 = vld [vmem:[%s260 + $0x330] sm:$0xff]
      %v379 = vld [vmem:[%s260 + $0x338] sm:$0xff]
      %v380 = vld [vmem:[%s260 + $0x340] sm:$0xff]
      %v381 = vld [vmem:[%s260 + $0x348] sm:$0xff]
      %v382 = vld [vmem:[%s260 + $0x350] sm:$0xff]
      %v383 = vld [vmem:[%s260 + $0x358] sm:$0xff]
      %v384 = vld [vmem:[%s260 + $0x360] sm:$0xff]
      %v385 = vld [vmem:[%s260 + $0x368] sm:$0xff]
      %v386 = vld [vmem:[%s260 + $0x370] sm:$0xff]
      %v387 = vld [vmem:[%s260 + $0x378] sm:$0xff]
      %v388 = vld [vmem:[%s260 + $0x380] sm:$0xff]
      %v389 = vld [vmem:[%s260 + $0x388] sm:$0xff]
      %v390 = vld [vmem:[%s260 + $0x390] sm:$0xff]
      %v391 = vld [vmem:[%s260 + $0x398] sm:$0xff]
      %v392 = vld [vmem:[%s260 + $0x3a0] sm:$0xff]
      %v393 = vld [vmem:[%s260 + $0x3a8] sm:$0xff]
      %v394 = vld [vmem:[%s260 + $0x3b0] sm:$0xff]
      %v395 = vld [vmem:[%s260 + $0x3b8] sm:$0xff]
      %v396 = vld [vmem:[%s260 + $0x3c0] sm:$0xff]
      %v397 = vld [vmem:[%s260 + $0x3c8] sm:$0xff]
      %v398 = vld [vmem:[%s260 + $0x3d0] sm:$0xff]
      %v399 = vld [vmem:[%s260 + $0x3d8] sm:$0xff]
      %v400 = vld [vmem:[%s260 + $0x3e0] sm:$0xff]
      %v401 = vld [vmem:[%s260 + $0x3e8] sm:$0xff]
      %v402 = vld [vmem:[%s260 + $0x3f0] sm:$0xff]
      %v403 = vld [vmem:[%s260 + $0x3f8] sm:$0xff]
      %v404 = vld [vmem:[%s1] sm:$0x1]
      %v406 = vlaneseq
      %v407 = vshrl.u32 %v406, 7
      %v408 = vsub.s32 0, %v407
      %v409 = vrot.slane %v404, %v408
      %v411 = vmul.f32 %v276, %v409
      %v412 = vmul.f32 %v277, %v409
      %v413 = vmul.f32 %v278, %v409
      %v414 = vmul.f32 %v279, %v409
      %v415 = vmul.f32 %v280, %v409
      %v416 = vmul.f32 %v281, %v409
      %v417 = vmul.f32 %v282, %v409
      %v418 = vmul.f32 %v283, %v409
      %v419 = vmul.f32 %v284, %v409
      %v420 = vmul.f32 %v285, %v409
      %v421 = vmul.f32 %v286, %v409
      %v422 = vmul.f32 %v287, %v409
      %v423 = vmul.f32 %v288, %v409
      %v424 = vmul.f32 %v289, %v409
      %v425 = vmul.f32 %v290, %v409
      %v426 = vmul.f32 %v291, %v409
      %v427 = vmul.f32 %v292, %v409
      %v428 = vmul.f32 %v293, %v409
      %v429 = vmul.f32 %v294, %v409
      %v430 = vmul.f32 %v295, %v409
      %v431 = vmul.f32 %v296, %v409
      %v432 = vmul.f32 %v297, %v409
      %v433 = vmul.f32 %v298, %v409
      %v434 = vmul.f32 %v299, %v409
      %v435 = vmul.f32 %v300, %v409
      %v436 = vmul.f32 %v301, %v409
      %v437 = vmul.f32 %v302, %v409
      %v438 = vmul.f32 %v303, %v409
      %v439 = vmul.f32 %v304, %v409
      %v440 = vmul.f32 %v305, %v409
      %v441 = vmul.f32 %v306, %v409
      %v442 = vmul.f32 %v307, %v409
      %v443 = vmul.f32 %v308, %v409
      %v444 = vmul.f32 %v309, %v409
      %v445 = vmul.f32 %v310, %v409
      %v446 = vmul.f32 %v311, %v409
      %v447 = vmul.f32 %v312, %v409
      %v448 = vmul.f32 %v313, %v409
      %v449 = vmul.f32 %v314, %v409
      %v450 = vmul.f32 %v315, %v409
      %v451 = vmul.f32 %v316, %v409
      %v452 = vmul.f32 %v317, %v409
      %v453 = vmul.f32 %v318, %v409
      %v454 = vmul.f32 %v319, %v409
      %v455 = vmul.f32 %v320, %v409
      %v456 = vmul.f32 %v321, %v409
      %v457 = vmul.f32 %v322, %v409
      %v458 = vmul.f32 %v323, %v409
      %v459 = vmul.f32 %v324, %v409
      %v460 = vmul.f32 %v325, %v409
      %v461 = vmul.f32 %v326, %v409
      %v462 = vmul.f32 %v327, %v409
      %v463 = vmul.f32 %v328, %v409
      %v464 = vmul.f32 %v329, %v409
      %v465 = vmul.f32 %v330, %v409
      %v466 = vmul.f32 %v331, %v409
      %v467 = vmul.f32 %v332, %v409
      %v468 = vmul.f32 %v333, %v409
      %v469 = vmul.f32 %v334, %v409
      %v470 = vmul.f32 %v335, %v409
      %v471 = vmul.f32 %v336, %v409
      %v472 = vmul.f32 %v337, %v409
      %v473 = vmul.f32 %v338, %v409
      %v474 = vmul.f32 %v339, %v409
      %v475 = vmul.f32 %v340, %v409
      %v476 = vmul.f32 %v341, %v409
      %v477 = vmul.f32 %v342, %v409
      %v478 = vmul.f32 %v343, %v409
      %v479 = vmul.f32 %v344, %v409
      %v480 = vmul.f32 %v345, %v409
      %v481 = vmul.f32 %v346, %v409
      %v482 = vmul.f32 %v347, %v409
      %v483 = vmul.f32 %v348, %v409
      %v484 = vmul.f32 %v349, %v409
      %v485 = vmul.f32 %v350, %v409
      %v486 = vmul.f32 %v351, %v409
      %v487 = vmul.f32 %v352, %v409
      %v488 = vmul.f32 %v353, %v409
      %v489 = vmul.f32 %v354, %v409
      %v490 = vmul.f32 %v355, %v409
      %v491 = vmul.f32 %v356, %v409
      %v492 = vmul.f32 %v357, %v409
      %v493 = vmul.f32 %v358, %v409
      %v494 = vmul.f32 %v359, %v409
      %v495 = vmul.f32 %v360, %v409
      %v496 = vmul.f32 %v361, %v409
      %v497 = vmul.f32 %v362, %v409
      %v498 = vmul.f32 %v363, %v409
      %v499 = vmul.f32 %v364, %v409
      %v500 = vmul.f32 %v365, %v409
      %v501 = vmul.f32 %v366, %v409
      %v502 = vmul.f32 %v367, %v409
      %v503 = vmul.f32 %v368, %v409
      %v504 = vmul.f32 %v369, %v409
      %v505 = vmul.f32 %v370, %v409
      %v506 = vmul.f32 %v371, %v409
      %v507 = vmul.f32 %v372, %v409
      %v508 = vmul.f32 %v373, %v409
      %v509 = vmul.f32 %v374, %v409
      %v510 = vmul.f32 %v375, %v409
      %v511 = vmul.f32 %v376, %v409
      %v512 = vmul.f32 %v377, %v409
      %v513 = vmul.f32 %v378, %v409
      %v514 = vmul.f32 %v379, %v409
      %v515 = vmul.f32 %v380, %v409
      %v516 = vmul.f32 %v381, %v409
      %v517 = vmul.f32 %v382, %v409
      %v518 = vmul.f32 %v383, %v409
      %v519 = vmul.f32 %v384, %v409
      %v520 = vmul.f32 %v385, %v409
      %v521 = vmul.f32 %v386, %v409
      %v522 = vmul.f32 %v387, %v409
      %v523 = vmul.f32 %v388, %v409
      %v524 = vmul.f32 %v389, %v409
      %v525 = vmul.f32 %v390, %v409
      %v526 = vmul.f32 %v391, %v409
      %v527 = vmul.f32 %v392, %v409
      %v528 = vmul.f32 %v393, %v409
      %v529 = vmul.f32 %v394, %v409
      %v530 = vmul.f32 %v395, %v409
      %v531 = vmul.f32 %v396, %v409
      %v532 = vmul.f32 %v397, %v409
      %v533 = vmul.f32 %v398, %v409
      %v534 = vmul.f32 %v399, %v409
      %v535 = vmul.f32 %v400, %v409
      %v536 = vmul.f32 %v401, %v409
      %v537 = vmul.f32 %v402, %v409
      %v538 = vmul.f32 %v403, %v409
      %v539 = vld [vmem:[%s2] sm:$0x1]
      %v541 = vlaneseq
      %v542 = vshrl.u32 %v541, 7
      %v543 = vsub.s32 0, %v542
      %v544 = vrot.slane %v539, %v543
      %v546 = vadd.f32 %v411, %v544
      %v547 = vadd.f32 %v412, %v544
      %v548 = vadd.f32 %v413, %v544
      %v549 = vadd.f32 %v414, %v544
      %v550 = vadd.f32 %v415, %v544
      %v551 = vadd.f32 %v416, %v544
      %v552 = vadd.f32 %v417, %v544
      %v553 = vadd.f32 %v418, %v544
      %v554 = vadd.f32 %v419, %v544
      %v555 = vadd.f32 %v420, %v544
      %v556 = vadd.f32 %v421, %v544
      %v557 = vadd.f32 %v422, %v544
      %v558 = vadd.f32 %v423, %v544
      %v559 = vadd.f32 %v424, %v544
      %v560 = vadd.f32 %v425, %v544
      %v561 = vadd.f32 %v426, %v544
      %v562 = vadd.f32 %v427, %v544
      %v563 = vadd.f32 %v428, %v544
      %v564 = vadd.f32 %v429, %v544
      %v565 = vadd.f32 %v430, %v544
      %v566 = vadd.f32 %v431, %v544
      %v567 = vadd.f32 %v432, %v544
      %v568 = vadd.f32 %v433, %v544
      %v569 = vadd.f32 %v434, %v544
      %v570 = vadd.f32 %v435, %v544
      %v571 = vadd.f32 %v436, %v544
      %v572 = vadd.f32 %v437, %v544
      %v573 = vadd.f32 %v438, %v544
      %v574 = vadd.f32 %v439, %v544
      %v575 = vadd.f32 %v440, %v544
      %v576 = vadd.f32 %v441, %v544
      %v577 = vadd.f32 %v442, %v544
      %v578 = vadd.f32 %v443, %v544
      %v579 = vadd.f32 %v444, %v544
      %v580 = vadd.f32 %v445, %v544
      %v581 = vadd.f32 %v446, %v544
      %v582 = vadd.f32 %v447, %v544
      %v583 = vadd.f32 %v448, %v544
      %v584 = vadd.f32 %v449, %v544
      %v585 = vadd.f32 %v450, %v544
      %v586 = vadd.f32 %v451, %v544
      %v587 = vadd.f32 %v452, %v544
      %v588 = vadd.f32 %v453, %v544
      %v589 = vadd.f32 %v454, %v544
      %v590 = vadd.f32 %v455, %v544
      %v591 = vadd.f32 %v456, %v544
      %v592 = vadd.f32 %v457, %v544
      %v593 = vadd.f32 %v458, %v544
      %v594 = vadd.f32 %v459, %v544
      %v595 = vadd.f32 %v460, %v544
      %v596 = vadd.f32 %v461, %v544
      %v597 = vadd.f32 %v462, %v544
      %v598 = vadd.f32 %v463, %v544
      %v599 = vadd.f32 %v464, %v544
      %v600 = vadd.f32 %v465, %v544
      %v601 = vadd.f32 %v466, %v544
      %v602 = vadd.f32 %v467, %v544
      %v603 = vadd.f32 %v468, %v544
      %v604 = vadd.f32 %v469, %v544
      %v605 = vadd.f32 %v470, %v544
      %v606 = vadd.f32 %v471, %v544
      %v607 = vadd.f32 %v472, %v544
      %v608 = vadd.f32 %v473, %v544
      %v609 = vadd.f32 %v474, %v544
      %v610 = vadd.f32 %v475, %v544
      %v611 = vadd.f32 %v476, %v544
      %v612 = vadd.f32 %v477, %v544
      %v613 = vadd.f32 %v478, %v544
      %v614 = vadd.f32 %v479, %v544
      %v615 = vadd.f32 %v480, %v544
      %v616 = vadd.f32 %v481, %v544
      %v617 = vadd.f32 %v482, %v544
      %v618 = vadd.f32 %v483, %v544
      %v619 = vadd.f32 %v484, %v544
      %v620 = vadd.f32 %v485, %v544
      %v621 = vadd.f32 %v486, %v544
      %v622 = vadd.f32 %v487, %v544
      %v623 = vadd.f32 %v488, %v544
      %v624 = vadd.f32 %v489, %v544
      %v625 = vadd.f32 %v490, %v544
      %v626 = vadd.f32 %v491, %v544
      %v627 = vadd.f32 %v492, %v544
      %v628 = vadd.f32 %v493, %v544
      %v629 = vadd.f32 %v494, %v544
      %v630 = vadd.f32 %v495, %v544
      %v631 = vadd.f32 %v496, %v544
      %v632 = vadd.f32 %v497, %v544
      %v633 = vadd.f32 %v498, %v544
      %v634 = vadd.f32 %v499, %v544
      %v635 = vadd.f32 %v500, %v544
      %v636 = vadd.f32 %v501, %v544
      %v637 = vadd.f32 %v502, %v544
      %v638 = vadd.f32 %v503, %v544
      %v639 = vadd.f32 %v504, %v544
      %v640 = vadd.f32 %v505, %v544
      %v641 = vadd.f32 %v506, %v544
      %v642 = vadd.f32 %v507, %v544
      %v643 = vadd.f32 %v508, %v544
      %v644 = vadd.f32 %v509, %v544
      %v645 = vadd.f32 %v510, %v544
      %v646 = vadd.f32 %v511, %v544
      %v647 = vadd.f32 %v512, %v544
      %v648 = vadd.f32 %v513, %v544
      %v649 = vadd.f32 %v514, %v544
      %v650 = vadd.f32 %v515, %v544
      %v651 = vadd.f32 %v516, %v544
      %v652 = vadd.f32 %v517, %v544
      %v653 = vadd.f32 %v518, %v544
      %v654 = vadd.f32 %v519, %v544
      %v655 = vadd.f32 %v520, %v544
      %v656 = vadd.f32 %v521, %v544
      %v657 = vadd.f32 %v522, %v544
      %v658 = vadd.f32 %v523, %v544
      %v659 = vadd.f32 %v524, %v544
      %v660 = vadd.f32 %v525, %v544
      %v661 = vadd.f32 %v526, %v544
      %v662 = vadd.f32 %v527, %v544
      %v663 = vadd.f32 %v528, %v544
      %v664 = vadd.f32 %v529, %v544
      %v665 = vadd.f32 %v530, %v544
      %v666 = vadd.f32 %v531, %v544
      %v667 = vadd.f32 %v532, %v544
      %v668 = vadd.f32 %v533, %v544
      %v669 = vadd.f32 %v534, %v544
      %v670 = vadd.f32 %v535, %v544
      %v671 = vadd.f32 %v536, %v544
      %v672 = vadd.f32 %v537, %v544
      %v673 = vadd.f32 %v538, %v544
      %v674 = vmax.f32 %v546, 0.0
      %v675 = vmax.f32 %v547, 0.0
      %v676 = vmax.f32 %v548, 0.0
      %v677 = vmax.f32 %v549, 0.0
      %v678 = vmax.f32 %v550, 0.0
      %v679 = vmax.f32 %v551, 0.0
      %v680 = vmax.f32 %v552, 0.0
      %v681 = vmax.f32 %v553, 0.0
      %v682 = vmax.f32 %v554, 0.0
      %v683 = vmax.f32 %v555, 0.0
      %v684 = vmax.f32 %v556, 0.0
      %v685 = vmax.f32 %v557, 0.0
      %v686 = vmax.f32 %v558, 0.0
      %v687 = vmax.f32 %v559, 0.0
      %v688 = vmax.f32 %v560, 0.0
      %v689 = vmax.f32 %v561, 0.0
      %v690 = vmax.f32 %v562, 0.0
      %v691 = vmax.f32 %v563, 0.0
      %v692 = vmax.f32 %v564, 0.0
      %v693 = vmax.f32 %v565, 0.0
      %v694 = vmax.f32 %v566, 0.0
      %v695 = vmax.f32 %v567, 0.0
      %v696 = vmax.f32 %v568, 0.0
      %v697 = vmax.f32 %v569, 0.0
      %v698 = vmax.f32 %v570, 0.0
      %v699 = vmax.f32 %v571, 0.0
      %v700 = vmax.f32 %v572, 0.0
      %v701 = vmax.f32 %v573, 0.0
      %v702 = vmax.f32 %v574, 0.0
      %v703 = vmax.f32 %v575, 0.0
      %v704 = vmax.f32 %v576, 0.0
      %v705 = vmax.f32 %v577, 0.0
      %v706 = vmax.f32 %v578, 0.0
      %v707 = vmax.f32 %v579, 0.0
      %v708 = vmax.f32 %v580, 0.0
      %v709 = vmax.f32 %v581, 0.0
      %v710 = vmax.f32 %v582, 0.0
      %v711 = vmax.f32 %v583, 0.0
      %v712 = vmax.f32 %v584, 0.0
      %v713 = vmax.f32 %v585, 0.0
      %v714 = vmax.f32 %v586, 0.0
      %v715 = vmax.f32 %v587, 0.0
      %v716 = vmax.f32 %v588, 0.0
      %v717 = vmax.f32 %v589, 0.0
      %v718 = vmax.f32 %v590, 0.0
      %v719 = vmax.f32 %v591, 0.0
      %v720 = vmax.f32 %v592, 0.0
      %v721 = vmax.f32 %v593, 0.0
      %v722 = vmax.f32 %v594, 0.0
      %v723 = vmax.f32 %v595, 0.0
      %v724 = vmax.f32 %v596, 0.0
      %v725 = vmax.f32 %v597, 0.0
      %v726 = vmax.f32 %v598, 0.0
      %v727 = vmax.f32 %v599, 0.0
      %v728 = vmax.f32 %v600, 0.0
      %v729 = vmax.f32 %v601, 0.0
      %v730 = vmax.f32 %v602, 0.0
      %v731 = vmax.f32 %v603, 0.0
      %v732 = vmax.f32 %v604, 0.0
      %v733 = vmax.f32 %v605, 0.0
      %v734 = vmax.f32 %v606, 0.0
      %v735 = vmax.f32 %v607, 0.0
      %v736 = vmax.f32 %v608, 0.0
      %v737 = vmax.f32 %v609, 0.0
      %v738 = vmax.f32 %v610, 0.0
      %v739 = vmax.f32 %v611, 0.0
      %v740 = vmax.f32 %v612, 0.0
      %v741 = vmax.f32 %v613, 0.0
      %v742 = vmax.f32 %v614, 0.0
      %v743 = vmax.f32 %v615, 0.0
      %v744 = vmax.f32 %v616, 0.0
      %v745 = vmax.f32 %v617, 0.0
      %v746 = vmax.f32 %v618, 0.0
      %v747 = vmax.f32 %v619, 0.0
      %v748 = vmax.f32 %v620, 0.0
      %v749 = vmax.f32 %v621, 0.0
      %v750 = vmax.f32 %v622, 0.0
      %v751 = vmax.f32 %v623, 0.0
      %v752 = vmax.f32 %v624, 0.0
      %v753 = vmax.f32 %v625, 0.0
      %v754 = vmax.f32 %v626, 0.0
      %v755 = vmax.f32 %v627, 0.0
      %v756 = vmax.f32 %v628, 0.0
      %v757 = vmax.f32 %v629, 0.0
      %v758 = vmax.f32 %v630, 0.0
      %v759 = vmax.f32 %v631, 0.0
      %v760 = vmax.f32 %v632, 0.0
      %v761 = vmax.f32 %v633, 0.0
      %v762 = vmax.f32 %v634, 0.0
      %v763 = vmax.f32 %v635, 0.0
      %v764 = vmax.f32 %v636, 0.0
      %v765 = vmax.f32 %v637, 0.0
      %v766 = vmax.f32 %v638, 0.0
      %v767 = vmax.f32 %v639, 0.0
      %v768 = vmax.f32 %v640, 0.0
      %v769 = vmax.f32 %v641, 0.0
      %v770 = vmax.f32 %v642, 0.0
      %v771 = vmax.f32 %v643, 0.0
      %v772 = vmax.f32 %v644, 0.0
      %v773 = vmax.f32 %v645, 0.0
      %v774 = vmax.f32 %v646, 0.0
      %v775 = vmax.f32 %v647, 0.0
      %v776 = vmax.f32 %v648, 0.0
      %v777 = vmax.f32 %v649, 0.0
      %v778 = vmax.f32 %v650, 0.0
      %v779 = vmax.f32 %v651, 0.0
      %v780 = vmax.f32 %v652, 0.0
      %v781 = vmax.f32 %v653, 0.0
      %v782 = vmax.f32 %v654, 0.0
      %v783 = vmax.f32 %v655, 0.0
      %v784 = vmax.f32 %v656, 0.0
      %v785 = vmax.f32 %v657, 0.0
      %v786 = vmax.f32 %v658, 0.0
      %v787 = vmax.f32 %v659, 0.0
      %v788 = vmax.f32 %v660, 0.0
      %v789 = vmax.f32 %v661, 0.0
      %v790 = vmax.f32 %v662, 0.0
      %v791 = vmax.f32 %v663, 0.0
      %v792 = vmax.f32 %v664, 0.0
      %v793 = vmax.f32 %v665, 0.0
      %v794 = vmax.f32 %v666, 0.0
      %v795 = vmax.f32 %v667, 0.0
      %v796 = vmax.f32 %v668, 0.0
      %v797 = vmax.f32 %v669, 0.0
      %v798 = vmax.f32 %v670, 0.0
      %v799 = vmax.f32 %v671, 0.0
      %v800 = vmax.f32 %v672, 0.0
      %v801 = vmax.f32 %v673, 0.0
      %s802 = smul.u32 %s18, 1024
      %v803 = vlaneseq
      %v804 = vshrl.u32 %v803, 7
      %v805 = vadd.s32 %v804, 8
      %v806 = vadd.s32 %v804, 16
      %v807 = vadd.s32 %v804, 24
      %v808 = vadd.s32 %v804, 32
      %v809 = vadd.s32 %v804, 40
      %v810 = vadd.s32 %v804, 48
      %v811 = vadd.s32 %v804, 56
      %v812 = vadd.s32 %v804, 64
      %v813 = vadd.s32 %v804, 72
      %v814 = vadd.s32 %v804, 80
      %v815 = vadd.s32 %v804, 88
      %v816 = vadd.s32 %v804, 96
      %v817 = vadd.s32 %v804, 104
      %v818 = vadd.s32 %v804, 112
      %v819 = vadd.s32 %v804, 120
      %v820 = vadd.s32 %v804, 128
      %v821 = vadd.s32 %v804, 136
      %v822 = vadd.s32 %v804, 144
      %v823 = vadd.s32 %v804, 152
      %v824 = vadd.s32 %v804, 160
      %v825 = vadd.s32 %v804, 168
      %v826 = vadd.s32 %v804, 176
      %v827 = vadd.s32 %v804, 184
      %v828 = vadd.s32 %v804, 192
      %v829 = vadd.s32 %v804, 200
      %v830 = vadd.s32 %v804, 208
      %v831 = vadd.s32 %v804, 216
      %v832 = vadd.s32 %v804, 224
      %v833 = vadd.s32 %v804, 232
      %v834 = vadd.s32 %v804, 240
      %v835 = vadd.s32 %v804, 248
      %v836 = vadd.s32 %v804, 256
      %v837 = vadd.s32 %v804, 264
      %v838 = vadd.s32 %v804, 272
      %v839 = vadd.s32 %v804, 280
      %v840 = vadd.s32 %v804, 288
      %v841 = vadd.s32 %v804, 296
      %v842 = vadd.s32 %v804, 304
      %v843 = vadd.s32 %v804, 312
      %v844 = vadd.s32 %v804, 320
      %v845 = vadd.s32 %v804, 328
      %v846 = vadd.s32 %v804, 336
      %v847 = vadd.s32 %v804, 344
      %v848 = vadd.s32 %v804, 352
      %v849 = vadd.s32 %v804, 360
      %v850 = vadd.s32 %v804, 368
      %v851 = vadd.s32 %v804, 376
      %v852 = vadd.s32 %v804, 384
      %v853 = vadd.s32 %v804, 392
      %v854 = vadd.s32 %v804, 400
      %v855 = vadd.s32 %v804, 408
      %v856 = vadd.s32 %v804, 416
      %v857 = vadd.s32 %v804, 424
      %v858 = vadd.s32 %v804, 432
      %v859 = vadd.s32 %v804, 440
      %v860 = vadd.s32 %v804, 448
      %v861 = vadd.s32 %v804, 456
      %v862 = vadd.s32 %v804, 464
      %v863 = vadd.s32 %v804, 472
      %v864 = vadd.s32 %v804, 480
      %v865 = vadd.s32 %v804, 488
      %v866 = vadd.s32 %v804, 496
      %v867 = vadd.s32 %v804, 504
      %v868 = vadd.s32 %v804, 512
      %v869 = vadd.s32 %v804, 520
      %v870 = vadd.s32 %v804, 528
      %v871 = vadd.s32 %v804, 536
      %v872 = vadd.s32 %v804, 544
      %v873 = vadd.s32 %v804, 552
      %v874 = vadd.s32 %v804, 560
      %v875 = vadd.s32 %v804, 568
      %v876 = vadd.s32 %v804, 576
      %v877 = vadd.s32 %v804, 584
      %v878 = vadd.s32 %v804, 592
      %v879 = vadd.s32 %v804, 600
      %v880 = vadd.s32 %v804, 608
      %v881 = vadd.s32 %v804, 616
      %v882 = vadd.s32 %v804, 624
      %v883 = vadd.s32 %v804, 632
      %v884 = vadd.s32 %v804, 640
      %v885 = vadd.s32 %v804, 648
      %v886 = vadd.s32 %v804, 656
      %v887 = vadd.s32 %v804, 664
      %v888 = vadd.s32 %v804, 672
      %v889 = vadd.s32 %v804, 680
      %v890 = vadd.s32 %v804, 688
      %v891 = vadd.s32 %v804, 696
      %v892 = vadd.s32 %v804, 704
      %v893 = vadd.s32 %v804, 712
      %v894 = vadd.s32 %v804, 720
      %v895 = vadd.s32 %v804, 728
      %v896 = vadd.s32 %v804, 736
      %v897 = vadd.s32 %v804, 744
      %v898 = vadd.s32 %v804, 752
      %v899 = vadd.s32 %v804, 760
      %v900 = vadd.s32 %v804, 768
      %v901 = vadd.s32 %v804, 776
      %v902 = vadd.s32 %v804, 784
      %v903 = vadd.s32 %v804, 792
      %v904 = vadd.s32 %v804, 800
      %v905 = vadd.s32 %v804, 808
      %v906 = vadd.s32 %v804, 816
      %v907 = vadd.s32 %v804, 824
      %v908 = vadd.s32 %v804, 832
      %v909 = vadd.s32 %v804, 840
      %v910 = vadd.s32 %v804, 848
      %v911 = vadd.s32 %v804, 856
      %v912 = vadd.s32 %v804, 864
      %v913 = vadd.s32 %v804, 872
      %v914 = vadd.s32 %v804, 880
      %v915 = vadd.s32 %v804, 888
      %v916 = vadd.s32 %v804, 896
      %v917 = vadd.s32 %v804, 904
      %v918 = vadd.s32 %v804, 912
      %v919 = vadd.s32 %v804, 920
      %v920 = vadd.s32 %v804, 928
      %v921 = vadd.s32 %v804, 936
      %v922 = vadd.s32 %v804, 944
      %v923 = vadd.s32 %v804, 952
      %v924 = vadd.s32 %v804, 960
      %v925 = vadd.s32 %v804, 968
      %v926 = vadd.s32 %v804, 976
      %v927 = vadd.s32 %v804, 984
      %v928 = vadd.s32 %v804, 992
      %v929 = vadd.s32 %v804, 1000
      %v930 = vadd.s32 %v804, 1008
      %v931 = vadd.s32 %v804, 1016
      %v932 = vstv %s802
      %v933 = vadd.s32 %v932, %v804
      %v934 = vadd.s32 %v932, %v805
      %v935 = vadd.s32 %v932, %v806
      %v936 = vadd.s32 %v932, %v807
      %v937 = vadd.s32 %v932, %v808
      %v938 = vadd.s32 %v932, %v809
      %v939 = vadd.s32 %v932, %v810
      %v940 = vadd.s32 %v932, %v811
      %v941 = vadd.s32 %v932, %v812
      %v942 = vadd.s32 %v932, %v813
      %v943 = vadd.s32 %v932, %v814
      %v944 = vadd.s32 %v932, %v815
      %v945 = vadd.s32 %v932, %v816
      %v946 = vadd.s32 %v932, %v817
      %v947 = vadd.s32 %v932, %v818
      %v948 = vadd.s32 %v932, %v819
      %v949 = vadd.s32 %v932, %v820
      %v950 = vadd.s32 %v932, %v821
      %v951 = vadd.s32 %v932, %v822
      %v952 = vadd.s32 %v932, %v823
      %v953 = vadd.s32 %v932, %v824
      %v954 = vadd.s32 %v932, %v825
      %v955 = vadd.s32 %v932, %v826
      %v956 = vadd.s32 %v932, %v827
      %v957 = vadd.s32 %v932, %v828
      %v958 = vadd.s32 %v932, %v829
      %v959 = vadd.s32 %v932, %v830
      %v960 = vadd.s32 %v932, %v831
      %v961 = vadd.s32 %v932, %v832
      %v962 = vadd.s32 %v932, %v833
      %v963 = vadd.s32 %v932, %v834
      %v964 = vadd.s32 %v932, %v835
      %v965 = vadd.s32 %v932, %v836
      %v966 = vadd.s32 %v932, %v837
      %v967 = vadd.s32 %v932, %v838
      %v968 = vadd.s32 %v932, %v839
      %v969 = vadd.s32 %v932, %v840
      %v970 = vadd.s32 %v932, %v841
      %v971 = vadd.s32 %v932, %v842
      %v972 = vadd.s32 %v932, %v843
      %v973 = vadd.s32 %v932, %v844
      %v974 = vadd.s32 %v932, %v845
      %v975 = vadd.s32 %v932, %v846
      %v976 = vadd.s32 %v932, %v847
      %v977 = vadd.s32 %v932, %v848
      %v978 = vadd.s32 %v932, %v849
      %v979 = vadd.s32 %v932, %v850
      %v980 = vadd.s32 %v932, %v851
      %v981 = vadd.s32 %v932, %v852
      %v982 = vadd.s32 %v932, %v853
      %v983 = vadd.s32 %v932, %v854
      %v984 = vadd.s32 %v932, %v855
      %v985 = vadd.s32 %v932, %v856
      %v986 = vadd.s32 %v932, %v857
      %v987 = vadd.s32 %v932, %v858
      %v988 = vadd.s32 %v932, %v859
      %v989 = vadd.s32 %v932, %v860
      %v990 = vadd.s32 %v932, %v861
      %v991 = vadd.s32 %v932, %v862
      %v992 = vadd.s32 %v932, %v863
      %v993 = vadd.s32 %v932, %v864
      %v994 = vadd.s32 %v932, %v865
      %v995 = vadd.s32 %v932, %v866
      %v996 = vadd.s32 %v932, %v867
      %v997 = vadd.s32 %v932, %v868
      %v998 = vadd.s32 %v932, %v869
      %v999 = vadd.s32 %v932, %v870
      %v1000 = vadd.s32 %v932, %v871
      %v1001 = vadd.s32 %v932, %v872
      %v1002 = vadd.s32 %v932, %v873
      %v1003 = vadd.s32 %v932, %v874
      %v1004 = vadd.s32 %v932, %v875
      %v1005 = vadd.s32 %v932, %v876
      %v1006 = vadd.s32 %v932, %v877
      %v1007 = vadd.s32 %v932, %v878
      %v1008 = vadd.s32 %v932, %v879
      %v1009 = vadd.s32 %v932, %v880
      %v1010 = vadd.s32 %v932, %v881
      %v1011 = vadd.s32 %v932, %v882
      %v1012 = vadd.s32 %v932, %v883
      %v1013 = vadd.s32 %v932, %v884
      %v1014 = vadd.s32 %v932, %v885
      %v1015 = vadd.s32 %v932, %v886
      %v1016 = vadd.s32 %v932, %v887
      %v1017 = vadd.s32 %v932, %v888
      %v1018 = vadd.s32 %v932, %v889
      %v1019 = vadd.s32 %v932, %v890
      %v1020 = vadd.s32 %v932, %v891
      %v1021 = vadd.s32 %v932, %v892
      %v1022 = vadd.s32 %v932, %v893
      %v1023 = vadd.s32 %v932, %v894
      %v1024 = vadd.s32 %v932, %v895
      %v1025 = vadd.s32 %v932, %v896
      %v1026 = vadd.s32 %v932, %v897
      %v1027 = vadd.s32 %v932, %v898
      %v1028 = vadd.s32 %v932, %v899
      %v1029 = vadd.s32 %v932, %v900
      %v1030 = vadd.s32 %v932, %v901
      %v1031 = vadd.s32 %v932, %v902
      %v1032 = vadd.s32 %v932, %v903
      %v1033 = vadd.s32 %v932, %v904
      %v1034 = vadd.s32 %v932, %v905
      %v1035 = vadd.s32 %v932, %v906
      %v1036 = vadd.s32 %v932, %v907
      %v1037 = vadd.s32 %v932, %v908
      %v1038 = vadd.s32 %v932, %v909
      %v1039 = vadd.s32 %v932, %v910
      %v1040 = vadd.s32 %v932, %v911
      %v1041 = vadd.s32 %v932, %v912
      %v1042 = vadd.s32 %v932, %v913
      %v1043 = vadd.s32 %v932, %v914
      %v1044 = vadd.s32 %v932, %v915
      %v1045 = vadd.s32 %v932, %v916
      %v1046 = vadd.s32 %v932, %v917
      %v1047 = vadd.s32 %v932, %v918
      %v1048 = vadd.s32 %v932, %v919
      %v1049 = vadd.s32 %v932, %v920
      %v1050 = vadd.s32 %v932, %v921
      %v1051 = vadd.s32 %v932, %v922
      %v1052 = vadd.s32 %v932, %v923
      %v1053 = vadd.s32 %v932, %v924
      %v1054 = vadd.s32 %v932, %v925
      %v1055 = vadd.s32 %v932, %v926
      %v1056 = vadd.s32 %v932, %v927
      %v1057 = vadd.s32 %v932, %v928
      %v1058 = vadd.s32 %v932, %v929
      %v1059 = vadd.s32 %v932, %v930
      %v1060 = vadd.s32 %v932, %v931
      %vm1061 = vcmp.lt.s32.totalorder %v933, 4096
      %vm1062 = vcmp.lt.s32.totalorder %v934, 4096
      %vm1063 = vcmp.lt.s32.totalorder %v935, 4096
      %vm1064 = vcmp.lt.s32.totalorder %v936, 4096
      %vm1065 = vcmp.lt.s32.totalorder %v937, 4096
      %vm1066 = vcmp.lt.s32.totalorder %v938, 4096
      %vm1067 = vcmp.lt.s32.totalorder %v939, 4096
      %vm1068 = vcmp.lt.s32.totalorder %v940, 4096
      %vm1069 = vcmp.lt.s32.totalorder %v941, 4096
      %vm1070 = vcmp.lt.s32.totalorder %v942, 4096
      %vm1071 = vcmp.lt.s32.totalorder %v943, 4096
      %vm1072 = vcmp.lt.s32.totalorder %v944, 4096
      %vm1073 = vcmp.lt.s32.totalorder %v945, 4096
      %vm1074 = vcmp.lt.s32.totalorder %v946, 4096
      %vm1075 = vcmp.lt.s32.totalorder %v947, 4096
      %vm1076 = vcmp.lt.s32.totalorder %v948, 4096
      %vm1077 = vcmp.lt.s32.totalorder %v949, 4096
      %vm1078 = vcmp.lt.s32.totalorder %v950, 4096
      %vm1079 = vcmp.lt.s32.totalorder %v951, 4096
      %vm1080 = vcmp.lt.s32.totalorder %v952, 4096
      %vm1081 = vcmp.lt.s32.totalorder %v953, 4096
      %vm1082 = vcmp.lt.s32.totalorder %v954, 4096
      %vm1083 = vcmp.lt.s32.totalorder %v955, 4096
      %vm1084 = vcmp.lt.s32.totalorder %v956, 4096
      %vm1085 = vcmp.lt.s32.totalorder %v957, 4096
      %vm1086 = vcmp.lt.s32.totalorder %v958, 4096
      %vm1087 = vcmp.lt.s32.totalorder %v959, 4096
      %vm1088 = vcmp.lt.s32.totalorder %v960, 4096
      %vm1089 = vcmp.lt.s32.totalorder %v961, 4096
      %vm1090 = vcmp.lt.s32.totalorder %v962, 4096
      %vm1091 = vcmp.lt.s32.totalorder %v963, 4096
      %vm1092 = vcmp.lt.s32.totalorder %v964, 4096
      %vm1093 = vcmp.lt.s32.totalorder %v965, 4096
      %vm1094 = vcmp.lt.s32.totalorder %v966, 4096
      %vm1095 = vcmp.lt.s32.totalorder %v967, 4096
      %vm1096 = vcmp.lt.s32.totalorder %v968, 4096
      %vm1097 = vcmp.lt.s32.totalorder %v969, 4096
      %vm1098 = vcmp.lt.s32.totalorder %v970, 4096
      %vm1099 = vcmp.lt.s32.totalorder %v971, 4096
      %vm1100 = vcmp.lt.s32.totalorder %v972, 4096
      %vm1101 = vcmp.lt.s32.totalorder %v973, 4096
      %vm1102 = vcmp.lt.s32.totalorder %v974, 4096
      %vm1103 = vcmp.lt.s32.totalorder %v975, 4096
      %vm1104 = vcmp.lt.s32.totalorder %v976, 4096
      %vm1105 = vcmp.lt.s32.totalorder %v977, 4096
      %vm1106 = vcmp.lt.s32.totalorder %v978, 4096
      %vm1107 = vcmp.lt.s32.totalorder %v979, 4096
      %vm1108 = vcmp.lt.s32.totalorder %v980, 4096
      %vm1109 = vcmp.lt.s32.totalorder %v981, 4096
      %vm1110 = vcmp.lt.s32.totalorder %v982, 4096
      %vm1111 = vcmp.lt.s32.totalorder %v983, 4096
      %vm1112 = vcmp.lt.s32.totalorder %v984, 4096
      %vm1113 = vcmp.lt.s32.totalorder %v985, 4096
      %vm1114 = vcmp.lt.s32.totalorder %v986, 4096
      %vm1115 = vcmp.lt.s32.totalorder %v987, 4096
      %vm1116 = vcmp.lt.s32.totalorder %v988, 4096
      %vm1117 = vcmp.lt.s32.totalorder %v989, 4096
      %vm1118 = vcmp.lt.s32.totalorder %v990, 4096
      %vm1119 = vcmp.lt.s32.totalorder %v991, 4096
      %vm1120 = vcmp.lt.s32.totalorder %v992, 4096
      %vm1121 = vcmp.lt.s32.totalorder %v993, 4096
      %vm1122 = vcmp.lt.s32.totalorder %v994, 4096
      %vm1123 = vcmp.lt.s32.totalorder %v995, 4096
      %vm1124 = vcmp.lt.s32.totalorder %v996, 4096
      %vm1125 = vcmp.lt.s32.totalorder %v997, 4096
      %vm1126 = vcmp.lt.s32.totalorder %v998, 4096
      %vm1127 = vcmp.lt.s32.totalorder %v999, 4096
      %vm1128 = vcmp.lt.s32.totalorder %v1000, 4096
      %vm1129 = vcmp.lt.s32.totalorder %v1001, 4096
      %vm1130 = vcmp.lt.s32.totalorder %v1002, 4096
      %vm1131 = vcmp.lt.s32.totalorder %v1003, 4096
      %vm1132 = vcmp.lt.s32.totalorder %v1004, 4096
      %vm1133 = vcmp.lt.s32.totalorder %v1005, 4096
      %vm1134 = vcmp.lt.s32.totalorder %v1006, 4096
      %vm1135 = vcmp.lt.s32.totalorder %v1007, 4096
      %vm1136 = vcmp.lt.s32.totalorder %v1008, 4096
      %vm1137 = vcmp.lt.s32.totalorder %v1009, 4096
      %vm1138 = vcmp.lt.s32.totalorder %v1010, 4096
      %vm1139 = vcmp.lt.s32.totalorder %v1011, 4096
      %vm1140 = vcmp.lt.s32.totalorder %v1012, 4096
      %vm1141 = vcmp.lt.s32.totalorder %v1013, 4096
      %vm1142 = vcmp.lt.s32.totalorder %v1014, 4096
      %vm1143 = vcmp.lt.s32.totalorder %v1015, 4096
      %vm1144 = vcmp.lt.s32.totalorder %v1016, 4096
      %vm1145 = vcmp.lt.s32.totalorder %v1017, 4096
      %vm1146 = vcmp.lt.s32.totalorder %v1018, 4096
      %vm1147 = vcmp.lt.s32.totalorder %v1019, 4096
      %vm1148 = vcmp.lt.s32.totalorder %v1020, 4096
      %vm1149 = vcmp.lt.s32.totalorder %v1021, 4096
      %vm1150 = vcmp.lt.s32.totalorder %v1022, 4096
      %vm1151 = vcmp.lt.s32.totalorder %v1023, 4096
      %vm1152 = vcmp.lt.s32.totalorder %v1024, 4096
      %vm1153 = vcmp.lt.s32.totalorder %v1025, 4096
      %vm1154 = vcmp.lt.s32.totalorder %v1026, 4096
      %vm1155 = vcmp.lt.s32.totalorder %v1027, 4096
      %vm1156 = vcmp.lt.s32.totalorder %v1028, 4096
      %vm1157 = vcmp.lt.s32.totalorder %v1029, 4096
      %vm1158 = vcmp.lt.s32.totalorder %v1030, 4096
      %vm1159 = vcmp.lt.s32.totalorder %v1031, 4096
      %vm1160 = vcmp.lt.s32.totalorder %v1032, 4096
      %vm1161 = vcmp.lt.s32.totalorder %v1033, 4096
      %vm1162 = vcmp.lt.s32.totalorder %v1034, 4096
      %vm1163 = vcmp.lt.s32.totalorder %v1035, 4096
      %vm1164 = vcmp.lt.s32.totalorder %v1036, 4096
      %vm1165 = vcmp.lt.s32.totalorder %v1037, 4096
      %vm1166 = vcmp.lt.s32.totalorder %v1038, 4096
      %vm1167 = vcmp.lt.s32.totalorder %v1039, 4096
      %vm1168 = vcmp.lt.s32.totalorder %v1040, 4096
      %vm1169 = vcmp.lt.s32.totalorder %v1041, 4096
      %vm1170 = vcmp.lt.s32.totalorder %v1042, 4096
      %vm1171 = vcmp.lt.s32.totalorder %v1043, 4096
      %vm1172 = vcmp.lt.s32.totalorder %v1044, 4096
      %vm1173 = vcmp.lt.s32.totalorder %v1045, 4096
      %vm1174 = vcmp.lt.s32.totalorder %v1046, 4096
      %vm1175 = vcmp.lt.s32.totalorder %v1047, 4096
      %vm1176 = vcmp.lt.s32.totalorder %v1048, 4096
      %vm1177 = vcmp.lt.s32.totalorder %v1049, 4096
      %vm1178 = vcmp.lt.s32.totalorder %v1050, 4096
      %vm1179 = vcmp.lt.s32.totalorder %v1051, 4096
      %vm1180 = vcmp.lt.s32.totalorder %v1052, 4096
      %vm1181 = vcmp.lt.s32.totalorder %v1053, 4096
      %vm1182 = vcmp.lt.s32.totalorder %v1054, 4096
      %vm1183 = vcmp.lt.s32.totalorder %v1055, 4096
      %vm1184 = vcmp.lt.s32.totalorder %v1056, 4096
      %vm1185 = vcmp.lt.s32.totalorder %v1057, 4096
      %vm1186 = vcmp.lt.s32.totalorder %v1058, 4096
      %vm1187 = vcmp.lt.s32.totalorder %v1059, 4096
      %vm1188 = vcmp.lt.s32.totalorder %v1060, 4096
      %v1189 = vsel %vm1061, 1, 0
      %v1190 = vsel %vm1062, 1, 0
      %v1191 = vsel %vm1063, 1, 0
      %v1192 = vsel %vm1064, 1, 0
      %v1193 = vsel %vm1065, 1, 0
      %v1194 = vsel %vm1066, 1, 0
      %v1195 = vsel %vm1067, 1, 0
      %v1196 = vsel %vm1068, 1, 0
      %v1197 = vsel %vm1069, 1, 0
      %v1198 = vsel %vm1070, 1, 0
      %v1199 = vsel %vm1071, 1, 0
      %v1200 = vsel %vm1072, 1, 0
      %v1201 = vsel %vm1073, 1, 0
      %v1202 = vsel %vm1074, 1, 0
      %v1203 = vsel %vm1075, 1, 0
      %v1204 = vsel %vm1076, 1, 0
      %v1205 = vsel %vm1077, 1, 0
      %v1206 = vsel %vm1078, 1, 0
      %v1207 = vsel %vm1079, 1, 0
      %v1208 = vsel %vm1080, 1, 0
      %v1209 = vsel %vm1081, 1, 0
      %v1210 = vsel %vm1082, 1, 0
      %v1211 = vsel %vm1083, 1, 0
      %v1212 = vsel %vm1084, 1, 0
      %v1213 = vsel %vm1085, 1, 0
      %v1214 = vsel %vm1086, 1, 0
      %v1215 = vsel %vm1087, 1, 0
      %v1216 = vsel %vm1088, 1, 0
      %v1217 = vsel %vm1089, 1, 0
      %v1218 = vsel %vm1090, 1, 0
      %v1219 = vsel %vm1091, 1, 0
      %v1220 = vsel %vm1092, 1, 0
      %v1221 = vsel %vm1093, 1, 0
      %v1222 = vsel %vm1094, 1, 0
      %v1223 = vsel %vm1095, 1, 0
      %v1224 = vsel %vm1096, 1, 0
      %v1225 = vsel %vm1097, 1, 0
      %v1226 = vsel %vm1098, 1, 0
      %v1227 = vsel %vm1099, 1, 0
      %v1228 = vsel %vm1100, 1, 0
      %v1229 = vsel %vm1101, 1, 0
      %v1230 = vsel %vm1102, 1, 0
      %v1231 = vsel %vm1103, 1, 0
      %v1232 = vsel %vm1104, 1, 0
      %v1233 = vsel %vm1105, 1, 0
      %v1234 = vsel %vm1106, 1, 0
      %v1235 = vsel %vm1107, 1, 0
      %v1236 = vsel %vm1108, 1, 0
      %v1237 = vsel %vm1109, 1, 0
      %v1238 = vsel %vm1110, 1, 0
      %v1239 = vsel %vm1111, 1, 0
      %v1240 = vsel %vm1112, 1, 0
      %v1241 = vsel %vm1113, 1, 0
      %v1242 = vsel %vm1114, 1, 0
      %v1243 = vsel %vm1115, 1, 0
      %v1244 = vsel %vm1116, 1, 0
      %v1245 = vsel %vm1117, 1, 0
      %v1246 = vsel %vm1118, 1, 0
      %v1247 = vsel %vm1119, 1, 0
      %v1248 = vsel %vm1120, 1, 0
      %v1249 = vsel %vm1121, 1, 0
      %v1250 = vsel %vm1122, 1, 0
      %v1251 = vsel %vm1123, 1, 0
      %v1252 = vsel %vm1124, 1, 0
      %v1253 = vsel %vm1125, 1, 0
      %v1254 = vsel %vm1126, 1, 0
      %v1255 = vsel %vm1127, 1, 0
      %v1256 = vsel %vm1128, 1, 0
      %v1257 = vsel %vm1129, 1, 0
      %v1258 = vsel %vm1130, 1, 0
      %v1259 = vsel %vm1131, 1, 0
      %v1260 = vsel %vm1132, 1, 0
      %v1261 = vsel %vm1133, 1, 0
      %v1262 = vsel %vm1134, 1, 0
      %v1263 = vsel %vm1135, 1, 0
      %v1264 = vsel %vm1136, 1, 0
      %v1265 = vsel %vm1137, 1, 0
      %v1266 = vsel %vm1138, 1, 0
      %v1267 = vsel %vm1139, 1, 0
      %v1268 = vsel %vm1140, 1, 0
      %v1269 = vsel %vm1141, 1, 0
      %v1270 = vsel %vm1142, 1, 0
      %v1271 = vsel %vm1143, 1, 0
      %v1272 = vsel %vm1144, 1, 0
      %v1273 = vsel %vm1145, 1, 0
      %v1274 = vsel %vm1146, 1, 0
      %v1275 = vsel %vm1147, 1, 0
      %v1276 = vsel %vm1148, 1, 0
      %v1277 = vsel %vm1149, 1, 0
      %v1278 = vsel %vm1150, 1, 0
      %v1279 = vsel %vm1151, 1, 0
      %v1280 = vsel %vm1152, 1, 0
      %v1281 = vsel %vm1153, 1, 0
      %v1282 = vsel %vm1154, 1, 0
      %v1283 = vsel %vm1155, 1, 0
      %v1284 = vsel %vm1156, 1, 0
      %v1285 = vsel %vm1157, 1, 0
      %v1286 = vsel %vm1158, 1, 0
      %v1287 = vsel %vm1159, 1, 0
      %v1288 = vsel %vm1160, 1, 0
      %v1289 = vsel %vm1161, 1, 0
      %v1290 = vsel %vm1162, 1, 0
      %v1291 = vsel %vm1163, 1, 0
      %v1292 = vsel %vm1164, 1, 0
      %v1293 = vsel %vm1165, 1, 0
      %v1294 = vsel %vm1166, 1, 0
      %v1295 = vsel %vm1167, 1, 0
      %v1296 = vsel %vm1168, 1, 0
      %v1297 = vsel %vm1169, 1, 0
      %v1298 = vsel %vm1170, 1, 0
      %v1299 = vsel %vm1171, 1, 0
      %v1300 = vsel %vm1172, 1, 0
      %v1301 = vsel %vm1173, 1, 0
      %v1302 = vsel %vm1174, 1, 0
      %v1303 = vsel %vm1175, 1, 0
      %v1304 = vsel %vm1176, 1, 0
      %v1305 = vsel %vm1177, 1, 0
      %v1306 = vsel %vm1178, 1, 0
      %v1307 = vsel %vm1179, 1, 0
      %v1308 = vsel %vm1180, 1, 0
      %v1309 = vsel %vm1181, 1, 0
      %v1310 = vsel %vm1182, 1, 0
      %v1311 = vsel %vm1183, 1, 0
      %v1312 = vsel %vm1184, 1, 0
      %v1313 = vsel %vm1185, 1, 0
      %v1314 = vsel %vm1186, 1, 0
      %v1315 = vsel %vm1187, 1, 0
      %v1316 = vsel %vm1188, 1, 0
      %vm1317 = vcmp.eq.s32.totalorder %v1189, 1
      %vm1318 = vcmp.eq.s32.totalorder %v1190, 1
      %vm1319 = vcmp.eq.s32.totalorder %v1191, 1
      %vm1320 = vcmp.eq.s32.totalorder %v1192, 1
      %vm1321 = vcmp.eq.s32.totalorder %v1193, 1
      %vm1322 = vcmp.eq.s32.totalorder %v1194, 1
      %vm1323 = vcmp.eq.s32.totalorder %v1195, 1
      %vm1324 = vcmp.eq.s32.totalorder %v1196, 1
      %vm1325 = vcmp.eq.s32.totalorder %v1197, 1
      %vm1326 = vcmp.eq.s32.totalorder %v1198, 1
      %vm1327 = vcmp.eq.s32.totalorder %v1199, 1
      %vm1328 = vcmp.eq.s32.totalorder %v1200, 1
      %vm1329 = vcmp.eq.s32.totalorder %v1201, 1
      %vm1330 = vcmp.eq.s32.totalorder %v1202, 1
      %vm1331 = vcmp.eq.s32.totalorder %v1203, 1
      %vm1332 = vcmp.eq.s32.totalorder %v1204, 1
      %vm1333 = vcmp.eq.s32.totalorder %v1205, 1
      %vm1334 = vcmp.eq.s32.totalorder %v1206, 1
      %vm1335 = vcmp.eq.s32.totalorder %v1207, 1
      %vm1336 = vcmp.eq.s32.totalorder %v1208, 1
      %vm1337 = vcmp.eq.s32.totalorder %v1209, 1
      %vm1338 = vcmp.eq.s32.totalorder %v1210, 1
      %vm1339 = vcmp.eq.s32.totalorder %v1211, 1
      %vm1340 = vcmp.eq.s32.totalorder %v1212, 1
      %vm1341 = vcmp.eq.s32.totalorder %v1213, 1
      %vm1342 = vcmp.eq.s32.totalorder %v1214, 1
      %vm1343 = vcmp.eq.s32.totalorder %v1215, 1
      %vm1344 = vcmp.eq.s32.totalorder %v1216, 1
      %vm1345 = vcmp.eq.s32.totalorder %v1217, 1
      %vm1346 = vcmp.eq.s32.totalorder %v1218, 1
      %vm1347 = vcmp.eq.s32.totalorder %v1219, 1
      %vm1348 = vcmp.eq.s32.totalorder %v1220, 1
      %vm1349 = vcmp.eq.s32.totalorder %v1221, 1
      %vm1350 = vcmp.eq.s32.totalorder %v1222, 1
      %vm1351 = vcmp.eq.s32.totalorder %v1223, 1
      %vm1352 = vcmp.eq.s32.totalorder %v1224, 1
      %vm1353 = vcmp.eq.s32.totalorder %v1225, 1
      %vm1354 = vcmp.eq.s32.totalorder %v1226, 1
      %vm1355 = vcmp.eq.s32.totalorder %v1227, 1
      %vm1356 = vcmp.eq.s32.totalorder %v1228, 1
      %vm1357 = vcmp.eq.s32.totalorder %v1229, 1
      %vm1358 = vcmp.eq.s32.totalorder %v1230, 1
      %vm1359 = vcmp.eq.s32.totalorder %v1231, 1
      %vm1360 = vcmp.eq.s32.totalorder %v1232, 1
      %vm1361 = vcmp.eq.s32.totalorder %v1233, 1
      %vm1362 = vcmp.eq.s32.totalorder %v1234, 1
      %vm1363 = vcmp.eq.s32.totalorder %v1235, 1
      %vm1364 = vcmp.eq.s32.totalorder %v1236, 1
      %vm1365 = vcmp.eq.s32.totalorder %v1237, 1
      %vm1366 = vcmp.eq.s32.totalorder %v1238, 1
      %vm1367 = vcmp.eq.s32.totalorder %v1239, 1
      %vm1368 = vcmp.eq.s32.totalorder %v1240, 1
      %vm1369 = vcmp.eq.s32.totalorder %v1241, 1
      %vm1370 = vcmp.eq.s32.totalorder %v1242, 1
      %vm1371 = vcmp.eq.s32.totalorder %v1243, 1
      %vm1372 = vcmp.eq.s32.totalorder %v1244, 1
      %vm1373 = vcmp.eq.s32.totalorder %v1245, 1
      %vm1374 = vcmp.eq.s32.totalorder %v1246, 1
      %vm1375 = vcmp.eq.s32.totalorder %v1247, 1
      %vm1376 = vcmp.eq.s32.totalorder %v1248, 1
      %vm1377 = vcmp.eq.s32.totalorder %v1249, 1
      %vm1378 = vcmp.eq.s32.totalorder %v1250, 1
      %vm1379 = vcmp.eq.s32.totalorder %v1251, 1
      %vm1380 = vcmp.eq.s32.totalorder %v1252, 1
      %vm1381 = vcmp.eq.s32.totalorder %v1253, 1
      %vm1382 = vcmp.eq.s32.totalorder %v1254, 1
      %vm1383 = vcmp.eq.s32.totalorder %v1255, 1
      %vm1384 = vcmp.eq.s32.totalorder %v1256, 1
      %vm1385 = vcmp.eq.s32.totalorder %v1257, 1
      %vm1386 = vcmp.eq.s32.totalorder %v1258, 1
      %vm1387 = vcmp.eq.s32.totalorder %v1259, 1
      %vm1388 = vcmp.eq.s32.totalorder %v1260, 1
      %vm1389 = vcmp.eq.s32.totalorder %v1261, 1
      %vm1390 = vcmp.eq.s32.totalorder %v1262, 1
      %vm1391 = vcmp.eq.s32.totalorder %v1263, 1
      %vm1392 = vcmp.eq.s32.totalorder %v1264, 1
      %vm1393 = vcmp.eq.s32.totalorder %v1265, 1
      %vm1394 = vcmp.eq.s32.totalorder %v1266, 1
      %vm1395 = vcmp.eq.s32.totalorder %v1267, 1
      %vm1396 = vcmp.eq.s32.totalorder %v1268, 1
      %vm1397 = vcmp.eq.s32.totalorder %v1269, 1
      %vm1398 = vcmp.eq.s32.totalorder %v1270, 1
      %vm1399 = vcmp.eq.s32.totalorder %v1271, 1
      %vm1400 = vcmp.eq.s32.totalorder %v1272, 1
      %vm1401 = vcmp.eq.s32.totalorder %v1273, 1
      %vm1402 = vcmp.eq.s32.totalorder %v1274, 1
      %vm1403 = vcmp.eq.s32.totalorder %v1275, 1
      %vm1404 = vcmp.eq.s32.totalorder %v1276, 1
      %vm1405 = vcmp.eq.s32.totalorder %v1277, 1
      %vm1406 = vcmp.eq.s32.totalorder %v1278, 1
      %vm1407 = vcmp.eq.s32.totalorder %v1279, 1
      %vm1408 = vcmp.eq.s32.totalorder %v1280, 1
      %vm1409 = vcmp.eq.s32.totalorder %v1281, 1
      %vm1410 = vcmp.eq.s32.totalorder %v1282, 1
      %vm1411 = vcmp.eq.s32.totalorder %v1283, 1
      %vm1412 = vcmp.eq.s32.totalorder %v1284, 1
      %vm1413 = vcmp.eq.s32.totalorder %v1285, 1
      %vm1414 = vcmp.eq.s32.totalorder %v1286, 1
      %vm1415 = vcmp.eq.s32.totalorder %v1287, 1
      %vm1416 = vcmp.eq.s32.totalorder %v1288, 1
      %vm1417 = vcmp.eq.s32.totalorder %v1289, 1
      %vm1418 = vcmp.eq.s32.totalorder %v1290, 1
      %vm1419 = vcmp.eq.s32.totalorder %v1291, 1
      %vm1420 = vcmp.eq.s32.totalorder %v1292, 1
      %vm1421 = vcmp.eq.s32.totalorder %v1293, 1
      %vm1422 = vcmp.eq.s32.totalorder %v1294, 1
      %vm1423 = vcmp.eq.s32.totalorder %v1295, 1
      %vm1424 = vcmp.eq.s32.totalorder %v1296, 1
      %vm1425 = vcmp.eq.s32.totalorder %v1297, 1
      %vm1426 = vcmp.eq.s32.totalorder %v1298, 1
      %vm1427 = vcmp.eq.s32.totalorder %v1299, 1
      %vm1428 = vcmp.eq.s32.totalorder %v1300, 1
      %vm1429 = vcmp.eq.s32.totalorder %v1301, 1
      %vm1430 = vcmp.eq.s32.totalorder %v1302, 1
      %vm1431 = vcmp.eq.s32.totalorder %v1303, 1
      %vm1432 = vcmp.eq.s32.totalorder %v1304, 1
      %vm1433 = vcmp.eq.s32.totalorder %v1305, 1
      %vm1434 = vcmp.eq.s32.totalorder %v1306, 1
      %vm1435 = vcmp.eq.s32.totalorder %v1307, 1
      %vm1436 = vcmp.eq.s32.totalorder %v1308, 1
      %vm1437 = vcmp.eq.s32.totalorder %v1309, 1
      %vm1438 = vcmp.eq.s32.totalorder %v1310, 1
      %vm1439 = vcmp.eq.s32.totalorder %v1311, 1
      %vm1440 = vcmp.eq.s32.totalorder %v1312, 1
      %vm1441 = vcmp.eq.s32.totalorder %v1313, 1
      %vm1442 = vcmp.eq.s32.totalorder %v1314, 1
      %vm1443 = vcmp.eq.s32.totalorder %v1315, 1
      %vm1444 = vcmp.eq.s32.totalorder %v1316, 1
      %v1445 = vsel %vm1317, %v674, 0.0
      %v1446 = vsel %vm1318, %v675, 0.0
      %v1447 = vsel %vm1319, %v676, 0.0
      %v1448 = vsel %vm1320, %v677, 0.0
      %v1449 = vsel %vm1321, %v678, 0.0
      %v1450 = vsel %vm1322, %v679, 0.0
      %v1451 = vsel %vm1323, %v680, 0.0
      %v1452 = vsel %vm1324, %v681, 0.0
      %v1453 = vsel %vm1325, %v682, 0.0
      %v1454 = vsel %vm1326, %v683, 0.0
      %v1455 = vsel %vm1327, %v684, 0.0
      %v1456 = vsel %vm1328, %v685, 0.0
      %v1457 = vsel %vm1329, %v686, 0.0
      %v1458 = vsel %vm1330, %v687, 0.0
      %v1459 = vsel %vm1331, %v688, 0.0
      %v1460 = vsel %vm1332, %v689, 0.0
      %v1461 = vsel %vm1333, %v690, 0.0
      %v1462 = vsel %vm1334, %v691, 0.0
      %v1463 = vsel %vm1335, %v692, 0.0
      %v1464 = vsel %vm1336, %v693, 0.0
      %v1465 = vsel %vm1337, %v694, 0.0
      %v1466 = vsel %vm1338, %v695, 0.0
      %v1467 = vsel %vm1339, %v696, 0.0
      %v1468 = vsel %vm1340, %v697, 0.0
      %v1469 = vsel %vm1341, %v698, 0.0
      %v1470 = vsel %vm1342, %v699, 0.0
      %v1471 = vsel %vm1343, %v700, 0.0
      %v1472 = vsel %vm1344, %v701, 0.0
      %v1473 = vsel %vm1345, %v702, 0.0
      %v1474 = vsel %vm1346, %v703, 0.0
      %v1475 = vsel %vm1347, %v704, 0.0
      %v1476 = vsel %vm1348, %v705, 0.0
      %v1477 = vsel %vm1349, %v706, 0.0
      %v1478 = vsel %vm1350, %v707, 0.0
      %v1479 = vsel %vm1351, %v708, 0.0
      %v1480 = vsel %vm1352, %v709, 0.0
      %v1481 = vsel %vm1353, %v710, 0.0
      %v1482 = vsel %vm1354, %v711, 0.0
      %v1483 = vsel %vm1355, %v712, 0.0
      %v1484 = vsel %vm1356, %v713, 0.0
      %v1485 = vsel %vm1357, %v714, 0.0
      %v1486 = vsel %vm1358, %v715, 0.0
      %v1487 = vsel %vm1359, %v716, 0.0
      %v1488 = vsel %vm1360, %v717, 0.0
      %v1489 = vsel %vm1361, %v718, 0.0
      %v1490 = vsel %vm1362, %v719, 0.0
      %v1491 = vsel %vm1363, %v720, 0.0
      %v1492 = vsel %vm1364, %v721, 0.0
      %v1493 = vsel %vm1365, %v722, 0.0
      %v1494 = vsel %vm1366, %v723, 0.0
      %v1495 = vsel %vm1367, %v724, 0.0
      %v1496 = vsel %vm1368, %v725, 0.0
      %v1497 = vsel %vm1369, %v726, 0.0
      %v1498 = vsel %vm1370, %v727, 0.0
      %v1499 = vsel %vm1371, %v728, 0.0
      %v1500 = vsel %vm1372, %v729, 0.0
      %v1501 = vsel %vm1373, %v730, 0.0
      %v1502 = vsel %vm1374, %v731, 0.0
      %v1503 = vsel %vm1375, %v732, 0.0
      %v1504 = vsel %vm1376, %v733, 0.0
      %v1505 = vsel %vm1377, %v734, 0.0
      %v1506 = vsel %vm1378, %v735, 0.0
      %v1507 = vsel %vm1379, %v736, 0.0
      %v1508 = vsel %vm1380, %v737, 0.0
      %v1509 = vsel %vm1381, %v738, 0.0
      %v1510 = vsel %vm1382, %v739, 0.0
      %v1511 = vsel %vm1383, %v740, 0.0
      %v1512 = vsel %vm1384, %v741, 0.0
      %v1513 = vsel %vm1385, %v742, 0.0
      %v1514 = vsel %vm1386, %v743, 0.0
      %v1515 = vsel %vm1387, %v744, 0.0
      %v1516 = vsel %vm1388, %v745, 0.0
      %v1517 = vsel %vm1389, %v746, 0.0
      %v1518 = vsel %vm1390, %v747, 0.0
      %v1519 = vsel %vm1391, %v748, 0.0
      %v1520 = vsel %vm1392, %v749, 0.0
      %v1521 = vsel %vm1393, %v750, 0.0
      %v1522 = vsel %vm1394, %v751, 0.0
      %v1523 = vsel %vm1395, %v752, 0.0
      %v1524 = vsel %vm1396, %v753, 0.0
      %v1525 = vsel %vm1397, %v754, 0.0
      %v1526 = vsel %vm1398, %v755, 0.0
      %v1527 = vsel %vm1399, %v756, 0.0
      %v1528 = vsel %vm1400, %v757, 0.0
      %v1529 = vsel %vm1401, %v758, 0.0
      %v1530 = vsel %vm1402, %v759, 0.0
      %v1531 = vsel %vm1403, %v760, 0.0
      %v1532 = vsel %vm1404, %v761, 0.0
      %v1533 = vsel %vm1405, %v762, 0.0
      %v1534 = vsel %vm1406, %v763, 0.0
      %v1535 = vsel %vm1407, %v764, 0.0
      %v1536 = vsel %vm1408, %v765, 0.0
      %v1537 = vsel %vm1409, %v766, 0.0
      %v1538 = vsel %vm1410, %v767, 0.0
      %v1539 = vsel %vm1411, %v768, 0.0
      %v1540 = vsel %vm1412, %v769, 0.0
      %v1541 = vsel %vm1413, %v770, 0.0
      %v1542 = vsel %vm1414, %v771, 0.0
      %v1543 = vsel %vm1415, %v772, 0.0
      %v1544 = vsel %vm1416, %v773, 0.0
      %v1545 = vsel %vm1417, %v774, 0.0
      %v1546 = vsel %vm1418, %v775, 0.0
      %v1547 = vsel %vm1419, %v776, 0.0
      %v1548 = vsel %vm1420, %v777, 0.0
      %v1549 = vsel %vm1421, %v778, 0.0
      %v1550 = vsel %vm1422, %v779, 0.0
      %v1551 = vsel %vm1423, %v780, 0.0
      %v1552 = vsel %vm1424, %v781, 0.0
      %v1553 = vsel %vm1425, %v782, 0.0
      %v1554 = vsel %vm1426, %v783, 0.0
      %v1555 = vsel %vm1427, %v784, 0.0
      %v1556 = vsel %vm1428, %v785, 0.0
      %v1557 = vsel %vm1429, %v786, 0.0
      %v1558 = vsel %vm1430, %v787, 0.0
      %v1559 = vsel %vm1431, %v788, 0.0
      %v1560 = vsel %vm1432, %v789, 0.0
      %v1561 = vsel %vm1433, %v790, 0.0
      %v1562 = vsel %vm1434, %v791, 0.0
      %v1563 = vsel %vm1435, %v792, 0.0
      %v1564 = vsel %vm1436, %v793, 0.0
      %v1565 = vsel %vm1437, %v794, 0.0
      %v1566 = vsel %vm1438, %v795, 0.0
      %v1567 = vsel %vm1439, %v796, 0.0
      %v1568 = vsel %vm1440, %v797, 0.0
      %v1569 = vsel %vm1441, %v798, 0.0
      %v1570 = vsel %vm1442, %v799, 0.0
      %v1571 = vsel %vm1443, %v800, 0.0
      %v1572 = vsel %vm1444, %v801, 0.0
      %v1573 = vld [vmem:[%s3] sm:$0xff]
      %v1574 = vld [vmem:[%s3 + $0x8] sm:$0xff]
      %v1575 = vld [vmem:[%s3 + $0x10] sm:$0xff]
      %v1576 = vld [vmem:[%s3 + $0x18] sm:$0xff]
      %v1577 = vld [vmem:[%s3 + $0x20] sm:$0xf]
      %vm1578 = vcmask 293888
      %v1580 = vsel %vm1578, %v1445, 0
      %v1583 = vsel %vm1578, %v1446, 0
      %v1586 = vsel %vm1578, %v1447, 0
      %v1589 = vsel %vm1578, %v1448, 0
      %v1592 = vsel %vm1578, %v1449, 0
      %v1595 = vsel %vm1578, %v1450, 0
      %v1598 = vsel %vm1578, %v1451, 0
      %v1601 = vsel %vm1578, %v1452, 0
      %v1604 = vsel %vm1578, %v1453, 0
      %v1607 = vsel %vm1578, %v1454, 0
      %v1610 = vsel %vm1578, %v1455, 0
      %v1613 = vsel %vm1578, %v1456, 0
      %v1616 = vsel %vm1578, %v1457, 0
      %v1619 = vsel %vm1578, %v1458, 0
      %v1622 = vsel %vm1578, %v1459, 0
      %v1625 = vsel %vm1578, %v1460, 0
      %v1628 = vsel %vm1578, %v1461, 0
      %v1631 = vsel %vm1578, %v1462, 0
      %v1634 = vsel %vm1578, %v1463, 0
      %v1637 = vsel %vm1578, %v1464, 0
      %v1640 = vsel %vm1578, %v1465, 0
      %v1643 = vsel %vm1578, %v1466, 0
      %v1646 = vsel %vm1578, %v1467, 0
      %v1649 = vsel %vm1578, %v1468, 0
      %v1652 = vsel %vm1578, %v1469, 0
      %v1655 = vsel %vm1578, %v1470, 0
      %v1658 = vsel %vm1578, %v1471, 0
      %v1661 = vsel %vm1578, %v1472, 0
      %v1664 = vsel %vm1578, %v1473, 0
      %v1667 = vsel %vm1578, %v1474, 0
      %v1670 = vsel %vm1578, %v1475, 0
      %v1673 = vsel %vm1578, %v1476, 0
      %v1676 = vsel %vm1578, %v1477, 0
      %v1679 = vsel %vm1578, %v1478, 0
      %v1682 = vsel %vm1578, %v1479, 0
      %v1685 = vsel %vm1578, %v1480, 0
      %v1688 = vsel %vm1578, %v1481, 0
      %v1691 = vsel %vm1578, %v1482, 0
      %v1694 = vsel %vm1578, %v1483, 0
      %v1697 = vsel %vm1578, %v1484, 0
      %v1700 = vsel %vm1578, %v1485, 0
      %v1703 = vsel %vm1578, %v1486, 0
      %v1706 = vsel %vm1578, %v1487, 0
      %v1709 = vsel %vm1578, %v1488, 0
      %v1712 = vsel %vm1578, %v1489, 0
      %v1715 = vsel %vm1578, %v1490, 0
      %v1718 = vsel %vm1578, %v1491, 0
      %v1721 = vsel %vm1578, %v1492, 0
      %v1724 = vsel %vm1578, %v1493, 0
      %v1727 = vsel %vm1578, %v1494, 0
      %v1730 = vsel %vm1578, %v1495, 0
      %v1733 = vsel %vm1578, %v1496, 0
      %v1736 = vsel %vm1578, %v1497, 0
      %v1739 = vsel %vm1578, %v1498, 0
      %v1742 = vsel %vm1578, %v1499, 0
      %v1745 = vsel %vm1578, %v1500, 0
      %v1748 = vsel %vm1578, %v1501, 0
      %v1751 = vsel %vm1578, %v1502, 0
      %v1754 = vsel %vm1578, %v1503, 0
      %v1757 = vsel %vm1578, %v1504, 0
      %v1760 = vsel %vm1578, %v1505, 0
      %v1763 = vsel %vm1578, %v1506, 0
      %v1766 = vsel %vm1578, %v1507, 0
      %v1769 = vsel %vm1578, %v1508, 0
      %v1772 = vsel %vm1578, %v1509, 0
      %v1775 = vsel %vm1578, %v1510, 0
      %v1778 = vsel %vm1578, %v1511, 0
      %v1781 = vsel %vm1578, %v1512, 0
      %v1784 = vsel %vm1578, %v1513, 0
      %v1787 = vsel %vm1578, %v1514, 0
      %v1790 = vsel %vm1578, %v1515, 0
      %v1793 = vsel %vm1578, %v1516, 0
      %v1796 = vsel %vm1578, %v1517, 0
      %v1799 = vsel %vm1578, %v1518, 0
      %v1802 = vsel %vm1578, %v1519, 0
      %v1805 = vsel %vm1578, %v1520, 0
      %v1808 = vsel %vm1578, %v1521, 0
      %v1811 = vsel %vm1578, %v1522, 0
      %v1814 = vsel %vm1578, %v1523, 0
      %v1817 = vsel %vm1578, %v1524, 0
      %v1820 = vsel %vm1578, %v1525, 0
      %v1823 = vsel %vm1578, %v1526, 0
      %v1826 = vsel %vm1578, %v1527, 0
      %v1829 = vsel %vm1578, %v1528, 0
      %v1832 = vsel %vm1578, %v1529, 0
      %v1835 = vsel %vm1578, %v1530, 0
      %v1838 = vsel %vm1578, %v1531, 0
      %v1841 = vsel %vm1578, %v1532, 0
      %v1844 = vsel %vm1578, %v1533, 0
      %v1847 = vsel %vm1578, %v1534, 0
      %v1850 = vsel %vm1578, %v1535, 0
      %v1853 = vsel %vm1578, %v1536, 0
      %v1856 = vsel %vm1578, %v1537, 0
      %v1859 = vsel %vm1578, %v1538, 0
      %v1862 = vsel %vm1578, %v1539, 0
      %v1865 = vsel %vm1578, %v1540, 0
      %v1868 = vsel %vm1578, %v1541, 0
      %v1871 = vsel %vm1578, %v1542, 0
      %v1874 = vsel %vm1578, %v1543, 0
      %v1877 = vsel %vm1578, %v1544, 0
      %v1880 = vsel %vm1578, %v1545, 0
      %v1883 = vsel %vm1578, %v1546, 0
      %v1886 = vsel %vm1578, %v1547, 0
      %v1889 = vsel %vm1578, %v1548, 0
      %v1892 = vsel %vm1578, %v1549, 0
      %v1895 = vsel %vm1578, %v1550, 0
      %v1898 = vsel %vm1578, %v1551, 0
      %v1901 = vsel %vm1578, %v1552, 0
      %v1904 = vsel %vm1578, %v1553, 0
      %v1907 = vsel %vm1578, %v1554, 0
      %v1910 = vsel %vm1578, %v1555, 0
      %v1913 = vsel %vm1578, %v1556, 0
      %v1916 = vsel %vm1578, %v1557, 0
      %v1919 = vsel %vm1578, %v1558, 0
      %v1922 = vsel %vm1578, %v1559, 0
      %v1925 = vsel %vm1578, %v1560, 0
      %v1928 = vsel %vm1578, %v1561, 0
      %v1931 = vsel %vm1578, %v1562, 0
      %v1934 = vsel %vm1578, %v1563, 0
      %v1937 = vsel %vm1578, %v1564, 0
      %v1940 = vsel %vm1578, %v1565, 0
      %v1943 = vsel %vm1578, %v1566, 0
      %v1946 = vsel %vm1578, %v1567, 0
      %v1949 = vsel %vm1578, %v1568, 0
      %v1952 = vsel %vm1578, %v1569, 0
      %v1955 = vsel %vm1578, %v1570, 0
      %v1958 = vsel %vm1578, %v1571, 0
      %v1961 = vsel %vm1578, %v1572, 0
      %vm1963 = vcmask 1043456
      %v1965 = vsel %vm1963, %v1577, 0
      %1967 = vmatprep.subr.mxu0 0.0
      %1968 = vmatpush1.msra.mxu0 0.0
      %1969 = vmatprep.subr.mxu0 0.0
      %1970 = vmatpush1.msra.mxu0 0.0
      %1971 = vmatprep.subr.mxu0 0.0
      %1972 = vmatpush1.msra.mxu0 0.0
      %1973 = vmatprep.subr.mxu0 0.0
      %1974 = vmatpush1.msra.mxu0 0.0
      %1975 = vmatprep.subr.mxu0 0.0
      %1976 = vmatpush1.msra.mxu0 0.0
      %1977 = vmatprep.subr.mxu0 0.0
      %1978 = vmatpush1.msra.mxu0 0.0
      %1979 = vmatprep.subr.mxu0 0.0
      %1980 = vmatpush1.msra.mxu0 0.0
      %1981 = vmatprep.subr.mxu0 0.0
      %1982 = vmatpush1.msra.mxu0 0.0
      %1983 = vmatprep.subr.mxu0 0.0
      %1984 = vmatpush1.msra.mxu0 0.0
      %1985 = vmatprep.subr.mxu0 0.0
      %1986 = vmatpush1.msra.mxu0 0.0
      %1987 = vmatprep.subr.mxu0 0.0
      %1988 = vmatpush1.msra.mxu0 0.0
      %1989 = vmatprep.subr.mxu0 0.0
      %1990 = vmatpush1.msra.mxu0 %v1965
      %1991 = vmatprep.subr.mxu0 0.0
      %1992 = vmatpush1.msra.mxu0 %v1576
      %1993 = vmatprep.subr.mxu0 0.0
      %1994 = vmatpush1.msra.mxu0 %v1575
      %1995 = vmatprep.subr.mxu0 0.0
      %1996 = vmatpush1.msra.mxu0 %v1574
      %1997 = vmatprep.subr.mxu0 0.0
      %1998 = vmatpush1.msra.mxu0 %v1573
      %1999 = vmatprep.subr.mxu0 0.0
      %2000 = vmatpush2.msra.mxu0 0.0
      %2001 = vmatprep.subr.mxu0 0.0
      %2002 = vmatpush2.msra.mxu0 0.0
      %2003 = vmatprep.subr.mxu0 0.0
      %2004 = vmatpush2.msra.mxu0 0.0
      %2005 = vmatprep.subr.mxu0 0.0
      %2006 = vmatpush2.msra.mxu0 0.0
      %2007 = vmatprep.subr.mxu0 0.0
      %2008 = vmatpush2.msra.mxu0 0.0
      %2009 = vmatprep.subr.mxu0 0.0
      %2010 = vmatpush2.msra.mxu0 0.0
      %2011 = vmatprep.subr.mxu0 0.0
      %2012 = vmatpush2.msra.mxu0 0.0
      %2013 = vmatprep.subr.mxu0 0.0
      %2014 = vmatpush2.msra.mxu0 0.0
      %2015 = vmatprep.subr.mxu0 0.0
      %2016 = vmatpush2.msra.mxu0 0.0
      %2017 = vmatprep.subr.mxu0 0.0
      %2018 = vmatpush2.msra.mxu0 0.0
      %2019 = vmatprep.subr.mxu0 0.0
      %2020 = vmatpush2.msra.mxu0 0.0
      %2021 = vmatprep.subr.mxu0 0.0
      %2022 = vmatpush2.msra.mxu0 0.0
      %2023 = vmatprep.subr.mxu0 0.0
      %2024 = vmatpush2.msra.mxu0 0.0
      %2025 = vmatprep.subr.mxu0 0.0
      %2026 = vmatpush2.msra.mxu0 0.0
      %2027 = vmatprep.subr.mxu0 0.0
      %2028 = vmatpush2.msra.mxu0 0.0
      %2029 = vmatprep.subr.mxu0 0.0
      %2030 = vmatpush2.msra.mxu0 0.0
      %2031 = vmatprep.mubr.f32.mxu0 0.0
      %2032 = vmatmul.mubr.f32.gmra.mxu0 %v1580
      %v2033 = vpop.f32.mrf.mxu0
      %v2034 = vadd.f32 0.0, %v2033
      %v2035 = vpop.f32.mrf.mxu0
      %2036 = vmatprep.mubr.f32.mxu0 0.0
      %2037 = vmatmul.mubr.f32.gmra.mxu0 %v1583
      %v2038 = vpop.f32.mrf.mxu0
      %v2039 = vadd.f32 0.0, %v2038
      %v2040 = vpop.f32.mrf.mxu0
      %2041 = vmatprep.mubr.f32.mxu0 0.0
      %2042 = vmatmul.mubr.f32.gmra.mxu0 %v1586
      %v2043 = vpop.f32.mrf.mxu0
      %v2044 = vadd.f32 0.0, %v2043
      %v2045 = vpop.f32.mrf.mxu0
      %2046 = vmatprep.mubr.f32.mxu0 0.0
      %2047 = vmatmul.mubr.f32.gmra.mxu0 %v1589
      %v2048 = vpop.f32.mrf.mxu0
      %v2049 = vadd.f32 0.0, %v2048
      %v2050 = vpop.f32.mrf.mxu0
      %2051 = vmatprep.mubr.f32.mxu0 0.0
      %2052 = vmatmul.mubr.f32.gmra.mxu0 %v1592
      %v2053 = vpop.f32.mrf.mxu0
      %v2054 = vadd.f32 0.0, %v2053
      %v2055 = vpop.f32.mrf.mxu0
      %2056 = vmatprep.mubr.f32.mxu0 0.0
      %2057 = vmatmul.mubr.f32.gmra.mxu0 %v1595
      %v2058 = vpop.f32.mrf.mxu0
      %v2059 = vadd.f32 0.0, %v2058
      %v2060 = vpop.f32.mrf.mxu0
      %2061 = vmatprep.mubr.f32.mxu0 0.0
      %2062 = vmatmul.mubr.f32.gmra.mxu0 %v1598
      %v2063 = vpop.f32.mrf.mxu0
      %v2064 = vadd.f32 0.0, %v2063
      %v2065 = vpop.f32.mrf.mxu0
      %2066 = vmatprep.mubr.f32.mxu0 0.0
      %2067 = vmatmul.mubr.f32.gmra.mxu0 %v1601
      %v2068 = vpop.f32.mrf.mxu0
      %v2069 = vadd.f32 0.0, %v2068
      %v2070 = vpop.f32.mrf.mxu0
      %2071 = vmatprep.mubr.f32.mxu0 0.0
      %2072 = vmatmul.mubr.f32.gmra.mxu0 %v1604
      %v2073 = vpop.f32.mrf.mxu0
      %v2074 = vadd.f32 0.0, %v2073
      %v2075 = vpop.f32.mrf.mxu0
      %2076 = vmatprep.mubr.f32.mxu0 0.0
      %2077 = vmatmul.mubr.f32.gmra.mxu0 %v1607
      %v2078 = vpop.f32.mrf.mxu0
      %v2079 = vadd.f32 0.0, %v2078
      %v2080 = vpop.f32.mrf.mxu0
      %2081 = vmatprep.mubr.f32.mxu0 0.0
      %2082 = vmatmul.mubr.f32.gmra.mxu0 %v1610
      %v2083 = vpop.f32.mrf.mxu0
      %v2084 = vadd.f32 0.0, %v2083
      %v2085 = vpop.f32.mrf.mxu0
      %2086 = vmatprep.mubr.f32.mxu0 0.0
      %2087 = vmatmul.mubr.f32.gmra.mxu0 %v1613
      %v2088 = vpop.f32.mrf.mxu0
      %v2089 = vadd.f32 0.0, %v2088
      %v2090 = vpop.f32.mrf.mxu0
      %2091 = vmatprep.mubr.f32.mxu0 0.0
      %2092 = vmatmul.mubr.f32.gmra.mxu0 %v1616
      %v2093 = vpop.f32.mrf.mxu0
      %v2094 = vadd.f32 0.0, %v2093
      %v2095 = vpop.f32.mrf.mxu0
      %2096 = vmatprep.mubr.f32.mxu0 0.0
      %2097 = vmatmul.mubr.f32.gmra.mxu0 %v1619
      %v2098 = vpop.f32.mrf.mxu0
      %v2099 = vadd.f32 0.0, %v2098
      %v2100 = vpop.f32.mrf.mxu0
      %2101 = vmatprep.mubr.f32.mxu0 0.0
      %2102 = vmatmul.mubr.f32.gmra.mxu0 %v1622
      %v2103 = vpop.f32.mrf.mxu0
      %v2104 = vadd.f32 0.0, %v2103
      %v2105 = vpop.f32.mrf.mxu0
      %2106 = vmatprep.mubr.f32.mxu0 0.0
      %2107 = vmatmul.mubr.f32.gmra.mxu0 %v1625
      %v2108 = vpop.f32.mrf.mxu0
      %v2109 = vadd.f32 0.0, %v2108
      %v2110 = vpop.f32.mrf.mxu0
      %2111 = vmatprep.mubr.f32.mxu0 0.0
      %2112 = vmatmul.mubr.f32.gmra.mxu0 %v1628
      %v2113 = vpop.f32.mrf.mxu0
      %v2114 = vadd.f32 0.0, %v2113
      %v2115 = vpop.f32.mrf.mxu0
      %2116 = vmatprep.mubr.f32.mxu0 0.0
      %2117 = vmatmul.mubr.f32.gmra.mxu0 %v1631
      %v2118 = vpop.f32.mrf.mxu0
      %v2119 = vadd.f32 0.0, %v2118
      %v2120 = vpop.f32.mrf.mxu0
      %2121 = vmatprep.mubr.f32.mxu0 0.0
      %2122 = vmatmul.mubr.f32.gmra.mxu0 %v1634
      %v2123 = vpop.f32.mrf.mxu0
      %v2124 = vadd.f32 0.0, %v2123
      %v2125 = vpop.f32.mrf.mxu0
      %2126 = vmatprep.mubr.f32.mxu0 0.0
      %2127 = vmatmul.mubr.f32.gmra.mxu0 %v1637
      %v2128 = vpop.f32.mrf.mxu0
      %v2129 = vadd.f32 0.0, %v2128
      %v2130 = vpop.f32.mrf.mxu0
      %2131 = vmatprep.mubr.f32.mxu0 0.0
      %2132 = vmatmul.mubr.f32.gmra.mxu0 %v1640
      %v2133 = vpop.f32.mrf.mxu0
      %v2134 = vadd.f32 0.0, %v2133
      %v2135 = vpop.f32.mrf.mxu0
      %2136 = vmatprep.mubr.f32.mxu0 0.0
      %2137 = vmatmul.mubr.f32.gmra.mxu0 %v1643
      %v2138 = vpop.f32.mrf.mxu0
      %v2139 = vadd.f32 0.0, %v2138
      %v2140 = vpop.f32.mrf.mxu0
      %2141 = vmatprep.mubr.f32.mxu0 0.0
      %2142 = vmatmul.mubr.f32.gmra.mxu0 %v1646
      %v2143 = vpop.f32.mrf.mxu0
      %v2144 = vadd.f32 0.0, %v2143
      %v2145 = vpop.f32.mrf.mxu0
      %2146 = vmatprep.mubr.f32.mxu0 0.0
      %2147 = vmatmul.mubr.f32.gmra.mxu0 %v1649
      %v2148 = vpop.f32.mrf.mxu0
      %v2149 = vadd.f32 0.0, %v2148
      %v2150 = vpop.f32.mrf.mxu0
      %2151 = vmatprep.mubr.f32.mxu0 0.0
      %2152 = vmatmul.mubr.f32.gmra.mxu0 %v1652
      %v2153 = vpop.f32.mrf.mxu0
      %v2154 = vadd.f32 0.0, %v2153
      %v2155 = vpop.f32.mrf.mxu0
      %2156 = vmatprep.mubr.f32.mxu0 0.0
      %2157 = vmatmul.mubr.f32.gmra.mxu0 %v1655
      %v2158 = vpop.f32.mrf.mxu0
      %v2159 = vadd.f32 0.0, %v2158
      %v2160 = vpop.f32.mrf.mxu0
      %2161 = vmatprep.mubr.f32.mxu0 0.0
      %2162 = vmatmul.mubr.f32.gmra.mxu0 %v1658
      %v2163 = vpop.f32.mrf.mxu0
      %v2164 = vadd.f32 0.0, %v2163
      %v2165 = vpop.f32.mrf.mxu0
      %2166 = vmatprep.mubr.f32.mxu0 0.0
      %2167 = vmatmul.mubr.f32.gmra.mxu0 %v1661
      %v2168 = vpop.f32.mrf.mxu0
      %v2169 = vadd.f32 0.0, %v2168
      %v2170 = vpop.f32.mrf.mxu0
      %2171 = vmatprep.mubr.f32.mxu0 0.0
      %2172 = vmatmul.mubr.f32.gmra.mxu0 %v1664
      %v2173 = vpop.f32.mrf.mxu0
      %v2174 = vadd.f32 0.0, %v2173
      %v2175 = vpop.f32.mrf.mxu0
      %2176 = vmatprep.mubr.f32.mxu0 0.0
      %2177 = vmatmul.mubr.f32.gmra.mxu0 %v1667
      %v2178 = vpop.f32.mrf.mxu0
      %v2179 = vadd.f32 0.0, %v2178
      %v2180 = vpop.f32.mrf.mxu0
      %2181 = vmatprep.mubr.f32.mxu0 0.0
      %2182 = vmatmul.mubr.f32.gmra.mxu0 %v1670
      %v2183 = vpop.f32.mrf.mxu0
      %v2184 = vadd.f32 0.0, %v2183
      %v2185 = vpop.f32.mrf.mxu0
      %2186 = vmatprep.mubr.f32.mxu0 0.0
      %2187 = vmatmul.mubr.f32.gmra.mxu0 %v1673
      %v2188 = vpop.f32.mrf.mxu0
      %v2189 = vadd.f32 0.0, %v2188
      %v2190 = vpop.f32.mrf.mxu0
      %2191 = vmatprep.mubr.f32.mxu0 0.0
      %2192 = vmatmul.mubr.f32.gmra.mxu0 %v1676
      %v2193 = vpop.f32.mrf.mxu0
      %v2194 = vadd.f32 0.0, %v2193
      %v2195 = vpop.f32.mrf.mxu0
      %2196 = vmatprep.mubr.f32.mxu0 0.0
      %2197 = vmatmul.mubr.f32.gmra.mxu0 %v1679
      %v2198 = vpop.f32.mrf.mxu0
      %v2199 = vadd.f32 0.0, %v2198
      %v2200 = vpop.f32.mrf.mxu0
      %2201 = vmatprep.mubr.f32.mxu0 0.0
      %2202 = vmatmul.mubr.f32.gmra.mxu0 %v1682
      %v2203 = vpop.f32.mrf.mxu0
      %v2204 = vadd.f32 0.0, %v2203
      %v2205 = vpop.f32.mrf.mxu0
      %2206 = vmatprep.mubr.f32.mxu0 0.0
      %2207 = vmatmul.mubr.f32.gmra.mxu0 %v1685
      %v2208 = vpop.f32.mrf.mxu0
      %v2209 = vadd.f32 0.0, %v2208
      %v2210 = vpop.f32.mrf.mxu0
      %2211 = vmatprep.mubr.f32.mxu0 0.0
      %2212 = vmatmul.mubr.f32.gmra.mxu0 %v1688
      %v2213 = vpop.f32.mrf.mxu0
      %v2214 = vadd.f32 0.0, %v2213
      %v2215 = vpop.f32.mrf.mxu0
      %2216 = vmatprep.mubr.f32.mxu0 0.0
      %2217 = vmatmul.mubr.f32.gmra.mxu0 %v1691
      %v2218 = vpop.f32.mrf.mxu0
      %v2219 = vadd.f32 0.0, %v2218
      %v2220 = vpop.f32.mrf.mxu0
      %2221 = vmatprep.mubr.f32.mxu0 0.0
      %2222 = vmatmul.mubr.f32.gmra.mxu0 %v1694
      %v2223 = vpop.f32.mrf.mxu0
      %v2224 = vadd.f32 0.0, %v2223
      %v2225 = vpop.f32.mrf.mxu0
      %2226 = vmatprep.mubr.f32.mxu0 0.0
      %2227 = vmatmul.mubr.f32.gmra.mxu0 %v1697
      %v2228 = vpop.f32.mrf.mxu0
      %v2229 = vadd.f32 0.0, %v2228
      %v2230 = vpop.f32.mrf.mxu0
      %2231 = vmatprep.mubr.f32.mxu0 0.0
      %2232 = vmatmul.mubr.f32.gmra.mxu0 %v1700
      %v2233 = vpop.f32.mrf.mxu0
      %v2234 = vadd.f32 0.0, %v2233
      %v2235 = vpop.f32.mrf.mxu0
      %2236 = vmatprep.mubr.f32.mxu0 0.0
      %2237 = vmatmul.mubr.f32.gmra.mxu0 %v1703
      %v2238 = vpop.f32.mrf.mxu0
      %v2239 = vadd.f32 0.0, %v2238
      %v2240 = vpop.f32.mrf.mxu0
      %2241 = vmatprep.mubr.f32.mxu0 0.0
      %2242 = vmatmul.mubr.f32.gmra.mxu0 %v1706
      %v2243 = vpop.f32.mrf.mxu0
      %v2244 = vadd.f32 0.0, %v2243
      %v2245 = vpop.f32.mrf.mxu0
      %2246 = vmatprep.mubr.f32.mxu0 0.0
      %2247 = vmatmul.mubr.f32.gmra.mxu0 %v1709
      %v2248 = vpop.f32.mrf.mxu0
      %v2249 = vadd.f32 0.0, %v2248
      %v2250 = vpop.f32.mrf.mxu0
      %2251 = vmatprep.mubr.f32.mxu0 0.0
      %2252 = vmatmul.mubr.f32.gmra.mxu0 %v1712
      %v2253 = vpop.f32.mrf.mxu0
      %v2254 = vadd.f32 0.0, %v2253
      %v2255 = vpop.f32.mrf.mxu0
      %2256 = vmatprep.mubr.f32.mxu0 0.0
      %2257 = vmatmul.mubr.f32.gmra.mxu0 %v1715
      %v2258 = vpop.f32.mrf.mxu0
      %v2259 = vadd.f32 0.0, %v2258
      %v2260 = vpop.f32.mrf.mxu0
      %2261 = vmatprep.mubr.f32.mxu0 0.0
      %2262 = vmatmul.mubr.f32.gmra.mxu0 %v1718
      %v2263 = vpop.f32.mrf.mxu0
      %v2264 = vadd.f32 0.0, %v2263
      %v2265 = vpop.f32.mrf.mxu0
      %2266 = vmatprep.mubr.f32.mxu0 0.0
      %2267 = vmatmul.mubr.f32.gmra.mxu0 %v1721
      %v2268 = vpop.f32.mrf.mxu0
      %v2269 = vadd.f32 0.0, %v2268
      %v2270 = vpop.f32.mrf.mxu0
      %2271 = vmatprep.mubr.f32.mxu0 0.0
      %2272 = vmatmul.mubr.f32.gmra.mxu0 %v1724
      %v2273 = vpop.f32.mrf.mxu0
      %v2274 = vadd.f32 0.0, %v2273
      %v2275 = vpop.f32.mrf.mxu0
      %2276 = vmatprep.mubr.f32.mxu0 0.0
      %2277 = vmatmul.mubr.f32.gmra.mxu0 %v1727
      %v2278 = vpop.f32.mrf.mxu0
      %v2279 = vadd.f32 0.0, %v2278
      %v2280 = vpop.f32.mrf.mxu0
      %2281 = vmatprep.mubr.f32.mxu0 0.0
      %2282 = vmatmul.mubr.f32.gmra.mxu0 %v1730
      %v2283 = vpop.f32.mrf.mxu0
      %v2284 = vadd.f32 0.0, %v2283
      %v2285 = vpop.f32.mrf.mxu0
      %2286 = vmatprep.mubr.f32.mxu0 0.0
      %2287 = vmatmul.mubr.f32.gmra.mxu0 %v1733
      %v2288 = vpop.f32.mrf.mxu0
      %v2289 = vadd.f32 0.0, %v2288
      %v2290 = vpop.f32.mrf.mxu0
      %2291 = vmatprep.mubr.f32.mxu0 0.0
      %2292 = vmatmul.mubr.f32.gmra.mxu0 %v1736
      %v2293 = vpop.f32.mrf.mxu0
      %v2294 = vadd.f32 0.0, %v2293
      %v2295 = vpop.f32.mrf.mxu0
      %2296 = vmatprep.mubr.f32.mxu0 0.0
      %2297 = vmatmul.mubr.f32.gmra.mxu0 %v1739
      %v2298 = vpop.f32.mrf.mxu0
      %v2299 = vadd.f32 0.0, %v2298
      %v2300 = vpop.f32.mrf.mxu0
      %2301 = vmatprep.mubr.f32.mxu0 0.0
      %2302 = vmatmul.mubr.f32.gmra.mxu0 %v1742
      %v2303 = vpop.f32.mrf.mxu0
      %v2304 = vadd.f32 0.0, %v2303
      %v2305 = vpop.f32.mrf.mxu0
      %2306 = vmatprep.mubr.f32.mxu0 0.0
      %2307 = vmatmul.mubr.f32.gmra.mxu0 %v1745
      %v2308 = vpop.f32.mrf.mxu0
      %v2309 = vadd.f32 0.0, %v2308
      %v2310 = vpop.f32.mrf.mxu0
      %2311 = vmatprep.mubr.f32.mxu0 0.0
      %2312 = vmatmul.mubr.f32.gmra.mxu0 %v1748
      %v2313 = vpop.f32.mrf.mxu0
      %v2314 = vadd.f32 0.0, %v2313
      %v2315 = vpop.f32.mrf.mxu0
      %2316 = vmatprep.mubr.f32.mxu0 0.0
      %2317 = vmatmul.mubr.f32.gmra.mxu0 %v1751
      %v2318 = vpop.f32.mrf.mxu0
      %v2319 = vadd.f32 0.0, %v2318
      %v2320 = vpop.f32.mrf.mxu0
      %2321 = vmatprep.mubr.f32.mxu0 0.0
      %2322 = vmatmul.mubr.f32.gmra.mxu0 %v1754
      %v2323 = vpop.f32.mrf.mxu0
      %v2324 = vadd.f32 0.0, %v2323
      %v2325 = vpop.f32.mrf.mxu0
      %2326 = vmatprep.mubr.f32.mxu0 0.0
      %2327 = vmatmul.mubr.f32.gmra.mxu0 %v1757
      %v2328 = vpop.f32.mrf.mxu0
      %v2329 = vadd.f32 0.0, %v2328
      %v2330 = vpop.f32.mrf.mxu0
      %2331 = vmatprep.mubr.f32.mxu0 0.0
      %2332 = vmatmul.mubr.f32.gmra.mxu0 %v1760
      %v2333 = vpop.f32.mrf.mxu0
      %v2334 = vadd.f32 0.0, %v2333
      %v2335 = vpop.f32.mrf.mxu0
      %2336 = vmatprep.mubr.f32.mxu0 0.0
      %2337 = vmatmul.mubr.f32.gmra.mxu0 %v1763
      %v2338 = vpop.f32.mrf.mxu0
      %v2339 = vadd.f32 0.0, %v2338
      %v2340 = vpop.f32.mrf.mxu0
      %2341 = vmatprep.mubr.f32.mxu0 0.0
      %2342 = vmatmul.mubr.f32.gmra.mxu0 %v1766
      %v2343 = vpop.f32.mrf.mxu0
      %v2344 = vadd.f32 0.0, %v2343
      %v2345 = vpop.f32.mrf.mxu0
      %2346 = vmatprep.mubr.f32.mxu0 0.0
      %2347 = vmatmul.mubr.f32.gmra.mxu0 %v1769
      %v2348 = vpop.f32.mrf.mxu0
      %v2349 = vadd.f32 0.0, %v2348
      %v2350 = vpop.f32.mrf.mxu0
      %2351 = vmatprep.mubr.f32.mxu0 0.0
      %2352 = vmatmul.mubr.f32.gmra.mxu0 %v1772
      %v2353 = vpop.f32.mrf.mxu0
      %v2354 = vadd.f32 0.0, %v2353
      %v2355 = vpop.f32.mrf.mxu0
      %2356 = vmatprep.mubr.f32.mxu0 0.0
      %2357 = vmatmul.mubr.f32.gmra.mxu0 %v1775
      %v2358 = vpop.f32.mrf.mxu0
      %v2359 = vadd.f32 0.0, %v2358
      %v2360 = vpop.f32.mrf.mxu0
      %2361 = vmatprep.mubr.f32.mxu0 0.0
      %2362 = vmatmul.mubr.f32.gmra.mxu0 %v1778
      %v2363 = vpop.f32.mrf.mxu0
      %v2364 = vadd.f32 0.0, %v2363
      %v2365 = vpop.f32.mrf.mxu0
      %2366 = vmatprep.mubr.f32.mxu0 0.0
      %2367 = vmatmul.mubr.f32.gmra.mxu0 %v1781
      %v2368 = vpop.f32.mrf.mxu0
      %v2369 = vadd.f32 0.0, %v2368
      %v2370 = vpop.f32.mrf.mxu0
      %2371 = vmatprep.mubr.f32.mxu0 0.0
      %2372 = vmatmul.mubr.f32.gmra.mxu0 %v1784
      %v2373 = vpop.f32.mrf.mxu0
      %v2374 = vadd.f32 0.0, %v2373
      %v2375 = vpop.f32.mrf.mxu0
      %2376 = vmatprep.mubr.f32.mxu0 0.0
      %2377 = vmatmul.mubr.f32.gmra.mxu0 %v1787
      %v2378 = vpop.f32.mrf.mxu0
      %v2379 = vadd.f32 0.0, %v2378
      %v2380 = vpop.f32.mrf.mxu0
      %2381 = vmatprep.mubr.f32.mxu0 0.0
      %2382 = vmatmul.mubr.f32.gmra.mxu0 %v1790
      %v2383 = vpop.f32.mrf.mxu0
      %v2384 = vadd.f32 0.0, %v2383
      %v2385 = vpop.f32.mrf.mxu0
      %2386 = vmatprep.mubr.f32.mxu0 0.0
      %2387 = vmatmul.mubr.f32.gmra.mxu0 %v1793
      %v2388 = vpop.f32.mrf.mxu0
      %v2389 = vadd.f32 0.0, %v2388
      %v2390 = vpop.f32.mrf.mxu0
      %2391 = vmatprep.mubr.f32.mxu0 0.0
      %2392 = vmatmul.mubr.f32.gmra.mxu0 %v1796
      %v2393 = vpop.f32.mrf.mxu0
      %v2394 = vadd.f32 0.0, %v2393
      %v2395 = vpop.f32.mrf.mxu0
      %2396 = vmatprep.mubr.f32.mxu0 0.0
      %2397 = vmatmul.mubr.f32.gmra.mxu0 %v1799
      %v2398 = vpop.f32.mrf.mxu0
      %v2399 = vadd.f32 0.0, %v2398
      %v2400 = vpop.f32.mrf.mxu0
      %2401 = vmatprep.mubr.f32.mxu0 0.0
      %2402 = vmatmul.mubr.f32.gmra.mxu0 %v1802
      %v2403 = vpop.f32.mrf.mxu0
      %v2404 = vadd.f32 0.0, %v2403
      %v2405 = vpop.f32.mrf.mxu0
      %2406 = vmatprep.mubr.f32.mxu0 0.0
      %2407 = vmatmul.mubr.f32.gmra.mxu0 %v1805
      %v2408 = vpop.f32.mrf.mxu0
      %v2409 = vadd.f32 0.0, %v2408
      %v2410 = vpop.f32.mrf.mxu0
      %2411 = vmatprep.mubr.f32.mxu0 0.0
      %2412 = vmatmul.mubr.f32.gmra.mxu0 %v1808
      %v2413 = vpop.f32.mrf.mxu0
      %v2414 = vadd.f32 0.0, %v2413
      %v2415 = vpop.f32.mrf.mxu0
      %2416 = vmatprep.mubr.f32.mxu0 0.0
      %2417 = vmatmul.mubr.f32.gmra.mxu0 %v1811
      %v2418 = vpop.f32.mrf.mxu0
      %v2419 = vadd.f32 0.0, %v2418
      %v2420 = vpop.f32.mrf.mxu0
      %2421 = vmatprep.mubr.f32.mxu0 0.0
      %2422 = vmatmul.mubr.f32.gmra.mxu0 %v1814
      %v2423 = vpop.f32.mrf.mxu0
      %v2424 = vadd.f32 0.0, %v2423
      %v2425 = vpop.f32.mrf.mxu0
      %2426 = vmatprep.mubr.f32.mxu0 0.0
      %2427 = vmatmul.mubr.f32.gmra.mxu0 %v1817
      %v2428 = vpop.f32.mrf.mxu0
      %v2429 = vadd.f32 0.0, %v2428
      %v2430 = vpop.f32.mrf.mxu0
      %2431 = vmatprep.mubr.f32.mxu0 0.0
      %2432 = vmatmul.mubr.f32.gmra.mxu0 %v1820
      %v2433 = vpop.f32.mrf.mxu0
      %v2434 = vadd.f32 0.0, %v2433
      %v2435 = vpop.f32.mrf.mxu0
      %2436 = vmatprep.mubr.f32.mxu0 0.0
      %2437 = vmatmul.mubr.f32.gmra.mxu0 %v1823
      %v2438 = vpop.f32.mrf.mxu0
      %v2439 = vadd.f32 0.0, %v2438
      %v2440 = vpop.f32.mrf.mxu0
      %2441 = vmatprep.mubr.f32.mxu0 0.0
      %2442 = vmatmul.mubr.f32.gmra.mxu0 %v1826
      %v2443 = vpop.f32.mrf.mxu0
      %v2444 = vadd.f32 0.0, %v2443
      %v2445 = vpop.f32.mrf.mxu0
      %2446 = vmatprep.mubr.f32.mxu0 0.0
      %2447 = vmatmul.mubr.f32.gmra.mxu0 %v1829
      %v2448 = vpop.f32.mrf.mxu0
      %v2449 = vadd.f32 0.0, %v2448
      %v2450 = vpop.f32.mrf.mxu0
      %2451 = vmatprep.mubr.f32.mxu0 0.0
      %2452 = vmatmul.mubr.f32.gmra.mxu0 %v1832
      %v2453 = vpop.f32.mrf.mxu0
      %v2454 = vadd.f32 0.0, %v2453
      %v2455 = vpop.f32.mrf.mxu0
      %2456 = vmatprep.mubr.f32.mxu0 0.0
      %2457 = vmatmul.mubr.f32.gmra.mxu0 %v1835
      %v2458 = vpop.f32.mrf.mxu0
      %v2459 = vadd.f32 0.0, %v2458
      %v2460 = vpop.f32.mrf.mxu0
      %2461 = vmatprep.mubr.f32.mxu0 0.0
      %2462 = vmatmul.mubr.f32.gmra.mxu0 %v1838
      %v2463 = vpop.f32.mrf.mxu0
      %v2464 = vadd.f32 0.0, %v2463
      %v2465 = vpop.f32.mrf.mxu0
      %2466 = vmatprep.mubr.f32.mxu0 0.0
      %2467 = vmatmul.mubr.f32.gmra.mxu0 %v1841
      %v2468 = vpop.f32.mrf.mxu0
      %v2469 = vadd.f32 0.0, %v2468
      %v2470 = vpop.f32.mrf.mxu0
      %2471 = vmatprep.mubr.f32.mxu0 0.0
      %2472 = vmatmul.mubr.f32.gmra.mxu0 %v1844
      %v2473 = vpop.f32.mrf.mxu0
      %v2474 = vadd.f32 0.0, %v2473
      %v2475 = vpop.f32.mrf.mxu0
      %2476 = vmatprep.mubr.f32.mxu0 0.0
      %2477 = vmatmul.mubr.f32.gmra.mxu0 %v1847
      %v2478 = vpop.f32.mrf.mxu0
      %v2479 = vadd.f32 0.0, %v2478
      %v2480 = vpop.f32.mrf.mxu0
      %2481 = vmatprep.mubr.f32.mxu0 0.0
      %2482 = vmatmul.mubr.f32.gmra.mxu0 %v1850
      %v2483 = vpop.f32.mrf.mxu0
      %v2484 = vadd.f32 0.0, %v2483
      %v2485 = vpop.f32.mrf.mxu0
      %2486 = vmatprep.mubr.f32.mxu0 0.0
      %2487 = vmatmul.mubr.f32.gmra.mxu0 %v1853
      %v2488 = vpop.f32.mrf.mxu0
      %v2489 = vadd.f32 0.0, %v2488
      %v2490 = vpop.f32.mrf.mxu0
      %2491 = vmatprep.mubr.f32.mxu0 0.0
      %2492 = vmatmul.mubr.f32.gmra.mxu0 %v1856
      %v2493 = vpop.f32.mrf.mxu0
      %v2494 = vadd.f32 0.0, %v2493
      %v2495 = vpop.f32.mrf.mxu0
      %2496 = vmatprep.mubr.f32.mxu0 0.0
      %2497 = vmatmul.mubr.f32.gmra.mxu0 %v1859
      %v2498 = vpop.f32.mrf.mxu0
      %v2499 = vadd.f32 0.0, %v2498
      %v2500 = vpop.f32.mrf.mxu0
      %2501 = vmatprep.mubr.f32.mxu0 0.0
      %2502 = vmatmul.mubr.f32.gmra.mxu0 %v1862
      %v2503 = vpop.f32.mrf.mxu0
      %v2504 = vadd.f32 0.0, %v2503
      %v2505 = vpop.f32.mrf.mxu0
      %2506 = vmatprep.mubr.f32.mxu0 0.0
      %2507 = vmatmul.mubr.f32.gmra.mxu0 %v1865
      %v2508 = vpop.f32.mrf.mxu0
      %v2509 = vadd.f32 0.0, %v2508
      %v2510 = vpop.f32.mrf.mxu0
      %2511 = vmatprep.mubr.f32.mxu0 0.0
      %2512 = vmatmul.mubr.f32.gmra.mxu0 %v1868
      %v2513 = vpop.f32.mrf.mxu0
      %v2514 = vadd.f32 0.0, %v2513
      %v2515 = vpop.f32.mrf.mxu0
      %2516 = vmatprep.mubr.f32.mxu0 0.0
      %2517 = vmatmul.mubr.f32.gmra.mxu0 %v1871
      %v2518 = vpop.f32.mrf.mxu0
      %v2519 = vadd.f32 0.0, %v2518
      %v2520 = vpop.f32.mrf.mxu0
      %2521 = vmatprep.mubr.f32.mxu0 0.0
      %2522 = vmatmul.mubr.f32.gmra.mxu0 %v1874
      %v2523 = vpop.f32.mrf.mxu0
      %v2524 = vadd.f32 0.0, %v2523
      %v2525 = vpop.f32.mrf.mxu0
      %2526 = vmatprep.mubr.f32.mxu0 0.0
      %2527 = vmatmul.mubr.f32.gmra.mxu0 %v1877
      %v2528 = vpop.f32.mrf.mxu0
      %v2529 = vadd.f32 0.0, %v2528
      %v2530 = vpop.f32.mrf.mxu0
      %2531 = vmatprep.mubr.f32.mxu0 0.0
      %2532 = vmatmul.mubr.f32.gmra.mxu0 %v1880
      %v2533 = vpop.f32.mrf.mxu0
      %v2534 = vadd.f32 0.0, %v2533
      %v2535 = vpop.f32.mrf.mxu0
      %2536 = vmatprep.mubr.f32.mxu0 0.0
      %2537 = vmatmul.mubr.f32.gmra.mxu0 %v1883
      %v2538 = vpop.f32.mrf.mxu0
      %v2539 = vadd.f32 0.0, %v2538
      %v2540 = vpop.f32.mrf.mxu0
      %2541 = vmatprep.mubr.f32.mxu0 0.0
      %2542 = vmatmul.mubr.f32.gmra.mxu0 %v1886
      %v2543 = vpop.f32.mrf.mxu0
      %v2544 = vadd.f32 0.0, %v2543
      %v2545 = vpop.f32.mrf.mxu0
      %2546 = vmatprep.mubr.f32.mxu0 0.0
      %2547 = vmatmul.mubr.f32.gmra.mxu0 %v1889
      %v2548 = vpop.f32.mrf.mxu0
      %v2549 = vadd.f32 0.0, %v2548
      %v2550 = vpop.f32.mrf.mxu0
      %2551 = vmatprep.mubr.f32.mxu0 0.0
      %2552 = vmatmul.mubr.f32.gmra.mxu0 %v1892
      %v2553 = vpop.f32.mrf.mxu0
      %v2554 = vadd.f32 0.0, %v2553
      %v2555 = vpop.f32.mrf.mxu0
      %2556 = vmatprep.mubr.f32.mxu0 0.0
      %2557 = vmatmul.mubr.f32.gmra.mxu0 %v1895
      %v2558 = vpop.f32.mrf.mxu0
      %v2559 = vadd.f32 0.0, %v2558
      %v2560 = vpop.f32.mrf.mxu0
      %2561 = vmatprep.mubr.f32.mxu0 0.0
      %2562 = vmatmul.mubr.f32.gmra.mxu0 %v1898
      %v2563 = vpop.f32.mrf.mxu0
      %v2564 = vadd.f32 0.0, %v2563
      %v2565 = vpop.f32.mrf.mxu0
      %2566 = vmatprep.mubr.f32.mxu0 0.0
      %2567 = vmatmul.mubr.f32.gmra.mxu0 %v1901
      %v2568 = vpop.f32.mrf.mxu0
      %v2569 = vadd.f32 0.0, %v2568
      %v2570 = vpop.f32.mrf.mxu0
      %2571 = vmatprep.mubr.f32.mxu0 0.0
      %2572 = vmatmul.mubr.f32.gmra.mxu0 %v1904
      %v2573 = vpop.f32.mrf.mxu0
      %v2574 = vadd.f32 0.0, %v2573
      %v2575 = vpop.f32.mrf.mxu0
      %2576 = vmatprep.mubr.f32.mxu0 0.0
      %2577 = vmatmul.mubr.f32.gmra.mxu0 %v1907
      %v2578 = vpop.f32.mrf.mxu0
      %v2579 = vadd.f32 0.0, %v2578
      %v2580 = vpop.f32.mrf.mxu0
      %2581 = vmatprep.mubr.f32.mxu0 0.0
      %2582 = vmatmul.mubr.f32.gmra.mxu0 %v1910
      %v2583 = vpop.f32.mrf.mxu0
      %v2584 = vadd.f32 0.0, %v2583
      %v2585 = vpop.f32.mrf.mxu0
      %2586 = vmatprep.mubr.f32.mxu0 0.0
      %2587 = vmatmul.mubr.f32.gmra.mxu0 %v1913
      %v2588 = vpop.f32.mrf.mxu0
      %v2589 = vadd.f32 0.0, %v2588
      %v2590 = vpop.f32.mrf.mxu0
      %2591 = vmatprep.mubr.f32.mxu0 0.0
      %2592 = vmatmul.mubr.f32.gmra.mxu0 %v1916
      %v2593 = vpop.f32.mrf.mxu0
      %v2594 = vadd.f32 0.0, %v2593
      %v2595 = vpop.f32.mrf.mxu0
      %2596 = vmatprep.mubr.f32.mxu0 0.0
      %2597 = vmatmul.mubr.f32.gmra.mxu0 %v1919
      %v2598 = vpop.f32.mrf.mxu0
      %v2599 = vadd.f32 0.0, %v2598
      %v2600 = vpop.f32.mrf.mxu0
      %2601 = vmatprep.mubr.f32.mxu0 0.0
      %2602 = vmatmul.mubr.f32.gmra.mxu0 %v1922
      %v2603 = vpop.f32.mrf.mxu0
      %v2604 = vadd.f32 0.0, %v2603
      %v2605 = vpop.f32.mrf.mxu0
      %2606 = vmatprep.mubr.f32.mxu0 0.0
      %2607 = vmatmul.mubr.f32.gmra.mxu0 %v1925
      %v2608 = vpop.f32.mrf.mxu0
      %v2609 = vadd.f32 0.0, %v2608
      %v2610 = vpop.f32.mrf.mxu0
      %2611 = vmatprep.mubr.f32.mxu0 0.0
      %2612 = vmatmul.mubr.f32.gmra.mxu0 %v1928
      %v2613 = vpop.f32.mrf.mxu0
      %v2614 = vadd.f32 0.0, %v2613
      %v2615 = vpop.f32.mrf.mxu0
      %2616 = vmatprep.mubr.f32.mxu0 0.0
      %2617 = vmatmul.mubr.f32.gmra.mxu0 %v1931
      %v2618 = vpop.f32.mrf.mxu0
      %v2619 = vadd.f32 0.0, %v2618
      %v2620 = vpop.f32.mrf.mxu0
      %2621 = vmatprep.mubr.f32.mxu0 0.0
      %2622 = vmatmul.mubr.f32.gmra.mxu0 %v1934
      %v2623 = vpop.f32.mrf.mxu0
      %v2624 = vadd.f32 0.0, %v2623
      %v2625 = vpop.f32.mrf.mxu0
      %2626 = vmatprep.mubr.f32.mxu0 0.0
      %2627 = vmatmul.mubr.f32.gmra.mxu0 %v1937
      %v2628 = vpop.f32.mrf.mxu0
      %v2629 = vadd.f32 0.0, %v2628
      %v2630 = vpop.f32.mrf.mxu0
      %2631 = vmatprep.mubr.f32.mxu0 0.0
      %2632 = vmatmul.mubr.f32.gmra.mxu0 %v1940
      %v2633 = vpop.f32.mrf.mxu0
      %v2634 = vadd.f32 0.0, %v2633
      %v2635 = vpop.f32.mrf.mxu0
      %2636 = vmatprep.mubr.f32.mxu0 0.0
      %2637 = vmatmul.mubr.f32.gmra.mxu0 %v1943
      %v2638 = vpop.f32.mrf.mxu0
      %v2639 = vadd.f32 0.0, %v2638
      %v2640 = vpop.f32.mrf.mxu0
      %2641 = vmatprep.mubr.f32.mxu0 0.0
      %2642 = vmatmul.mubr.f32.gmra.mxu0 %v1946
      %v2643 = vpop.f32.mrf.mxu0
      %v2644 = vadd.f32 0.0, %v2643
      %v2645 = vpop.f32.mrf.mxu0
      %2646 = vmatprep.mubr.f32.mxu0 0.0
      %2647 = vmatmul.mubr.f32.gmra.mxu0 %v1949
      %v2648 = vpop.f32.mrf.mxu0
      %v2649 = vadd.f32 0.0, %v2648
      %v2650 = vpop.f32.mrf.mxu0
      %2651 = vmatprep.mubr.f32.mxu0 0.0
      %2652 = vmatmul.mubr.f32.gmra.mxu0 %v1952
      %v2653 = vpop.f32.mrf.mxu0
      %v2654 = vadd.f32 0.0, %v2653
      %v2655 = vpop.f32.mrf.mxu0
      %2656 = vmatprep.mubr.f32.mxu0 0.0
      %2657 = vmatmul.mubr.f32.gmra.mxu0 %v1955
      %v2658 = vpop.f32.mrf.mxu0
      %v2659 = vadd.f32 0.0, %v2658
      %v2660 = vpop.f32.mrf.mxu0
      %2661 = vmatprep.mubr.f32.mxu0 0.0
      %2662 = vmatmul.mubr.f32.gmra.mxu0 %v1958
      %v2663 = vpop.f32.mrf.mxu0
      %v2664 = vadd.f32 0.0, %v2663
      %v2665 = vpop.f32.mrf.mxu0
      %2666 = vmatprep.mubr.f32.mxu0 0.0
      %2667 = vmatmul.mubr.f32.gmra.mxu0 %v1961
      %v2668 = vpop.f32.mrf.mxu0
      %v2669 = vadd.f32 0.0, %v2668
      %v2670 = vpop.f32.mrf.mxu0
      %2671 = vdwg.mxu0
      %2672 = vst [vmem:[%s266] sm:$0xff] %v2034
      %2673 = vst [vmem:[%s266 + $0x8] sm:$0xff] %v2039
      %2674 = vst [vmem:[%s266 + $0x10] sm:$0xff] %v2044
      %2675 = vst [vmem:[%s266 + $0x18] sm:$0xff] %v2049
      %2676 = vst [vmem:[%s266 + $0x20] sm:$0xff] %v2054
      %2677 = vst [vmem:[%s266 + $0x28] sm:$0xff] %v2059
      %2678 = vst [vmem:[%s266 + $0x30] sm:$0xff] %v2064
      %2679 = vst [vmem:[%s266 + $0x38] sm:$0xff] %v2069
      %2680 = vst [vmem:[%s266 + $0x40] sm:$0xff] %v2074
      %2681 = vst [vmem:[%s266 + $0x48] sm:$0xff] %v2079
      %2682 = vst [vmem:[%s266 + $0x50] sm:$0xff] %v2084
      %2683 = vst [vmem:[%s266 + $0x58] sm:$0xff] %v2089
      %2684 = vst [vmem:[%s266 + $0x60] sm:$0xff] %v2094
      %2685 = vst [vmem:[%s266 + $0x68] sm:$0xff] %v2099
      %2686 = vst [vmem:[%s266 + $0x70] sm:$0xff] %v2104
      %2687 = vst [vmem:[%s266 + $0x78] sm:$0xff] %v2109
      %2688 = vst [vmem:[%s266 + $0x80] sm:$0xff] %v2114
      %2689 = vst [vmem:[%s266 + $0x88] sm:$0xff] %v2119
      %2690 = vst [vmem:[%s266 + $0x90] sm:$0xff] %v2124
      %2691 = vst [vmem:[%s266 + $0x98] sm:$0xff] %v2129
      %2692 = vst [vmem:[%s266 + $0xa0] sm:$0xff] %v2134
      %2693 = vst [vmem:[%s266 + $0xa8] sm:$0xff] %v2139
      %2694 = vst [vmem:[%s266 + $0xb0] sm:$0xff] %v2144
      %2695 = vst [vmem:[%s266 + $0xb8] sm:$0xff] %v2149
      %2696 = vst [vmem:[%s266 + $0xc0] sm:$0xff] %v2154
      %2697 = vst [vmem:[%s266 + $0xc8] sm:$0xff] %v2159
      %2698 = vst [vmem:[%s266 + $0xd0] sm:$0xff] %v2164
      %2699 = vst [vmem:[%s266 + $0xd8] sm:$0xff] %v2169
      %2700 = vst [vmem:[%s266 + $0xe0] sm:$0xff] %v2174
      %2701 = vst [vmem:[%s266 + $0xe8] sm:$0xff] %v2179
      %2702 = vst [vmem:[%s266 + $0xf0] sm:$0xff] %v2184
      %2703 = vst [vmem:[%s266 + $0xf8] sm:$0xff] %v2189
      %2704 = vst [vmem:[%s266 + $0x100] sm:$0xff] %v2194
      %2705 = vst [vmem:[%s266 + $0x108] sm:$0xff] %v2199
      %2706 = vst [vmem:[%s266 + $0x110] sm:$0xff] %v2204
      %2707 = vst [vmem:[%s266 + $0x118] sm:$0xff] %v2209
      %2708 = vst [vmem:[%s266 + $0x120] sm:$0xff] %v2214
      %2709 = vst [vmem:[%s266 + $0x128] sm:$0xff] %v2219
      %2710 = vst [vmem:[%s266 + $0x130] sm:$0xff] %v2224
      %2711 = vst [vmem:[%s266 + $0x138] sm:$0xff] %v2229
      %2712 = vst [vmem:[%s266 + $0x140] sm:$0xff] %v2234
      %2713 = vst [vmem:[%s266 + $0x148] sm:$0xff] %v2239
      %2714 = vst [vmem:[%s266 + $0x150] sm:$0xff] %v2244
      %2715 = vst [vmem:[%s266 + $0x158] sm:$0xff] %v2249
      %2716 = vst [vmem:[%s266 + $0x160] sm:$0xff] %v2254
      %2717 = vst [vmem:[%s266 + $0x168] sm:$0xff] %v2259
      %2718 = vst [vmem:[%s266 + $0x170] sm:$0xff] %v2264
      %2719 = vst [vmem:[%s266 + $0x178] sm:$0xff] %v2269
      %2720 = vst [vmem:[%s266 + $0x180] sm:$0xff] %v2274
      %2721 = vst [vmem:[%s266 + $0x188] sm:$0xff] %v2279
      %2722 = vst [vmem:[%s266 + $0x190] sm:$0xff] %v2284
      %2723 = vst [vmem:[%s266 + $0x198] sm:$0xff] %v2289
      %2724 = vst [vmem:[%s266 + $0x1a0] sm:$0xff] %v2294
      %2725 = vst [vmem:[%s266 + $0x1a8] sm:$0xff] %v2299
      %2726 = vst [vmem:[%s266 + $0x1b0] sm:$0xff] %v2304
      %2727 = vst [vmem:[%s266 + $0x1b8] sm:$0xff] %v2309
      %2728 = vst [vmem:[%s266 + $0x1c0] sm:$0xff] %v2314
      %2729 = vst [vmem:[%s266 + $0x1c8] sm:$0xff] %v2319
      %2730 = vst [vmem:[%s266 + $0x1d0] sm:$0xff] %v2324
      %2731 = vst [vmem:[%s266 + $0x1d8] sm:$0xff] %v2329
      %2732 = vst [vmem:[%s266 + $0x1e0] sm:$0xff] %v2334
      %2733 = vst [vmem:[%s266 + $0x1e8] sm:$0xff] %v2339
      %2734 = vst [vmem:[%s266 + $0x1f0] sm:$0xff] %v2344
      %2735 = vst [vmem:[%s266 + $0x1f8] sm:$0xff] %v2349
      %2736 = vst [vmem:[%s266 + $0x200] sm:$0xff] %v2354
      %2737 = vst [vmem:[%s266 + $0x208] sm:$0xff] %v2359
      %2738 = vst [vmem:[%s266 + $0x210] sm:$0xff] %v2364
      %2739 = vst [vmem:[%s266 + $0x218] sm:$0xff] %v2369
      %2740 = vst [vmem:[%s266 + $0x220] sm:$0xff] %v2374
      %2741 = vst [vmem:[%s266 + $0x228] sm:$0xff] %v2379
      %2742 = vst [vmem:[%s266 + $0x230] sm:$0xff] %v2384
      %2743 = vst [vmem:[%s266 + $0x238] sm:$0xff] %v2389
      %2744 = vst [vmem:[%s266 + $0x240] sm:$0xff] %v2394
      %2745 = vst [vmem:[%s266 + $0x248] sm:$0xff] %v2399
      %2746 = vst [vmem:[%s266 + $0x250] sm:$0xff] %v2404
      %2747 = vst [vmem:[%s266 + $0x258] sm:$0xff] %v2409
      %2748 = vst [vmem:[%s266 + $0x260] sm:$0xff] %v2414
      %2749 = vst [vmem:[%s266 + $0x268] sm:$0xff] %v2419
      %2750 = vst [vmem:[%s266 + $0x270] sm:$0xff] %v2424
      %2751 = vst [vmem:[%s266 + $0x278] sm:$0xff] %v2429
      %2752 = vst [vmem:[%s266 + $0x280] sm:$0xff] %v2434
      %2753 = vst [vmem:[%s266 + $0x288] sm:$0xff] %v2439
      %2754 = vst [vmem:[%s266 + $0x290] sm:$0xff] %v2444
      %2755 = vst [vmem:[%s266 + $0x298] sm:$0xff] %v2449
      %2756 = vst [vmem:[%s266 + $0x2a0] sm:$0xff] %v2454
      %2757 = vst [vmem:[%s266 + $0x2a8] sm:$0xff] %v2459
      %2758 = vst [vmem:[%s266 + $0x2b0] sm:$0xff] %v2464
      %2759 = vst [vmem:[%s266 + $0x2b8] sm:$0xff] %v2469
      %2760 = vst [vmem:[%s266 + $0x2c0] sm:$0xff] %v2474
      %2761 = vst [vmem:[%s266 + $0x2c8] sm:$0xff] %v2479
      %2762 = vst [vmem:[%s266 + $0x2d0] sm:$0xff] %v2484
      %2763 = vst [vmem:[%s266 + $0x2d8] sm:$0xff] %v2489
      %2764 = vst [vmem:[%s266 + $0x2e0] sm:$0xff] %v2494
      %2765 = vst [vmem:[%s266 + $0x2e8] sm:$0xff] %v2499
      %2766 = vst [vmem:[%s266 + $0x2f0] sm:$0xff] %v2504
      %2767 = vst [vmem:[%s266 + $0x2f8] sm:$0xff] %v2509
      %2768 = vst [vmem:[%s266 + $0x300] sm:$0xff] %v2514
      %2769 = vst [vmem:[%s266 + $0x308] sm:$0xff] %v2519
      %2770 = vst [vmem:[%s266 + $0x310] sm:$0xff] %v2524
      %2771 = vst [vmem:[%s266 + $0x318] sm:$0xff] %v2529
      %2772 = vst [vmem:[%s266 + $0x320] sm:$0xff] %v2534
      %2773 = vst [vmem:[%s266 + $0x328] sm:$0xff] %v2539
      %2774 = vst [vmem:[%s266 + $0x330] sm:$0xff] %v2544
      %2775 = vst [vmem:[%s266 + $0x338] sm:$0xff] %v2549
      %2776 = vst [vmem:[%s266 + $0x340] sm:$0xff] %v2554
      %2777 = vst [vmem:[%s266 + $0x348] sm:$0xff] %v2559
      %2778 = vst [vmem:[%s266 + $0x350] sm:$0xff] %v2564
      %2779 = vst [vmem:[%s266 + $0x358] sm:$0xff] %v2569
      %2780 = vst [vmem:[%s266 + $0x360] sm:$0xff] %v2574
      %2781 = vst [vmem:[%s266 + $0x368] sm:$0xff] %v2579
      %2782 = vst [vmem:[%s266 + $0x370] sm:$0xff] %v2584
      %2783 = vst [vmem:[%s266 + $0x378] sm:$0xff] %v2589
      %2784 = vst [vmem:[%s266 + $0x380] sm:$0xff] %v2594
      %2785 = vst [vmem:[%s266 + $0x388] sm:$0xff] %v2599
      %2786 = vst [vmem:[%s266 + $0x390] sm:$0xff] %v2604
      %2787 = vst [vmem:[%s266 + $0x398] sm:$0xff] %v2609
      %2788 = vst [vmem:[%s266 + $0x3a0] sm:$0xff] %v2614
      %2789 = vst [vmem:[%s266 + $0x3a8] sm:$0xff] %v2619
      %2790 = vst [vmem:[%s266 + $0x3b0] sm:$0xff] %v2624
      %2791 = vst [vmem:[%s266 + $0x3b8] sm:$0xff] %v2629
      %2792 = vst [vmem:[%s266 + $0x3c0] sm:$0xff] %v2634
      %2793 = vst [vmem:[%s266 + $0x3c8] sm:$0xff] %v2639
      %2794 = vst [vmem:[%s266 + $0x3d0] sm:$0xff] %v2644
      %2795 = vst [vmem:[%s266 + $0x3d8] sm:$0xff] %v2649
      %2796 = vst [vmem:[%s266 + $0x3e0] sm:$0xff] %v2654
      %2797 = vst [vmem:[%s266 + $0x3e8] sm:$0xff] %v2659
      %2798 = vst [vmem:[%s266 + $0x3f0] sm:$0xff] %v2664
      %2799 = vst [vmem:[%s266 + $0x3f8] sm:$0xff] %v2669
      %v2800 = vadd.f32 %v2034, %v2039
      %v2801 = vadd.f32 %v2800, %v2044
      %v2802 = vadd.f32 %v2801, %v2049
      %v2803 = vadd.f32 %v2802, %v2054
      %v2804 = vadd.f32 %v2803, %v2059
      %v2805 = vadd.f32 %v2804, %v2064
      %v2806 = vadd.f32 %v2805, %v2069
      %v2807 = vadd.f32 %v2806, %v2074
      %v2808 = vadd.f32 %v2807, %v2079
      %v2809 = vadd.f32 %v2808, %v2084
      %v2810 = vadd.f32 %v2809, %v2089
      %v2811 = vadd.f32 %v2810, %v2094
      %v2812 = vadd.f32 %v2811, %v2099
      %v2813 = vadd.f32 %v2812, %v2104
      %v2814 = vadd.f32 %v2813, %v2109
      %v2815 = vadd.f32 %v2814, %v2114
      %v2816 = vadd.f32 %v2815, %v2119
      %v2817 = vadd.f32 %v2816, %v2124
      %v2818 = vadd.f32 %v2817, %v2129
      %v2819 = vadd.f32 %v2818, %v2134
      %v2820 = vadd.f32 %v2819, %v2139
      %v2821 = vadd.f32 %v2820, %v2144
      %v2822 = vadd.f32 %v2821, %v2149
      %v2823 = vadd.f32 %v2822, %v2154
      %v2824 = vadd.f32 %v2823, %v2159
      %v2825 = vadd.f32 %v2824, %v2164
      %v2826 = vadd.f32 %v2825, %v2169
      %v2827 = vadd.f32 %v2826, %v2174
      %v2828 = vadd.f32 %v2827, %v2179
      %v2829 = vadd.f32 %v2828, %v2184
      %v2830 = vadd.f32 %v2829, %v2189
      %v2831 = vadd.f32 %v2830, %v2194
      %v2832 = vadd.f32 %v2831, %v2199
      %v2833 = vadd.f32 %v2832, %v2204
      %v2834 = vadd.f32 %v2833, %v2209
      %v2835 = vadd.f32 %v2834, %v2214
      %v2836 = vadd.f32 %v2835, %v2219
      %v2837 = vadd.f32 %v2836, %v2224
      %v2838 = vadd.f32 %v2837, %v2229
      %v2839 = vadd.f32 %v2838, %v2234
      %v2840 = vadd.f32 %v2839, %v2239
      %v2841 = vadd.f32 %v2840, %v2244
      %v2842 = vadd.f32 %v2841, %v2249
      %v2843 = vadd.f32 %v2842, %v2254
      %v2844 = vadd.f32 %v2843, %v2259
      %v2845 = vadd.f32 %v2844, %v2264
      %v2846 = vadd.f32 %v2845, %v2269
      %v2847 = vadd.f32 %v2846, %v2274
      %v2848 = vadd.f32 %v2847, %v2279
      %v2849 = vadd.f32 %v2848, %v2284
      %v2850 = vadd.f32 %v2849, %v2289
      %v2851 = vadd.f32 %v2850, %v2294
      %v2852 = vadd.f32 %v2851, %v2299
      %v2853 = vadd.f32 %v2852, %v2304
      %v2854 = vadd.f32 %v2853, %v2309
      %v2855 = vadd.f32 %v2854, %v2314
      %v2856 = vadd.f32 %v2855, %v2319
      %v2857 = vadd.f32 %v2856, %v2324
      %v2858 = vadd.f32 %v2857, %v2329
      %v2859 = vadd.f32 %v2858, %v2334
      %v2860 = vadd.f32 %v2859, %v2339
      %v2861 = vadd.f32 %v2860, %v2344
      %v2862 = vadd.f32 %v2861, %v2349
      %v2863 = vadd.f32 %v2862, %v2354
      %v2864 = vadd.f32 %v2863, %v2359
      %v2865 = vadd.f32 %v2864, %v2364
      %v2866 = vadd.f32 %v2865, %v2369
      %v2867 = vadd.f32 %v2866, %v2374
      %v2868 = vadd.f32 %v2867, %v2379
      %v2869 = vadd.f32 %v2868, %v2384
      %v2870 = vadd.f32 %v2869, %v2389
      %v2871 = vadd.f32 %v2870, %v2394
      %v2872 = vadd.f32 %v2871, %v2399
      %v2873 = vadd.f32 %v2872, %v2404
      %v2874 = vadd.f32 %v2873, %v2409
      %v2875 = vadd.f32 %v2874, %v2414
      %v2876 = vadd.f32 %v2875, %v2419
      %v2877 = vadd.f32 %v2876, %v2424
      %v2878 = vadd.f32 %v2877, %v2429
      %v2879 = vadd.f32 %v2878, %v2434
      %v2880 = vadd.f32 %v2879, %v2439
      %v2881 = vadd.f32 %v2880, %v2444
      %v2882 = vadd.f32 %v2881, %v2449
      %v2883 = vadd.f32 %v2882, %v2454
      %v2884 = vadd.f32 %v2883, %v2459
      %v2885 = vadd.f32 %v2884, %v2464
      %v2886 = vadd.f32 %v2885, %v2469
      %v2887 = vadd.f32 %v2886, %v2474
      %v2888 = vadd.f32 %v2887, %v2479
      %v2889 = vadd.f32 %v2888, %v2484
      %v2890 = vadd.f32 %v2889, %v2489
      %v2891 = vadd.f32 %v2890, %v2494
      %v2892 = vadd.f32 %v2891, %v2499
      %v2893 = vadd.f32 %v2892, %v2504
      %v2894 = vadd.f32 %v2893, %v2509
      %v2895 = vadd.f32 %v2894, %v2514
      %v2896 = vadd.f32 %v2895, %v2519
      %v2897 = vadd.f32 %v2896, %v2524
      %v2898 = vadd.f32 %v2897, %v2529
      %v2899 = vadd.f32 %v2898, %v2534
      %v2900 = vadd.f32 %v2899, %v2539
      %v2901 = vadd.f32 %v2900, %v2544
      %v2902 = vadd.f32 %v2901, %v2549
      %v2903 = vadd.f32 %v2902, %v2554
      %v2904 = vadd.f32 %v2903, %v2559
      %v2905 = vadd.f32 %v2904, %v2564
      %v2906 = vadd.f32 %v2905, %v2569
      %v2907 = vadd.f32 %v2906, %v2574
      %v2908 = vadd.f32 %v2907, %v2579
      %v2909 = vadd.f32 %v2908, %v2584
      %v2910 = vadd.f32 %v2909, %v2589
      %v2911 = vadd.f32 %v2910, %v2594
      %v2912 = vadd.f32 %v2911, %v2599
      %v2913 = vadd.f32 %v2912, %v2604
      %v2914 = vadd.f32 %v2913, %v2609
      %v2915 = vadd.f32 %v2914, %v2614
      %v2916 = vadd.f32 %v2915, %v2619
      %v2917 = vadd.f32 %v2916, %v2624
      %v2918 = vadd.f32 %v2917, %v2629
      %v2919 = vadd.f32 %v2918, %v2634
      %v2920 = vadd.f32 %v2919, %v2639
      %v2921 = vadd.f32 %v2920, %v2644
      %v2922 = vadd.f32 %v2921, %v2649
      %v2923 = vadd.f32 %v2922, %v2654
      %v2924 = vadd.f32 %v2923, %v2659
      %v2925 = vadd.f32 %v2924, %v2664
      %v2926 = vadd.f32 %v2925, %v2669
      %v2927 = vrot.slane %v2926, 4
      %v2928 = vadd.f32 %v2926, %v2927
      %v2929 = vrot.slane %v2928, 2
      %v2930 = vadd.f32 %v2928, %v2929
      %v2931 = vrot.slane %v2930, 1
      %v2932 = vadd.f32 %v2930, %v2931
      %2933 = vst [vmem:[%s271] sm:$0xff] %v2932
      %v2934 = vmul.f32 %v2034, %v2034
      %v2935 = vmul.f32 %v2039, %v2039
      %v2936 = vmul.f32 %v2044, %v2044
      %v2937 = vmul.f32 %v2049, %v2049
      %v2938 = vmul.f32 %v2054, %v2054
      %v2939 = vmul.f32 %v2059, %v2059
      %v2940 = vmul.f32 %v2064, %v2064
      %v2941 = vmul.f32 %v2069, %v2069
      %v2942 = vmul.f32 %v2074, %v2074
      %v2943 = vmul.f32 %v2079, %v2079
      %v2944 = vmul.f32 %v2084, %v2084
      %v2945 = vmul.f32 %v2089, %v2089
      %v2946 = vmul.f32 %v2094, %v2094
      %v2947 = vmul.f32 %v2099, %v2099
      %v2948 = vmul.f32 %v2104, %v2104
      %v2949 = vmul.f32 %v2109, %v2109
      %v2950 = vmul.f32 %v2114, %v2114
      %v2951 = vmul.f32 %v2119, %v2119
      %v2952 = vmul.f32 %v2124, %v2124
      %v2953 = vmul.f32 %v2129, %v2129
      %v2954 = vmul.f32 %v2134, %v2134
      %v2955 = vmul.f32 %v2139, %v2139
      %v2956 = vmul.f32 %v2144, %v2144
      %v2957 = vmul.f32 %v2149, %v2149
      %v2958 = vmul.f32 %v2154, %v2154
      %v2959 = vmul.f32 %v2159, %v2159
      %v2960 = vmul.f32 %v2164, %v2164
      %v2961 = vmul.f32 %v2169, %v2169
      %v2962 = vmul.f32 %v2174, %v2174
      %v2963 = vmul.f32 %v2179, %v2179
      %v2964 = vmul.f32 %v2184, %v2184
      %v2965 = vmul.f32 %v2189, %v2189
      %v2966 = vmul.f32 %v2194, %v2194
      %v2967 = vmul.f32 %v2199, %v2199
      %v2968 = vmul.f32 %v2204, %v2204
      %v2969 = vmul.f32 %v2209, %v2209
      %v2970 = vmul.f32 %v2214, %v2214
      %v2971 = vmul.f32 %v2219, %v2219
      %v2972 = vmul.f32 %v2224, %v2224
      %v2973 = vmul.f32 %v2229, %v2229
      %v2974 = vmul.f32 %v2234, %v2234
      %v2975 = vmul.f32 %v2239, %v2239
      %v2976 = vmul.f32 %v2244, %v2244
      %v2977 = vmul.f32 %v2249, %v2249
      %v2978 = vmul.f32 %v2254, %v2254
      %v2979 = vmul.f32 %v2259, %v2259
      %v2980 = vmul.f32 %v2264, %v2264
      %v2981 = vmul.f32 %v2269, %v2269
      %v2982 = vmul.f32 %v2274, %v2274
      %v2983 = vmul.f32 %v2279, %v2279
      %v2984 = vmul.f32 %v2284, %v2284
      %v2985 = vmul.f32 %v2289, %v2289
      %v2986 = vmul.f32 %v2294, %v2294
      %v2987 = vmul.f32 %v2299, %v2299
      %v2988 = vmul.f32 %v2304, %v2304
      %v2989 = vmul.f32 %v2309, %v2309
      %v2990 = vmul.f32 %v2314, %v2314
      %v2991 = vmul.f32 %v2319, %v2319
      %v2992 = vmul.f32 %v2324, %v2324
      %v2993 = vmul.f32 %v2329, %v2329
      %v2994 = vmul.f32 %v2334, %v2334
      %v2995 = vmul.f32 %v2339, %v2339
      %v2996 = vmul.f32 %v2344, %v2344
      %v2997 = vmul.f32 %v2349, %v2349
      %v2998 = vmul.f32 %v2354, %v2354
      %v2999 = vmul.f32 %v2359, %v2359
      %v3000 = vmul.f32 %v2364, %v2364
      %v3001 = vmul.f32 %v2369, %v2369
      %v3002 = vmul.f32 %v2374, %v2374
      %v3003 = vmul.f32 %v2379, %v2379
      %v3004 = vmul.f32 %v2384, %v2384
      %v3005 = vmul.f32 %v2389, %v2389
      %v3006 = vmul.f32 %v2394, %v2394
      %v3007 = vmul.f32 %v2399, %v2399
      %v3008 = vmul.f32 %v2404, %v2404
      %v3009 = vmul.f32 %v2409, %v2409
      %v3010 = vmul.f32 %v2414, %v2414
      %v3011 = vmul.f32 %v2419, %v2419
      %v3012 = vmul.f32 %v2424, %v2424
      %v3013 = vmul.f32 %v2429, %v2429
      %v3014 = vmul.f32 %v2434, %v2434
      %v3015 = vmul.f32 %v2439, %v2439
      %v3016 = vmul.f32 %v2444, %v2444
      %v3017 = vmul.f32 %v2449, %v2449
      %v3018 = vmul.f32 %v2454, %v2454
      %v3019 = vmul.f32 %v2459, %v2459
      %v3020 = vmul.f32 %v2464, %v2464
      %v3021 = vmul.f32 %v2469, %v2469
      %v3022 = vmul.f32 %v2474, %v2474
      %v3023 = vmul.f32 %v2479, %v2479
      %v3024 = vmul.f32 %v2484, %v2484
      %v3025 = vmul.f32 %v2489, %v2489
      %v3026 = vmul.f32 %v2494, %v2494
      %v3027 = vmul.f32 %v2499, %v2499
      %v3028 = vmul.f32 %v2504, %v2504
      %v3029 = vmul.f32 %v2509, %v2509
      %v3030 = vmul.f32 %v2514, %v2514
      %v3031 = vmul.f32 %v2519, %v2519
      %v3032 = vmul.f32 %v2524, %v2524
      %v3033 = vmul.f32 %v2529, %v2529
      %v3034 = vmul.f32 %v2534, %v2534
      %v3035 = vmul.f32 %v2539, %v2539
      %v3036 = vmul.f32 %v2544, %v2544
      %v3037 = vmul.f32 %v2549, %v2549
      %v3038 = vmul.f32 %v2554, %v2554
      %v3039 = vmul.f32 %v2559, %v2559
      %v3040 = vmul.f32 %v2564, %v2564
      %v3041 = vmul.f32 %v2569, %v2569
      %v3042 = vmul.f32 %v2574, %v2574
      %v3043 = vmul.f32 %v2579, %v2579
      %v3044 = vmul.f32 %v2584, %v2584
      %v3045 = vmul.f32 %v2589, %v2589
      %v3046 = vmul.f32 %v2594, %v2594
      %v3047 = vmul.f32 %v2599, %v2599
      %v3048 = vmul.f32 %v2604, %v2604
      %v3049 = vmul.f32 %v2609, %v2609
      %v3050 = vmul.f32 %v2614, %v2614
      %v3051 = vmul.f32 %v2619, %v2619
      %v3052 = vmul.f32 %v2624, %v2624
      %v3053 = vmul.f32 %v2629, %v2629
      %v3054 = vmul.f32 %v2634, %v2634
      %v3055 = vmul.f32 %v2639, %v2639
      %v3056 = vmul.f32 %v2644, %v2644
      %v3057 = vmul.f32 %v2649, %v2649
      %v3058 = vmul.f32 %v2654, %v2654
      %v3059 = vmul.f32 %v2659, %v2659
      %v3060 = vmul.f32 %v2664, %v2664
      %v3061 = vmul.f32 %v2669, %v2669
      %v3062 = vadd.f32 %v2934, %v2935
      %v3063 = vadd.f32 %v3062, %v2936
      %v3064 = vadd.f32 %v3063, %v2937
      %v3065 = vadd.f32 %v3064, %v2938
      %v3066 = vadd.f32 %v3065, %v2939
      %v3067 = vadd.f32 %v3066, %v2940
      %v3068 = vadd.f32 %v3067, %v2941
      %v3069 = vadd.f32 %v3068, %v2942
      %v3070 = vadd.f32 %v3069, %v2943
      %v3071 = vadd.f32 %v3070, %v2944
      %v3072 = vadd.f32 %v3071, %v2945
      %v3073 = vadd.f32 %v3072, %v2946
      %v3074 = vadd.f32 %v3073, %v2947
      %v3075 = vadd.f32 %v3074, %v2948
      %v3076 = vadd.f32 %v3075, %v2949
      %v3077 = vadd.f32 %v3076, %v2950
      %v3078 = vadd.f32 %v3077, %v2951
      %v3079 = vadd.f32 %v3078, %v2952
      %v3080 = vadd.f32 %v3079, %v2953
      %v3081 = vadd.f32 %v3080, %v2954
      %v3082 = vadd.f32 %v3081, %v2955
      %v3083 = vadd.f32 %v3082, %v2956
      %v3084 = vadd.f32 %v3083, %v2957
      %v3085 = vadd.f32 %v3084, %v2958
      %v3086 = vadd.f32 %v3085, %v2959
      %v3087 = vadd.f32 %v3086, %v2960
      %v3088 = vadd.f32 %v3087, %v2961
      %v3089 = vadd.f32 %v3088, %v2962
      %v3090 = vadd.f32 %v3089, %v2963
      %v3091 = vadd.f32 %v3090, %v2964
      %v3092 = vadd.f32 %v3091, %v2965
      %v3093 = vadd.f32 %v3092, %v2966
      %v3094 = vadd.f32 %v3093, %v2967
      %v3095 = vadd.f32 %v3094, %v2968
      %v3096 = vadd.f32 %v3095, %v2969
      %v3097 = vadd.f32 %v3096, %v2970
      %v3098 = vadd.f32 %v3097, %v2971
      %v3099 = vadd.f32 %v3098, %v2972
      %v3100 = vadd.f32 %v3099, %v2973
      %v3101 = vadd.f32 %v3100, %v2974
      %v3102 = vadd.f32 %v3101, %v2975
      %v3103 = vadd.f32 %v3102, %v2976
      %v3104 = vadd.f32 %v3103, %v2977
      %v3105 = vadd.f32 %v3104, %v2978
      %v3106 = vadd.f32 %v3105, %v2979
      %v3107 = vadd.f32 %v3106, %v2980
      %v3108 = vadd.f32 %v3107, %v2981
      %v3109 = vadd.f32 %v3108, %v2982
      %v3110 = vadd.f32 %v3109, %v2983
      %v3111 = vadd.f32 %v3110, %v2984
      %v3112 = vadd.f32 %v3111, %v2985
      %v3113 = vadd.f32 %v3112, %v2986
      %v3114 = vadd.f32 %v3113, %v2987
      %v3115 = vadd.f32 %v3114, %v2988
      %v3116 = vadd.f32 %v3115, %v2989
      %v3117 = vadd.f32 %v3116, %v2990
      %v3118 = vadd.f32 %v3117, %v2991
      %v3119 = vadd.f32 %v3118, %v2992
      %v3120 = vadd.f32 %v3119, %v2993
      %v3121 = vadd.f32 %v3120, %v2994
      %v3122 = vadd.f32 %v3121, %v2995
      %v3123 = vadd.f32 %v3122, %v2996
      %v3124 = vadd.f32 %v3123, %v2997
      %v3125 = vadd.f32 %v3124, %v2998
      %v3126 = vadd.f32 %v3125, %v2999
      %v3127 = vadd.f32 %v3126, %v3000
      %v3128 = vadd.f32 %v3127, %v3001
      %v3129 = vadd.f32 %v3128, %v3002
      %v3130 = vadd.f32 %v3129, %v3003
      %v3131 = vadd.f32 %v3130, %v3004
      %v3132 = vadd.f32 %v3131, %v3005
      %v3133 = vadd.f32 %v3132, %v3006
      %v3134 = vadd.f32 %v3133, %v3007
      %v3135 = vadd.f32 %v3134, %v3008
      %v3136 = vadd.f32 %v3135, %v3009
      %v3137 = vadd.f32 %v3136, %v3010
      %v3138 = vadd.f32 %v3137, %v3011
      %v3139 = vadd.f32 %v3138, %v3012
      %v3140 = vadd.f32 %v3139, %v3013
      %v3141 = vadd.f32 %v3140, %v3014
      %v3142 = vadd.f32 %v3141, %v3015
      %v3143 = vadd.f32 %v3142, %v3016
      %v3144 = vadd.f32 %v3143, %v3017
      %v3145 = vadd.f32 %v3144, %v3018
      %v3146 = vadd.f32 %v3145, %v3019
      %v3147 = vadd.f32 %v3146, %v3020
      %v3148 = vadd.f32 %v3147, %v3021
      %v3149 = vadd.f32 %v3148, %v3022
      %v3150 = vadd.f32 %v3149, %v3023
      %v3151 = vadd.f32 %v3150, %v3024
      %v3152 = vadd.f32 %v3151, %v3025
      %v3153 = vadd.f32 %v3152, %v3026
      %v3154 = vadd.f32 %v3153, %v3027
      %v3155 = vadd.f32 %v3154, %v3028
      %v3156 = vadd.f32 %v3155, %v3029
      %v3157 = vadd.f32 %v3156, %v3030
      %v3158 = vadd.f32 %v3157, %v3031
      %v3159 = vadd.f32 %v3158, %v3032
      %v3160 = vadd.f32 %v3159, %v3033
      %v3161 = vadd.f32 %v3160, %v3034
      %v3162 = vadd.f32 %v3161, %v3035
      %v3163 = vadd.f32 %v3162, %v3036
      %v3164 = vadd.f32 %v3163, %v3037
      %v3165 = vadd.f32 %v3164, %v3038
      %v3166 = vadd.f32 %v3165, %v3039
      %v3167 = vadd.f32 %v3166, %v3040
      %v3168 = vadd.f32 %v3167, %v3041
      %v3169 = vadd.f32 %v3168, %v3042
      %v3170 = vadd.f32 %v3169, %v3043
      %v3171 = vadd.f32 %v3170, %v3044
      %v3172 = vadd.f32 %v3171, %v3045
      %v3173 = vadd.f32 %v3172, %v3046
      %v3174 = vadd.f32 %v3173, %v3047
      %v3175 = vadd.f32 %v3174, %v3048
      %v3176 = vadd.f32 %v3175, %v3049
      %v3177 = vadd.f32 %v3176, %v3050
      %v3178 = vadd.f32 %v3177, %v3051
      %v3179 = vadd.f32 %v3178, %v3052
      %v3180 = vadd.f32 %v3179, %v3053
      %v3181 = vadd.f32 %v3180, %v3054
      %v3182 = vadd.f32 %v3181, %v3055
      %v3183 = vadd.f32 %v3182, %v3056
      %v3184 = vadd.f32 %v3183, %v3057
      %v3185 = vadd.f32 %v3184, %v3058
      %v3186 = vadd.f32 %v3185, %v3059
      %v3187 = vadd.f32 %v3186, %v3060
      %v3188 = vadd.f32 %v3187, %v3061
      %v3189 = vrot.slane %v3188, 4
      %v3190 = vadd.f32 %v3188, %v3189
      %v3191 = vrot.slane %v3190, 2
      %v3192 = vadd.f32 %v3190, %v3191
      %v3193 = vrot.slane %v3192, 1
      %v3194 = vadd.f32 %v3192, %v3193
      %3195 = vst [vmem:[%s275] sm:$0xff] %v3194
      %s3196 = smul.u32 128, %s18
      %p3197 = scmp.lt.s32.totalorder %s3196, 511
      %s3198 = scalar_select %p3197, %s3196, 511
      %s3199 = smul.addr %s3198, 8
      %s3200 = scalar_lea.vmem %s4, %s3199
      %p3201 = scmp.lt.s32.totalorder %s18, 3
      %s3202 = scalar_select %p3201, %s18, 3
      %s3203 = smul.addr %s3202, 8
      %s3204 = scalar_lea.vmem %s5, %s3203
      %p3205 = scmp.lt.s32.totalorder %s18, 3
      %s3206 = scalar_select %p3205, %s18, 3
      %s3207 = smul.addr %s3206, 8
      %s3208 = scalar_lea.vmem %s6, %s3207
      // Predicated region
      $region37: #{conv2_1d_forward.3} parent=35 // pred_check
        %p3209 = pneg %p125
      $region38: #{conv2_1d_forward.3} parent=35 // pred_check_branch
        %3211 = sbr.rel (%p3209) target = $region40
      $region39: #{conv2_1d_forward.3} parent=35 // pred_region
        %s3212 = smul.u32 128, %s18
      $region40: #{conv2_1d_forward.3} parent=35 // pred_fallthru
        _
      // Predicated region
      $region41: #{conv2_1d_forward.3} parent=35 // pred_check
        %p3213 = pneg %p151
      $region42: #{conv2_1d_forward.3} parent=35 // pred_check_branch
        %3215 = sbr.rel (%p3213) target = $region44
      $region43: #{conv2_1d_forward.3} parent=35 // pred_region
        _
      $region44: #{conv2_1d_forward.3} parent=35 // pred_fallthru
        _
      // Predicated region
      $region45: #{conv2_1d_forward.3} parent=35 // pred_check
        %p3216 = pneg %p177
      $region46: #{conv2_1d_forward.3} parent=35 // pred_check_branch
        %3218 = sbr.rel (%p3216) target = $region48
      $region47: #{conv2_1d_forward.3} parent=35 // pred_region
        _
      $region48: #{conv2_1d_forward.3} parent=35 // pred_fallthru
        _
    $region36: #{conv2_1d_forward.3} parent=5 // pred_fallthru
      _
    %p3219 = scmp.le.s32.totalorder 2, %s13
    // Predicated region
    $region49: #{conv2_1d_forward.3} parent=5 // pred_check
      %p3220 = pneg %p3219
    $region50: #{conv2_1d_forward.3} parent=5 // pred_check_branch
      %3222 = sbr.rel (%p3220) target = $region52
    $region51: #{conv2_1d_forward.3} parent=5 // pred_region
      %s3223 = ssub.s32 %s13, 2
      // Predicated region
      $region53: #{conv2_1d_forward.3} parent=51 // pred_check
        %p3224 = pneg %p131
      $region54: #{conv2_1d_forward.3} parent=51 // pred_check_branch
        %3226 = sbr.rel (%p3224) target = $region56
      $region55: #{conv2_1d_forward.3} parent=51 // pred_region
        %s3227 = smul.u32 128, %s19
        %p3228 = scmp.lt.s32.totalorder %s3227, 511
        %s3229 = scalar_select %p3228, %s3227, 511
        %s3230 = smul.addr %s3229, 8
        %s3231 = scalar_lea.vmem %s4, %s3230
      $region56: #{conv2_1d_forward.3} parent=51 // pred_fallthru
        _
      // Predicated region
      $region57: #{conv2_1d_forward.3} parent=51 // pred_check
        %p3232 = pneg %p157
      $region58: #{conv2_1d_forward.3} parent=51 // pred_check_branch
        %3234 = sbr.rel (%p3232) target = $region60
      $region59: #{conv2_1d_forward.3} parent=51 // pred_region
        %p3235 = scmp.lt.s32.totalorder %s19, 3
        %s3236 = scalar_select %p3235, %s19, 3
        %s3237 = smul.addr %s3236, 8
        %s3238 = scalar_lea.vmem %s5, %s3237
      $region60: #{conv2_1d_forward.3} parent=51 // pred_fallthru
        _
      // Predicated region
      $region61: #{conv2_1d_forward.3} parent=51 // pred_check
        %p3239 = pneg %p183
      $region62: #{conv2_1d_forward.3} parent=51 // pred_check_branch
        %3241 = sbr.rel (%p3239) target = $region64
      $region63: #{conv2_1d_forward.3} parent=51 // pred_region
        %p3242 = scmp.lt.s32.totalorder %s19, 3
        %s3243 = scalar_select %p3242, %s19, 3
        %s3244 = smul.addr %s3243, 8
        %s3245 = scalar_lea.vmem %s6, %s3244
      $region64: #{conv2_1d_forward.3} parent=51 // pred_fallthru
        _
    $region52: #{conv2_1d_forward.3} parent=5 // pred_fallthru
      _
  $region6: #{conv2_1d_forward.3} parent=0 // loop_footer
    %s17 = sadd.s32 1, %s13
  $region7: #{conv2_1d_forward.3} parent=0 // loop_footer_branch
    %12 = sbr.rel target = $region3
  $region8: #{conv2_1d_forward.3} parent=0 // loop_exit
    _

// kernel: conv2_1d_forward.4
$region0: #{conv2_1d_forward.4}
  #allocation0 [shape = 'u32[]', space=smem, size = 0x4, offset = 0x4, fixed_abs, tag = 'smem constant byte address 0x4 - core index']
  #allocation1 [shape = 'u32[144,128]{1,0:T(1,128)}', space=vmem, size = 0x12000, scoped, tag = 'internal scratch']
  %s0 = inlined_call_operand.vmem [shape: f32[4096,27], index: 0, kind: input, shape index: {}]
  %s1 = inlined_call_operand.vmem [shape: f32[1,27], index: 1, kind: input, shape index: {}]
  %s2 = inlined_call_operand.vmem [shape: f32[1,27], index: 2, kind: input, shape index: {}]
  %s3 = inlined_call_operand.vmem [shape: f32[27,128], index: 3, kind: input, shape index: {}]
  %s4 = inlined_call_operand.vmem [shape: f32[4096,128], index: 4, kind: output, shape index: {0}]
  %s5 = inlined_call_operand.vmem [shape: f32[32,128], index: 5, kind: output, shape index: {1}]
  %s6 = inlined_call_operand.vmem [shape: f32[32,128], index: 6, kind: output, shape index: {2}]
  %7 = xla_tuple %s4, %s5, %s6
  %s8 = sld [smem:[#allocation0]]
  $region65: #{conv2_1d_forward.4} parent=0
    _
  %s10 = ssub.s32 1, %s8
  %s11 = scalar_select 0, %s10, %s8
  loop: start=0, step=1, limit=6
  $region2: #{conv2_1d_forward.4} parent=0 // loop_pre_header
    _
  $region3: #{conv2_1d_forward.4} parent=0 // loop_header
    %s13 = sphi 0, %s17
    %p14 = scmp.ge.s32.totalorder %s13, 6
    %s23 = sphi 0, %s25
    %s26 = sphi 0, %s23
    %s27 = sphi 0, %s26
    %s43 = sphi 0, %s27
    %s47 = sphi 0, %s47
    %s49 = sphi 0, %s47
    %s50 = sphi 0, %s49
    %s64 = sphi 0, %s50
    %s68 = sphi 0, %s68
    %s70 = sphi 0, %s68
    %s71 = sphi 0, %s70
    %s85 = sphi 0, %s71
    %s89 = sphi 0, %s89
    %s91 = sphi 0, %s89
    %s92 = sphi 0, %s91
    %s106 = sphi 0, %s92
    %s112 = sphi 0, %s114
    %s115 = sphi 0, %s112
    %s116 = sphi 0, %s115
    %s132 = sphi 0, %s116
    %s138 = sphi 0, %s140
    %s141 = sphi 0, %s138
    %s142 = sphi 0, %s141
    %s158 = sphi 0, %s142
    %s164 = sphi 0, %s166
    %s167 = sphi 0, %s164
    %s168 = sphi 0, %s167
    %s184 = sphi 0, %s168
  $region4: #{conv2_1d_forward.4} parent=0 // loop_header_branch
    %16 = sbr.rel (%p14) target = $region8
  $region5: #{conv2_1d_forward.4} parent=0 // loop_body
    %s18 = ssub.s32 %s13, 1
    %s19 = ssub.s32 %s13, 2
    %s20 = sadd.s32 %s13, 1
    %s21 = ssub.s32 %s13, %s20
    %p22 = scmp.eq.s32.totalorder %s21, 0
    %s24 = sadd.s32 %s23, 1
    %s25 = scalar_select %p22, %s23, %s24
    %p28 = pneg %p22
    %p29 = scmp.eq.s32.totalorder %s13, 3
    %p30 = por %p28, %p29
    %p31 = scmp.ne.s32.totalorder %s23, %s26
    %p32 = scmp.eq.s32.totalorder %s13, 0
    %p33 = por %p31, %p32
    %p34 = scmp.ne.s32.totalorder %s23, %s26
    %p35 = scmp.eq.s32.totalorder %s18, 3
    %p36 = por %p34, %p35
    %p37 = scmp.ne.s32.totalorder %s26, %s27
    %p38 = scmp.eq.s32.totalorder %s18, 0
    %p39 = por %p37, %p38
    %p40 = scmp.ne.s32.totalorder %s26, %s27
    %p41 = scmp.eq.s32.totalorder %s19, 3
    %p42 = por %p40, %p41
    %p44 = scmp.ne.s32.totalorder %s27, %s43
    %p45 = scmp.eq.s32.totalorder %s19, 0
    %p46 = por %p44, %p45
    %s48 = sadd.s32 %s47, 1
    %p51 = scmp.eq.s32.totalorder %s13, 3
    %p52 = scmp.ne.s32.totalorder %s47, %s49
    %p53 = scmp.eq.s32.totalorder %s13, 0
    %p54 = por %p52, %p53
    %p55 = scmp.ne.s32.totalorder %s47, %s49
    %p56 = scmp.eq.s32.totalorder %s18, 3
    %p57 = por %p55, %p56
    %p58 = scmp.ne.s32.totalorder %s49, %s50
    %p59 = scmp.eq.s32.totalorder %s18, 0
    %p60 = por %p58, %p59
    %p61 = scmp.ne.s32.totalorder %s49, %s50
    %p62 = scmp.eq.s32.totalorder %s19, 3
    %p63 = por %p61, %p62
    %p65 = scmp.ne.s32.totalorder %s50, %s64
    %p66 = scmp.eq.s32.totalorder %s19, 0
    %p67 = por %p65, %p66
    %s69 = sadd.s32 %s68, 1
    %p72 = scmp.eq.s32.totalorder %s13, 3
    %p73 = scmp.ne.s32.totalorder %s68, %s70
    %p74 = scmp.eq.s32.totalorder %s13, 0
    %p75 = por %p73, %p74
    %p76 = scmp.ne.s32.totalorder %s68, %s70
    %p77 = scmp.eq.s32.totalorder %s18, 3
    %p78 = por %p76, %p77
    %p79 = scmp.ne.s32.totalorder %s70, %s71
    %p80 = scmp.eq.s32.totalorder %s18, 0
    %p81 = por %p79, %p80
    %p82 = scmp.ne.s32.totalorder %s70, %s71
    %p83 = scmp.eq.s32.totalorder %s19, 3
    %p84 = por %p82, %p83
    %p86 = scmp.ne.s32.totalorder %s71, %s85
    %p87 = scmp.eq.s32.totalorder %s19, 0
    %p88 = por %p86, %p87
    %s90 = sadd.s32 %s89, 1
    %p93 = scmp.eq.s32.totalorder %s13, 3
    %p94 = scmp.ne.s32.totalorder %s89, %s91
    %p95 = scmp.eq.s32.totalorder %s13, 0
    %p96 = por %p94, %p95
    %p97 = scmp.ne.s32.totalorder %s89, %s91
    %p98 = scmp.eq.s32.totalorder %s18, 3
    %p99 = por %p97, %p98
    %p100 = scmp.ne.s32.totalorder %s91, %s92
    %p101 = scmp.eq.s32.totalorder %s18, 0
    %p102 = por %p100, %p101
    %p103 = scmp.ne.s32.totalorder %s91, %s92
    %p104 = scmp.eq.s32.totalorder %s19, 3
    %p105 = por %p103, %p104
    %p107 = scmp.ne.s32.totalorder %s92, %s106
    %p108 = scmp.eq.s32.totalorder %s19, 0
    %p109 = por %p107, %p108
    %s110 = ssub.s32 %s13, %s20
    %p111 = scmp.eq.s32.totalorder %s110, 0
    %s113 = sadd.s32 %s112, 1
    %s114 = scalar_select %p111, %s112, %s113
    %p117 = pneg %p111
    %p118 = scmp.eq.s32.totalorder %s13, 3
    %p119 = por %p117, %p118
    %p120 = scmp.ne.s32.totalorder %s112, %s115
    %p121 = scmp.eq.s32.totalorder %s13, 0
    %p122 = por %p120, %p121
    %p123 = scmp.ne.s32.totalorder %s112, %s115
    %p124 = scmp.eq.s32.totalorder %s18, 3
    %p125 = por %p123, %p124
    %p126 = scmp.ne.s32.totalorder %s115, %s116
    %p127 = scmp.eq.s32.totalorder %s18, 0
    %p128 = por %p126, %p127
    %p129 = scmp.ne.s32.totalorder %s115, %s116
    %p130 = scmp.eq.s32.totalorder %s19, 3
    %p131 = por %p129, %p130
    %p133 = scmp.ne.s32.totalorder %s116, %s132
    %p134 = scmp.eq.s32.totalorder %s19, 0
    %p135 = por %p133, %p134
    %s136 = ssub.s32 %s13, %s20
    %p137 = scmp.eq.s32.totalorder %s136, 0
    %s139 = sadd.s32 %s138, 1
    %s140 = scalar_select %p137, %s138, %s139
    %p143 = pneg %p137
    %p144 = scmp.eq.s32.totalorder %s13, 3
    %p145 = por %p143, %p144
    %p146 = scmp.ne.s32.totalorder %s138, %s141
    %p147 = scmp.eq.s32.totalorder %s13, 0
    %p148 = por %p146, %p147
    %p149 = scmp.ne.s32.totalorder %s138, %s141
    %p150 = scmp.eq.s32.totalorder %s18, 3
    %p151 = por %p149, %p150
    %p152 = scmp.ne.s32.totalorder %s141, %s142
    %p153 = scmp.eq.s32.totalorder %s18, 0
    %p154 = por %p152, %p153
    %p155 = scmp.ne.s32.totalorder %s141, %s142
    %p156 = scmp.eq.s32.totalorder %s19, 3
    %p157 = por %p155, %p156
    %p159 = scmp.ne.s32.totalorder %s142, %s158
    %p160 = scmp.eq.s32.totalorder %s19, 0
    %p161 = por %p159, %p160
    %s162 = ssub.s32 %s13, %s20
    %p163 = scmp.eq.s32.totalorder %s162, 0
    %s165 = sadd.s32 %s164, 1
    %s166 = scalar_select %p163, %s164, %s165
    %p169 = pneg %p163
    %p170 = scmp.eq.s32.totalorder %s13, 3
    %p171 = por %p169, %p170
    %p172 = scmp.ne.s32.totalorder %s164, %s167
    %p173 = scmp.eq.s32.totalorder %s13, 0
    %p174 = por %p172, %p173
    %p175 = scmp.ne.s32.totalorder %s164, %s167
    %p176 = scmp.eq.s32.totalorder %s18, 3
    %p177 = por %p175, %p176
    %p178 = scmp.ne.s32.totalorder %s167, %s168
    %p179 = scmp.eq.s32.totalorder %s18, 0
    %p180 = por %p178, %p179
    %p181 = scmp.ne.s32.totalorder %s167, %s168
    %p182 = scmp.eq.s32.totalorder %s19, 3
    %p183 = por %p181, %p182
    %p185 = scmp.ne.s32.totalorder %s168, %s184
    %p186 = scmp.eq.s32.totalorder %s19, 0
    %p187 = por %p185, %p186
    %p188 = scmp.le.s32.totalorder 1, %s13
    %p189 = scmp.lt.s32.totalorder %s13, 5
    %p190 = pnand %p188, %p189
    %p191 = pneg %p190
    // Predicated region
    $region9: #{conv2_1d_forward.4} parent=5 // pred_check
      _
    $region10: #{conv2_1d_forward.4} parent=5 // pred_check_branch
      %193 = sbr.rel (%p190) target = $region12
    $region11: #{conv2_1d_forward.4} parent=5 // pred_region
      %s194 = ssub.s32 %s13, 1
      // Predicated region
      $region13: #{conv2_1d_forward.4} parent=11 // pred_check
        %p195 = pneg %p60
      $region14: #{conv2_1d_forward.4} parent=11 // pred_check_branch
        %197 = sbr.rel (%p195) target = $region16
      $region15: #{conv2_1d_forward.4} parent=11 // pred_region
        _
      $region16: #{conv2_1d_forward.4} parent=11 // pred_fallthru
        _
      // Predicated region
      $region17: #{conv2_1d_forward.4} parent=11 // pred_check
        %p198 = pneg %p81
      $region18: #{conv2_1d_forward.4} parent=11 // pred_check_branch
        %200 = sbr.rel (%p198) target = $region20
      $region19: #{conv2_1d_forward.4} parent=11 // pred_region
        _
      $region20: #{conv2_1d_forward.4} parent=11 // pred_fallthru
        _
      // Predicated region
      $region21: #{conv2_1d_forward.4} parent=11 // pred_check
        %p201 = pneg %p102
      $region22: #{conv2_1d_forward.4} parent=11 // pred_check_branch
        %203 = sbr.rel (%p201) target = $region24
      $region23: #{conv2_1d_forward.4} parent=11 // pred_region
        _
      $region24: #{conv2_1d_forward.4} parent=11 // pred_fallthru
        _
    $region12: #{conv2_1d_forward.4} parent=5 // pred_fallthru
      _
    %p204 = scmp.lt.s32.totalorder %s13, 4
    // Predicated region
    $region25: #{conv2_1d_forward.4} parent=5 // pred_check
      %p205 = pneg %p204
    $region26: #{conv2_1d_forward.4} parent=5 // pred_check_branch
      %207 = sbr.rel (%p205) target = $region28
    $region27: #{conv2_1d_forward.4} parent=5 // pred_region
      // Predicated region
      $region29: #{conv2_1d_forward.4} parent=27 // pred_check
        %p208 = pneg %p33
      $region30: #{conv2_1d_forward.4} parent=27 // pred_check_branch
        %210 = sbr.rel (%p208) target = $region32
      $region31: #{conv2_1d_forward.4} parent=27 // pred_region
        %s211 = smul.u32 128, %s13
        %p212 = scmp.lt.s32.totalorder %s211, 511
        %s213 = scalar_select %p212, %s211, 511
        %s214 = smul.addr %s213, 8
        %s215 = scalar_lea.vmem %s0, %s214
        %s216 = smul.u32 128, %s13
      $region32: #{conv2_1d_forward.4} parent=27 // pred_fallthru
        _
    $region28: #{conv2_1d_forward.4} parent=5 // pred_fallthru
      _
    %p217 = scmp.le.s32.totalorder 1, %s13
    %p218 = scmp.lt.s32.totalorder %s13, 5
    %p219 = pnand %p217, %p218
    %p220 = pneg %p219
    // Predicated region
    $region33: #{conv2_1d_forward.4} parent=5 // pred_check
      _
    $region34: #{conv2_1d_forward.4} parent=5 // pred_check_branch
      %222 = sbr.rel (%p219) target = $region36
    $region35: #{conv2_1d_forward.4} parent=5 // pred_region
      %s223 = ssub.s32 %s13, 1
      %s224 = smul.u32 128, %s18
      %p225 = scmp.lt.s32.totalorder %s224, 511
      %s226 = scalar_select %p225, %s224, 511
      %s227 = smul.addr %s226, 8
      %s228 = scalar_lea.vmem %s0, %s227
      %p229 = pneg %p39
      %p230 = pneg %p36
      %p231 = pneg %p60
      %p232 = pneg %p57
      %p233 = pneg %p81
      %p234 = pneg %p78
      %p235 = pneg %p102
      %p236 = pneg %p99
      %p237 = pneg %p128
      %p238 = pneg %p125
      %s239 = smul.u32 128, %s18
      %p240 = scmp.lt.s32.totalorder %s239, 511
      %s241 = scalar_select %p240, %s239, 511
      %s242 = smul.addr %s241, 8
      %s243 = scalar_lea.vmem %s4, %s242
      %p244 = pneg %p154
      %p245 = pneg %p151
      %p246 = scmp.lt.s32.totalorder %s18, 3
      %s247 = scalar_select %p246, %s18, 3
      %s248 = smul.addr %s247, 8
      %s249 = scalar_lea.vmem %s5, %s248
      %p250 = pneg %p180
      %p251 = pneg %p177
      %p252 = scmp.lt.s32.totalorder %s18, 3
      %s253 = scalar_select %p252, %s18, 3
      %s254 = smul.addr %s253, 8
      %s255 = scalar_lea.vmem %s6, %s254
      %s256 = smul.u32 128, %s18
      %p257 = scmp.lt.s32.totalorder %s256, 511
      %s258 = scalar_select %p257, %s256, 511
      %s259 = smul.addr %s258, 8
      %s260 = scalar_lea.vmem %s0, %s259
      %s261 = smul.u32 128, %s18
      %s262 = smul.u32 128, %s18
      %p263 = scmp.lt.s32.totalorder %s262, 511
      %s264 = scalar_select %p263, %s262, 511
      %s265 = smul.addr %s264, 8
      %s266 = scalar_lea.vmem %s4, %s265
      %s267 = smul.u32 128, %s18
      %p268 = scmp.lt.s32.totalorder %s18, 3
      %s269 = scalar_select %p268, %s18, 3
      %s270 = smul.addr %s269, 8
      %s271 = scalar_lea.vmem %s5, %s270
      %p272 = scmp.lt.s32.totalorder %s18, 3
      %s273 = scalar_select %p272, %s18, 3
      %s274 = smul.addr %s273, 8
      %s275 = scalar_lea.vmem %s6, %s274
      %v276 = vld [vmem:[%s260] sm:$0xff]
      %v277 = vld [vmem:[%s260 + $0x8] sm:$0xff]
      %v278 = vld [vmem:[%s260 + $0x10] sm:$0xff]
      %v279 = vld [vmem:[%s260 + $0x18] sm:$0xff]
      %v280 = vld [vmem:[%s260 + $0x20] sm:$0xff]
      %v281 = vld [vmem:[%s260 + $0x28] sm:$0xff]
      %v282 = vld [vmem:[%s260 + $0x30] sm:$0xff]
      %v283 = vld [vmem:[%s260 + $0x38] sm:$0xff]
      %v284 = vld [vmem:[%s260 + $0x40] sm:$0xff]
      %v285 = vld [vmem:[%s260 + $0x48] sm:$0xff]
      %v286 = vld [vmem:[%s260 + $0x50] sm:$0xff]
      %v287 = vld [vmem:[%s260 + $0x58] sm:$0xff]
      %v288 = vld [vmem:[%s260 + $0x60] sm:$0xff]
      %v289 = vld [vmem:[%s260 + $0x68] sm:$0xff]
      %v290 = vld [vmem:[%s260 + $0x70] sm:$0xff]
      %v291 = vld [vmem:[%s260 + $0x78] sm:$0xff]
      %v292 = vld [vmem:[%s260 + $0x80] sm:$0xff]
      %v293 = vld [vmem:[%s260 + $0x88] sm:$0xff]
      %v294 = vld [vmem:[%s260 + $0x90] sm:$0xff]
      %v295 = vld [vmem:[%s260 + $0x98] sm:$0xff]
      %v296 = vld [vmem:[%s260 + $0xa0] sm:$0xff]
      %v297 = vld [vmem:[%s260 + $0xa8] sm:$0xff]
      %v298 = vld [vmem:[%s260 + $0xb0] sm:$0xff]
      %v299 = vld [vmem:[%s260 + $0xb8] sm:$0xff]
      %v300 = vld [vmem:[%s260 + $0xc0] sm:$0xff]
      %v301 = vld [vmem:[%s260 + $0xc8] sm:$0xff]
      %v302 = vld [vmem:[%s260 + $0xd0] sm:$0xff]
      %v303 = vld [vmem:[%s260 + $0xd8] sm:$0xff]
      %v304 = vld [vmem:[%s260 + $0xe0] sm:$0xff]
      %v305 = vld [vmem:[%s260 + $0xe8] sm:$0xff]
      %v306 = vld [vmem:[%s260 + $0xf0] sm:$0xff]
      %v307 = vld [vmem:[%s260 + $0xf8] sm:$0xff]
      %v308 = vld [vmem:[%s260 + $0x100] sm:$0xff]
      %v309 = vld [vmem:[%s260 + $0x108] sm:$0xff]
      %v310 = vld [vmem:[%s260 + $0x110] sm:$0xff]
      %v311 = vld [vmem:[%s260 + $0x118] sm:$0xff]
      %v312 = vld [vmem:[%s260 + $0x120] sm:$0xff]
      %v313 = vld [vmem:[%s260 + $0x128] sm:$0xff]
      %v314 = vld [vmem:[%s260 + $0x130] sm:$0xff]
      %v315 = vld [vmem:[%s260 + $0x138] sm:$0xff]
      %v316 = vld [vmem:[%s260 + $0x140] sm:$0xff]
      %v317 = vld [vmem:[%s260 + $0x148] sm:$0xff]
      %v318 = vld [vmem:[%s260 + $0x150] sm:$0xff]
      %v319 = vld [vmem:[%s260 + $0x158] sm:$0xff]
      %v320 = vld [vmem:[%s260 + $0x160] sm:$0xff]
      %v321 = vld [vmem:[%s260 + $0x168] sm:$0xff]
      %v322 = vld [vmem:[%s260 + $0x170] sm:$0xff]
      %v323 = vld [vmem:[%s260 + $0x178] sm:$0xff]
      %v324 = vld [vmem:[%s260 + $0x180] sm:$0xff]
      %v325 = vld [vmem:[%s260 + $0x188] sm:$0xff]
      %v326 = vld [vmem:[%s260 + $0x190] sm:$0xff]
      %v327 = vld [vmem:[%s260 + $0x198] sm:$0xff]
      %v328 = vld [vmem:[%s260 + $0x1a0] sm:$0xff]
      %v329 = vld [vmem:[%s260 + $0x1a8] sm:$0xff]
      %v330 = vld [vmem:[%s260 + $0x1b0] sm:$0xff]
      %v331 = vld [vmem:[%s260 + $0x1b8] sm:$0xff]
      %v332 = vld [vmem:[%s260 + $0x1c0] sm:$0xff]
      %v333 = vld [vmem:[%s260 + $0x1c8] sm:$0xff]
      %v334 = vld [vmem:[%s260 + $0x1d0] sm:$0xff]
      %v335 = vld [vmem:[%s260 + $0x1d8] sm:$0xff]
      %v336 = vld [vmem:[%s260 + $0x1e0] sm:$0xff]
      %v337 = vld [vmem:[%s260 + $0x1e8] sm:$0xff]
      %v338 = vld [vmem:[%s260 + $0x1f0] sm:$0xff]
      %v339 = vld [vmem:[%s260 + $0x1f8] sm:$0xff]
      %v340 = vld [vmem:[%s260 + $0x200] sm:$0xff]
      %v341 = vld [vmem:[%s260 + $0x208] sm:$0xff]
      %v342 = vld [vmem:[%s260 + $0x210] sm:$0xff]
      %v343 = vld [vmem:[%s260 + $0x218] sm:$0xff]
      %v344 = vld [vmem:[%s260 + $0x220] sm:$0xff]
      %v345 = vld [vmem:[%s260 + $0x228] sm:$0xff]
      %v346 = vld [vmem:[%s260 + $0x230] sm:$0xff]
      %v347 = vld [vmem:[%s260 + $0x238] sm:$0xff]
      %v348 = vld [vmem:[%s260 + $0x240] sm:$0xff]
      %v349 = vld [vmem:[%s260 + $0x248] sm:$0xff]
      %v350 = vld [vmem:[%s260 + $0x250] sm:$0xff]
      %v351 = vld [vmem:[%s260 + $0x258] sm:$0xff]
      %v352 = vld [vmem:[%s260 + $0x260] sm:$0xff]
      %v353 = vld [vmem:[%s260 + $0x268] sm:$0xff]
      %v354 = vld [vmem:[%s260 + $0x270] sm:$0xff]
      %v355 = vld [vmem:[%s260 + $0x278] sm:$0xff]
      %v356 = vld [vmem:[%s260 + $0x280] sm:$0xff]
      %v357 = vld [vmem:[%s260 + $0x288] sm:$0xff]
      %v358 = vld [vmem:[%s260 + $0x290] sm:$0xff]
      %v359 = vld [vmem:[%s260 + $0x298] sm:$0xff]
      %v360 = vld [vmem:[%s260 + $0x2a0] sm:$0xff]
      %v361 = vld [vmem:[%s260 + $0x2a8] sm:$0xff]
      %v362 = vld [vmem:[%s260 + $0x2b0] sm:$0xff]
      %v363 = vld [vmem:[%s260 + $0x2b8] sm:$0xff]
      %v364 = vld [vmem:[%s260 + $0x2c0] sm:$0xff]
      %v365 = vld [vmem:[%s260 + $0x2c8] sm:$0xff]
      %v366 = vld [vmem:[%s260 + $0x2d0] sm:$0xff]
      %v367 = vld [vmem:[%s260 + $0x2d8] sm:$0xff]
      %v368 = vld [vmem:[%s260 + $0x2e0] sm:$0xff]
      %v369 = vld [vmem:[%s260 + $0x2e8] sm:$0xff]
      %v370 = vld [vmem:[%s260 + $0x2f0] sm:$0xff]
      %v371 = vld [vmem:[%s260 + $0x2f8] sm:$0xff]
      %v372 = vld [vmem:[%s260 + $0x300] sm:$0xff]
      %v373 = vld [vmem:[%s260 + $0x308] sm:$0xff]
      %v374 = vld [vmem:[%s260 + $0x310] sm:$0xff]
      %v375 = vld [vmem:[%s260 + $0x318] sm:$0xff]
      %v376 = vld [vmem:[%s260 + $0x320] sm:$0xff]
      %v377 = vld [vmem:[%s260 + $0x328] sm:$0xff]
      %v378 = vld [vmem:[%s260 + $0x330] sm:$0xff]
      %v379 = vld [vmem:[%s260 + $0x338] sm:$0xff]
      %v380 = vld [vmem:[%s260 + $0x340] sm:$0xff]
      %v381 = vld [vmem:[%s260 + $0x348] sm:$0xff]
      %v382 = vld [vmem:[%s260 + $0x350] sm:$0xff]
      %v383 = vld [vmem:[%s260 + $0x358] sm:$0xff]
      %v384 = vld [vmem:[%s260 + $0x360] sm:$0xff]
      %v385 = vld [vmem:[%s260 + $0x368] sm:$0xff]
      %v386 = vld [vmem:[%s260 + $0x370] sm:$0xff]
      %v387 = vld [vmem:[%s260 + $0x378] sm:$0xff]
      %v388 = vld [vmem:[%s260 + $0x380] sm:$0xff]
      %v389 = vld [vmem:[%s260 + $0x388] sm:$0xff]
      %v390 = vld [vmem:[%s260 + $0x390] sm:$0xff]
      %v391 = vld [vmem:[%s260 + $0x398] sm:$0xff]
      %v392 = vld [vmem:[%s260 + $0x3a0] sm:$0xff]
      %v393 = vld [vmem:[%s260 + $0x3a8] sm:$0xff]
      %v394 = vld [vmem:[%s260 + $0x3b0] sm:$0xff]
      %v395 = vld [vmem:[%s260 + $0x3b8] sm:$0xff]
      %v396 = vld [vmem:[%s260 + $0x3c0] sm:$0xff]
      %v397 = vld [vmem:[%s260 + $0x3c8] sm:$0xff]
      %v398 = vld [vmem:[%s260 + $0x3d0] sm:$0xff]
      %v399 = vld [vmem:[%s260 + $0x3d8] sm:$0xff]
      %v400 = vld [vmem:[%s260 + $0x3e0] sm:$0xff]
      %v401 = vld [vmem:[%s260 + $0x3e8] sm:$0xff]
      %v402 = vld [vmem:[%s260 + $0x3f0] sm:$0xff]
      %v403 = vld [vmem:[%s260 + $0x3f8] sm:$0xff]
      %v404 = vld [vmem:[%s1] sm:$0x1]
      %v406 = vlaneseq
      %v407 = vshrl.u32 %v406, 7
      %v408 = vsub.s32 0, %v407
      %v409 = vrot.slane %v404, %v408
      %v411 = vmul.f32 %v276, %v409
      %v412 = vmul.f32 %v277, %v409
      %v413 = vmul.f32 %v278, %v409
      %v414 = vmul.f32 %v279, %v409
      %v415 = vmul.f32 %v280, %v409
      %v416 = vmul.f32 %v281, %v409
      %v417 = vmul.f32 %v282, %v409
      %v418 = vmul.f32 %v283, %v409
      %v419 = vmul.f32 %v284, %v409
      %v420 = vmul.f32 %v285, %v409
      %v421 = vmul.f32 %v286, %v409
      %v422 = vmul.f32 %v287, %v409
      %v423 = vmul.f32 %v288, %v409
      %v424 = vmul.f32 %v289, %v409
      %v425 = vmul.f32 %v290, %v409
      %v426 = vmul.f32 %v291, %v409
      %v427 = vmul.f32 %v292, %v409
      %v428 = vmul.f32 %v293, %v409
      %v429 = vmul.f32 %v294, %v409
      %v430 = vmul.f32 %v295, %v409
      %v431 = vmul.f32 %v296, %v409
      %v432 = vmul.f32 %v297, %v409
      %v433 = vmul.f32 %v298, %v409
      %v434 = vmul.f32 %v299, %v409
      %v435 = vmul.f32 %v300, %v409
      %v436 = vmul.f32 %v301, %v409
      %v437 = vmul.f32 %v302, %v409
      %v438 = vmul.f32 %v303, %v409
      %v439 = vmul.f32 %v304, %v409
      %v440 = vmul.f32 %v305, %v409
      %v441 = vmul.f32 %v306, %v409
      %v442 = vmul.f32 %v307, %v409
      %v443 = vmul.f32 %v308, %v409
      %v444 = vmul.f32 %v309, %v409
      %v445 = vmul.f32 %v310, %v409
      %v446 = vmul.f32 %v311, %v409
      %v447 = vmul.f32 %v312, %v409
      %v448 = vmul.f32 %v313, %v409
      %v449 = vmul.f32 %v314, %v409
      %v450 = vmul.f32 %v315, %v409
      %v451 = vmul.f32 %v316, %v409
      %v452 = vmul.f32 %v317, %v409
      %v453 = vmul.f32 %v318, %v409
      %v454 = vmul.f32 %v319, %v409
      %v455 = vmul.f32 %v320, %v409
      %v456 = vmul.f32 %v321, %v409
      %v457 = vmul.f32 %v322, %v409
      %v458 = vmul.f32 %v323, %v409
      %v459 = vmul.f32 %v324, %v409
      %v460 = vmul.f32 %v325, %v409
      %v461 = vmul.f32 %v326, %v409
      %v462 = vmul.f32 %v327, %v409
      %v463 = vmul.f32 %v328, %v409
      %v464 = vmul.f32 %v329, %v409
      %v465 = vmul.f32 %v330, %v409
      %v466 = vmul.f32 %v331, %v409
      %v467 = vmul.f32 %v332, %v409
      %v468 = vmul.f32 %v333, %v409
      %v469 = vmul.f32 %v334, %v409
      %v470 = vmul.f32 %v335, %v409
      %v471 = vmul.f32 %v336, %v409
      %v472 = vmul.f32 %v337, %v409
      %v473 = vmul.f32 %v338, %v409
      %v474 = vmul.f32 %v339, %v409
      %v475 = vmul.f32 %v340, %v409
      %v476 = vmul.f32 %v341, %v409
      %v477 = vmul.f32 %v342, %v409
      %v478 = vmul.f32 %v343, %v409
      %v479 = vmul.f32 %v344, %v409
      %v480 = vmul.f32 %v345, %v409
      %v481 = vmul.f32 %v346, %v409
      %v482 = vmul.f32 %v347, %v409
      %v483 = vmul.f32 %v348, %v409
      %v484 = vmul.f32 %v349, %v409
      %v485 = vmul.f32 %v350, %v409
      %v486 = vmul.f32 %v351, %v409
      %v487 = vmul.f32 %v352, %v409
      %v488 = vmul.f32 %v353, %v409
      %v489 = vmul.f32 %v354, %v409
      %v490 = vmul.f32 %v355, %v409
      %v491 = vmul.f32 %v356, %v409
      %v492 = vmul.f32 %v357, %v409
      %v493 = vmul.f32 %v358, %v409
      %v494 = vmul.f32 %v359, %v409
      %v495 = vmul.f32 %v360, %v409
      %v496 = vmul.f32 %v361, %v409
      %v497 = vmul.f32 %v362, %v409
      %v498 = vmul.f32 %v363, %v409
      %v499 = vmul.f32 %v364, %v409
      %v500 = vmul.f32 %v365, %v409
      %v501 = vmul.f32 %v366, %v409
      %v502 = vmul.f32 %v367, %v409
      %v503 = vmul.f32 %v368, %v409
      %v504 = vmul.f32 %v369, %v409
      %v505 = vmul.f32 %v370, %v409
      %v506 = vmul.f32 %v371, %v409
      %v507 = vmul.f32 %v372, %v409
      %v508 = vmul.f32 %v373, %v409
      %v509 = vmul.f32 %v374, %v409
      %v510 = vmul.f32 %v375, %v409
      %v511 = vmul.f32 %v376, %v409
      %v512 = vmul.f32 %v377, %v409
      %v513 = vmul.f32 %v378, %v409
      %v514 = vmul.f32 %v379, %v409
      %v515 = vmul.f32 %v380, %v409
      %v516 = vmul.f32 %v381, %v409
      %v517 = vmul.f32 %v382, %v409
      %v518 = vmul.f32 %v383, %v409
      %v519 = vmul.f32 %v384, %v409
      %v520 = vmul.f32 %v385, %v409
      %v521 = vmul.f32 %v386, %v409
      %v522 = vmul.f32 %v387, %v409
      %v523 = vmul.f32 %v388, %v409
      %v524 = vmul.f32 %v389, %v409
      %v525 = vmul.f32 %v390, %v409
      %v526 = vmul.f32 %v391, %v409
      %v527 = vmul.f32 %v392, %v409
      %v528 = vmul.f32 %v393, %v409
      %v529 = vmul.f32 %v394, %v409
      %v530 = vmul.f32 %v395, %v409
      %v531 = vmul.f32 %v396, %v409
      %v532 = vmul.f32 %v397, %v409
      %v533 = vmul.f32 %v398, %v409
      %v534 = vmul.f32 %v399, %v409
      %v535 = vmul.f32 %v400, %v409
      %v536 = vmul.f32 %v401, %v409
      %v537 = vmul.f32 %v402, %v409
      %v538 = vmul.f32 %v403, %v409
      %v539 = vld [vmem:[%s2] sm:$0x1]
      %v541 = vlaneseq
      %v542 = vshrl.u32 %v541, 7
      %v543 = vsub.s32 0, %v542
      %v544 = vrot.slane %v539, %v543
      %v546 = vadd.f32 %v411, %v544
      %v547 = vadd.f32 %v412, %v544
      %v548 = vadd.f32 %v413, %v544
      %v549 = vadd.f32 %v414, %v544
      %v550 = vadd.f32 %v415, %v544
      %v551 = vadd.f32 %v416, %v544
      %v552 = vadd.f32 %v417, %v544
      %v553 = vadd.f32 %v418, %v544
      %v554 = vadd.f32 %v419, %v544
      %v555 = vadd.f32 %v420, %v544
      %v556 = vadd.f32 %v421, %v544
      %v557 = vadd.f32 %v422, %v544
      %v558 = vadd.f32 %v423, %v544
      %v559 = vadd.f32 %v424, %v544
      %v560 = vadd.f32 %v425, %v544
      %v561 = vadd.f32 %v426, %v544
      %v562 = vadd.f32 %v427, %v544
      %v563 = vadd.f32 %v428, %v544
      %v564 = vadd.f32 %v429, %v544
      %v565 = vadd.f32 %v430, %v544
      %v566 = vadd.f32 %v431, %v544
      %v567 = vadd.f32 %v432, %v544
      %v568 = vadd.f32 %v433, %v544
      %v569 = vadd.f32 %v434, %v544
      %v570 = vadd.f32 %v435, %v544
      %v571 = vadd.f32 %v436, %v544
      %v572 = vadd.f32 %v437, %v544
      %v573 = vadd.f32 %v438, %v544
      %v574 = vadd.f32 %v439, %v544
      %v575 = vadd.f32 %v440, %v544
      %v576 = vadd.f32 %v441, %v544
      %v577 = vadd.f32 %v442, %v544
      %v578 = vadd.f32 %v443, %v544
      %v579 = vadd.f32 %v444, %v544
      %v580 = vadd.f32 %v445, %v544
      %v581 = vadd.f32 %v446, %v544
      %v582 = vadd.f32 %v447, %v544
      %v583 = vadd.f32 %v448, %v544
      %v584 = vadd.f32 %v449, %v544
      %v585 = vadd.f32 %v450, %v544
      %v586 = vadd.f32 %v451, %v544
      %v587 = vadd.f32 %v452, %v544
      %v588 = vadd.f32 %v453, %v544
      %v589 = vadd.f32 %v454, %v544
      %v590 = vadd.f32 %v455, %v544
      %v591 = vadd.f32 %v456, %v544
      %v592 = vadd.f32 %v457, %v544
      %v593 = vadd.f32 %v458, %v544
      %v594 = vadd.f32 %v459, %v544
      %v595 = vadd.f32 %v460, %v544
      %v596 = vadd.f32 %v461, %v544
      %v597 = vadd.f32 %v462, %v544
      %v598 = vadd.f32 %v463, %v544
      %v599 = vadd.f32 %v464, %v544
      %v600 = vadd.f32 %v465, %v544
      %v601 = vadd.f32 %v466, %v544
      %v602 = vadd.f32 %v467, %v544
      %v603 = vadd.f32 %v468, %v544
      %v604 = vadd.f32 %v469, %v544
      %v605 = vadd.f32 %v470, %v544
      %v606 = vadd.f32 %v471, %v544
      %v607 = vadd.f32 %v472, %v544
      %v608 = vadd.f32 %v473, %v544
      %v609 = vadd.f32 %v474, %v544
      %v610 = vadd.f32 %v475, %v544
      %v611 = vadd.f32 %v476, %v544
      %v612 = vadd.f32 %v477, %v544
      %v613 = vadd.f32 %v478, %v544
      %v614 = vadd.f32 %v479, %v544
      %v615 = vadd.f32 %v480, %v544
      %v616 = vadd.f32 %v481, %v544
      %v617 = vadd.f32 %v482, %v544
      %v618 = vadd.f32 %v483, %v544
      %v619 = vadd.f32 %v484, %v544
      %v620 = vadd.f32 %v485, %v544
      %v621 = vadd.f32 %v486, %v544
      %v622 = vadd.f32 %v487, %v544
      %v623 = vadd.f32 %v488, %v544
      %v624 = vadd.f32 %v489, %v544
      %v625 = vadd.f32 %v490, %v544
      %v626 = vadd.f32 %v491, %v544
      %v627 = vadd.f32 %v492, %v544
      %v628 = vadd.f32 %v493, %v544
      %v629 = vadd.f32 %v494, %v544
      %v630 = vadd.f32 %v495, %v544
      %v631 = vadd.f32 %v496, %v544
      %v632 = vadd.f32 %v497, %v544
      %v633 = vadd.f32 %v498, %v544
      %v634 = vadd.f32 %v499, %v544
      %v635 = vadd.f32 %v500, %v544
      %v636 = vadd.f32 %v501, %v544
      %v637 = vadd.f32 %v502, %v544
      %v638 = vadd.f32 %v503, %v544
      %v639 = vadd.f32 %v504, %v544
      %v640 = vadd.f32 %v505, %v544
      %v641 = vadd.f32 %v506, %v544
      %v642 = vadd.f32 %v507, %v544
      %v643 = vadd.f32 %v508, %v544
      %v644 = vadd.f32 %v509, %v544
      %v645 = vadd.f32 %v510, %v544
      %v646 = vadd.f32 %v511, %v544
      %v647 = vadd.f32 %v512, %v544
      %v648 = vadd.f32 %v513, %v544
      %v649 = vadd.f32 %v514, %v544
      %v650 = vadd.f32 %v515, %v544
      %v651 = vadd.f32 %v516, %v544
      %v652 = vadd.f32 %v517, %v544
      %v653 = vadd.f32 %v518, %v544
      %v654 = vadd.f32 %v519, %v544
      %v655 = vadd.f32 %v520, %v544
      %v656 = vadd.f32 %v521, %v544
      %v657 = vadd.f32 %v522, %v544
      %v658 = vadd.f32 %v523, %v544
      %v659 = vadd.f32 %v524, %v544
      %v660 = vadd.f32 %v525, %v544
      %v661 = vadd.f32 %v526, %v544
      %v662 = vadd.f32 %v527, %v544
      %v663 = vadd.f32 %v528, %v544
      %v664 = vadd.f32 %v529, %v544
      %v665 = vadd.f32 %v530, %v544
      %v666 = vadd.f32 %v531, %v544
      %v667 = vadd.f32 %v532, %v544
      %v668 = vadd.f32 %v533, %v544
      %v669 = vadd.f32 %v534, %v544
      %v670 = vadd.f32 %v535, %v544
      %v671 = vadd.f32 %v536, %v544
      %v672 = vadd.f32 %v537, %v544
      %v673 = vadd.f32 %v538, %v544
      %v674 = vmax.f32 %v546, 0.0
      %v675 = vmax.f32 %v547, 0.0
      %v676 = vmax.f32 %v548, 0.0
      %v677 = vmax.f32 %v549, 0.0
      %v678 = vmax.f32 %v550, 0.0
      %v679 = vmax.f32 %v551, 0.0
      %v680 = vmax.f32 %v552, 0.0
      %v681 = vmax.f32 %v553, 0.0
      %v682 = vmax.f32 %v554, 0.0
      %v683 = vmax.f32 %v555, 0.0
      %v684 = vmax.f32 %v556, 0.0
      %v685 = vmax.f32 %v557, 0.0
      %v686 = vmax.f32 %v558, 0.0
      %v687 = vmax.f32 %v559, 0.0
      %v688 = vmax.f32 %v560, 0.0
      %v689 = vmax.f32 %v561, 0.0
      %v690 = vmax.f32 %v562, 0.0
      %v691 = vmax.f32 %v563, 0.0
      %v692 = vmax.f32 %v564, 0.0
      %v693 = vmax.f32 %v565, 0.0
      %v694 = vmax.f32 %v566, 0.0
      %v695 = vmax.f32 %v567, 0.0
      %v696 = vmax.f32 %v568, 0.0
      %v697 = vmax.f32 %v569, 0.0
      %v698 = vmax.f32 %v570, 0.0
      %v699 = vmax.f32 %v571, 0.0
      %v700 = vmax.f32 %v572, 0.0
      %v701 = vmax.f32 %v573, 0.0
      %v702 = vmax.f32 %v574, 0.0
      %v703 = vmax.f32 %v575, 0.0
      %v704 = vmax.f32 %v576, 0.0
      %v705 = vmax.f32 %v577, 0.0
      %v706 = vmax.f32 %v578, 0.0
      %v707 = vmax.f32 %v579, 0.0
      %v708 = vmax.f32 %v580, 0.0
      %v709 = vmax.f32 %v581, 0.0
      %v710 = vmax.f32 %v582, 0.0
      %v711 = vmax.f32 %v583, 0.0
      %v712 = vmax.f32 %v584, 0.0
      %v713 = vmax.f32 %v585, 0.0
      %v714 = vmax.f32 %v586, 0.0
      %v715 = vmax.f32 %v587, 0.0
      %v716 = vmax.f32 %v588, 0.0
      %v717 = vmax.f32 %v589, 0.0
      %v718 = vmax.f32 %v590, 0.0
      %v719 = vmax.f32 %v591, 0.0
      %v720 = vmax.f32 %v592, 0.0
      %v721 = vmax.f32 %v593, 0.0
      %v722 = vmax.f32 %v594, 0.0
      %v723 = vmax.f32 %v595, 0.0
      %v724 = vmax.f32 %v596, 0.0
      %v725 = vmax.f32 %v597, 0.0
      %v726 = vmax.f32 %v598, 0.0
      %v727 = vmax.f32 %v599, 0.0
      %v728 = vmax.f32 %v600, 0.0
      %v729 = vmax.f32 %v601, 0.0
      %v730 = vmax.f32 %v602, 0.0
      %v731 = vmax.f32 %v603, 0.0
      %v732 = vmax.f32 %v604, 0.0
      %v733 = vmax.f32 %v605, 0.0
      %v734 = vmax.f32 %v606, 0.0
      %v735 = vmax.f32 %v607, 0.0
      %v736 = vmax.f32 %v608, 0.0
      %v737 = vmax.f32 %v609, 0.0
      %v738 = vmax.f32 %v610, 0.0
      %v739 = vmax.f32 %v611, 0.0
      %v740 = vmax.f32 %v612, 0.0
      %v741 = vmax.f32 %v613, 0.0
      %v742 = vmax.f32 %v614, 0.0
      %v743 = vmax.f32 %v615, 0.0
      %v744 = vmax.f32 %v616, 0.0
      %v745 = vmax.f32 %v617, 0.0
      %v746 = vmax.f32 %v618, 0.0
      %v747 = vmax.f32 %v619, 0.0
      %v748 = vmax.f32 %v620, 0.0
      %v749 = vmax.f32 %v621, 0.0
      %v750 = vmax.f32 %v622, 0.0
      %v751 = vmax.f32 %v623, 0.0
      %v752 = vmax.f32 %v624, 0.0
      %v753 = vmax.f32 %v625, 0.0
      %v754 = vmax.f32 %v626, 0.0
      %v755 = vmax.f32 %v627, 0.0
      %v756 = vmax.f32 %v628, 0.0
      %v757 = vmax.f32 %v629, 0.0
      %v758 = vmax.f32 %v630, 0.0
      %v759 = vmax.f32 %v631, 0.0
      %v760 = vmax.f32 %v632, 0.0
      %v761 = vmax.f32 %v633, 0.0
      %v762 = vmax.f32 %v634, 0.0
      %v763 = vmax.f32 %v635, 0.0
      %v764 = vmax.f32 %v636, 0.0
      %v765 = vmax.f32 %v637, 0.0
      %v766 = vmax.f32 %v638, 0.0
      %v767 = vmax.f32 %v639, 0.0
      %v768 = vmax.f32 %v640, 0.0
      %v769 = vmax.f32 %v641, 0.0
      %v770 = vmax.f32 %v642, 0.0
      %v771 = vmax.f32 %v643, 0.0
      %v772 = vmax.f32 %v644, 0.0
      %v773 = vmax.f32 %v645, 0.0
      %v774 = vmax.f32 %v646, 0.0
      %v775 = vmax.f32 %v647, 0.0
      %v776 = vmax.f32 %v648, 0.0
      %v777 = vmax.f32 %v649, 0.0
      %v778 = vmax.f32 %v650, 0.0
      %v779 = vmax.f32 %v651, 0.0
      %v780 = vmax.f32 %v652, 0.0
      %v781 = vmax.f32 %v653, 0.0
      %v782 = vmax.f32 %v654, 0.0
      %v783 = vmax.f32 %v655, 0.0
      %v784 = vmax.f32 %v656, 0.0
      %v785 = vmax.f32 %v657, 0.0
      %v786 = vmax.f32 %v658, 0.0
      %v787 = vmax.f32 %v659, 0.0
      %v788 = vmax.f32 %v660, 0.0
      %v789 = vmax.f32 %v661, 0.0
      %v790 = vmax.f32 %v662, 0.0
      %v791 = vmax.f32 %v663, 0.0
      %v792 = vmax.f32 %v664, 0.0
      %v793 = vmax.f32 %v665, 0.0
      %v794 = vmax.f32 %v666, 0.0
      %v795 = vmax.f32 %v667, 0.0
      %v796 = vmax.f32 %v668, 0.0
      %v797 = vmax.f32 %v669, 0.0
      %v798 = vmax.f32 %v670, 0.0
      %v799 = vmax.f32 %v671, 0.0
      %v800 = vmax.f32 %v672, 0.0
      %v801 = vmax.f32 %v673, 0.0
      %s802 = smul.u32 %s18, 1024
      %v803 = vlaneseq
      %v804 = vshrl.u32 %v803, 7
      %v805 = vadd.s32 %v804, 8
      %v806 = vadd.s32 %v804, 16
      %v807 = vadd.s32 %v804, 24
      %v808 = vadd.s32 %v804, 32
      %v809 = vadd.s32 %v804, 40
      %v810 = vadd.s32 %v804, 48
      %v811 = vadd.s32 %v804, 56
      %v812 = vadd.s32 %v804, 64
      %v813 = vadd.s32 %v804, 72
      %v814 = vadd.s32 %v804, 80
      %v815 = vadd.s32 %v804, 88
      %v816 = vadd.s32 %v804, 96
      %v817 = vadd.s32 %v804, 104
      %v818 = vadd.s32 %v804, 112
      %v819 = vadd.s32 %v804, 120
      %v820 = vadd.s32 %v804, 128
      %v821 = vadd.s32 %v804, 136
      %v822 = vadd.s32 %v804, 144
      %v823 = vadd.s32 %v804, 152
      %v824 = vadd.s32 %v804, 160
      %v825 = vadd.s32 %v804, 168
      %v826 = vadd.s32 %v804, 176
      %v827 = vadd.s32 %v804, 184
      %v828 = vadd.s32 %v804, 192
      %v829 = vadd.s32 %v804, 200
      %v830 = vadd.s32 %v804, 208
      %v831 = vadd.s32 %v804, 216
      %v832 = vadd.s32 %v804, 224
      %v833 = vadd.s32 %v804, 232
      %v834 = vadd.s32 %v804, 240
      %v835 = vadd.s32 %v804, 248
      %v836 = vadd.s32 %v804, 256
      %v837 = vadd.s32 %v804, 264
      %v838 = vadd.s32 %v804, 272
      %v839 = vadd.s32 %v804, 280
      %v840 = vadd.s32 %v804, 288
      %v841 = vadd.s32 %v804, 296
      %v842 = vadd.s32 %v804, 304
      %v843 = vadd.s32 %v804, 312
      %v844 = vadd.s32 %v804, 320
      %v845 = vadd.s32 %v804, 328
      %v846 = vadd.s32 %v804, 336
      %v847 = vadd.s32 %v804, 344
      %v848 = vadd.s32 %v804, 352
      %v849 = vadd.s32 %v804, 360
      %v850 = vadd.s32 %v804, 368
      %v851 = vadd.s32 %v804, 376
      %v852 = vadd.s32 %v804, 384
      %v853 = vadd.s32 %v804, 392
      %v854 = vadd.s32 %v804, 400
      %v855 = vadd.s32 %v804, 408
      %v856 = vadd.s32 %v804, 416
      %v857 = vadd.s32 %v804, 424
      %v858 = vadd.s32 %v804, 432
      %v859 = vadd.s32 %v804, 440
      %v860 = vadd.s32 %v804, 448
      %v861 = vadd.s32 %v804, 456
      %v862 = vadd.s32 %v804, 464
      %v863 = vadd.s32 %v804, 472
      %v864 = vadd.s32 %v804, 480
      %v865 = vadd.s32 %v804, 488
      %v866 = vadd.s32 %v804, 496
      %v867 = vadd.s32 %v804, 504
      %v868 = vadd.s32 %v804, 512
      %v869 = vadd.s32 %v804, 520
      %v870 = vadd.s32 %v804, 528
      %v871 = vadd.s32 %v804, 536
      %v872 = vadd.s32 %v804, 544
      %v873 = vadd.s32 %v804, 552
      %v874 = vadd.s32 %v804, 560
      %v875 = vadd.s32 %v804, 568
      %v876 = vadd.s32 %v804, 576
      %v877 = vadd.s32 %v804, 584
      %v878 = vadd.s32 %v804, 592
      %v879 = vadd.s32 %v804, 600
      %v880 = vadd.s32 %v804, 608
      %v881 = vadd.s32 %v804, 616
      %v882 = vadd.s32 %v804, 624
      %v883 = vadd.s32 %v804, 632
      %v884 = vadd.s32 %v804, 640
      %v885 = vadd.s32 %v804, 648
      %v886 = vadd.s32 %v804, 656
      %v887 = vadd.s32 %v804, 664
      %v888 = vadd.s32 %v804, 672
      %v889 = vadd.s32 %v804, 680
      %v890 = vadd.s32 %v804, 688
      %v891 = vadd.s32 %v804, 696
      %v892 = vadd.s32 %v804, 704
      %v893 = vadd.s32 %v804, 712
      %v894 = vadd.s32 %v804, 720
      %v895 = vadd.s32 %v804, 728
      %v896 = vadd.s32 %v804, 736
      %v897 = vadd.s32 %v804, 744
      %v898 = vadd.s32 %v804, 752
      %v899 = vadd.s32 %v804, 760
      %v900 = vadd.s32 %v804, 768
      %v901 = vadd.s32 %v804, 776
      %v902 = vadd.s32 %v804, 784
      %v903 = vadd.s32 %v804, 792
      %v904 = vadd.s32 %v804, 800
      %v905 = vadd.s32 %v804, 808
      %v906 = vadd.s32 %v804, 816
      %v907 = vadd.s32 %v804, 824
      %v908 = vadd.s32 %v804, 832
      %v909 = vadd.s32 %v804, 840
      %v910 = vadd.s32 %v804, 848
      %v911 = vadd.s32 %v804, 856
      %v912 = vadd.s32 %v804, 864
      %v913 = vadd.s32 %v804, 872
      %v914 = vadd.s32 %v804, 880
      %v915 = vadd.s32 %v804, 888
      %v916 = vadd.s32 %v804, 896
      %v917 = vadd.s32 %v804, 904
      %v918 = vadd.s32 %v804, 912
      %v919 = vadd.s32 %v804, 920
      %v920 = vadd.s32 %v804, 928
      %v921 = vadd.s32 %v804, 936
      %v922 = vadd.s32 %v804, 944
      %v923 = vadd.s32 %v804, 952
      %v924 = vadd.s32 %v804, 960
      %v925 = vadd.s32 %v804, 968
      %v926 = vadd.s32 %v804, 976
      %v927 = vadd.s32 %v804, 984
      %v928 = vadd.s32 %v804, 992
      %v929 = vadd.s32 %v804, 1000
      %v930 = vadd.s32 %v804, 1008
      %v931 = vadd.s32 %v804, 1016
      %v932 = vstv %s802
      %v933 = vadd.s32 %v932, %v804
      %v934 = vadd.s32 %v932, %v805
      %v935 = vadd.s32 %v932, %v806
      %v936 = vadd.s32 %v932, %v807
      %v937 = vadd.s32 %v932, %v808
      %v938 = vadd.s32 %v932, %v809
      %v939 = vadd.s32 %v932, %v810
      %v940 = vadd.s32 %v932, %v811
      %v941 = vadd.s32 %v932, %v812
      %v942 = vadd.s32 %v932, %v813
      %v943 = vadd.s32 %v932, %v814
      %v944 = vadd.s32 %v932, %v815
      %v945 = vadd.s32 %v932, %v816
      %v946 = vadd.s32 %v932, %v817
      %v947 = vadd.s32 %v932, %v818
      %v948 = vadd.s32 %v932, %v819
      %v949 = vadd.s32 %v932, %v820
      %v950 = vadd.s32 %v932, %v821
      %v951 = vadd.s32 %v932, %v822
      %v952 = vadd.s32 %v932, %v823
      %v953 = vadd.s32 %v932, %v824
      %v954 = vadd.s32 %v932, %v825
      %v955 = vadd.s32 %v932, %v826
      %v956 = vadd.s32 %v932, %v827
      %v957 = vadd.s32 %v932, %v828
      %v958 = vadd.s32 %v932, %v829
      %v959 = vadd.s32 %v932, %v830
      %v960 = vadd.s32 %v932, %v831
      %v961 = vadd.s32 %v932, %v832
      %v962 = vadd.s32 %v932, %v833
      %v963 = vadd.s32 %v932, %v834
      %v964 = vadd.s32 %v932, %v835
      %v965 = vadd.s32 %v932, %v836
      %v966 = vadd.s32 %v932, %v837
      %v967 = vadd.s32 %v932, %v838
      %v968 = vadd.s32 %v932, %v839
      %v969 = vadd.s32 %v932, %v840
      %v970 = vadd.s32 %v932, %v841
      %v971 = vadd.s32 %v932, %v842
      %v972 = vadd.s32 %v932, %v843
      %v973 = vadd.s32 %v932, %v844
      %v974 = vadd.s32 %v932, %v845
      %v975 = vadd.s32 %v932, %v846
      %v976 = vadd.s32 %v932, %v847
      %v977 = vadd.s32 %v932, %v848
      %v978 = vadd.s32 %v932, %v849
      %v979 = vadd.s32 %v932, %v850
      %v980 = vadd.s32 %v932, %v851
      %v981 = vadd.s32 %v932, %v852
      %v982 = vadd.s32 %v932, %v853
      %v983 = vadd.s32 %v932, %v854
      %v984 = vadd.s32 %v932, %v855
      %v985 = vadd.s32 %v932, %v856
      %v986 = vadd.s32 %v932, %v857
      %v987 = vadd.s32 %v932, %v858
      %v988 = vadd.s32 %v932, %v859
      %v989 = vadd.s32 %v932, %v860
      %v990 = vadd.s32 %v932, %v861
      %v991 = vadd.s32 %v932, %v862
      %v992 = vadd.s32 %v932, %v863
      %v993 = vadd.s32 %v932, %v864
      %v994 = vadd.s32 %v932, %v865
      %v995 = vadd.s32 %v932, %v866
      %v996 = vadd.s32 %v932, %v867
      %v997 = vadd.s32 %v932, %v868
      %v998 = vadd.s32 %v932, %v869
      %v999 = vadd.s32 %v932, %v870
      %v1000 = vadd.s32 %v932, %v871
      %v1001 = vadd.s32 %v932, %v872
      %v1002 = vadd.s32 %v932, %v873
      %v1003 = vadd.s32 %v932, %v874
      %v1004 = vadd.s32 %v932, %v875
      %v1005 = vadd.s32 %v932, %v876
      %v1006 = vadd.s32 %v932, %v877
      %v1007 = vadd.s32 %v932, %v878
      %v1008 = vadd.s32 %v932, %v879
      %v1009 = vadd.s32 %v932, %v880
      %v1010 = vadd.s32 %v932, %v881
      %v1011 = vadd.s32 %v932, %v882
      %v1012 = vadd.s32 %v932, %v883
      %v1013 = vadd.s32 %v932, %v884
      %v1014 = vadd.s32 %v932, %v885
      %v1015 = vadd.s32 %v932, %v886
      %v1016 = vadd.s32 %v932, %v887
      %v1017 = vadd.s32 %v932, %v888
      %v1018 = vadd.s32 %v932, %v889
      %v1019 = vadd.s32 %v932, %v890
      %v1020 = vadd.s32 %v932, %v891
      %v1021 = vadd.s32 %v932, %v892
      %v1022 = vadd.s32 %v932, %v893
      %v1023 = vadd.s32 %v932, %v894
      %v1024 = vadd.s32 %v932, %v895
      %v1025 = vadd.s32 %v932, %v896
      %v1026 = vadd.s32 %v932, %v897
      %v1027 = vadd.s32 %v932, %v898
      %v1028 = vadd.s32 %v932, %v899
      %v1029 = vadd.s32 %v932, %v900
      %v1030 = vadd.s32 %v932, %v901
      %v1031 = vadd.s32 %v932, %v902
      %v1032 = vadd.s32 %v932, %v903
      %v1033 = vadd.s32 %v932, %v904
      %v1034 = vadd.s32 %v932, %v905
      %v1035 = vadd.s32 %v932, %v906
      %v1036 = vadd.s32 %v932, %v907
      %v1037 = vadd.s32 %v932, %v908
      %v1038 = vadd.s32 %v932, %v909
      %v1039 = vadd.s32 %v932, %v910
      %v1040 = vadd.s32 %v932, %v911
      %v1041 = vadd.s32 %v932, %v912
      %v1042 = vadd.s32 %v932, %v913
      %v1043 = vadd.s32 %v932, %v914
      %v1044 = vadd.s32 %v932, %v915
      %v1045 = vadd.s32 %v932, %v916
      %v1046 = vadd.s32 %v932, %v917
      %v1047 = vadd.s32 %v932, %v918
      %v1048 = vadd.s32 %v932, %v919
      %v1049 = vadd.s32 %v932, %v920
      %v1050 = vadd.s32 %v932, %v921
      %v1051 = vadd.s32 %v932, %v922
      %v1052 = vadd.s32 %v932, %v923
      %v1053 = vadd.s32 %v932, %v924
      %v1054 = vadd.s32 %v932, %v925
      %v1055 = vadd.s32 %v932, %v926
      %v1056 = vadd.s32 %v932, %v927
      %v1057 = vadd.s32 %v932, %v928
      %v1058 = vadd.s32 %v932, %v929
      %v1059 = vadd.s32 %v932, %v930
      %v1060 = vadd.s32 %v932, %v931
      %vm1061 = vcmp.lt.s32.totalorder %v933, 4096
      %vm1062 = vcmp.lt.s32.totalorder %v934, 4096
      %vm1063 = vcmp.lt.s32.totalorder %v935, 4096
      %vm1064 = vcmp.lt.s32.totalorder %v936, 4096
      %vm1065 = vcmp.lt.s32.totalorder %v937, 4096
      %vm1066 = vcmp.lt.s32.totalorder %v938, 4096
      %vm1067 = vcmp.lt.s32.totalorder %v939, 4096
      %vm1068 = vcmp.lt.s32.totalorder %v940, 4096
      %vm1069 = vcmp.lt.s32.totalorder %v941, 4096
      %vm1070 = vcmp.lt.s32.totalorder %v942, 4096
      %vm1071 = vcmp.lt.s32.totalorder %v943, 4096
      %vm1072 = vcmp.lt.s32.totalorder %v944, 4096
      %vm1073 = vcmp.lt.s32.totalorder %v945, 4096
      %vm1074 = vcmp.lt.s32.totalorder %v946, 4096
      %vm1075 = vcmp.lt.s32.totalorder %v947, 4096
      %vm1076 = vcmp.lt.s32.totalorder %v948, 4096
      %vm1077 = vcmp.lt.s32.totalorder %v949, 4096
      %vm1078 = vcmp.lt.s32.totalorder %v950, 4096
      %vm1079 = vcmp.lt.s32.totalorder %v951, 4096
      %vm1080 = vcmp.lt.s32.totalorder %v952, 4096
      %vm1081 = vcmp.lt.s32.totalorder %v953, 4096
      %vm1082 = vcmp.lt.s32.totalorder %v954, 4096
      %vm1083 = vcmp.lt.s32.totalorder %v955, 4096
      %vm1084 = vcmp.lt.s32.totalorder %v956, 4096
      %vm1085 = vcmp.lt.s32.totalorder %v957, 4096
      %vm1086 = vcmp.lt.s32.totalorder %v958, 4096
      %vm1087 = vcmp.lt.s32.totalorder %v959, 4096
      %vm1088 = vcmp.lt.s32.totalorder %v960, 4096
      %vm1089 = vcmp.lt.s32.totalorder %v961, 4096
      %vm1090 = vcmp.lt.s32.totalorder %v962, 4096
      %vm1091 = vcmp.lt.s32.totalorder %v963, 4096
      %vm1092 = vcmp.lt.s32.totalorder %v964, 4096
      %vm1093 = vcmp.lt.s32.totalorder %v965, 4096
      %vm1094 = vcmp.lt.s32.totalorder %v966, 4096
      %vm1095 = vcmp.lt.s32.totalorder %v967, 4096
      %vm1096 = vcmp.lt.s32.totalorder %v968, 4096
      %vm1097 = vcmp.lt.s32.totalorder %v969, 4096
      %vm1098 = vcmp.lt.s32.totalorder %v970, 4096
      %vm1099 = vcmp.lt.s32.totalorder %v971, 4096
      %vm1100 = vcmp.lt.s32.totalorder %v972, 4096
      %vm1101 = vcmp.lt.s32.totalorder %v973, 4096
      %vm1102 = vcmp.lt.s32.totalorder %v974, 4096
      %vm1103 = vcmp.lt.s32.totalorder %v975, 4096
      %vm1104 = vcmp.lt.s32.totalorder %v976, 4096
      %vm1105 = vcmp.lt.s32.totalorder %v977, 4096
      %vm1106 = vcmp.lt.s32.totalorder %v978, 4096
      %vm1107 = vcmp.lt.s32.totalorder %v979, 4096
      %vm1108 = vcmp.lt.s32.totalorder %v980, 4096
      %vm1109 = vcmp.lt.s32.totalorder %v981, 4096
      %vm1110 = vcmp.lt.s32.totalorder %v982, 4096
      %vm1111 = vcmp.lt.s32.totalorder %v983, 4096
      %vm1112 = vcmp.lt.s32.totalorder %v984, 4096
      %vm1113 = vcmp.lt.s32.totalorder %v985, 4096
      %vm1114 = vcmp.lt.s32.totalorder %v986, 4096
      %vm1115 = vcmp.lt.s32.totalorder %v987, 4096
      %vm1116 = vcmp.lt.s32.totalorder %v988, 4096
      %vm1117 = vcmp.lt.s32.totalorder %v989, 4096
      %vm1118 = vcmp.lt.s32.totalorder %v990, 4096
      %vm1119 = vcmp.lt.s32.totalorder %v991, 4096
      %vm1120 = vcmp.lt.s32.totalorder %v992, 4096
      %vm1121 = vcmp.lt.s32.totalorder %v993, 4096
      %vm1122 = vcmp.lt.s32.totalorder %v994, 4096
      %vm1123 = vcmp.lt.s32.totalorder %v995, 4096
      %vm1124 = vcmp.lt.s32.totalorder %v996, 4096
      %vm1125 = vcmp.lt.s32.totalorder %v997, 4096
      %vm1126 = vcmp.lt.s32.totalorder %v998, 4096
      %vm1127 = vcmp.lt.s32.totalorder %v999, 4096
      %vm1128 = vcmp.lt.s32.totalorder %v1000, 4096
      %vm1129 = vcmp.lt.s32.totalorder %v1001, 4096
      %vm1130 = vcmp.lt.s32.totalorder %v1002, 4096
      %vm1131 = vcmp.lt.s32.totalorder %v1003, 4096
      %vm1132 = vcmp.lt.s32.totalorder %v1004, 4096
      %vm1133 = vcmp.lt.s32.totalorder %v1005, 4096
      %vm1134 = vcmp.lt.s32.totalorder %v1006, 4096
      %vm1135 = vcmp.lt.s32.totalorder %v1007, 4096
      %vm1136 = vcmp.lt.s32.totalorder %v1008, 4096
      %vm1137 = vcmp.lt.s32.totalorder %v1009, 4096
      %vm1138 = vcmp.lt.s32.totalorder %v1010, 4096
      %vm1139 = vcmp.lt.s32.totalorder %v1011, 4096
      %vm1140 = vcmp.lt.s32.totalorder %v1012, 4096
      %vm1141 = vcmp.lt.s32.totalorder %v1013, 4096
      %vm1142 = vcmp.lt.s32.totalorder %v1014, 4096
      %vm1143 = vcmp.lt.s32.totalorder %v1015, 4096
      %vm1144 = vcmp.lt.s32.totalorder %v1016, 4096
      %vm1145 = vcmp.lt.s32.totalorder %v1017, 4096
      %vm1146 = vcmp.lt.s32.totalorder %v1018, 4096
      %vm1147 = vcmp.lt.s32.totalorder %v1019, 4096
      %vm1148 = vcmp.lt.s32.totalorder %v1020, 4096
      %vm1149 = vcmp.lt.s32.totalorder %v1021, 4096
      %vm1150 = vcmp.lt.s32.totalorder %v1022, 4096
      %vm1151 = vcmp.lt.s32.totalorder %v1023, 4096
      %vm1152 = vcmp.lt.s32.totalorder %v1024, 4096
      %vm1153 = vcmp.lt.s32.totalorder %v1025, 4096
      %vm1154 = vcmp.lt.s32.totalorder %v1026, 4096
      %vm1155 = vcmp.lt.s32.totalorder %v1027, 4096
      %vm1156 = vcmp.lt.s32.totalorder %v1028, 4096
      %vm1157 = vcmp.lt.s32.totalorder %v1029, 4096
      %vm1158 = vcmp.lt.s32.totalorder %v1030, 4096
      %vm1159 = vcmp.lt.s32.totalorder %v1031, 4096
      %vm1160 = vcmp.lt.s32.totalorder %v1032, 4096
      %vm1161 = vcmp.lt.s32.totalorder %v1033, 4096
      %vm1162 = vcmp.lt.s32.totalorder %v1034, 4096
      %vm1163 = vcmp.lt.s32.totalorder %v1035, 4096
      %vm1164 = vcmp.lt.s32.totalorder %v1036, 4096
      %vm1165 = vcmp.lt.s32.totalorder %v1037, 4096
      %vm1166 = vcmp.lt.s32.totalorder %v1038, 4096
      %vm1167 = vcmp.lt.s32.totalorder %v1039, 4096
      %vm1168 = vcmp.lt.s32.totalorder %v1040, 4096
      %vm1169 = vcmp.lt.s32.totalorder %v1041, 4096
      %vm1170 = vcmp.lt.s32.totalorder %v1042, 4096
      %vm1171 = vcmp.lt.s32.totalorder %v1043, 4096
      %vm1172 = vcmp.lt.s32.totalorder %v1044, 4096
      %vm1173 = vcmp.lt.s32.totalorder %v1045, 4096
      %vm1174 = vcmp.lt.s32.totalorder %v1046, 4096
      %vm1175 = vcmp.lt.s32.totalorder %v1047, 4096
      %vm1176 = vcmp.lt.s32.totalorder %v1048, 4096
      %vm1177 = vcmp.lt.s32.totalorder %v1049, 4096
      %vm1178 = vcmp.lt.s32.totalorder %v1050, 4096
      %vm1179 = vcmp.lt.s32.totalorder %v1051, 4096
      %vm1180 = vcmp.lt.s32.totalorder %v1052, 4096
      %vm1181 = vcmp.lt.s32.totalorder %v1053, 4096
      %vm1182 = vcmp.lt.s32.totalorder %v1054, 4096
      %vm1183 = vcmp.lt.s32.totalorder %v1055, 4096
      %vm1184 = vcmp.lt.s32.totalorder %v1056, 4096
      %vm1185 = vcmp.lt.s32.totalorder %v1057, 4096
      %vm1186 = vcmp.lt.s32.totalorder %v1058, 4096
      %vm1187 = vcmp.lt.s32.totalorder %v1059, 4096
      %vm1188 = vcmp.lt.s32.totalorder %v1060, 4096
      %v1189 = vsel %vm1061, 1, 0
      %v1190 = vsel %vm1062, 1, 0
      %v1191 = vsel %vm1063, 1, 0
      %v1192 = vsel %vm1064, 1, 0
      %v1193 = vsel %vm1065, 1, 0
      %v1194 = vsel %vm1066, 1, 0
      %v1195 = vsel %vm1067, 1, 0
      %v1196 = vsel %vm1068, 1, 0
      %v1197 = vsel %vm1069, 1, 0
      %v1198 = vsel %vm1070, 1, 0
      %v1199 = vsel %vm1071, 1, 0
      %v1200 = vsel %vm1072, 1, 0
      %v1201 = vsel %vm1073, 1, 0
      %v1202 = vsel %vm1074, 1, 0
      %v1203 = vsel %vm1075, 1, 0
      %v1204 = vsel %vm1076, 1, 0
      %v1205 = vsel %vm1077, 1, 0
      %v1206 = vsel %vm1078, 1, 0
      %v1207 = vsel %vm1079, 1, 0
      %v1208 = vsel %vm1080, 1, 0
      %v1209 = vsel %vm1081, 1, 0
      %v1210 = vsel %vm1082, 1, 0
      %v1211 = vsel %vm1083, 1, 0
      %v1212 = vsel %vm1084, 1, 0
      %v1213 = vsel %vm1085, 1, 0
      %v1214 = vsel %vm1086, 1, 0
      %v1215 = vsel %vm1087, 1, 0
      %v1216 = vsel %vm1088, 1, 0
      %v1217 = vsel %vm1089, 1, 0
      %v1218 = vsel %vm1090, 1, 0
      %v1219 = vsel %vm1091, 1, 0
      %v1220 = vsel %vm1092, 1, 0
      %v1221 = vsel %vm1093, 1, 0
      %v1222 = vsel %vm1094, 1, 0
      %v1223 = vsel %vm1095, 1, 0
      %v1224 = vsel %vm1096, 1, 0
      %v1225 = vsel %vm1097, 1, 0
      %v1226 = vsel %vm1098, 1, 0
      %v1227 = vsel %vm1099, 1, 0
      %v1228 = vsel %vm1100, 1, 0
      %v1229 = vsel %vm1101, 1, 0
      %v1230 = vsel %vm1102, 1, 0
      %v1231 = vsel %vm1103, 1, 0
      %v1232 = vsel %vm1104, 1, 0
      %v1233 = vsel %vm1105, 1, 0
      %v1234 = vsel %vm1106, 1, 0
      %v1235 = vsel %vm1107, 1, 0
      %v1236 = vsel %vm1108, 1, 0
      %v1237 = vsel %vm1109, 1, 0
      %v1238 = vsel %vm1110, 1, 0
      %v1239 = vsel %vm1111, 1, 0
      %v1240 = vsel %vm1112, 1, 0
      %v1241 = vsel %vm1113, 1, 0
      %v1242 = vsel %vm1114, 1, 0
      %v1243 = vsel %vm1115, 1, 0
      %v1244 = vsel %vm1116, 1, 0
      %v1245 = vsel %vm1117, 1, 0
      %v1246 = vsel %vm1118, 1, 0
      %v1247 = vsel %vm1119, 1, 0
      %v1248 = vsel %vm1120, 1, 0
      %v1249 = vsel %vm1121, 1, 0
      %v1250 = vsel %vm1122, 1, 0
      %v1251 = vsel %vm1123, 1, 0
      %v1252 = vsel %vm1124, 1, 0
      %v1253 = vsel %vm1125, 1, 0
      %v1254 = vsel %vm1126, 1, 0
      %v1255 = vsel %vm1127, 1, 0
      %v1256 = vsel %vm1128, 1, 0
      %v1257 = vsel %vm1129, 1, 0
      %v1258 = vsel %vm1130, 1, 0
      %v1259 = vsel %vm1131, 1, 0
      %v1260 = vsel %vm1132, 1, 0
      %v1261 = vsel %vm1133, 1, 0
      %v1262 = vsel %vm1134, 1, 0
      %v1263 = vsel %vm1135, 1, 0
      %v1264 = vsel %vm1136, 1, 0
      %v1265 = vsel %vm1137, 1, 0
      %v1266 = vsel %vm1138, 1, 0
      %v1267 = vsel %vm1139, 1, 0
      %v1268 = vsel %vm1140, 1, 0
      %v1269 = vsel %vm1141, 1, 0
      %v1270 = vsel %vm1142, 1, 0
      %v1271 = vsel %vm1143, 1, 0
      %v1272 = vsel %vm1144, 1, 0
      %v1273 = vsel %vm1145, 1, 0
      %v1274 = vsel %vm1146, 1, 0
      %v1275 = vsel %vm1147, 1, 0
      %v1276 = vsel %vm1148, 1, 0
      %v1277 = vsel %vm1149, 1, 0
      %v1278 = vsel %vm1150, 1, 0
      %v1279 = vsel %vm1151, 1, 0
      %v1280 = vsel %vm1152, 1, 0
      %v1281 = vsel %vm1153, 1, 0
      %v1282 = vsel %vm1154, 1, 0
      %v1283 = vsel %vm1155, 1, 0
      %v1284 = vsel %vm1156, 1, 0
      %v1285 = vsel %vm1157, 1, 0
      %v1286 = vsel %vm1158, 1, 0
      %v1287 = vsel %vm1159, 1, 0
      %v1288 = vsel %vm1160, 1, 0
      %v1289 = vsel %vm1161, 1, 0
      %v1290 = vsel %vm1162, 1, 0
      %v1291 = vsel %vm1163, 1, 0
      %v1292 = vsel %vm1164, 1, 0
      %v1293 = vsel %vm1165, 1, 0
      %v1294 = vsel %vm1166, 1, 0
      %v1295 = vsel %vm1167, 1, 0
      %v1296 = vsel %vm1168, 1, 0
      %v1297 = vsel %vm1169, 1, 0
      %v1298 = vsel %vm1170, 1, 0
      %v1299 = vsel %vm1171, 1, 0
      %v1300 = vsel %vm1172, 1, 0
      %v1301 = vsel %vm1173, 1, 0
      %v1302 = vsel %vm1174, 1, 0
      %v1303 = vsel %vm1175, 1, 0
      %v1304 = vsel %vm1176, 1, 0
      %v1305 = vsel %vm1177, 1, 0
      %v1306 = vsel %vm1178, 1, 0
      %v1307 = vsel %vm1179, 1, 0
      %v1308 = vsel %vm1180, 1, 0
      %v1309 = vsel %vm1181, 1, 0
      %v1310 = vsel %vm1182, 1, 0
      %v1311 = vsel %vm1183, 1, 0
      %v1312 = vsel %vm1184, 1, 0
      %v1313 = vsel %vm1185, 1, 0
      %v1314 = vsel %vm1186, 1, 0
      %v1315 = vsel %vm1187, 1, 0
      %v1316 = vsel %vm1188, 1, 0
      %vm1317 = vcmp.eq.s32.totalorder %v1189, 1
      %vm1318 = vcmp.eq.s32.totalorder %v1190, 1
      %vm1319 = vcmp.eq.s32.totalorder %v1191, 1
      %vm1320 = vcmp.eq.s32.totalorder %v1192, 1
      %vm1321 = vcmp.eq.s32.totalorder %v1193, 1
      %vm1322 = vcmp.eq.s32.totalorder %v1194, 1
      %vm1323 = vcmp.eq.s32.totalorder %v1195, 1
      %vm1324 = vcmp.eq.s32.totalorder %v1196, 1
      %vm1325 = vcmp.eq.s32.totalorder %v1197, 1
      %vm1326 = vcmp.eq.s32.totalorder %v1198, 1
      %vm1327 = vcmp.eq.s32.totalorder %v1199, 1
      %vm1328 = vcmp.eq.s32.totalorder %v1200, 1
      %vm1329 = vcmp.eq.s32.totalorder %v1201, 1
      %vm1330 = vcmp.eq.s32.totalorder %v1202, 1
      %vm1331 = vcmp.eq.s32.totalorder %v1203, 1
      %vm1332 = vcmp.eq.s32.totalorder %v1204, 1
      %vm1333 = vcmp.eq.s32.totalorder %v1205, 1
      %vm1334 = vcmp.eq.s32.totalorder %v1206, 1
      %vm1335 = vcmp.eq.s32.totalorder %v1207, 1
      %vm1336 = vcmp.eq.s32.totalorder %v1208, 1
      %vm1337 = vcmp.eq.s32.totalorder %v1209, 1
      %vm1338 = vcmp.eq.s32.totalorder %v1210, 1
      %vm1339 = vcmp.eq.s32.totalorder %v1211, 1
      %vm1340 = vcmp.eq.s32.totalorder %v1212, 1
      %vm1341 = vcmp.eq.s32.totalorder %v1213, 1
      %vm1342 = vcmp.eq.s32.totalorder %v1214, 1
      %vm1343 = vcmp.eq.s32.totalorder %v1215, 1
      %vm1344 = vcmp.eq.s32.totalorder %v1216, 1
      %vm1345 = vcmp.eq.s32.totalorder %v1217, 1
      %vm1346 = vcmp.eq.s32.totalorder %v1218, 1
      %vm1347 = vcmp.eq.s32.totalorder %v1219, 1
      %vm1348 = vcmp.eq.s32.totalorder %v1220, 1
      %vm1349 = vcmp.eq.s32.totalorder %v1221, 1
      %vm1350 = vcmp.eq.s32.totalorder %v1222, 1
      %vm1351 = vcmp.eq.s32.totalorder %v1223, 1
      %vm1352 = vcmp.eq.s32.totalorder %v1224, 1
      %vm1353 = vcmp.eq.s32.totalorder %v1225, 1
      %vm1354 = vcmp.eq.s32.totalorder %v1226, 1
      %vm1355 = vcmp.eq.s32.totalorder %v1227, 1
      %vm1356 = vcmp.eq.s32.totalorder %v1228, 1
      %vm1357 = vcmp.eq.s32.totalorder %v1229, 1
      %vm1358 = vcmp.eq.s32.totalorder %v1230, 1
      %vm1359 = vcmp.eq.s32.totalorder %v1231, 1
      %vm1360 = vcmp.eq.s32.totalorder %v1232, 1
      %vm1361 = vcmp.eq.s32.totalorder %v1233, 1
      %vm1362 = vcmp.eq.s32.totalorder %v1234, 1
      %vm1363 = vcmp.eq.s32.totalorder %v1235, 1
      %vm1364 = vcmp.eq.s32.totalorder %v1236, 1
      %vm1365 = vcmp.eq.s32.totalorder %v1237, 1
      %vm1366 = vcmp.eq.s32.totalorder %v1238, 1
      %vm1367 = vcmp.eq.s32.totalorder %v1239, 1
      %vm1368 = vcmp.eq.s32.totalorder %v1240, 1
      %vm1369 = vcmp.eq.s32.totalorder %v1241, 1
      %vm1370 = vcmp.eq.s32.totalorder %v1242, 1
      %vm1371 = vcmp.eq.s32.totalorder %v1243, 1
      %vm1372 = vcmp.eq.s32.totalorder %v1244, 1
      %vm1373 = vcmp.eq.s32.totalorder %v1245, 1
      %vm1374 = vcmp.eq.s32.totalorder %v1246, 1
      %vm1375 = vcmp.eq.s32.totalorder %v1247, 1
      %vm1376 = vcmp.eq.s32.totalorder %v1248, 1
      %vm1377 = vcmp.eq.s32.totalorder %v1249, 1
      %vm1378 = vcmp.eq.s32.totalorder %v1250, 1
      %vm1379 = vcmp.eq.s32.totalorder %v1251, 1
      %vm1380 = vcmp.eq.s32.totalorder %v1252, 1
      %vm1381 = vcmp.eq.s32.totalorder %v1253, 1
      %vm1382 = vcmp.eq.s32.totalorder %v1254, 1
      %vm1383 = vcmp.eq.s32.totalorder %v1255, 1
      %vm1384 = vcmp.eq.s32.totalorder %v1256, 1
      %vm1385 = vcmp.eq.s32.totalorder %v1257, 1
      %vm1386 = vcmp.eq.s32.totalorder %v1258, 1
      %vm1387 = vcmp.eq.s32.totalorder %v1259, 1
      %vm1388 = vcmp.eq.s32.totalorder %v1260, 1
      %vm1389 = vcmp.eq.s32.totalorder %v1261, 1
      %vm1390 = vcmp.eq.s32.totalorder %v1262, 1
      %vm1391 = vcmp.eq.s32.totalorder %v1263, 1
      %vm1392 = vcmp.eq.s32.totalorder %v1264, 1
      %vm1393 = vcmp.eq.s32.totalorder %v1265, 1
      %vm1394 = vcmp.eq.s32.totalorder %v1266, 1
      %vm1395 = vcmp.eq.s32.totalorder %v1267, 1
      %vm1396 = vcmp.eq.s32.totalorder %v1268, 1
      %vm1397 = vcmp.eq.s32.totalorder %v1269, 1
      %vm1398 = vcmp.eq.s32.totalorder %v1270, 1
      %vm1399 = vcmp.eq.s32.totalorder %v1271, 1
      %vm1400 = vcmp.eq.s32.totalorder %v1272, 1
      %vm1401 = vcmp.eq.s32.totalorder %v1273, 1
      %vm1402 = vcmp.eq.s32.totalorder %v1274, 1
      %vm1403 = vcmp.eq.s32.totalorder %v1275, 1
      %vm1404 = vcmp.eq.s32.totalorder %v1276, 1
      %vm1405 = vcmp.eq.s32.totalorder %v1277, 1
      %vm1406 = vcmp.eq.s32.totalorder %v1278, 1
      %vm1407 = vcmp.eq.s32.totalorder %v1279, 1
      %vm1408 = vcmp.eq.s32.totalorder %v1280, 1
      %vm1409 = vcmp.eq.s32.totalorder %v1281, 1
      %vm1410 = vcmp.eq.s32.totalorder %v1282, 1
      %vm1411 = vcmp.eq.s32.totalorder %v1283, 1
      %vm1412 = vcmp.eq.s32.totalorder %v1284, 1
      %vm1413 = vcmp.eq.s32.totalorder %v1285, 1
      %vm1414 = vcmp.eq.s32.totalorder %v1286, 1
      %vm1415 = vcmp.eq.s32.totalorder %v1287, 1
      %vm1416 = vcmp.eq.s32.totalorder %v1288, 1
      %vm1417 = vcmp.eq.s32.totalorder %v1289, 1
      %vm1418 = vcmp.eq.s32.totalorder %v1290, 1
      %vm1419 = vcmp.eq.s32.totalorder %v1291, 1
      %vm1420 = vcmp.eq.s32.totalorder %v1292, 1
      %vm1421 = vcmp.eq.s32.totalorder %v1293, 1
      %vm1422 = vcmp.eq.s32.totalorder %v1294, 1
      %vm1423 = vcmp.eq.s32.totalorder %v1295, 1
      %vm1424 = vcmp.eq.s32.totalorder %v1296, 1
      %vm1425 = vcmp.eq.s32.totalorder %v1297, 1
      %vm1426 = vcmp.eq.s32.totalorder %v1298, 1
      %vm1427 = vcmp.eq.s32.totalorder %v1299, 1
      %vm1428 = vcmp.eq.s32.totalorder %v1300, 1
      %vm1429 = vcmp.eq.s32.totalorder %v1301, 1
      %vm1430 = vcmp.eq.s32.totalorder %v1302, 1
      %vm1431 = vcmp.eq.s32.totalorder %v1303, 1
      %vm1432 = vcmp.eq.s32.totalorder %v1304, 1
      %vm1433 = vcmp.eq.s32.totalorder %v1305, 1
      %vm1434 = vcmp.eq.s32.totalorder %v1306, 1
      %vm1435 = vcmp.eq.s32.totalorder %v1307, 1
      %vm1436 = vcmp.eq.s32.totalorder %v1308, 1
      %vm1437 = vcmp.eq.s32.totalorder %v1309, 1
      %vm1438 = vcmp.eq.s32.totalorder %v1310, 1
      %vm1439 = vcmp.eq.s32.totalorder %v1311, 1
      %vm1440 = vcmp.eq.s32.totalorder %v1312, 1
      %vm1441 = vcmp.eq.s32.totalorder %v1313, 1
      %vm1442 = vcmp.eq.s32.totalorder %v1314, 1
      %vm1443 = vcmp.eq.s32.totalorder %v1315, 1
      %vm1444 = vcmp.eq.s32.totalorder %v1316, 1
      %v1445 = vsel %vm1317, %v674, 0.0
      %v1446 = vsel %vm1318, %v675, 0.0
      %v1447 = vsel %vm1319, %v676, 0.0
      %v1448 = vsel %vm1320, %v677, 0.0
      %v1449 = vsel %vm1321, %v678, 0.0
      %v1450 = vsel %vm1322, %v679, 0.0
      %v1451 = vsel %vm1323, %v680, 0.0
      %v1452 = vsel %vm1324, %v681, 0.0
      %v1453 = vsel %vm1325, %v682, 0.0
      %v1454 = vsel %vm1326, %v683, 0.0
      %v1455 = vsel %vm1327, %v684, 0.0
      %v1456 = vsel %vm1328, %v685, 0.0
      %v1457 = vsel %vm1329, %v686, 0.0
      %v1458 = vsel %vm1330, %v687, 0.0
      %v1459 = vsel %vm1331, %v688, 0.0
      %v1460 = vsel %vm1332, %v689, 0.0
      %v1461 = vsel %vm1333, %v690, 0.0
      %v1462 = vsel %vm1334, %v691, 0.0
      %v1463 = vsel %vm1335, %v692, 0.0
      %v1464 = vsel %vm1336, %v693, 0.0
      %v1465 = vsel %vm1337, %v694, 0.0
      %v1466 = vsel %vm1338, %v695, 0.0
      %v1467 = vsel %vm1339, %v696, 0.0
      %v1468 = vsel %vm1340, %v697, 0.0
      %v1469 = vsel %vm1341, %v698, 0.0
      %v1470 = vsel %vm1342, %v699, 0.0
      %v1471 = vsel %vm1343, %v700, 0.0
      %v1472 = vsel %vm1344, %v701, 0.0
      %v1473 = vsel %vm1345, %v702, 0.0
      %v1474 = vsel %vm1346, %v703, 0.0
      %v1475 = vsel %vm1347, %v704, 0.0
      %v1476 = vsel %vm1348, %v705, 0.0
      %v1477 = vsel %vm1349, %v706, 0.0
      %v1478 = vsel %vm1350, %v707, 0.0
      %v1479 = vsel %vm1351, %v708, 0.0
      %v1480 = vsel %vm1352, %v709, 0.0
      %v1481 = vsel %vm1353, %v710, 0.0
      %v1482 = vsel %vm1354, %v711, 0.0
      %v1483 = vsel %vm1355, %v712, 0.0
      %v1484 = vsel %vm1356, %v713, 0.0
      %v1485 = vsel %vm1357, %v714, 0.0
      %v1486 = vsel %vm1358, %v715, 0.0
      %v1487 = vsel %vm1359, %v716, 0.0
      %v1488 = vsel %vm1360, %v717, 0.0
      %v1489 = vsel %vm1361, %v718, 0.0
      %v1490 = vsel %vm1362, %v719, 0.0
      %v1491 = vsel %vm1363, %v720, 0.0
      %v1492 = vsel %vm1364, %v721, 0.0
      %v1493 = vsel %vm1365, %v722, 0.0
      %v1494 = vsel %vm1366, %v723, 0.0
      %v1495 = vsel %vm1367, %v724, 0.0
      %v1496 = vsel %vm1368, %v725, 0.0
      %v1497 = vsel %vm1369, %v726, 0.0
      %v1498 = vsel %vm1370, %v727, 0.0
      %v1499 = vsel %vm1371, %v728, 0.0
      %v1500 = vsel %vm1372, %v729, 0.0
      %v1501 = vsel %vm1373, %v730, 0.0
      %v1502 = vsel %vm1374, %v731, 0.0
      %v1503 = vsel %vm1375, %v732, 0.0
      %v1504 = vsel %vm1376, %v733, 0.0
      %v1505 = vsel %vm1377, %v734, 0.0
      %v1506 = vsel %vm1378, %v735, 0.0
      %v1507 = vsel %vm1379, %v736, 0.0
      %v1508 = vsel %vm1380, %v737, 0.0
      %v1509 = vsel %vm1381, %v738, 0.0
      %v1510 = vsel %vm1382, %v739, 0.0
      %v1511 = vsel %vm1383, %v740, 0.0
      %v1512 = vsel %vm1384, %v741, 0.0
      %v1513 = vsel %vm1385, %v742, 0.0
      %v1514 = vsel %vm1386, %v743, 0.0
      %v1515 = vsel %vm1387, %v744, 0.0
      %v1516 = vsel %vm1388, %v745, 0.0
      %v1517 = vsel %vm1389, %v746, 0.0
      %v1518 = vsel %vm1390, %v747, 0.0
      %v1519 = vsel %vm1391, %v748, 0.0
      %v1520 = vsel %vm1392, %v749, 0.0
      %v1521 = vsel %vm1393, %v750, 0.0
      %v1522 = vsel %vm1394, %v751, 0.0
      %v1523 = vsel %vm1395, %v752, 0.0
      %v1524 = vsel %vm1396, %v753, 0.0
      %v1525 = vsel %vm1397, %v754, 0.0
      %v1526 = vsel %vm1398, %v755, 0.0
      %v1527 = vsel %vm1399, %v756, 0.0
      %v1528 = vsel %vm1400, %v757, 0.0
      %v1529 = vsel %vm1401, %v758, 0.0
      %v1530 = vsel %vm1402, %v759, 0.0
      %v1531 = vsel %vm1403, %v760, 0.0
      %v1532 = vsel %vm1404, %v761, 0.0
      %v1533 = vsel %vm1405, %v762, 0.0
      %v1534 = vsel %vm1406, %v763, 0.0
      %v1535 = vsel %vm1407, %v764, 0.0
      %v1536 = vsel %vm1408, %v765, 0.0
      %v1537 = vsel %vm1409, %v766, 0.0
      %v1538 = vsel %vm1410, %v767, 0.0
      %v1539 = vsel %vm1411, %v768, 0.0
      %v1540 = vsel %vm1412, %v769, 0.0
      %v1541 = vsel %vm1413, %v770, 0.0
      %v1542 = vsel %vm1414, %v771, 0.0
      %v1543 = vsel %vm1415, %v772, 0.0
      %v1544 = vsel %vm1416, %v773, 0.0
      %v1545 = vsel %vm1417, %v774, 0.0
      %v1546 = vsel %vm1418, %v775, 0.0
      %v1547 = vsel %vm1419, %v776, 0.0
      %v1548 = vsel %vm1420, %v777, 0.0
      %v1549 = vsel %vm1421, %v778, 0.0
      %v1550 = vsel %vm1422, %v779, 0.0
      %v1551 = vsel %vm1423, %v780, 0.0
      %v1552 = vsel %vm1424, %v781, 0.0
      %v1553 = vsel %vm1425, %v782, 0.0
      %v1554 = vsel %vm1426, %v783, 0.0
      %v1555 = vsel %vm1427, %v784, 0.0
      %v1556 = vsel %vm1428, %v785, 0.0
      %v1557 = vsel %vm1429, %v786, 0.0
      %v1558 = vsel %vm1430, %v787, 0.0
      %v1559 = vsel %vm1431, %v788, 0.0
      %v1560 = vsel %vm1432, %v789, 0.0
      %v1561 = vsel %vm1433, %v790, 0.0
      %v1562 = vsel %vm1434, %v791, 0.0
      %v1563 = vsel %vm1435, %v792, 0.0
      %v1564 = vsel %vm1436, %v793, 0.0
      %v1565 = vsel %vm1437, %v794, 0.0
      %v1566 = vsel %vm1438, %v795, 0.0
      %v1567 = vsel %vm1439, %v796, 0.0
      %v1568 = vsel %vm1440, %v797, 0.0
      %v1569 = vsel %vm1441, %v798, 0.0
      %v1570 = vsel %vm1442, %v799, 0.0
      %v1571 = vsel %vm1443, %v800, 0.0
      %v1572 = vsel %vm1444, %v801, 0.0
      %v1573 = vld [vmem:[%s3] sm:$0xff]
      %v1574 = vld [vmem:[%s3 + $0x8] sm:$0xff]
      %v1575 = vld [vmem:[%s3 + $0x10] sm:$0xff]
      %v1576 = vld [vmem:[%s3 + $0x18] sm:$0x7]
      %vm1577 = vcmask 220160
      %v1579 = vsel %vm1577, %v1445, 0
      %v1582 = vsel %vm1577, %v1446, 0
      %v1585 = vsel %vm1577, %v1447, 0
      %v1588 = vsel %vm1577, %v1448, 0
      %v1591 = vsel %vm1577, %v1449, 0
      %v1594 = vsel %vm1577, %v1450, 0
      %v1597 = vsel %vm1577, %v1451, 0
      %v1600 = vsel %vm1577, %v1452, 0
      %v1603 = vsel %vm1577, %v1453, 0
      %v1606 = vsel %vm1577, %v1454, 0
      %v1609 = vsel %vm1577, %v1455, 0
      %v1612 = vsel %vm1577, %v1456, 0
      %v1615 = vsel %vm1577, %v1457, 0
      %v1618 = vsel %vm1577, %v1458, 0
      %v1621 = vsel %vm1577, %v1459, 0
      %v1624 = vsel %vm1577, %v1460, 0
      %v1627 = vsel %vm1577, %v1461, 0
      %v1630 = vsel %vm1577, %v1462, 0
      %v1633 = vsel %vm1577, %v1463, 0
      %v1636 = vsel %vm1577, %v1464, 0
      %v1639 = vsel %vm1577, %v1465, 0
      %v1642 = vsel %vm1577, %v1466, 0
      %v1645 = vsel %vm1577, %v1467, 0
      %v1648 = vsel %vm1577, %v1468, 0
      %v1651 = vsel %vm1577, %v1469, 0
      %v1654 = vsel %vm1577, %v1470, 0
      %v1657 = vsel %vm1577, %v1471, 0
      %v1660 = vsel %vm1577, %v1472, 0
      %v1663 = vsel %vm1577, %v1473, 0
      %v1666 = vsel %vm1577, %v1474, 0
      %v1669 = vsel %vm1577, %v1475, 0
      %v1672 = vsel %vm1577, %v1476, 0
      %v1675 = vsel %vm1577, %v1477, 0
      %v1678 = vsel %vm1577, %v1478, 0
      %v1681 = vsel %vm1577, %v1479, 0
      %v1684 = vsel %vm1577, %v1480, 0
      %v1687 = vsel %vm1577, %v1481, 0
      %v1690 = vsel %vm1577, %v1482, 0
      %v1693 = vsel %vm1577, %v1483, 0
      %v1696 = vsel %vm1577, %v1484, 0
      %v1699 = vsel %vm1577, %v1485, 0
      %v1702 = vsel %vm1577, %v1486, 0
      %v1705 = vsel %vm1577, %v1487, 0
      %v1708 = vsel %vm1577, %v1488, 0
      %v1711 = vsel %vm1577, %v1489, 0
      %v1714 = vsel %vm1577, %v1490, 0
      %v1717 = vsel %vm1577, %v1491, 0
      %v1720 = vsel %vm1577, %v1492, 0
      %v1723 = vsel %vm1577, %v1493, 0
      %v1726 = vsel %vm1577, %v1494, 0
      %v1729 = vsel %vm1577, %v1495, 0
      %v1732 = vsel %vm1577, %v1496, 0
      %v1735 = vsel %vm1577, %v1497, 0
      %v1738 = vsel %vm1577, %v1498, 0
      %v1741 = vsel %vm1577, %v1499, 0
      %v1744 = vsel %vm1577, %v1500, 0
      %v1747 = vsel %vm1577, %v1501, 0
      %v1750 = vsel %vm1577, %v1502, 0
      %v1753 = vsel %vm1577, %v1503, 0
      %v1756 = vsel %vm1577, %v1504, 0
      %v1759 = vsel %vm1577, %v1505, 0
      %v1762 = vsel %vm1577, %v1506, 0
      %v1765 = vsel %vm1577, %v1507, 0
      %v1768 = vsel %vm1577, %v1508, 0
      %v1771 = vsel %vm1577, %v1509, 0
      %v1774 = vsel %vm1577, %v1510, 0
      %v1777 = vsel %vm1577, %v1511, 0
      %v1780 = vsel %vm1577, %v1512, 0
      %v1783 = vsel %vm1577, %v1513, 0
      %v1786 = vsel %vm1577, %v1514, 0
      %v1789 = vsel %vm1577, %v1515, 0
      %v1792 = vsel %vm1577, %v1516, 0
      %v1795 = vsel %vm1577, %v1517, 0
      %v1798 = vsel %vm1577, %v1518, 0
      %v1801 = vsel %vm1577, %v1519, 0
      %v1804 = vsel %vm1577, %v1520, 0
      %v1807 = vsel %vm1577, %v1521, 0
      %v1810 = vsel %vm1577, %v1522, 0
      %v1813 = vsel %vm1577, %v1523, 0
      %v1816 = vsel %vm1577, %v1524, 0
      %v1819 = vsel %vm1577, %v1525, 0
      %v1822 = vsel %vm1577, %v1526, 0
      %v1825 = vsel %vm1577, %v1527, 0
      %v1828 = vsel %vm1577, %v1528, 0
      %v1831 = vsel %vm1577, %v1529, 0
      %v1834 = vsel %vm1577, %v1530, 0
      %v1837 = vsel %vm1577, %v1531, 0
      %v1840 = vsel %vm1577, %v1532, 0
      %v1843 = vsel %vm1577, %v1533, 0
      %v1846 = vsel %vm1577, %v1534, 0
      %v1849 = vsel %vm1577, %v1535, 0
      %v1852 = vsel %vm1577, %v1536, 0
      %v1855 = vsel %vm1577, %v1537, 0
      %v1858 = vsel %vm1577, %v1538, 0
      %v1861 = vsel %vm1577, %v1539, 0
      %v1864 = vsel %vm1577, %v1540, 0
      %v1867 = vsel %vm1577, %v1541, 0
      %v1870 = vsel %vm1577, %v1542, 0
      %v1873 = vsel %vm1577, %v1543, 0
      %v1876 = vsel %vm1577, %v1544, 0
      %v1879 = vsel %vm1577, %v1545, 0
      %v1882 = vsel %vm1577, %v1546, 0
      %v1885 = vsel %vm1577, %v1547, 0
      %v1888 = vsel %vm1577, %v1548, 0
      %v1891 = vsel %vm1577, %v1549, 0
      %v1894 = vsel %vm1577, %v1550, 0
      %v1897 = vsel %vm1577, %v1551, 0
      %v1900 = vsel %vm1577, %v1552, 0
      %v1903 = vsel %vm1577, %v1553, 0
      %v1906 = vsel %vm1577, %v1554, 0
      %v1909 = vsel %vm1577, %v1555, 0
      %v1912 = vsel %vm1577, %v1556, 0
      %v1915 = vsel %vm1577, %v1557, 0
      %v1918 = vsel %vm1577, %v1558, 0
      %v1921 = vsel %vm1577, %v1559, 0
      %v1924 = vsel %vm1577, %v1560, 0
      %v1927 = vsel %vm1577, %v1561, 0
      %v1930 = vsel %vm1577, %v1562, 0
      %v1933 = vsel %vm1577, %v1563, 0
      %v1936 = vsel %vm1577, %v1564, 0
      %v1939 = vsel %vm1577, %v1565, 0
      %v1942 = vsel %vm1577, %v1566, 0
      %v1945 = vsel %vm1577, %v1567, 0
      %v1948 = vsel %vm1577, %v1568, 0
      %v1951 = vsel %vm1577, %v1569, 0
      %v1954 = vsel %vm1577, %v1570, 0
      %v1957 = vsel %vm1577, %v1571, 0
      %v1960 = vsel %vm1577, %v1572, 0
      %vm1962 = vcmask 1042432
      %v1964 = vsel %vm1962, %v1576, 0
      %1966 = vmatprep.subr.mxu0 0.0
      %1967 = vmatpush1.msra.mxu0 0.0
      %1968 = vmatprep.subr.mxu0 0.0
      %1969 = vmatpush1.msra.mxu0 0.0
      %1970 = vmatprep.subr.mxu0 0.0
      %1971 = vmatpush1.msra.mxu0 0.0
      %1972 = vmatprep.subr.mxu0 0.0
      %1973 = vmatpush1.msra.mxu0 0.0
      %1974 = vmatprep.subr.mxu0 0.0
      %1975 = vmatpush1.msra.mxu0 0.0
      %1976 = vmatprep.subr.mxu0 0.0
      %1977 = vmatpush1.msra.mxu0 0.0
      %1978 = vmatprep.subr.mxu0 0.0
      %1979 = vmatpush1.msra.mxu0 0.0
      %1980 = vmatprep.subr.mxu0 0.0
      %1981 = vmatpush1.msra.mxu0 0.0
      %1982 = vmatprep.subr.mxu0 0.0
      %1983 = vmatpush1.msra.mxu0 0.0
      %1984 = vmatprep.subr.mxu0 0.0
      %1985 = vmatpush1.msra.mxu0 0.0
      %1986 = vmatprep.subr.mxu0 0.0
      %1987 = vmatpush1.msra.mxu0 0.0
      %1988 = vmatprep.subr.mxu0 0.0
      %1989 = vmatpush1.msra.mxu0 0.0
      %1990 = vmatprep.subr.mxu0 0.0
      %1991 = vmatpush1.msra.mxu0 %v1964
      %1992 = vmatprep.subr.mxu0 0.0
      %1993 = vmatpush1.msra.mxu0 %v1575
      %1994 = vmatprep.subr.mxu0 0.0
      %1995 = vmatpush1.msra.mxu0 %v1574
      %1996 = vmatprep.subr.mxu0 0.0
      %1997 = vmatpush1.msra.mxu0 %v1573
      %1998 = vmatprep.subr.mxu0 0.0
      %1999 = vmatpush2.msra.mxu0 0.0
      %2000 = vmatprep.subr.mxu0 0.0
      %2001 = vmatpush2.msra.mxu0 0.0
      %2002 = vmatprep.subr.mxu0 0.0
      %2003 = vmatpush2.msra.mxu0 0.0
      %2004 = vmatprep.subr.mxu0 0.0
      %2005 = vmatpush2.msra.mxu0 0.0
      %2006 = vmatprep.subr.mxu0 0.0
      %2007 = vmatpush2.msra.mxu0 0.0
      %2008 = vmatprep.subr.mxu0 0.0
      %2009 = vmatpush2.msra.mxu0 0.0
      %2010 = vmatprep.subr.mxu0 0.0
      %2011 = vmatpush2.msra.mxu0 0.0
      %2012 = vmatprep.subr.mxu0 0.0
      %2013 = vmatpush2.msra.mxu0 0.0
      %2014 = vmatprep.subr.mxu0 0.0
      %2015 = vmatpush2.msra.mxu0 0.0
      %2016 = vmatprep.subr.mxu0 0.0
      %2017 = vmatpush2.msra.mxu0 0.0
      %2018 = vmatprep.subr.mxu0 0.0
      %2019 = vmatpush2.msra.mxu0 0.0
      %2020 = vmatprep.subr.mxu0 0.0
      %2021 = vmatpush2.msra.mxu0 0.0
      %2022 = vmatprep.subr.mxu0 0.0
      %2023 = vmatpush2.msra.mxu0 0.0
      %2024 = vmatprep.subr.mxu0 0.0
      %2025 = vmatpush2.msra.mxu0 0.0
      %2026 = vmatprep.subr.mxu0 0.0
      %2027 = vmatpush2.msra.mxu0 0.0
      %2028 = vmatprep.subr.mxu0 0.0
      %2029 = vmatpush2.msra.mxu0 0.0
      %2030 = vmatprep.mubr.f32.mxu0 0.0
      %2031 = vmatmul.mubr.f32.gmra.mxu0 %v1579
      %v2032 = vpop.f32.mrf.mxu0
      %v2033 = vadd.f32 0.0, %v2032
      %v2034 = vpop.f32.mrf.mxu0
      %2035 = vmatprep.mubr.f32.mxu0 0.0
      %2036 = vmatmul.mubr.f32.gmra.mxu0 %v1582
      %v2037 = vpop.f32.mrf.mxu0
      %v2038 = vadd.f32 0.0, %v2037
      %v2039 = vpop.f32.mrf.mxu0
      %2040 = vmatprep.mubr.f32.mxu0 0.0
      %2041 = vmatmul.mubr.f32.gmra.mxu0 %v1585
      %v2042 = vpop.f32.mrf.mxu0
      %v2043 = vadd.f32 0.0, %v2042
      %v2044 = vpop.f32.mrf.mxu0
      %2045 = vmatprep.mubr.f32.mxu0 0.0
      %2046 = vmatmul.mubr.f32.gmra.mxu0 %v1588
      %v2047 = vpop.f32.mrf.mxu0
      %v2048 = vadd.f32 0.0, %v2047
      %v2049 = vpop.f32.mrf.mxu0
      %2050 = vmatprep.mubr.f32.mxu0 0.0
      %2051 = vmatmul.mubr.f32.gmra.mxu0 %v1591
      %v2052 = vpop.f32.mrf.mxu0
      %v2053 = vadd.f32 0.0, %v2052
      %v2054 = vpop.f32.mrf.mxu0
      %2055 = vmatprep.mubr.f32.mxu0 0.0
      %2056 = vmatmul.mubr.f32.gmra.mxu0 %v1594
      %v2057 = vpop.f32.mrf.mxu0
      %v2058 = vadd.f32 0.0, %v2057
      %v2059 = vpop.f32.mrf.mxu0
      %2060 = vmatprep.mubr.f32.mxu0 0.0
      %2061 = vmatmul.mubr.f32.gmra.mxu0 %v1597
      %v2062 = vpop.f32.mrf.mxu0
      %v2063 = vadd.f32 0.0, %v2062
      %v2064 = vpop.f32.mrf.mxu0
      %2065 = vmatprep.mubr.f32.mxu0 0.0
      %2066 = vmatmul.mubr.f32.gmra.mxu0 %v1600
      %v2067 = vpop.f32.mrf.mxu0
      %v2068 = vadd.f32 0.0, %v2067
      %v2069 = vpop.f32.mrf.mxu0
      %2070 = vmatprep.mubr.f32.mxu0 0.0
      %2071 = vmatmul.mubr.f32.gmra.mxu0 %v1603
      %v2072 = vpop.f32.mrf.mxu0
      %v2073 = vadd.f32 0.0, %v2072
      %v2074 = vpop.f32.mrf.mxu0
      %2075 = vmatprep.mubr.f32.mxu0 0.0
      %2076 = vmatmul.mubr.f32.gmra.mxu0 %v1606
      %v2077 = vpop.f32.mrf.mxu0
      %v2078 = vadd.f32 0.0, %v2077
      %v2079 = vpop.f32.mrf.mxu0
      %2080 = vmatprep.mubr.f32.mxu0 0.0
      %2081 = vmatmul.mubr.f32.gmra.mxu0 %v1609
      %v2082 = vpop.f32.mrf.mxu0
      %v2083 = vadd.f32 0.0, %v2082
      %v2084 = vpop.f32.mrf.mxu0
      %2085 = vmatprep.mubr.f32.mxu0 0.0
      %2086 = vmatmul.mubr.f32.gmra.mxu0 %v1612
      %v2087 = vpop.f32.mrf.mxu0
      %v2088 = vadd.f32 0.0, %v2087
      %v2089 = vpop.f32.mrf.mxu0
      %2090 = vmatprep.mubr.f32.mxu0 0.0
      %2091 = vmatmul.mubr.f32.gmra.mxu0 %v1615
      %v2092 = vpop.f32.mrf.mxu0
      %v2093 = vadd.f32 0.0, %v2092
      %v2094 = vpop.f32.mrf.mxu0
      %2095 = vmatprep.mubr.f32.mxu0 0.0
      %2096 = vmatmul.mubr.f32.gmra.mxu0 %v1618
      %v2097 = vpop.f32.mrf.mxu0
      %v2098 = vadd.f32 0.0, %v2097
      %v2099 = vpop.f32.mrf.mxu0
      %2100 = vmatprep.mubr.f32.mxu0 0.0
      %2101 = vmatmul.mubr.f32.gmra.mxu0 %v1621
      %v2102 = vpop.f32.mrf.mxu0
      %v2103 = vadd.f32 0.0, %v2102
      %v2104 = vpop.f32.mrf.mxu0
      %2105 = vmatprep.mubr.f32.mxu0 0.0
      %2106 = vmatmul.mubr.f32.gmra.mxu0 %v1624
      %v2107 = vpop.f32.mrf.mxu0
      %v2108 = vadd.f32 0.0, %v2107
      %v2109 = vpop.f32.mrf.mxu0
      %2110 = vmatprep.mubr.f32.mxu0 0.0
      %2111 = vmatmul.mubr.f32.gmra.mxu0 %v1627
      %v2112 = vpop.f32.mrf.mxu0
      %v2113 = vadd.f32 0.0, %v2112
      %v2114 = vpop.f32.mrf.mxu0
      %2115 = vmatprep.mubr.f32.mxu0 0.0
      %2116 = vmatmul.mubr.f32.gmra.mxu0 %v1630
      %v2117 = vpop.f32.mrf.mxu0
      %v2118 = vadd.f32 0.0, %v2117
      %v2119 = vpop.f32.mrf.mxu0
      %2120 = vmatprep.mubr.f32.mxu0 0.0
      %2121 = vmatmul.mubr.f32.gmra.mxu0 %v1633
      %v2122 = vpop.f32.mrf.mxu0
      %v2123 = vadd.f32 0.0, %v2122
      %v2124 = vpop.f32.mrf.mxu0
      %2125 = vmatprep.mubr.f32.mxu0 0.0
      %2126 = vmatmul.mubr.f32.gmra.mxu0 %v1636
      %v2127 = vpop.f32.mrf.mxu0
      %v2128 = vadd.f32 0.0, %v2127
      %v2129 = vpop.f32.mrf.mxu0
      %2130 = vmatprep.mubr.f32.mxu0 0.0
      %2131 = vmatmul.mubr.f32.gmra.mxu0 %v1639
      %v2132 = vpop.f32.mrf.mxu0
      %v2133 = vadd.f32 0.0, %v2132
      %v2134 = vpop.f32.mrf.mxu0
      %2135 = vmatprep.mubr.f32.mxu0 0.0
      %2136 = vmatmul.mubr.f32.gmra.mxu0 %v1642
      %v2137 = vpop.f32.mrf.mxu0
      %v2138 = vadd.f32 0.0, %v2137
      %v2139 = vpop.f32.mrf.mxu0
      %2140 = vmatprep.mubr.f32.mxu0 0.0
      %2141 = vmatmul.mubr.f32.gmra.mxu0 %v1645
      %v2142 = vpop.f32.mrf.mxu0
      %v2143 = vadd.f32 0.0, %v2142
      %v2144 = vpop.f32.mrf.mxu0
      %2145 = vmatprep.mubr.f32.mxu0 0.0
      %2146 = vmatmul.mubr.f32.gmra.mxu0 %v1648
      %v2147 = vpop.f32.mrf.mxu0
      %v2148 = vadd.f32 0.0, %v2147
      %v2149 = vpop.f32.mrf.mxu0
      %2150 = vmatprep.mubr.f32.mxu0 0.0
      %2151 = vmatmul.mubr.f32.gmra.mxu0 %v1651
      %v2152 = vpop.f32.mrf.mxu0
      %v2153 = vadd.f32 0.0, %v2152
      %v2154 = vpop.f32.mrf.mxu0
      %2155 = vmatprep.mubr.f32.mxu0 0.0
      %2156 = vmatmul.mubr.f32.gmra.mxu0 %v1654
      %v2157 = vpop.f32.mrf.mxu0
      %v2158 = vadd.f32 0.0, %v2157
      %v2159 = vpop.f32.mrf.mxu0
      %2160 = vmatprep.mubr.f32.mxu0 0.0
      %2161 = vmatmul.mubr.f32.gmra.mxu0 %v1657
      %v2162 = vpop.f32.mrf.mxu0
      %v2163 = vadd.f32 0.0, %v2162
      %v2164 = vpop.f32.mrf.mxu0
      %2165 = vmatprep.mubr.f32.mxu0 0.0
      %2166 = vmatmul.mubr.f32.gmra.mxu0 %v1660
      %v2167 = vpop.f32.mrf.mxu0
      %v2168 = vadd.f32 0.0, %v2167
      %v2169 = vpop.f32.mrf.mxu0
      %2170 = vmatprep.mubr.f32.mxu0 0.0
      %2171 = vmatmul.mubr.f32.gmra.mxu0 %v1663
      %v2172 = vpop.f32.mrf.mxu0
      %v2173 = vadd.f32 0.0, %v2172
      %v2174 = vpop.f32.mrf.mxu0
      %2175 = vmatprep.mubr.f32.mxu0 0.0
      %2176 = vmatmul.mubr.f32.gmra.mxu0 %v1666
      %v2177 = vpop.f32.mrf.mxu0
      %v2178 = vadd.f32 0.0, %v2177
      %v2179 = vpop.f32.mrf.mxu0
      %2180 = vmatprep.mubr.f32.mxu0 0.0
      %2181 = vmatmul.mubr.f32.gmra.mxu0 %v1669
      %v2182 = vpop.f32.mrf.mxu0
      %v2183 = vadd.f32 0.0, %v2182
      %v2184 = vpop.f32.mrf.mxu0
      %2185 = vmatprep.mubr.f32.mxu0 0.0
      %2186 = vmatmul.mubr.f32.gmra.mxu0 %v1672
      %v2187 = vpop.f32.mrf.mxu0
      %v2188 = vadd.f32 0.0, %v2187
      %v2189 = vpop.f32.mrf.mxu0
      %2190 = vmatprep.mubr.f32.mxu0 0.0
      %2191 = vmatmul.mubr.f32.gmra.mxu0 %v1675
      %v2192 = vpop.f32.mrf.mxu0
      %v2193 = vadd.f32 0.0, %v2192
      %v2194 = vpop.f32.mrf.mxu0
      %2195 = vmatprep.mubr.f32.mxu0 0.0
      %2196 = vmatmul.mubr.f32.gmra.mxu0 %v1678
      %v2197 = vpop.f32.mrf.mxu0
      %v2198 = vadd.f32 0.0, %v2197
      %v2199 = vpop.f32.mrf.mxu0
      %2200 = vmatprep.mubr.f32.mxu0 0.0
      %2201 = vmatmul.mubr.f32.gmra.mxu0 %v1681
      %v2202 = vpop.f32.mrf.mxu0
      %v2203 = vadd.f32 0.0, %v2202
      %v2204 = vpop.f32.mrf.mxu0
      %2205 = vmatprep.mubr.f32.mxu0 0.0
      %2206 = vmatmul.mubr.f32.gmra.mxu0 %v1684
      %v2207 = vpop.f32.mrf.mxu0
      %v2208 = vadd.f32 0.0, %v2207
      %v2209 = vpop.f32.mrf.mxu0
      %2210 = vmatprep.mubr.f32.mxu0 0.0
      %2211 = vmatmul.mubr.f32.gmra.mxu0 %v1687
      %v2212 = vpop.f32.mrf.mxu0
      %v2213 = vadd.f32 0.0, %v2212
      %v2214 = vpop.f32.mrf.mxu0
      %2215 = vmatprep.mubr.f32.mxu0 0.0
      %2216 = vmatmul.mubr.f32.gmra.mxu0 %v1690
      %v2217 = vpop.f32.mrf.mxu0
      %v2218 = vadd.f32 0.0, %v2217
      %v2219 = vpop.f32.mrf.mxu0
      %2220 = vmatprep.mubr.f32.mxu0 0.0
      %2221 = vmatmul.mubr.f32.gmra.mxu0 %v1693
      %v2222 = vpop.f32.mrf.mxu0
      %v2223 = vadd.f32 0.0, %v2222
      %v2224 = vpop.f32.mrf.mxu0
      %2225 = vmatprep.mubr.f32.mxu0 0.0
      %2226 = vmatmul.mubr.f32.gmra.mxu0 %v1696
      %v2227 = vpop.f32.mrf.mxu0
      %v2228 = vadd.f32 0.0, %v2227
      %v2229 = vpop.f32.mrf.mxu0
      %2230 = vmatprep.mubr.f32.mxu0 0.0
      %2231 = vmatmul.mubr.f32.gmra.mxu0 %v1699
      %v2232 = vpop.f32.mrf.mxu0
      %v2233 = vadd.f32 0.0, %v2232
      %v2234 = vpop.f32.mrf.mxu0
      %2235 = vmatprep.mubr.f32.mxu0 0.0
      %2236 = vmatmul.mubr.f32.gmra.mxu0 %v1702
      %v2237 = vpop.f32.mrf.mxu0
      %v2238 = vadd.f32 0.0, %v2237
      %v2239 = vpop.f32.mrf.mxu0
      %2240 = vmatprep.mubr.f32.mxu0 0.0
      %2241 = vmatmul.mubr.f32.gmra.mxu0 %v1705
      %v2242 = vpop.f32.mrf.mxu0
      %v2243 = vadd.f32 0.0, %v2242
      %v2244 = vpop.f32.mrf.mxu0
      %2245 = vmatprep.mubr.f32.mxu0 0.0
      %2246 = vmatmul.mubr.f32.gmra.mxu0 %v1708
      %v2247 = vpop.f32.mrf.mxu0
      %v2248 = vadd.f32 0.0, %v2247
      %v2249 = vpop.f32.mrf.mxu0
      %2250 = vmatprep.mubr.f32.mxu0 0.0
      %2251 = vmatmul.mubr.f32.gmra.mxu0 %v1711
      %v2252 = vpop.f32.mrf.mxu0
      %v2253 = vadd.f32 0.0, %v2252
      %v2254 = vpop.f32.mrf.mxu0
      %2255 = vmatprep.mubr.f32.mxu0 0.0
      %2256 = vmatmul.mubr.f32.gmra.mxu0 %v1714
      %v2257 = vpop.f32.mrf.mxu0
      %v2258 = vadd.f32 0.0, %v2257
      %v2259 = vpop.f32.mrf.mxu0
      %2260 = vmatprep.mubr.f32.mxu0 0.0
      %2261 = vmatmul.mubr.f32.gmra.mxu0 %v1717
      %v2262 = vpop.f32.mrf.mxu0
      %v2263 = vadd.f32 0.0, %v2262
      %v2264 = vpop.f32.mrf.mxu0
      %2265 = vmatprep.mubr.f32.mxu0 0.0
      %2266 = vmatmul.mubr.f32.gmra.mxu0 %v1720
      %v2267 = vpop.f32.mrf.mxu0
      %v2268 = vadd.f32 0.0, %v2267
      %v2269 = vpop.f32.mrf.mxu0
      %2270 = vmatprep.mubr.f32.mxu0 0.0
      %2271 = vmatmul.mubr.f32.gmra.mxu0 %v1723
      %v2272 = vpop.f32.mrf.mxu0
      %v2273 = vadd.f32 0.0, %v2272
      %v2274 = vpop.f32.mrf.mxu0
      %2275 = vmatprep.mubr.f32.mxu0 0.0
      %2276 = vmatmul.mubr.f32.gmra.mxu0 %v1726
      %v2277 = vpop.f32.mrf.mxu0
      %v2278 = vadd.f32 0.0, %v2277
      %v2279 = vpop.f32.mrf.mxu0
      %2280 = vmatprep.mubr.f32.mxu0 0.0
      %2281 = vmatmul.mubr.f32.gmra.mxu0 %v1729
      %v2282 = vpop.f32.mrf.mxu0
      %v2283 = vadd.f32 0.0, %v2282
      %v2284 = vpop.f32.mrf.mxu0
      %2285 = vmatprep.mubr.f32.mxu0 0.0
      %2286 = vmatmul.mubr.f32.gmra.mxu0 %v1732
      %v2287 = vpop.f32.mrf.mxu0
      %v2288 = vadd.f32 0.0, %v2287
      %v2289 = vpop.f32.mrf.mxu0
      %2290 = vmatprep.mubr.f32.mxu0 0.0
      %2291 = vmatmul.mubr.f32.gmra.mxu0 %v1735
      %v2292 = vpop.f32.mrf.mxu0
      %v2293 = vadd.f32 0.0, %v2292
      %v2294 = vpop.f32.mrf.mxu0
      %2295 = vmatprep.mubr.f32.mxu0 0.0
      %2296 = vmatmul.mubr.f32.gmra.mxu0 %v1738
      %v2297 = vpop.f32.mrf.mxu0
      %v2298 = vadd.f32 0.0, %v2297
      %v2299 = vpop.f32.mrf.mxu0
      %2300 = vmatprep.mubr.f32.mxu0 0.0
      %2301 = vmatmul.mubr.f32.gmra.mxu0 %v1741
      %v2302 = vpop.f32.mrf.mxu0
      %v2303 = vadd.f32 0.0, %v2302
      %v2304 = vpop.f32.mrf.mxu0
      %2305 = vmatprep.mubr.f32.mxu0 0.0
      %2306 = vmatmul.mubr.f32.gmra.mxu0 %v1744
      %v2307 = vpop.f32.mrf.mxu0
      %v2308 = vadd.f32 0.0, %v2307
      %v2309 = vpop.f32.mrf.mxu0
      %2310 = vmatprep.mubr.f32.mxu0 0.0
      %2311 = vmatmul.mubr.f32.gmra.mxu0 %v1747
      %v2312 = vpop.f32.mrf.mxu0
      %v2313 = vadd.f32 0.0, %v2312
      %v2314 = vpop.f32.mrf.mxu0
      %2315 = vmatprep.mubr.f32.mxu0 0.0
      %2316 = vmatmul.mubr.f32.gmra.mxu0 %v1750
      %v2317 = vpop.f32.mrf.mxu0
      %v2318 = vadd.f32 0.0, %v2317
      %v2319 = vpop.f32.mrf.mxu0
      %2320 = vmatprep.mubr.f32.mxu0 0.0
      %2321 = vmatmul.mubr.f32.gmra.mxu0 %v1753
      %v2322 = vpop.f32.mrf.mxu0
      %v2323 = vadd.f32 0.0, %v2322
      %v2324 = vpop.f32.mrf.mxu0
      %2325 = vmatprep.mubr.f32.mxu0 0.0
      %2326 = vmatmul.mubr.f32.gmra.mxu0 %v1756
      %v2327 = vpop.f32.mrf.mxu0
      %v2328 = vadd.f32 0.0, %v2327
      %v2329 = vpop.f32.mrf.mxu0
      %2330 = vmatprep.mubr.f32.mxu0 0.0
      %2331 = vmatmul.mubr.f32.gmra.mxu0 %v1759
      %v2332 = vpop.f32.mrf.mxu0
      %v2333 = vadd.f32 0.0, %v2332
      %v2334 = vpop.f32.mrf.mxu0
      %2335 = vmatprep.mubr.f32.mxu0 0.0
      %2336 = vmatmul.mubr.f32.gmra.mxu0 %v1762
      %v2337 = vpop.f32.mrf.mxu0
      %v2338 = vadd.f32 0.0, %v2337
      %v2339 = vpop.f32.mrf.mxu0
      %2340 = vmatprep.mubr.f32.mxu0 0.0
      %2341 = vmatmul.mubr.f32.gmra.mxu0 %v1765
      %v2342 = vpop.f32.mrf.mxu0
      %v2343 = vadd.f32 0.0, %v2342
      %v2344 = vpop.f32.mrf.mxu0
      %2345 = vmatprep.mubr.f32.mxu0 0.0
      %2346 = vmatmul.mubr.f32.gmra.mxu0 %v1768
      %v2347 = vpop.f32.mrf.mxu0
      %v2348 = vadd.f32 0.0, %v2347
      %v2349 = vpop.f32.mrf.mxu0
      %2350 = vmatprep.mubr.f32.mxu0 0.0
      %2351 = vmatmul.mubr.f32.gmra.mxu0 %v1771
      %v2352 = vpop.f32.mrf.mxu0
      %v2353 = vadd.f32 0.0, %v2352
      %v2354 = vpop.f32.mrf.mxu0
      %2355 = vmatprep.mubr.f32.mxu0 0.0
      %2356 = vmatmul.mubr.f32.gmra.mxu0 %v1774
      %v2357 = vpop.f32.mrf.mxu0
      %v2358 = vadd.f32 0.0, %v2357
      %v2359 = vpop.f32.mrf.mxu0
      %2360 = vmatprep.mubr.f32.mxu0 0.0
      %2361 = vmatmul.mubr.f32.gmra.mxu0 %v1777
      %v2362 = vpop.f32.mrf.mxu0
      %v2363 = vadd.f32 0.0, %v2362
      %v2364 = vpop.f32.mrf.mxu0
      %2365 = vmatprep.mubr.f32.mxu0 0.0
      %2366 = vmatmul.mubr.f32.gmra.mxu0 %v1780
      %v2367 = vpop.f32.mrf.mxu0
      %v2368 = vadd.f32 0.0, %v2367
      %v2369 = vpop.f32.mrf.mxu0
      %2370 = vmatprep.mubr.f32.mxu0 0.0
      %2371 = vmatmul.mubr.f32.gmra.mxu0 %v1783
      %v2372 = vpop.f32.mrf.mxu0
      %v2373 = vadd.f32 0.0, %v2372
      %v2374 = vpop.f32.mrf.mxu0
      %2375 = vmatprep.mubr.f32.mxu0 0.0
      %2376 = vmatmul.mubr.f32.gmra.mxu0 %v1786
      %v2377 = vpop.f32.mrf.mxu0
      %v2378 = vadd.f32 0.0, %v2377
      %v2379 = vpop.f32.mrf.mxu0
      %2380 = vmatprep.mubr.f32.mxu0 0.0
      %2381 = vmatmul.mubr.f32.gmra.mxu0 %v1789
      %v2382 = vpop.f32.mrf.mxu0
      %v2383 = vadd.f32 0.0, %v2382
      %v2384 = vpop.f32.mrf.mxu0
      %2385 = vmatprep.mubr.f32.mxu0 0.0
      %2386 = vmatmul.mubr.f32.gmra.mxu0 %v1792
      %v2387 = vpop.f32.mrf.mxu0
      %v2388 = vadd.f32 0.0, %v2387
      %v2389 = vpop.f32.mrf.mxu0
      %2390 = vmatprep.mubr.f32.mxu0 0.0
      %2391 = vmatmul.mubr.f32.gmra.mxu0 %v1795
      %v2392 = vpop.f32.mrf.mxu0
      %v2393 = vadd.f32 0.0, %v2392
      %v2394 = vpop.f32.mrf.mxu0
      %2395 = vmatprep.mubr.f32.mxu0 0.0
      %2396 = vmatmul.mubr.f32.gmra.mxu0 %v1798
      %v2397 = vpop.f32.mrf.mxu0
      %v2398 = vadd.f32 0.0, %v2397
      %v2399 = vpop.f32.mrf.mxu0
      %2400 = vmatprep.mubr.f32.mxu0 0.0
      %2401 = vmatmul.mubr.f32.gmra.mxu0 %v1801
      %v2402 = vpop.f32.mrf.mxu0
      %v2403 = vadd.f32 0.0, %v2402
      %v2404 = vpop.f32.mrf.mxu0
      %2405 = vmatprep.mubr.f32.mxu0 0.0
      %2406 = vmatmul.mubr.f32.gmra.mxu0 %v1804
      %v2407 = vpop.f32.mrf.mxu0
      %v2408 = vadd.f32 0.0, %v2407
      %v2409 = vpop.f32.mrf.mxu0
      %2410 = vmatprep.mubr.f32.mxu0 0.0
      %2411 = vmatmul.mubr.f32.gmra.mxu0 %v1807
      %v2412 = vpop.f32.mrf.mxu0
      %v2413 = vadd.f32 0.0, %v2412
      %v2414 = vpop.f32.mrf.mxu0
      %2415 = vmatprep.mubr.f32.mxu0 0.0
      %2416 = vmatmul.mubr.f32.gmra.mxu0 %v1810
      %v2417 = vpop.f32.mrf.mxu0
      %v2418 = vadd.f32 0.0, %v2417
      %v2419 = vpop.f32.mrf.mxu0
      %2420 = vmatprep.mubr.f32.mxu0 0.0
      %2421 = vmatmul.mubr.f32.gmra.mxu0 %v1813
      %v2422 = vpop.f32.mrf.mxu0
      %v2423 = vadd.f32 0.0, %v2422
      %v2424 = vpop.f32.mrf.mxu0
      %2425 = vmatprep.mubr.f32.mxu0 0.0
      %2426 = vmatmul.mubr.f32.gmra.mxu0 %v1816
      %v2427 = vpop.f32.mrf.mxu0
      %v2428 = vadd.f32 0.0, %v2427
      %v2429 = vpop.f32.mrf.mxu0
      %2430 = vmatprep.mubr.f32.mxu0 0.0
      %2431 = vmatmul.mubr.f32.gmra.mxu0 %v1819
      %v2432 = vpop.f32.mrf.mxu0
      %v2433 = vadd.f32 0.0, %v2432
      %v2434 = vpop.f32.mrf.mxu0
      %2435 = vmatprep.mubr.f32.mxu0 0.0
      %2436 = vmatmul.mubr.f32.gmra.mxu0 %v1822
      %v2437 = vpop.f32.mrf.mxu0
      %v2438 = vadd.f32 0.0, %v2437
      %v2439 = vpop.f32.mrf.mxu0
      %2440 = vmatprep.mubr.f32.mxu0 0.0
      %2441 = vmatmul.mubr.f32.gmra.mxu0 %v1825
      %v2442 = vpop.f32.mrf.mxu0
      %v2443 = vadd.f32 0.0, %v2442
      %v2444 = vpop.f32.mrf.mxu0
      %2445 = vmatprep.mubr.f32.mxu0 0.0
      %2446 = vmatmul.mubr.f32.gmra.mxu0 %v1828
      %v2447 = vpop.f32.mrf.mxu0
      %v2448 = vadd.f32 0.0, %v2447
      %v2449 = vpop.f32.mrf.mxu0
      %2450 = vmatprep.mubr.f32.mxu0 0.0
      %2451 = vmatmul.mubr.f32.gmra.mxu0 %v1831
      %v2452 = vpop.f32.mrf.mxu0
      %v2453 = vadd.f32 0.0, %v2452
      %v2454 = vpop.f32.mrf.mxu0
      %2455 = vmatprep.mubr.f32.mxu0 0.0
      %2456 = vmatmul.mubr.f32.gmra.mxu0 %v1834
      %v2457 = vpop.f32.mrf.mxu0
      %v2458 = vadd.f32 0.0, %v2457
      %v2459 = vpop.f32.mrf.mxu0
      %2460 = vmatprep.mubr.f32.mxu0 0.0
      %2461 = vmatmul.mubr.f32.gmra.mxu0 %v1837
      %v2462 = vpop.f32.mrf.mxu0
      %v2463 = vadd.f32 0.0, %v2462
      %v2464 = vpop.f32.mrf.mxu0
      %2465 = vmatprep.mubr.f32.mxu0 0.0
      %2466 = vmatmul.mubr.f32.gmra.mxu0 %v1840
      %v2467 = vpop.f32.mrf.mxu0
      %v2468 = vadd.f32 0.0, %v2467
      %v2469 = vpop.f32.mrf.mxu0
      %2470 = vmatprep.mubr.f32.mxu0 0.0
      %2471 = vmatmul.mubr.f32.gmra.mxu0 %v1843
      %v2472 = vpop.f32.mrf.mxu0
      %v2473 = vadd.f32 0.0, %v2472
      %v2474 = vpop.f32.mrf.mxu0
      %2475 = vmatprep.mubr.f32.mxu0 0.0
      %2476 = vmatmul.mubr.f32.gmra.mxu0 %v1846
      %v2477 = vpop.f32.mrf.mxu0
      %v2478 = vadd.f32 0.0, %v2477
      %v2479 = vpop.f32.mrf.mxu0
      %2480 = vmatprep.mubr.f32.mxu0 0.0
      %2481 = vmatmul.mubr.f32.gmra.mxu0 %v1849
      %v2482 = vpop.f32.mrf.mxu0
      %v2483 = vadd.f32 0.0, %v2482
      %v2484 = vpop.f32.mrf.mxu0
      %2485 = vmatprep.mubr.f32.mxu0 0.0
      %2486 = vmatmul.mubr.f32.gmra.mxu0 %v1852
      %v2487 = vpop.f32.mrf.mxu0
      %v2488 = vadd.f32 0.0, %v2487
      %v2489 = vpop.f32.mrf.mxu0
      %2490 = vmatprep.mubr.f32.mxu0 0.0
      %2491 = vmatmul.mubr.f32.gmra.mxu0 %v1855
      %v2492 = vpop.f32.mrf.mxu0
      %v2493 = vadd.f32 0.0, %v2492
      %v2494 = vpop.f32.mrf.mxu0
      %2495 = vmatprep.mubr.f32.mxu0 0.0
      %2496 = vmatmul.mubr.f32.gmra.mxu0 %v1858
      %v2497 = vpop.f32.mrf.mxu0
      %v2498 = vadd.f32 0.0, %v2497
      %v2499 = vpop.f32.mrf.mxu0
      %2500 = vmatprep.mubr.f32.mxu0 0.0
      %2501 = vmatmul.mubr.f32.gmra.mxu0 %v1861
      %v2502 = vpop.f32.mrf.mxu0
      %v2503 = vadd.f32 0.0, %v2502
      %v2504 = vpop.f32.mrf.mxu0
      %2505 = vmatprep.mubr.f32.mxu0 0.0
      %2506 = vmatmul.mubr.f32.gmra.mxu0 %v1864
      %v2507 = vpop.f32.mrf.mxu0
      %v2508 = vadd.f32 0.0, %v2507
      %v2509 = vpop.f32.mrf.mxu0
      %2510 = vmatprep.mubr.f32.mxu0 0.0
      %2511 = vmatmul.mubr.f32.gmra.mxu0 %v1867
      %v2512 = vpop.f32.mrf.mxu0
      %v2513 = vadd.f32 0.0, %v2512
      %v2514 = vpop.f32.mrf.mxu0
      %2515 = vmatprep.mubr.f32.mxu0 0.0
      %2516 = vmatmul.mubr.f32.gmra.mxu0 %v1870
      %v2517 = vpop.f32.mrf.mxu0
      %v2518 = vadd.f32 0.0, %v2517
      %v2519 = vpop.f32.mrf.mxu0
      %2520 = vmatprep.mubr.f32.mxu0 0.0
      %2521 = vmatmul.mubr.f32.gmra.mxu0 %v1873
      %v2522 = vpop.f32.mrf.mxu0
      %v2523 = vadd.f32 0.0, %v2522
      %v2524 = vpop.f32.mrf.mxu0
      %2525 = vmatprep.mubr.f32.mxu0 0.0
      %2526 = vmatmul.mubr.f32.gmra.mxu0 %v1876
      %v2527 = vpop.f32.mrf.mxu0
      %v2528 = vadd.f32 0.0, %v2527
      %v2529 = vpop.f32.mrf.mxu0
      %2530 = vmatprep.mubr.f32.mxu0 0.0
      %2531 = vmatmul.mubr.f32.gmra.mxu0 %v1879
      %v2532 = vpop.f32.mrf.mxu0
      %v2533 = vadd.f32 0.0, %v2532
      %v2534 = vpop.f32.mrf.mxu0
      %2535 = vmatprep.mubr.f32.mxu0 0.0
      %2536 = vmatmul.mubr.f32.gmra.mxu0 %v1882
      %v2537 = vpop.f32.mrf.mxu0
      %v2538 = vadd.f32 0.0, %v2537
      %v2539 = vpop.f32.mrf.mxu0
      %2540 = vmatprep.mubr.f32.mxu0 0.0
      %2541 = vmatmul.mubr.f32.gmra.mxu0 %v1885
      %v2542 = vpop.f32.mrf.mxu0
      %v2543 = vadd.f32 0.0, %v2542
      %v2544 = vpop.f32.mrf.mxu0
      %2545 = vmatprep.mubr.f32.mxu0 0.0
      %2546 = vmatmul.mubr.f32.gmra.mxu0 %v1888
      %v2547 = vpop.f32.mrf.mxu0
      %v2548 = vadd.f32 0.0, %v2547
      %v2549 = vpop.f32.mrf.mxu0
      %2550 = vmatprep.mubr.f32.mxu0 0.0
      %2551 = vmatmul.mubr.f32.gmra.mxu0 %v1891
      %v2552 = vpop.f32.mrf.mxu0
      %v2553 = vadd.f32 0.0, %v2552
      %v2554 = vpop.f32.mrf.mxu0
      %2555 = vmatprep.mubr.f32.mxu0 0.0
      %2556 = vmatmul.mubr.f32.gmra.mxu0 %v1894
      %v2557 = vpop.f32.mrf.mxu0
      %v2558 = vadd.f32 0.0, %v2557
      %v2559 = vpop.f32.mrf.mxu0
      %2560 = vmatprep.mubr.f32.mxu0 0.0
      %2561 = vmatmul.mubr.f32.gmra.mxu0 %v1897
      %v2562 = vpop.f32.mrf.mxu0
      %v2563 = vadd.f32 0.0, %v2562
      %v2564 = vpop.f32.mrf.mxu0
      %2565 = vmatprep.mubr.f32.mxu0 0.0
      %2566 = vmatmul.mubr.f32.gmra.mxu0 %v1900
      %v2567 = vpop.f32.mrf.mxu0
      %v2568 = vadd.f32 0.0, %v2567
      %v2569 = vpop.f32.mrf.mxu0
      %2570 = vmatprep.mubr.f32.mxu0 0.0
      %2571 = vmatmul.mubr.f32.gmra.mxu0 %v1903
      %v2572 = vpop.f32.mrf.mxu0
      %v2573 = vadd.f32 0.0, %v2572
      %v2574 = vpop.f32.mrf.mxu0
      %2575 = vmatprep.mubr.f32.mxu0 0.0
      %2576 = vmatmul.mubr.f32.gmra.mxu0 %v1906
      %v2577 = vpop.f32.mrf.mxu0
      %v2578 = vadd.f32 0.0, %v2577
      %v2579 = vpop.f32.mrf.mxu0
      %2580 = vmatprep.mubr.f32.mxu0 0.0
      %2581 = vmatmul.mubr.f32.gmra.mxu0 %v1909
      %v2582 = vpop.f32.mrf.mxu0
      %v2583 = vadd.f32 0.0, %v2582
      %v2584 = vpop.f32.mrf.mxu0
      %2585 = vmatprep.mubr.f32.mxu0 0.0
      %2586 = vmatmul.mubr.f32.gmra.mxu0 %v1912
      %v2587 = vpop.f32.mrf.mxu0
      %v2588 = vadd.f32 0.0, %v2587
      %v2589 = vpop.f32.mrf.mxu0
      %2590 = vmatprep.mubr.f32.mxu0 0.0
      %2591 = vmatmul.mubr.f32.gmra.mxu0 %v1915
      %v2592 = vpop.f32.mrf.mxu0
      %v2593 = vadd.f32 0.0, %v2592
      %v2594 = vpop.f32.mrf.mxu0
      %2595 = vmatprep.mubr.f32.mxu0 0.0
      %2596 = vmatmul.mubr.f32.gmra.mxu0 %v1918
      %v2597 = vpop.f32.mrf.mxu0
      %v2598 = vadd.f32 0.0, %v2597
      %v2599 = vpop.f32.mrf.mxu0
      %2600 = vmatprep.mubr.f32.mxu0 0.0
      %2601 = vmatmul.mubr.f32.gmra.mxu0 %v1921
      %v2602 = vpop.f32.mrf.mxu0
      %v2603 = vadd.f32 0.0, %v2602
      %v2604 = vpop.f32.mrf.mxu0
      %2605 = vmatprep.mubr.f32.mxu0 0.0
      %2606 = vmatmul.mubr.f32.gmra.mxu0 %v1924
      %v2607 = vpop.f32.mrf.mxu0
      %v2608 = vadd.f32 0.0, %v2607
      %v2609 = vpop.f32.mrf.mxu0
      %2610 = vmatprep.mubr.f32.mxu0 0.0
      %2611 = vmatmul.mubr.f32.gmra.mxu0 %v1927
      %v2612 = vpop.f32.mrf.mxu0
      %v2613 = vadd.f32 0.0, %v2612
      %v2614 = vpop.f32.mrf.mxu0
      %2615 = vmatprep.mubr.f32.mxu0 0.0
      %2616 = vmatmul.mubr.f32.gmra.mxu0 %v1930
      %v2617 = vpop.f32.mrf.mxu0
      %v2618 = vadd.f32 0.0, %v2617
      %v2619 = vpop.f32.mrf.mxu0
      %2620 = vmatprep.mubr.f32.mxu0 0.0
      %2621 = vmatmul.mubr.f32.gmra.mxu0 %v1933
      %v2622 = vpop.f32.mrf.mxu0
      %v2623 = vadd.f32 0.0, %v2622
      %v2624 = vpop.f32.mrf.mxu0
      %2625 = vmatprep.mubr.f32.mxu0 0.0
      %2626 = vmatmul.mubr.f32.gmra.mxu0 %v1936
      %v2627 = vpop.f32.mrf.mxu0
      %v2628 = vadd.f32 0.0, %v2627
      %v2629 = vpop.f32.mrf.mxu0
      %2630 = vmatprep.mubr.f32.mxu0 0.0
      %2631 = vmatmul.mubr.f32.gmra.mxu0 %v1939
      %v2632 = vpop.f32.mrf.mxu0
      %v2633 = vadd.f32 0.0, %v2632
      %v2634 = vpop.f32.mrf.mxu0
      %2635 = vmatprep.mubr.f32.mxu0 0.0
      %2636 = vmatmul.mubr.f32.gmra.mxu0 %v1942
      %v2637 = vpop.f32.mrf.mxu0
      %v2638 = vadd.f32 0.0, %v2637
      %v2639 = vpop.f32.mrf.mxu0
      %2640 = vmatprep.mubr.f32.mxu0 0.0
      %2641 = vmatmul.mubr.f32.gmra.mxu0 %v1945
      %v2642 = vpop.f32.mrf.mxu0
      %v2643 = vadd.f32 0.0, %v2642
      %v2644 = vpop.f32.mrf.mxu0
      %2645 = vmatprep.mubr.f32.mxu0 0.0
      %2646 = vmatmul.mubr.f32.gmra.mxu0 %v1948
      %v2647 = vpop.f32.mrf.mxu0
      %v2648 = vadd.f32 0.0, %v2647
      %v2649 = vpop.f32.mrf.mxu0
      %2650 = vmatprep.mubr.f32.mxu0 0.0
      %2651 = vmatmul.mubr.f32.gmra.mxu0 %v1951
      %v2652 = vpop.f32.mrf.mxu0
      %v2653 = vadd.f32 0.0, %v2652
      %v2654 = vpop.f32.mrf.mxu0
      %2655 = vmatprep.mubr.f32.mxu0 0.0
      %2656 = vmatmul.mubr.f32.gmra.mxu0 %v1954
      %v2657 = vpop.f32.mrf.mxu0
      %v2658 = vadd.f32 0.0, %v2657
      %v2659 = vpop.f32.mrf.mxu0
      %2660 = vmatprep.mubr.f32.mxu0 0.0
      %2661 = vmatmul.mubr.f32.gmra.mxu0 %v1957
      %v2662 = vpop.f32.mrf.mxu0
      %v2663 = vadd.f32 0.0, %v2662
      %v2664 = vpop.f32.mrf.mxu0
      %2665 = vmatprep.mubr.f32.mxu0 0.0
      %2666 = vmatmul.mubr.f32.gmra.mxu0 %v1960
      %v2667 = vpop.f32.mrf.mxu0
      %v2668 = vadd.f32 0.0, %v2667
      %v2669 = vpop.f32.mrf.mxu0
      %2670 = vdwg.mxu0
      %2671 = vst [vmem:[%s266] sm:$0xff] %v2033
      %2672 = vst [vmem:[%s266 + $0x8] sm:$0xff] %v2038
      %2673 = vst [vmem:[%s266 + $0x10] sm:$0xff] %v2043
      %2674 = vst [vmem:[%s266 + $0x18] sm:$0xff] %v2048
      %2675 = vst [vmem:[%s266 + $0x20] sm:$0xff] %v2053
      %2676 = vst [vmem:[%s266 + $0x28] sm:$0xff] %v2058
      %2677 = vst [vmem:[%s266 + $0x30] sm:$0xff] %v2063
      %2678 = vst [vmem:[%s266 + $0x38] sm:$0xff] %v2068
      %2679 = vst [vmem:[%s266 + $0x40] sm:$0xff] %v2073
      %2680 = vst [vmem:[%s266 + $0x48] sm:$0xff] %v2078
      %2681 = vst [vmem:[%s266 + $0x50] sm:$0xff] %v2083
      %2682 = vst [vmem:[%s266 + $0x58] sm:$0xff] %v2088
      %2683 = vst [vmem:[%s266 + $0x60] sm:$0xff] %v2093
      %2684 = vst [vmem:[%s266 + $0x68] sm:$0xff] %v2098
      %2685 = vst [vmem:[%s266 + $0x70] sm:$0xff] %v2103
      %2686 = vst [vmem:[%s266 + $0x78] sm:$0xff] %v2108
      %2687 = vst [vmem:[%s266 + $0x80] sm:$0xff] %v2113
      %2688 = vst [vmem:[%s266 + $0x88] sm:$0xff] %v2118
      %2689 = vst [vmem:[%s266 + $0x90] sm:$0xff] %v2123
      %2690 = vst [vmem:[%s266 + $0x98] sm:$0xff] %v2128
      %2691 = vst [vmem:[%s266 + $0xa0] sm:$0xff] %v2133
      %2692 = vst [vmem:[%s266 + $0xa8] sm:$0xff] %v2138
      %2693 = vst [vmem:[%s266 + $0xb0] sm:$0xff] %v2143
      %2694 = vst [vmem:[%s266 + $0xb8] sm:$0xff] %v2148
      %2695 = vst [vmem:[%s266 + $0xc0] sm:$0xff] %v2153
      %2696 = vst [vmem:[%s266 + $0xc8] sm:$0xff] %v2158
      %2697 = vst [vmem:[%s266 + $0xd0] sm:$0xff] %v2163
      %2698 = vst [vmem:[%s266 + $0xd8] sm:$0xff] %v2168
      %2699 = vst [vmem:[%s266 + $0xe0] sm:$0xff] %v2173
      %2700 = vst [vmem:[%s266 + $0xe8] sm:$0xff] %v2178
      %2701 = vst [vmem:[%s266 + $0xf0] sm:$0xff] %v2183
      %2702 = vst [vmem:[%s266 + $0xf8] sm:$0xff] %v2188
      %2703 = vst [vmem:[%s266 + $0x100] sm:$0xff] %v2193
      %2704 = vst [vmem:[%s266 + $0x108] sm:$0xff] %v2198
      %2705 = vst [vmem:[%s266 + $0x110] sm:$0xff] %v2203
      %2706 = vst [vmem:[%s266 + $0x118] sm:$0xff] %v2208
      %2707 = vst [vmem:[%s266 + $0x120] sm:$0xff] %v2213
      %2708 = vst [vmem:[%s266 + $0x128] sm:$0xff] %v2218
      %2709 = vst [vmem:[%s266 + $0x130] sm:$0xff] %v2223
      %2710 = vst [vmem:[%s266 + $0x138] sm:$0xff] %v2228
      %2711 = vst [vmem:[%s266 + $0x140] sm:$0xff] %v2233
      %2712 = vst [vmem:[%s266 + $0x148] sm:$0xff] %v2238
      %2713 = vst [vmem:[%s266 + $0x150] sm:$0xff] %v2243
      %2714 = vst [vmem:[%s266 + $0x158] sm:$0xff] %v2248
      %2715 = vst [vmem:[%s266 + $0x160] sm:$0xff] %v2253
      %2716 = vst [vmem:[%s266 + $0x168] sm:$0xff] %v2258
      %2717 = vst [vmem:[%s266 + $0x170] sm:$0xff] %v2263
      %2718 = vst [vmem:[%s266 + $0x178] sm:$0xff] %v2268
      %2719 = vst [vmem:[%s266 + $0x180] sm:$0xff] %v2273
      %2720 = vst [vmem:[%s266 + $0x188] sm:$0xff] %v2278
      %2721 = vst [vmem:[%s266 + $0x190] sm:$0xff] %v2283
      %2722 = vst [vmem:[%s266 + $0x198] sm:$0xff] %v2288
      %2723 = vst [vmem:[%s266 + $0x1a0] sm:$0xff] %v2293
      %2724 = vst [vmem:[%s266 + $0x1a8] sm:$0xff] %v2298
      %2725 = vst [vmem:[%s266 + $0x1b0] sm:$0xff] %v2303
      %2726 = vst [vmem:[%s266 + $0x1b8] sm:$0xff] %v2308
      %2727 = vst [vmem:[%s266 + $0x1c0] sm:$0xff] %v2313
      %2728 = vst [vmem:[%s266 + $0x1c8] sm:$0xff] %v2318
      %2729 = vst [vmem:[%s266 + $0x1d0] sm:$0xff] %v2323
      %2730 = vst [vmem:[%s266 + $0x1d8] sm:$0xff] %v2328
      %2731 = vst [vmem:[%s266 + $0x1e0] sm:$0xff] %v2333
      %2732 = vst [vmem:[%s266 + $0x1e8] sm:$0xff] %v2338
      %2733 = vst [vmem:[%s266 + $0x1f0] sm:$0xff] %v2343
      %2734 = vst [vmem:[%s266 + $0x1f8] sm:$0xff] %v2348
      %2735 = vst [vmem:[%s266 + $0x200] sm:$0xff] %v2353
      %2736 = vst [vmem:[%s266 + $0x208] sm:$0xff] %v2358
      %2737 = vst [vmem:[%s266 + $0x210] sm:$0xff] %v2363
      %2738 = vst [vmem:[%s266 + $0x218] sm:$0xff] %v2368
      %2739 = vst [vmem:[%s266 + $0x220] sm:$0xff] %v2373
      %2740 = vst [vmem:[%s266 + $0x228] sm:$0xff] %v2378
      %2741 = vst [vmem:[%s266 + $0x230] sm:$0xff] %v2383
      %2742 = vst [vmem:[%s266 + $0x238] sm:$0xff] %v2388
      %2743 = vst [vmem:[%s266 + $0x240] sm:$0xff] %v2393
      %2744 = vst [vmem:[%s266 + $0x248] sm:$0xff] %v2398
      %2745 = vst [vmem:[%s266 + $0x250] sm:$0xff] %v2403
      %2746 = vst [vmem:[%s266 + $0x258] sm:$0xff] %v2408
      %2747 = vst [vmem:[%s266 + $0x260] sm:$0xff] %v2413
      %2748 = vst [vmem:[%s266 + $0x268] sm:$0xff] %v2418
      %2749 = vst [vmem:[%s266 + $0x270] sm:$0xff] %v2423
      %2750 = vst [vmem:[%s266 + $0x278] sm:$0xff] %v2428
      %2751 = vst [vmem:[%s266 + $0x280] sm:$0xff] %v2433
      %2752 = vst [vmem:[%s266 + $0x288] sm:$0xff] %v2438
      %2753 = vst [vmem:[%s266 + $0x290] sm:$0xff] %v2443
      %2754 = vst [vmem:[%s266 + $0x298] sm:$0xff] %v2448
      %2755 = vst [vmem:[%s266 + $0x2a0] sm:$0xff] %v2453
      %2756 = vst [vmem:[%s266 + $0x2a8] sm:$0xff] %v2458
      %2757 = vst [vmem:[%s266 + $0x2b0] sm:$0xff] %v2463
      %2758 = vst [vmem:[%s266 + $0x2b8] sm:$0xff] %v2468
      %2759 = vst [vmem:[%s266 + $0x2c0] sm:$0xff] %v2473
      %2760 = vst [vmem:[%s266 + $0x2c8] sm:$0xff] %v2478
      %2761 = vst [vmem:[%s266 + $0x2d0] sm:$0xff] %v2483
      %2762 = vst [vmem:[%s266 + $0x2d8] sm:$0xff] %v2488
      %2763 = vst [vmem:[%s266 + $0x2e0] sm:$0xff] %v2493
      %2764 = vst [vmem:[%s266 + $0x2e8] sm:$0xff] %v2498
      %2765 = vst [vmem:[%s266 + $0x2f0] sm:$0xff] %v2503
      %2766 = vst [vmem:[%s266 + $0x2f8] sm:$0xff] %v2508
      %2767 = vst [vmem:[%s266 + $0x300] sm:$0xff] %v2513
      %2768 = vst [vmem:[%s266 + $0x308] sm:$0xff] %v2518
      %2769 = vst [vmem:[%s266 + $0x310] sm:$0xff] %v2523
      %2770 = vst [vmem:[%s266 + $0x318] sm:$0xff] %v2528
      %2771 = vst [vmem:[%s266 + $0x320] sm:$0xff] %v2533
      %2772 = vst [vmem:[%s266 + $0x328] sm:$0xff] %v2538
      %2773 = vst [vmem:[%s266 + $0x330] sm:$0xff] %v2543
      %2774 = vst [vmem:[%s266 + $0x338] sm:$0xff] %v2548
      %2775 = vst [vmem:[%s266 + $0x340] sm:$0xff] %v2553
      %2776 = vst [vmem:[%s266 + $0x348] sm:$0xff] %v2558
      %2777 = vst [vmem:[%s266 + $0x350] sm:$0xff] %v2563
      %2778 = vst [vmem:[%s266 + $0x358] sm:$0xff] %v2568
      %2779 = vst [vmem:[%s266 + $0x360] sm:$0xff] %v2573
      %2780 = vst [vmem:[%s266 + $0x368] sm:$0xff] %v2578
      %2781 = vst [vmem:[%s266 + $0x370] sm:$0xff] %v2583
      %2782 = vst [vmem:[%s266 + $0x378] sm:$0xff] %v2588
      %2783 = vst [vmem:[%s266 + $0x380] sm:$0xff] %v2593
      %2784 = vst [vmem:[%s266 + $0x388] sm:$0xff] %v2598
      %2785 = vst [vmem:[%s266 + $0x390] sm:$0xff] %v2603
      %2786 = vst [vmem:[%s266 + $0x398] sm:$0xff] %v2608
      %2787 = vst [vmem:[%s266 + $0x3a0] sm:$0xff] %v2613
      %2788 = vst [vmem:[%s266 + $0x3a8] sm:$0xff] %v2618
      %2789 = vst [vmem:[%s266 + $0x3b0] sm:$0xff] %v2623
      %2790 = vst [vmem:[%s266 + $0x3b8] sm:$0xff] %v2628
      %2791 = vst [vmem:[%s266 + $0x3c0] sm:$0xff] %v2633
      %2792 = vst [vmem:[%s266 + $0x3c8] sm:$0xff] %v2638
      %2793 = vst [vmem:[%s266 + $0x3d0] sm:$0xff] %v2643
      %2794 = vst [vmem:[%s266 + $0x3d8] sm:$0xff] %v2648
      %2795 = vst [vmem:[%s266 + $0x3e0] sm:$0xff] %v2653
      %2796 = vst [vmem:[%s266 + $0x3e8] sm:$0xff] %v2658
      %2797 = vst [vmem:[%s266 + $0x3f0] sm:$0xff] %v2663
      %2798 = vst [vmem:[%s266 + $0x3f8] sm:$0xff] %v2668
      %v2799 = vadd.f32 %v2033, %v2038
      %v2800 = vadd.f32 %v2799, %v2043
      %v2801 = vadd.f32 %v2800, %v2048
      %v2802 = vadd.f32 %v2801, %v2053
      %v2803 = vadd.f32 %v2802, %v2058
      %v2804 = vadd.f32 %v2803, %v2063
      %v2805 = vadd.f32 %v2804, %v2068
      %v2806 = vadd.f32 %v2805, %v2073
      %v2807 = vadd.f32 %v2806, %v2078
      %v2808 = vadd.f32 %v2807, %v2083
      %v2809 = vadd.f32 %v2808, %v2088
      %v2810 = vadd.f32 %v2809, %v2093
      %v2811 = vadd.f32 %v2810, %v2098
      %v2812 = vadd.f32 %v2811, %v2103
      %v2813 = vadd.f32 %v2812, %v2108
      %v2814 = vadd.f32 %v2813, %v2113
      %v2815 = vadd.f32 %v2814, %v2118
      %v2816 = vadd.f32 %v2815, %v2123
      %v2817 = vadd.f32 %v2816, %v2128
      %v2818 = vadd.f32 %v2817, %v2133
      %v2819 = vadd.f32 %v2818, %v2138
      %v2820 = vadd.f32 %v2819, %v2143
      %v2821 = vadd.f32 %v2820, %v2148
      %v2822 = vadd.f32 %v2821, %v2153
      %v2823 = vadd.f32 %v2822, %v2158
      %v2824 = vadd.f32 %v2823, %v2163
      %v2825 = vadd.f32 %v2824, %v2168
      %v2826 = vadd.f32 %v2825, %v2173
      %v2827 = vadd.f32 %v2826, %v2178
      %v2828 = vadd.f32 %v2827, %v2183
      %v2829 = vadd.f32 %v2828, %v2188
      %v2830 = vadd.f32 %v2829, %v2193
      %v2831 = vadd.f32 %v2830, %v2198
      %v2832 = vadd.f32 %v2831, %v2203
      %v2833 = vadd.f32 %v2832, %v2208
      %v2834 = vadd.f32 %v2833, %v2213
      %v2835 = vadd.f32 %v2834, %v2218
      %v2836 = vadd.f32 %v2835, %v2223
      %v2837 = vadd.f32 %v2836, %v2228
      %v2838 = vadd.f32 %v2837, %v2233
      %v2839 = vadd.f32 %v2838, %v2238
      %v2840 = vadd.f32 %v2839, %v2243
      %v2841 = vadd.f32 %v2840, %v2248
      %v2842 = vadd.f32 %v2841, %v2253
      %v2843 = vadd.f32 %v2842, %v2258
      %v2844 = vadd.f32 %v2843, %v2263
      %v2845 = vadd.f32 %v2844, %v2268
      %v2846 = vadd.f32 %v2845, %v2273
      %v2847 = vadd.f32 %v2846, %v2278
      %v2848 = vadd.f32 %v2847, %v2283
      %v2849 = vadd.f32 %v2848, %v2288
      %v2850 = vadd.f32 %v2849, %v2293
      %v2851 = vadd.f32 %v2850, %v2298
      %v2852 = vadd.f32 %v2851, %v2303
      %v2853 = vadd.f32 %v2852, %v2308
      %v2854 = vadd.f32 %v2853, %v2313
      %v2855 = vadd.f32 %v2854, %v2318
      %v2856 = vadd.f32 %v2855, %v2323
      %v2857 = vadd.f32 %v2856, %v2328
      %v2858 = vadd.f32 %v2857, %v2333
      %v2859 = vadd.f32 %v2858, %v2338
      %v2860 = vadd.f32 %v2859, %v2343
      %v2861 = vadd.f32 %v2860, %v2348
      %v2862 = vadd.f32 %v2861, %v2353
      %v2863 = vadd.f32 %v2862, %v2358
      %v2864 = vadd.f32 %v2863, %v2363
      %v2865 = vadd.f32 %v2864, %v2368
      %v2866 = vadd.f32 %v2865, %v2373
      %v2867 = vadd.f32 %v2866, %v2378
      %v2868 = vadd.f32 %v2867, %v2383
      %v2869 = vadd.f32 %v2868, %v2388
      %v2870 = vadd.f32 %v2869, %v2393
      %v2871 = vadd.f32 %v2870, %v2398
      %v2872 = vadd.f32 %v2871, %v2403
      %v2873 = vadd.f32 %v2872, %v2408
      %v2874 = vadd.f32 %v2873, %v2413
      %v2875 = vadd.f32 %v2874, %v2418
      %v2876 = vadd.f32 %v2875, %v2423
      %v2877 = vadd.f32 %v2876, %v2428
      %v2878 = vadd.f32 %v2877, %v2433
      %v2879 = vadd.f32 %v2878, %v2438
      %v2880 = vadd.f32 %v2879, %v2443
      %v2881 = vadd.f32 %v2880, %v2448
      %v2882 = vadd.f32 %v2881, %v2453
      %v2883 = vadd.f32 %v2882, %v2458
      %v2884 = vadd.f32 %v2883, %v2463
      %v2885 = vadd.f32 %v2884, %v2468
      %v2886 = vadd.f32 %v2885, %v2473
      %v2887 = vadd.f32 %v2886, %v2478
      %v2888 = vadd.f32 %v2887, %v2483
      %v2889 = vadd.f32 %v2888, %v2488
      %v2890 = vadd.f32 %v2889, %v2493
      %v2891 = vadd.f32 %v2890, %v2498
      %v2892 = vadd.f32 %v2891, %v2503
      %v2893 = vadd.f32 %v2892, %v2508
      %v2894 = vadd.f32 %v2893, %v2513
      %v2895 = vadd.f32 %v2894, %v2518
      %v2896 = vadd.f32 %v2895, %v2523
      %v2897 = vadd.f32 %v2896, %v2528
      %v2898 = vadd.f32 %v2897, %v2533
      %v2899 = vadd.f32 %v2898, %v2538
      %v2900 = vadd.f32 %v2899, %v2543
      %v2901 = vadd.f32 %v2900, %v2548
      %v2902 = vadd.f32 %v2901, %v2553
      %v2903 = vadd.f32 %v2902, %v2558
      %v2904 = vadd.f32 %v2903, %v2563
      %v2905 = vadd.f32 %v2904, %v2568
      %v2906 = vadd.f32 %v2905, %v2573
      %v2907 = vadd.f32 %v2906, %v2578
      %v2908 = vadd.f32 %v2907, %v2583
      %v2909 = vadd.f32 %v2908, %v2588
      %v2910 = vadd.f32 %v2909, %v2593
      %v2911 = vadd.f32 %v2910, %v2598
      %v2912 = vadd.f32 %v2911, %v2603
      %v2913 = vadd.f32 %v2912, %v2608
      %v2914 = vadd.f32 %v2913, %v2613
      %v2915 = vadd.f32 %v2914, %v2618
      %v2916 = vadd.f32 %v2915, %v2623
      %v2917 = vadd.f32 %v2916, %v2628
      %v2918 = vadd.f32 %v2917, %v2633
      %v2919 = vadd.f32 %v2918, %v2638
      %v2920 = vadd.f32 %v2919, %v2643
      %v2921 = vadd.f32 %v2920, %v2648
      %v2922 = vadd.f32 %v2921, %v2653
      %v2923 = vadd.f32 %v2922, %v2658
      %v2924 = vadd.f32 %v2923, %v2663
      %v2925 = vadd.f32 %v2924, %v2668
      %v2926 = vrot.slane %v2925, 4
      %v2927 = vadd.f32 %v2925, %v2926
      %v2928 = vrot.slane %v2927, 2
      %v2929 = vadd.f32 %v2927, %v2928
      %v2930 = vrot.slane %v2929, 1
      %v2931 = vadd.f32 %v2929, %v2930
      %2932 = vst [vmem:[%s271] sm:$0xff] %v2931
      %v2933 = vmul.f32 %v2033, %v2033
      %v2934 = vmul.f32 %v2038, %v2038
      %v2935 = vmul.f32 %v2043, %v2043
      %v2936 = vmul.f32 %v2048, %v2048
      %v2937 = vmul.f32 %v2053, %v2053
      %v2938 = vmul.f32 %v2058, %v2058
      %v2939 = vmul.f32 %v2063, %v2063
      %v2940 = vmul.f32 %v2068, %v2068
      %v2941 = vmul.f32 %v2073, %v2073
      %v2942 = vmul.f32 %v2078, %v2078
      %v2943 = vmul.f32 %v2083, %v2083
      %v2944 = vmul.f32 %v2088, %v2088
      %v2945 = vmul.f32 %v2093, %v2093
      %v2946 = vmul.f32 %v2098, %v2098
      %v2947 = vmul.f32 %v2103, %v2103
      %v2948 = vmul.f32 %v2108, %v2108
      %v2949 = vmul.f32 %v2113, %v2113
      %v2950 = vmul.f32 %v2118, %v2118
      %v2951 = vmul.f32 %v2123, %v2123
      %v2952 = vmul.f32 %v2128, %v2128
      %v2953 = vmul.f32 %v2133, %v2133
      %v2954 = vmul.f32 %v2138, %v2138
      %v2955 = vmul.f32 %v2143, %v2143
      %v2956 = vmul.f32 %v2148, %v2148
      %v2957 = vmul.f32 %v2153, %v2153
      %v2958 = vmul.f32 %v2158, %v2158
      %v2959 = vmul.f32 %v2163, %v2163
      %v2960 = vmul.f32 %v2168, %v2168
      %v2961 = vmul.f32 %v2173, %v2173
      %v2962 = vmul.f32 %v2178, %v2178
      %v2963 = vmul.f32 %v2183, %v2183
      %v2964 = vmul.f32 %v2188, %v2188
      %v2965 = vmul.f32 %v2193, %v2193
      %v2966 = vmul.f32 %v2198, %v2198
      %v2967 = vmul.f32 %v2203, %v2203
      %v2968 = vmul.f32 %v2208, %v2208
      %v2969 = vmul.f32 %v2213, %v2213
      %v2970 = vmul.f32 %v2218, %v2218
      %v2971 = vmul.f32 %v2223, %v2223
      %v2972 = vmul.f32 %v2228, %v2228
      %v2973 = vmul.f32 %v2233, %v2233
      %v2974 = vmul.f32 %v2238, %v2238
      %v2975 = vmul.f32 %v2243, %v2243
      %v2976 = vmul.f32 %v2248, %v2248
      %v2977 = vmul.f32 %v2253, %v2253
      %v2978 = vmul.f32 %v2258, %v2258
      %v2979 = vmul.f32 %v2263, %v2263
      %v2980 = vmul.f32 %v2268, %v2268
      %v2981 = vmul.f32 %v2273, %v2273
      %v2982 = vmul.f32 %v2278, %v2278
      %v2983 = vmul.f32 %v2283, %v2283
      %v2984 = vmul.f32 %v2288, %v2288
      %v2985 = vmul.f32 %v2293, %v2293
      %v2986 = vmul.f32 %v2298, %v2298
      %v2987 = vmul.f32 %v2303, %v2303
      %v2988 = vmul.f32 %v2308, %v2308
      %v2989 = vmul.f32 %v2313, %v2313
      %v2990 = vmul.f32 %v2318, %v2318
      %v2991 = vmul.f32 %v2323, %v2323
      %v2992 = vmul.f32 %v2328, %v2328
      %v2993 = vmul.f32 %v2333, %v2333
      %v2994 = vmul.f32 %v2338, %v2338
      %v2995 = vmul.f32 %v2343, %v2343
      %v2996 = vmul.f32 %v2348, %v2348
      %v2997 = vmul.f32 %v2353, %v2353
      %v2998 = vmul.f32 %v2358, %v2358
      %v2999 = vmul.f32 %v2363, %v2363
      %v3000 = vmul.f32 %v2368, %v2368
      %v3001 = vmul.f32 %v2373, %v2373
      %v3002 = vmul.f32 %v2378, %v2378
      %v3003 = vmul.f32 %v2383, %v2383
      %v3004 = vmul.f32 %v2388, %v2388
      %v3005 = vmul.f32 %v2393, %v2393
      %v3006 = vmul.f32 %v2398, %v2398
      %v3007 = vmul.f32 %v2403, %v2403
      %v3008 = vmul.f32 %v2408, %v2408
      %v3009 = vmul.f32 %v2413, %v2413
      %v3010 = vmul.f32 %v2418, %v2418
      %v3011 = vmul.f32 %v2423, %v2423
      %v3012 = vmul.f32 %v2428, %v2428
      %v3013 = vmul.f32 %v2433, %v2433
      %v3014 = vmul.f32 %v2438, %v2438
      %v3015 = vmul.f32 %v2443, %v2443
      %v3016 = vmul.f32 %v2448, %v2448
      %v3017 = vmul.f32 %v2453, %v2453
      %v3018 = vmul.f32 %v2458, %v2458
      %v3019 = vmul.f32 %v2463, %v2463
      %v3020 = vmul.f32 %v2468, %v2468
      %v3021 = vmul.f32 %v2473, %v2473
      %v3022 = vmul.f32 %v2478, %v2478
      %v3023 = vmul.f32 %v2483, %v2483
      %v3024 = vmul.f32 %v2488, %v2488
      %v3025 = vmul.f32 %v2493, %v2493
      %v3026 = vmul.f32 %v2498, %v2498
      %v3027 = vmul.f32 %v2503, %v2503
      %v3028 = vmul.f32 %v2508, %v2508
      %v3029 = vmul.f32 %v2513, %v2513
      %v3030 = vmul.f32 %v2518, %v2518
      %v3031 = vmul.f32 %v2523, %v2523
      %v3032 = vmul.f32 %v2528, %v2528
      %v3033 = vmul.f32 %v2533, %v2533
      %v3034 = vmul.f32 %v2538, %v2538
      %v3035 = vmul.f32 %v2543, %v2543
      %v3036 = vmul.f32 %v2548, %v2548
      %v3037 = vmul.f32 %v2553, %v2553
      %v3038 = vmul.f32 %v2558, %v2558
      %v3039 = vmul.f32 %v2563, %v2563
      %v3040 = vmul.f32 %v2568, %v2568
      %v3041 = vmul.f32 %v2573, %v2573
      %v3042 = vmul.f32 %v2578, %v2578
      %v3043 = vmul.f32 %v2583, %v2583
      %v3044 = vmul.f32 %v2588, %v2588
      %v3045 = vmul.f32 %v2593, %v2593
      %v3046 = vmul.f32 %v2598, %v2598
      %v3047 = vmul.f32 %v2603, %v2603
      %v3048 = vmul.f32 %v2608, %v2608
      %v3049 = vmul.f32 %v2613, %v2613
      %v3050 = vmul.f32 %v2618, %v2618
      %v3051 = vmul.f32 %v2623, %v2623
      %v3052 = vmul.f32 %v2628, %v2628
      %v3053 = vmul.f32 %v2633, %v2633
      %v3054 = vmul.f32 %v2638, %v2638
      %v3055 = vmul.f32 %v2643, %v2643
      %v3056 = vmul.f32 %v2648, %v2648
      %v3057 = vmul.f32 %v2653, %v2653
      %v3058 = vmul.f32 %v2658, %v2658
      %v3059 = vmul.f32 %v2663, %v2663
      %v3060 = vmul.f32 %v2668, %v2668
      %v3061 = vadd.f32 %v2933, %v2934
      %v3062 = vadd.f32 %v3061, %v2935
      %v3063 = vadd.f32 %v3062, %v2936
      %v3064 = vadd.f32 %v3063, %v2937
      %v3065 = vadd.f32 %v3064, %v2938
      %v3066 = vadd.f32 %v3065, %v2939
      %v3067 = vadd.f32 %v3066, %v2940
      %v3068 = vadd.f32 %v3067, %v2941
      %v3069 = vadd.f32 %v3068, %v2942
      %v3070 = vadd.f32 %v3069, %v2943
      %v3071 = vadd.f32 %v3070, %v2944
      %v3072 = vadd.f32 %v3071, %v2945
      %v3073 = vadd.f32 %v3072, %v2946
      %v3074 = vadd.f32 %v3073, %v2947
      %v3075 = vadd.f32 %v3074, %v2948
      %v3076 = vadd.f32 %v3075, %v2949
      %v3077 = vadd.f32 %v3076, %v2950
      %v3078 = vadd.f32 %v3077, %v2951
      %v3079 = vadd.f32 %v3078, %v2952
      %v3080 = vadd.f32 %v3079, %v2953
      %v3081 = vadd.f32 %v3080, %v2954
      %v3082 = vadd.f32 %v3081, %v2955
      %v3083 = vadd.f32 %v3082, %v2956
      %v3084 = vadd.f32 %v3083, %v2957
      %v3085 = vadd.f32 %v3084, %v2958
      %v3086 = vadd.f32 %v3085, %v2959
      %v3087 = vadd.f32 %v3086, %v2960
      %v3088 = vadd.f32 %v3087, %v2961
      %v3089 = vadd.f32 %v3088, %v2962
      %v3090 = vadd.f32 %v3089, %v2963
      %v3091 = vadd.f32 %v3090, %v2964
      %v3092 = vadd.f32 %v3091, %v2965
      %v3093 = vadd.f32 %v3092, %v2966
      %v3094 = vadd.f32 %v3093, %v2967
      %v3095 = vadd.f32 %v3094, %v2968
      %v3096 = vadd.f32 %v3095, %v2969
      %v3097 = vadd.f32 %v3096, %v2970
      %v3098 = vadd.f32 %v3097, %v2971
      %v3099 = vadd.f32 %v3098, %v2972
      %v3100 = vadd.f32 %v3099, %v2973
      %v3101 = vadd.f32 %v3100, %v2974
      %v3102 = vadd.f32 %v3101, %v2975
      %v3103 = vadd.f32 %v3102, %v2976
      %v3104 = vadd.f32 %v3103, %v2977
      %v3105 = vadd.f32 %v3104, %v2978
      %v3106 = vadd.f32 %v3105, %v2979
      %v3107 = vadd.f32 %v3106, %v2980
      %v3108 = vadd.f32 %v3107, %v2981
      %v3109 = vadd.f32 %v3108, %v2982
      %v3110 = vadd.f32 %v3109, %v2983
      %v3111 = vadd.f32 %v3110, %v2984
      %v3112 = vadd.f32 %v3111, %v2985
      %v3113 = vadd.f32 %v3112, %v2986
      %v3114 = vadd.f32 %v3113, %v2987
      %v3115 = vadd.f32 %v3114, %v2988
      %v3116 = vadd.f32 %v3115, %v2989
      %v3117 = vadd.f32 %v3116, %v2990
      %v3118 = vadd.f32 %v3117, %v2991
      %v3119 = vadd.f32 %v3118, %v2992
      %v3120 = vadd.f32 %v3119, %v2993
      %v3121 = vadd.f32 %v3120, %v2994
      %v3122 = vadd.f32 %v3121, %v2995
      %v3123 = vadd.f32 %v3122, %v2996
      %v3124 = vadd.f32 %v3123, %v2997
      %v3125 = vadd.f32 %v3124, %v2998
      %v3126 = vadd.f32 %v3125, %v2999
      %v3127 = vadd.f32 %v3126, %v3000
      %v3128 = vadd.f32 %v3127, %v3001
      %v3129 = vadd.f32 %v3128, %v3002
      %v3130 = vadd.f32 %v3129, %v3003
      %v3131 = vadd.f32 %v3130, %v3004
      %v3132 = vadd.f32 %v3131, %v3005
      %v3133 = vadd.f32 %v3132, %v3006
      %v3134 = vadd.f32 %v3133, %v3007
      %v3135 = vadd.f32 %v3134, %v3008
      %v3136 = vadd.f32 %v3135, %v3009
      %v3137 = vadd.f32 %v3136, %v3010
      %v3138 = vadd.f32 %v3137, %v3011
      %v3139 = vadd.f32 %v3138, %v3012
      %v3140 = vadd.f32 %v3139, %v3013
      %v3141 = vadd.f32 %v3140, %v3014
      %v3142 = vadd.f32 %v3141, %v3015
      %v3143 = vadd.f32 %v3142, %v3016
      %v3144 = vadd.f32 %v3143, %v3017
      %v3145 = vadd.f32 %v3144, %v3018
      %v3146 = vadd.f32 %v3145, %v3019
      %v3147 = vadd.f32 %v3146, %v3020
      %v3148 = vadd.f32 %v3147, %v3021
      %v3149 = vadd.f32 %v3148, %v3022
      %v3150 = vadd.f32 %v3149, %v3023
      %v3151 = vadd.f32 %v3150, %v3024
      %v3152 = vadd.f32 %v3151, %v3025
      %v3153 = vadd.f32 %v3152, %v3026
      %v3154 = vadd.f32 %v3153, %v3027
      %v3155 = vadd.f32 %v3154, %v3028
      %v3156 = vadd.f32 %v3155, %v3029
      %v3157 = vadd.f32 %v3156, %v3030
      %v3158 = vadd.f32 %v3157, %v3031
      %v3159 = vadd.f32 %v3158, %v3032
      %v3160 = vadd.f32 %v3159, %v3033
      %v3161 = vadd.f32 %v3160, %v3034
      %v3162 = vadd.f32 %v3161, %v3035
      %v3163 = vadd.f32 %v3162, %v3036
      %v3164 = vadd.f32 %v3163, %v3037
      %v3165 = vadd.f32 %v3164, %v3038
      %v3166 = vadd.f32 %v3165, %v3039
      %v3167 = vadd.f32 %v3166, %v3040
      %v3168 = vadd.f32 %v3167, %v3041
      %v3169 = vadd.f32 %v3168, %v3042
      %v3170 = vadd.f32 %v3169, %v3043
      %v3171 = vadd.f32 %v3170, %v3044
      %v3172 = vadd.f32 %v3171, %v3045
      %v3173 = vadd.f32 %v3172, %v3046
      %v3174 = vadd.f32 %v3173, %v3047
      %v3175 = vadd.f32 %v3174, %v3048
      %v3176 = vadd.f32 %v3175, %v3049
      %v3177 = vadd.f32 %v3176, %v3050
      %v3178 = vadd.f32 %v3177, %v3051
      %v3179 = vadd.f32 %v3178, %v3052
      %v3180 = vadd.f32 %v3179, %v3053
      %v3181 = vadd.f32 %v3180, %v3054
      %v3182 = vadd.f32 %v3181, %v3055
      %v3183 = vadd.f32 %v3182, %v3056
      %v3184 = vadd.f32 %v3183, %v3057
      %v3185 = vadd.f32 %v3184, %v3058
      %v3186 = vadd.f32 %v3185, %v3059
      %v3187 = vadd.f32 %v3186, %v3060
      %v3188 = vrot.slane %v3187, 4
      %v3189 = vadd.f32 %v3187, %v3188
      %v3190 = vrot.slane %v3189, 2
      %v3191 = vadd.f32 %v3189, %v3190
      %v3192 = vrot.slane %v3191, 1
      %v3193 = vadd.f32 %v3191, %v3192
      %3194 = vst [vmem:[%s275] sm:$0xff] %v3193
      %s3195 = smul.u32 128, %s18
      %p3196 = scmp.lt.s32.totalorder %s3195, 511
      %s3197 = scalar_select %p3196, %s3195, 511
      %s3198 = smul.addr %s3197, 8
      %s3199 = scalar_lea.vmem %s4, %s3198
      %p3200 = scmp.lt.s32.totalorder %s18, 3
      %s3201 = scalar_select %p3200, %s18, 3
      %s3202 = smul.addr %s3201, 8
      %s3203 = scalar_lea.vmem %s5, %s3202
      %p3204 = scmp.lt.s32.totalorder %s18, 3
      %s3205 = scalar_select %p3204, %s18, 3
      %s3206 = smul.addr %s3205, 8
      %s3207 = scalar_lea.vmem %s6, %s3206
      // Predicated region
      $region37: #{conv2_1d_forward.4} parent=35 // pred_check
        %p3208 = pneg %p125
      $region38: #{conv2_1d_forward.4} parent=35 // pred_check_branch
        %3210 = sbr.rel (%p3208) target = $region40
      $region39: #{conv2_1d_forward.4} parent=35 // pred_region
        %s3211 = smul.u32 128, %s18
      $region40: #{conv2_1d_forward.4} parent=35 // pred_fallthru
        _
      // Predicated region
      $region41: #{conv2_1d_forward.4} parent=35 // pred_check
        %p3212 = pneg %p151
      $region42: #{conv2_1d_forward.4} parent=35 // pred_check_branch
        %3214 = sbr.rel (%p3212) target = $region44
      $region43: #{conv2_1d_forward.4} parent=35 // pred_region
        _
      $region44: #{conv2_1d_forward.4} parent=35 // pred_fallthru
        _
      // Predicated region
      $region45: #{conv2_1d_forward.4} parent=35 // pred_check
        %p3215 = pneg %p177
      $region46: #{conv2_1d_forward.4} parent=35 // pred_check_branch
        %3217 = sbr.rel (%p3215) target = $region48
      $region47: #{conv2_1d_forward.4} parent=35 // pred_region
        _
      $region48: #{conv2_1d_forward.4} parent=35 // pred_fallthru
        _
    $region36: #{conv2_1d_forward.4} parent=5 // pred_fallthru
      _
    %p3218 = scmp.le.s32.totalorder 2, %s13
    // Predicated region
    $region49: #{conv2_1d_forward.4} parent=5 // pred_check
      %p3219 = pneg %p3218
    $region50: #{conv2_1d_forward.4} parent=5 // pred_check_branch
      %3221 = sbr.rel (%p3219) target = $region52
    $region51: #{conv2_1d_forward.4} parent=5 // pred_region
      %s3222 = ssub.s32 %s13, 2
      // Predicated region
      $region53: #{conv2_1d_forward.4} parent=51 // pred_check
        %p3223 = pneg %p131
      $region54: #{conv2_1d_forward.4} parent=51 // pred_check_branch
        %3225 = sbr.rel (%p3223) target = $region56
      $region55: #{conv2_1d_forward.4} parent=51 // pred_region
        %s3226 = smul.u32 128, %s19
        %p3227 = scmp.lt.s32.totalorder %s3226, 511
        %s3228 = scalar_select %p3227, %s3226, 511
        %s3229 = smul.addr %s3228, 8
        %s3230 = scalar_lea.vmem %s4, %s3229
      $region56: #{conv2_1d_forward.4} parent=51 // pred_fallthru
        _
      // Predicated region
      $region57: #{conv2_1d_forward.4} parent=51 // pred_check
        %p3231 = pneg %p157
      $region58: #{conv2_1d_forward.4} parent=51 // pred_check_branch
        %3233 = sbr.rel (%p3231) target = $region60
      $region59: #{conv2_1d_forward.4} parent=51 // pred_region
        %p3234 = scmp.lt.s32.totalorder %s19, 3
        %s3235 = scalar_select %p3234, %s19, 3
        %s3236 = smul.addr %s3235, 8
        %s3237 = scalar_lea.vmem %s5, %s3236
      $region60: #{conv2_1d_forward.4} parent=51 // pred_fallthru
        _
      // Predicated region
      $region61: #{conv2_1d_forward.4} parent=51 // pred_check
        %p3238 = pneg %p183
      $region62: #{conv2_1d_forward.4} parent=51 // pred_check_branch
        %3240 = sbr.rel (%p3238) target = $region64
      $region63: #{conv2_1d_forward.4} parent=51 // pred_region
        %p3241 = scmp.lt.s32.totalorder %s19, 3
        %s3242 = scalar_select %p3241, %s19, 3
        %s3243 = smul.addr %s3242, 8
        %s3244 = scalar_lea.vmem %s6, %s3243
      $region64: #{conv2_1d_forward.4} parent=51 // pred_fallthru
        _
    $region52: #{conv2_1d_forward.4} parent=5 // pred_fallthru
      _
  $region6: #{conv2_1d_forward.4} parent=0 // loop_footer
    %s17 = sadd.s32 1, %s13
  $region7: #{conv2_1d_forward.4} parent=0 // loop_footer_branch
    %12 = sbr.rel target = $region3
  $region8: #{conv2_1d_forward.4} parent=0 // loop_exit
    _

// kernel: conv2_1d_forward.5
$region0: #{conv2_1d_forward.5}
  #allocation0 [shape = 'u32[]', space=smem, size = 0x4, offset = 0x4, fixed_abs, tag = 'smem constant byte address 0x4 - core index']
  #allocation1 [shape = 'u32[144,128]{1,0:T(1,128)}', space=vmem, size = 0x12000, scoped, tag = 'internal scratch']
  %s0 = inlined_call_operand.vmem [shape: f32[4096,128], index: 0, kind: input, shape index: {}]
  %s1 = inlined_call_operand.vmem [shape: f32[1,128], index: 1, kind: input, shape index: {}]
  %s2 = inlined_call_operand.vmem [shape: f32[1,128], index: 2, kind: input, shape index: {}]
  %s3 = inlined_call_operand.vmem [shape: f32[4096,128], index: 3, kind: output, shape index: {}]
  %s4 = sld [smem:[#allocation0]]
  $region45: #{conv2_1d_forward.5} parent=0
    _
  %s6 = ssub.s32 1, %s4
  %s7 = scalar_select 0, %s6, %s4
  loop: start=0, step=1, limit=6
  $region2: #{conv2_1d_forward.5} parent=0 // loop_pre_header
    _
  $region3: #{conv2_1d_forward.5} parent=0 // loop_header
    %s9 = sphi 0, %s13
    %p10 = scmp.ge.s32.totalorder %s9, 6
    %s19 = sphi 0, %s21
    %s22 = sphi 0, %s19
    %s23 = sphi 0, %s22
    %s39 = sphi 0, %s23
    %s43 = sphi 0, %s43
    %s45 = sphi 0, %s43
    %s46 = sphi 0, %s45
    %s60 = sphi 0, %s46
    %s64 = sphi 0, %s64
    %s66 = sphi 0, %s64
    %s67 = sphi 0, %s66
    %s81 = sphi 0, %s67
    %s87 = sphi 0, %s89
    %s90 = sphi 0, %s87
    %s91 = sphi 0, %s90
    %s107 = sphi 0, %s91
  $region4: #{conv2_1d_forward.5} parent=0 // loop_header_branch
    %12 = sbr.rel (%p10) target = $region8
  $region5: #{conv2_1d_forward.5} parent=0 // loop_body
    %s14 = ssub.s32 %s9, 1
    %s15 = ssub.s32 %s9, 2
    %s16 = sadd.s32 %s9, 1
    %s17 = ssub.s32 %s9, %s16
    %p18 = scmp.eq.s32.totalorder %s17, 0
    %s20 = sadd.s32 %s19, 1
    %s21 = scalar_select %p18, %s19, %s20
    %p24 = pneg %p18
    %p25 = scmp.eq.s32.totalorder %s9, 3
    %p26 = por %p24, %p25
    %p27 = scmp.ne.s32.totalorder %s19, %s22
    %p28 = scmp.eq.s32.totalorder %s9, 0
    %p29 = por %p27, %p28
    %p30 = scmp.ne.s32.totalorder %s19, %s22
    %p31 = scmp.eq.s32.totalorder %s14, 3
    %p32 = por %p30, %p31
    %p33 = scmp.ne.s32.totalorder %s22, %s23
    %p34 = scmp.eq.s32.totalorder %s14, 0
    %p35 = por %p33, %p34
    %p36 = scmp.ne.s32.totalorder %s22, %s23
    %p37 = scmp.eq.s32.totalorder %s15, 3
    %p38 = por %p36, %p37
    %p40 = scmp.ne.s32.totalorder %s23, %s39
    %p41 = scmp.eq.s32.totalorder %s15, 0
    %p42 = por %p40, %p41
    %s44 = sadd.s32 %s43, 1
    %p47 = scmp.eq.s32.totalorder %s9, 3
    %p48 = scmp.ne.s32.totalorder %s43, %s45
    %p49 = scmp.eq.s32.totalorder %s9, 0
    %p50 = por %p48, %p49
    %p51 = scmp.ne.s32.totalorder %s43, %s45
    %p52 = scmp.eq.s32.totalorder %s14, 3
    %p53 = por %p51, %p52
    %p54 = scmp.ne.s32.totalorder %s45, %s46
    %p55 = scmp.eq.s32.totalorder %s14, 0
    %p56 = por %p54, %p55
    %p57 = scmp.ne.s32.totalorder %s45, %s46
    %p58 = scmp.eq.s32.totalorder %s15, 3
    %p59 = por %p57, %p58
    %p61 = scmp.ne.s32.totalorder %s46, %s60
    %p62 = scmp.eq.s32.totalorder %s15, 0
    %p63 = por %p61, %p62
    %s65 = sadd.s32 %s64, 1
    %p68 = scmp.eq.s32.totalorder %s9, 3
    %p69 = scmp.ne.s32.totalorder %s64, %s66
    %p70 = scmp.eq.s32.totalorder %s9, 0
    %p71 = por %p69, %p70
    %p72 = scmp.ne.s32.totalorder %s64, %s66
    %p73 = scmp.eq.s32.totalorder %s14, 3
    %p74 = por %p72, %p73
    %p75 = scmp.ne.s32.totalorder %s66, %s67
    %p76 = scmp.eq.s32.totalorder %s14, 0
    %p77 = por %p75, %p76
    %p78 = scmp.ne.s32.totalorder %s66, %s67
    %p79 = scmp.eq.s32.totalorder %s15, 3
    %p80 = por %p78, %p79
    %p82 = scmp.ne.s32.totalorder %s67, %s81
    %p83 = scmp.eq.s32.totalorder %s15, 0
    %p84 = por %p82, %p83
    %s85 = ssub.s32 %s9, %s16
    %p86 = scmp.eq.s32.totalorder %s85, 0
    %s88 = sadd.s32 %s87, 1
    %s89 = scalar_select %p86, %s87, %s88
    %p92 = pneg %p86
    %p93 = scmp.eq.s32.totalorder %s9, 3
    %p94 = por %p92, %p93
    %p95 = scmp.ne.s32.totalorder %s87, %s90
    %p96 = scmp.eq.s32.totalorder %s9, 0
    %p97 = por %p95, %p96
    %p98 = scmp.ne.s32.totalorder %s87, %s90
    %p99 = scmp.eq.s32.totalorder %s14, 3
    %p100 = por %p98, %p99
    %p101 = scmp.ne.s32.totalorder %s90, %s91
    %p102 = scmp.eq.s32.totalorder %s14, 0
    %p103 = por %p101, %p102
    %p104 = scmp.ne.s32.totalorder %s90, %s91
    %p105 = scmp.eq.s32.totalorder %s15, 3
    %p106 = por %p104, %p105
    %p108 = scmp.ne.s32.totalorder %s91, %s107
    %p109 = scmp.eq.s32.totalorder %s15, 0
    %p110 = por %p108, %p109
    %p111 = scmp.le.s32.totalorder 1, %s9
    %p112 = scmp.lt.s32.totalorder %s9, 5
    %p113 = pnand %p111, %p112
    %p114 = pneg %p113
    // Predicated region
    $region9: #{conv2_1d_forward.5} parent=5 // pred_check
      _
    $region10: #{conv2_1d_forward.5} parent=5 // pred_check_branch
      %116 = sbr.rel (%p113) target = $region12
    $region11: #{conv2_1d_forward.5} parent=5 // pred_region
      %s117 = ssub.s32 %s9, 1
      // Predicated region
      $region13: #{conv2_1d_forward.5} parent=11 // pred_check
        %p118 = pneg %p56
      $region14: #{conv2_1d_forward.5} parent=11 // pred_check_branch
        %120 = sbr.rel (%p118) target = $region16
      $region15: #{conv2_1d_forward.5} parent=11 // pred_region
        _
      $region16: #{conv2_1d_forward.5} parent=11 // pred_fallthru
        _
      // Predicated region
      $region17: #{conv2_1d_forward.5} parent=11 // pred_check
        %p121 = pneg %p77
      $region18: #{conv2_1d_forward.5} parent=11 // pred_check_branch
        %123 = sbr.rel (%p121) target = $region20
      $region19: #{conv2_1d_forward.5} parent=11 // pred_region
        _
      $region20: #{conv2_1d_forward.5} parent=11 // pred_fallthru
        _
    $region12: #{conv2_1d_forward.5} parent=5 // pred_fallthru
      _
    %p124 = scmp.lt.s32.totalorder %s9, 4
    // Predicated region
    $region21: #{conv2_1d_forward.5} parent=5 // pred_check
      %p125 = pneg %p124
    $region22: #{conv2_1d_forward.5} parent=5 // pred_check_branch
      %127 = sbr.rel (%p125) target = $region24
    $region23: #{conv2_1d_forward.5} parent=5 // pred_region
      // Predicated region
      $region25: #{conv2_1d_forward.5} parent=23 // pred_check
        %p128 = pneg %p29
      $region26: #{conv2_1d_forward.5} parent=23 // pred_check_branch
        %130 = sbr.rel (%p128) target = $region28
      $region27: #{conv2_1d_forward.5} parent=23 // pred_region
        %s131 = smul.u32 128, %s9
        %p132 = scmp.lt.s32.totalorder %s131, 511
        %s133 = scalar_select %p132, %s131, 511
        %s134 = smul.addr %s133, 8
        %s135 = scalar_lea.vmem %s0, %s134
        %s136 = smul.u32 128, %s9
      $region28: #{conv2_1d_forward.5} parent=23 // pred_fallthru
        _
    $region24: #{conv2_1d_forward.5} parent=5 // pred_fallthru
      _
    %p137 = scmp.le.s32.totalorder 1, %s9
    %p138 = scmp.lt.s32.totalorder %s9, 5
    %p139 = pnand %p137, %p138
    %p140 = pneg %p139
    // Predicated region
    $region29: #{conv2_1d_forward.5} parent=5 // pred_check
      _
    $region30: #{conv2_1d_forward.5} parent=5 // pred_check_branch
      %142 = sbr.rel (%p139) target = $region32
    $region31: #{conv2_1d_forward.5} parent=5 // pred_region
      %s143 = ssub.s32 %s9, 1
      %s144 = smul.u32 128, %s14
      %p145 = scmp.lt.s32.totalorder %s144, 511
      %s146 = scalar_select %p145, %s144, 511
      %s147 = smul.addr %s146, 8
      %s148 = scalar_lea.vmem %s0, %s147
      %p149 = pneg %p35
      %p150 = pneg %p32
      %p151 = pneg %p56
      %p152 = pneg %p53
      %p153 = pneg %p77
      %p154 = pneg %p74
      %p155 = pneg %p103
      %p156 = pneg %p100
      %s157 = smul.u32 128, %s14
      %p158 = scmp.lt.s32.totalorder %s157, 511
      %s159 = scalar_select %p158, %s157, 511
      %s160 = smul.addr %s159, 8
      %s161 = scalar_lea.vmem %s3, %s160
      %s162 = smul.u32 128, %s14
      %p163 = scmp.lt.s32.totalorder %s162, 511
      %s164 = scalar_select %p163, %s162, 511
      %s165 = smul.addr %s164, 8
      %s166 = scalar_lea.vmem %s0, %s165
      %s167 = smul.u32 128, %s14
      %s168 = smul.u32 128, %s14
      %p169 = scmp.lt.s32.totalorder %s168, 511
      %s170 = scalar_select %p169, %s168, 511
      %s171 = smul.addr %s170, 8
      %s172 = scalar_lea.vmem %s3, %s171
      %s173 = smul.u32 128, %s14
      %v174 = vld [vmem:[%s166] sm:$0xff]
      %v175 = vld [vmem:[%s166 + $0x8] sm:$0xff]
      %v176 = vld [vmem:[%s166 + $0x10] sm:$0xff]
      %v177 = vld [vmem:[%s166 + $0x18] sm:$0xff]
      %v178 = vld [vmem:[%s166 + $0x20] sm:$0xff]
      %v179 = vld [vmem:[%s166 + $0x28] sm:$0xff]
      %v180 = vld [vmem:[%s166 + $0x30] sm:$0xff]
      %v181 = vld [vmem:[%s166 + $0x38] sm:$0xff]
      %v182 = vld [vmem:[%s166 + $0x40] sm:$0xff]
      %v183 = vld [vmem:[%s166 + $0x48] sm:$0xff]
      %v184 = vld [vmem:[%s166 + $0x50] sm:$0xff]
      %v185 = vld [vmem:[%s166 + $0x58] sm:$0xff]
      %v186 = vld [vmem:[%s166 + $0x60] sm:$0xff]
      %v187 = vld [vmem:[%s166 + $0x68] sm:$0xff]
      %v188 = vld [vmem:[%s166 + $0x70] sm:$0xff]
      %v189 = vld [vmem:[%s166 + $0x78] sm:$0xff]
      %v190 = vld [vmem:[%s166 + $0x80] sm:$0xff]
      %v191 = vld [vmem:[%s166 + $0x88] sm:$0xff]
      %v192 = vld [vmem:[%s166 + $0x90] sm:$0xff]
      %v193 = vld [vmem:[%s166 + $0x98] sm:$0xff]
      %v194 = vld [vmem:[%s166 + $0xa0] sm:$0xff]
      %v195 = vld [vmem:[%s166 + $0xa8] sm:$0xff]
      %v196 = vld [vmem:[%s166 + $0xb0] sm:$0xff]
      %v197 = vld [vmem:[%s166 + $0xb8] sm:$0xff]
      %v198 = vld [vmem:[%s166 + $0xc0] sm:$0xff]
      %v199 = vld [vmem:[%s166 + $0xc8] sm:$0xff]
      %v200 = vld [vmem:[%s166 + $0xd0] sm:$0xff]
      %v201 = vld [vmem:[%s166 + $0xd8] sm:$0xff]
      %v202 = vld [vmem:[%s166 + $0xe0] sm:$0xff]
      %v203 = vld [vmem:[%s166 + $0xe8] sm:$0xff]
      %v204 = vld [vmem:[%s166 + $0xf0] sm:$0xff]
      %v205 = vld [vmem:[%s166 + $0xf8] sm:$0xff]
      %v206 = vld [vmem:[%s166 + $0x100] sm:$0xff]
      %v207 = vld [vmem:[%s166 + $0x108] sm:$0xff]
      %v208 = vld [vmem:[%s166 + $0x110] sm:$0xff]
      %v209 = vld [vmem:[%s166 + $0x118] sm:$0xff]
      %v210 = vld [vmem:[%s166 + $0x120] sm:$0xff]
      %v211 = vld [vmem:[%s166 + $0x128] sm:$0xff]
      %v212 = vld [vmem:[%s166 + $0x130] sm:$0xff]
      %v213 = vld [vmem:[%s166 + $0x138] sm:$0xff]
      %v214 = vld [vmem:[%s166 + $0x140] sm:$0xff]
      %v215 = vld [vmem:[%s166 + $0x148] sm:$0xff]
      %v216 = vld [vmem:[%s166 + $0x150] sm:$0xff]
      %v217 = vld [vmem:[%s166 + $0x158] sm:$0xff]
      %v218 = vld [vmem:[%s166 + $0x160] sm:$0xff]
      %v219 = vld [vmem:[%s166 + $0x168] sm:$0xff]
      %v220 = vld [vmem:[%s166 + $0x170] sm:$0xff]
      %v221 = vld [vmem:[%s166 + $0x178] sm:$0xff]
      %v222 = vld [vmem:[%s166 + $0x180] sm:$0xff]
      %v223 = vld [vmem:[%s166 + $0x188] sm:$0xff]
      %v224 = vld [vmem:[%s166 + $0x190] sm:$0xff]
      %v225 = vld [vmem:[%s166 + $0x198] sm:$0xff]
      %v226 = vld [vmem:[%s166 + $0x1a0] sm:$0xff]
      %v227 = vld [vmem:[%s166 + $0x1a8] sm:$0xff]
      %v228 = vld [vmem:[%s166 + $0x1b0] sm:$0xff]
      %v229 = vld [vmem:[%s166 + $0x1b8] sm:$0xff]
      %v230 = vld [vmem:[%s166 + $0x1c0] sm:$0xff]
      %v231 = vld [vmem:[%s166 + $0x1c8] sm:$0xff]
      %v232 = vld [vmem:[%s166 + $0x1d0] sm:$0xff]
      %v233 = vld [vmem:[%s166 + $0x1d8] sm:$0xff]
      %v234 = vld [vmem:[%s166 + $0x1e0] sm:$0xff]
      %v235 = vld [vmem:[%s166 + $0x1e8] sm:$0xff]
      %v236 = vld [vmem:[%s166 + $0x1f0] sm:$0xff]
      %v237 = vld [vmem:[%s166 + $0x1f8] sm:$0xff]
      %v238 = vld [vmem:[%s166 + $0x200] sm:$0xff]
      %v239 = vld [vmem:[%s166 + $0x208] sm:$0xff]
      %v240 = vld [vmem:[%s166 + $0x210] sm:$0xff]
      %v241 = vld [vmem:[%s166 + $0x218] sm:$0xff]
      %v242 = vld [vmem:[%s166 + $0x220] sm:$0xff]
      %v243 = vld [vmem:[%s166 + $0x228] sm:$0xff]
      %v244 = vld [vmem:[%s166 + $0x230] sm:$0xff]
      %v245 = vld [vmem:[%s166 + $0x238] sm:$0xff]
      %v246 = vld [vmem:[%s166 + $0x240] sm:$0xff]
      %v247 = vld [vmem:[%s166 + $0x248] sm:$0xff]
      %v248 = vld [vmem:[%s166 + $0x250] sm:$0xff]
      %v249 = vld [vmem:[%s166 + $0x258] sm:$0xff]
      %v250 = vld [vmem:[%s166 + $0x260] sm:$0xff]
      %v251 = vld [vmem:[%s166 + $0x268] sm:$0xff]
      %v252 = vld [vmem:[%s166 + $0x270] sm:$0xff]
      %v253 = vld [vmem:[%s166 + $0x278] sm:$0xff]
      %v254 = vld [vmem:[%s166 + $0x280] sm:$0xff]
      %v255 = vld [vmem:[%s166 + $0x288] sm:$0xff]
      %v256 = vld [vmem:[%s166 + $0x290] sm:$0xff]
      %v257 = vld [vmem:[%s166 + $0x298] sm:$0xff]
      %v258 = vld [vmem:[%s166 + $0x2a0] sm:$0xff]
      %v259 = vld [vmem:[%s166 + $0x2a8] sm:$0xff]
      %v260 = vld [vmem:[%s166 + $0x2b0] sm:$0xff]
      %v261 = vld [vmem:[%s166 + $0x2b8] sm:$0xff]
      %v262 = vld [vmem:[%s166 + $0x2c0] sm:$0xff]
      %v263 = vld [vmem:[%s166 + $0x2c8] sm:$0xff]
      %v264 = vld [vmem:[%s166 + $0x2d0] sm:$0xff]
      %v265 = vld [vmem:[%s166 + $0x2d8] sm:$0xff]
      %v266 = vld [vmem:[%s166 + $0x2e0] sm:$0xff]
      %v267 = vld [vmem:[%s166 + $0x2e8] sm:$0xff]
      %v268 = vld [vmem:[%s166 + $0x2f0] sm:$0xff]
      %v269 = vld [vmem:[%s166 + $0x2f8] sm:$0xff]
      %v270 = vld [vmem:[%s166 + $0x300] sm:$0xff]
      %v271 = vld [vmem:[%s166 + $0x308] sm:$0xff]
      %v272 = vld [vmem:[%s166 + $0x310] sm:$0xff]
      %v273 = vld [vmem:[%s166 + $0x318] sm:$0xff]
      %v274 = vld [vmem:[%s166 + $0x320] sm:$0xff]
      %v275 = vld [vmem:[%s166 + $0x328] sm:$0xff]
      %v276 = vld [vmem:[%s166 + $0x330] sm:$0xff]
      %v277 = vld [vmem:[%s166 + $0x338] sm:$0xff]
      %v278 = vld [vmem:[%s166 + $0x340] sm:$0xff]
      %v279 = vld [vmem:[%s166 + $0x348] sm:$0xff]
      %v280 = vld [vmem:[%s166 + $0x350] sm:$0xff]
      %v281 = vld [vmem:[%s166 + $0x358] sm:$0xff]
      %v282 = vld [vmem:[%s166 + $0x360] sm:$0xff]
      %v283 = vld [vmem:[%s166 + $0x368] sm:$0xff]
      %v284 = vld [vmem:[%s166 + $0x370] sm:$0xff]
      %v285 = vld [vmem:[%s166 + $0x378] sm:$0xff]
      %v286 = vld [vmem:[%s166 + $0x380] sm:$0xff]
      %v287 = vld [vmem:[%s166 + $0x388] sm:$0xff]
      %v288 = vld [vmem:[%s166 + $0x390] sm:$0xff]
      %v289 = vld [vmem:[%s166 + $0x398] sm:$0xff]
      %v290 = vld [vmem:[%s166 + $0x3a0] sm:$0xff]
      %v291 = vld [vmem:[%s166 + $0x3a8] sm:$0xff]
      %v292 = vld [vmem:[%s166 + $0x3b0] sm:$0xff]
      %v293 = vld [vmem:[%s166 + $0x3b8] sm:$0xff]
      %v294 = vld [vmem:[%s166 + $0x3c0] sm:$0xff]
      %v295 = vld [vmem:[%s166 + $0x3c8] sm:$0xff]
      %v296 = vld [vmem:[%s166 + $0x3d0] sm:$0xff]
      %v297 = vld [vmem:[%s166 + $0x3d8] sm:$0xff]
      %v298 = vld [vmem:[%s166 + $0x3e0] sm:$0xff]
      %v299 = vld [vmem:[%s166 + $0x3e8] sm:$0xff]
      %v300 = vld [vmem:[%s166 + $0x3f0] sm:$0xff]
      %v301 = vld [vmem:[%s166 + $0x3f8] sm:$0xff]
      %v302 = vld [vmem:[%s1] sm:$0x1]
      %v304 = vlaneseq
      %v305 = vshrl.u32 %v304, 7
      %v306 = vsub.s32 0, %v305
      %v307 = vrot.slane %v302, %v306
      %v309 = vmul.f32 %v174, %v307
      %v310 = vmul.f32 %v175, %v307
      %v311 = vmul.f32 %v176, %v307
      %v312 = vmul.f32 %v177, %v307
      %v313 = vmul.f32 %v178, %v307
      %v314 = vmul.f32 %v179, %v307
      %v315 = vmul.f32 %v180, %v307
      %v316 = vmul.f32 %v181, %v307
      %v317 = vmul.f32 %v182, %v307
      %v318 = vmul.f32 %v183, %v307
      %v319 = vmul.f32 %v184, %v307
      %v320 = vmul.f32 %v185, %v307
      %v321 = vmul.f32 %v186, %v307
      %v322 = vmul.f32 %v187, %v307
      %v323 = vmul.f32 %v188, %v307
      %v324 = vmul.f32 %v189, %v307
      %v325 = vmul.f32 %v190, %v307
      %v326 = vmul.f32 %v191, %v307
      %v327 = vmul.f32 %v192, %v307
      %v328 = vmul.f32 %v193, %v307
      %v329 = vmul.f32 %v194, %v307
      %v330 = vmul.f32 %v195, %v307
      %v331 = vmul.f32 %v196, %v307
      %v332 = vmul.f32 %v197, %v307
      %v333 = vmul.f32 %v198, %v307
      %v334 = vmul.f32 %v199, %v307
      %v335 = vmul.f32 %v200, %v307
      %v336 = vmul.f32 %v201, %v307
      %v337 = vmul.f32 %v202, %v307
      %v338 = vmul.f32 %v203, %v307
      %v339 = vmul.f32 %v204, %v307
      %v340 = vmul.f32 %v205, %v307
      %v341 = vmul.f32 %v206, %v307
      %v342 = vmul.f32 %v207, %v307
      %v343 = vmul.f32 %v208, %v307
      %v344 = vmul.f32 %v209, %v307
      %v345 = vmul.f32 %v210, %v307
      %v346 = vmul.f32 %v211, %v307
      %v347 = vmul.f32 %v212, %v307
      %v348 = vmul.f32 %v213, %v307
      %v349 = vmul.f32 %v214, %v307
      %v350 = vmul.f32 %v215, %v307
      %v351 = vmul.f32 %v216, %v307
      %v352 = vmul.f32 %v217, %v307
      %v353 = vmul.f32 %v218, %v307
      %v354 = vmul.f32 %v219, %v307
      %v355 = vmul.f32 %v220, %v307
      %v356 = vmul.f32 %v221, %v307
      %v357 = vmul.f32 %v222, %v307
      %v358 = vmul.f32 %v223, %v307
      %v359 = vmul.f32 %v224, %v307
      %v360 = vmul.f32 %v225, %v307
      %v361 = vmul.f32 %v226, %v307
      %v362 = vmul.f32 %v227, %v307
      %v363 = vmul.f32 %v228, %v307
      %v364 = vmul.f32 %v229, %v307
      %v365 = vmul.f32 %v230, %v307
      %v366 = vmul.f32 %v231, %v307
      %v367 = vmul.f32 %v232, %v307
      %v368 = vmul.f32 %v233, %v307
      %v369 = vmul.f32 %v234, %v307
      %v370 = vmul.f32 %v235, %v307
      %v371 = vmul.f32 %v236, %v307
      %v372 = vmul.f32 %v237, %v307
      %v373 = vmul.f32 %v238, %v307
      %v374 = vmul.f32 %v239, %v307
      %v375 = vmul.f32 %v240, %v307
      %v376 = vmul.f32 %v241, %v307
      %v377 = vmul.f32 %v242, %v307
      %v378 = vmul.f32 %v243, %v307
      %v379 = vmul.f32 %v244, %v307
      %v380 = vmul.f32 %v245, %v307
      %v381 = vmul.f32 %v246, %v307
      %v382 = vmul.f32 %v247, %v307
      %v383 = vmul.f32 %v248, %v307
      %v384 = vmul.f32 %v249, %v307
      %v385 = vmul.f32 %v250, %v307
      %v386 = vmul.f32 %v251, %v307
      %v387 = vmul.f32 %v252, %v307
      %v388 = vmul.f32 %v253, %v307
      %v389 = vmul.f32 %v254, %v307
      %v390 = vmul.f32 %v255, %v307
      %v391 = vmul.f32 %v256, %v307
      %v392 = vmul.f32 %v257, %v307
      %v393 = vmul.f32 %v258, %v307
      %v394 = vmul.f32 %v259, %v307
      %v395 = vmul.f32 %v260, %v307
      %v396 = vmul.f32 %v261, %v307
      %v397 = vmul.f32 %v262, %v307
      %v398 = vmul.f32 %v263, %v307
      %v399 = vmul.f32 %v264, %v307
      %v400 = vmul.f32 %v265, %v307
      %v401 = vmul.f32 %v266, %v307
      %v402 = vmul.f32 %v267, %v307
      %v403 = vmul.f32 %v268, %v307
      %v404 = vmul.f32 %v269, %v307
      %v405 = vmul.f32 %v270, %v307
      %v406 = vmul.f32 %v271, %v307
      %v407 = vmul.f32 %v272, %v307
      %v408 = vmul.f32 %v273, %v307
      %v409 = vmul.f32 %v274, %v307
      %v410 = vmul.f32 %v275, %v307
      %v411 = vmul.f32 %v276, %v307
      %v412 = vmul.f32 %v277, %v307
      %v413 = vmul.f32 %v278, %v307
      %v414 = vmul.f32 %v279, %v307
      %v415 = vmul.f32 %v280, %v307
      %v416 = vmul.f32 %v281, %v307
      %v417 = vmul.f32 %v282, %v307
      %v418 = vmul.f32 %v283, %v307
      %v419 = vmul.f32 %v284, %v307
      %v420 = vmul.f32 %v285, %v307
      %v421 = vmul.f32 %v286, %v307
      %v422 = vmul.f32 %v287, %v307
      %v423 = vmul.f32 %v288, %v307
      %v424 = vmul.f32 %v289, %v307
      %v425 = vmul.f32 %v290, %v307
      %v426 = vmul.f32 %v291, %v307
      %v427 = vmul.f32 %v292, %v307
      %v428 = vmul.f32 %v293, %v307
      %v429 = vmul.f32 %v294, %v307
      %v430 = vmul.f32 %v295, %v307
      %v431 = vmul.f32 %v296, %v307
      %v432 = vmul.f32 %v297, %v307
      %v433 = vmul.f32 %v298, %v307
      %v434 = vmul.f32 %v299, %v307
      %v435 = vmul.f32 %v300, %v307
      %v436 = vmul.f32 %v301, %v307
      %v437 = vld [vmem:[%s2] sm:$0x1]
      %v439 = vlaneseq
      %v440 = vshrl.u32 %v439, 7
      %v441 = vsub.s32 0, %v440
      %v442 = vrot.slane %v437, %v441
      %v444 = vadd.f32 %v309, %v442
      %v445 = vadd.f32 %v310, %v442
      %v446 = vadd.f32 %v311, %v442
      %v447 = vadd.f32 %v312, %v442
      %v448 = vadd.f32 %v313, %v442
      %v449 = vadd.f32 %v314, %v442
      %v450 = vadd.f32 %v315, %v442
      %v451 = vadd.f32 %v316, %v442
      %v452 = vadd.f32 %v317, %v442
      %v453 = vadd.f32 %v318, %v442
      %v454 = vadd.f32 %v319, %v442
      %v455 = vadd.f32 %v320, %v442
      %v456 = vadd.f32 %v321, %v442
      %v457 = vadd.f32 %v322, %v442
      %v458 = vadd.f32 %v323, %v442
      %v459 = vadd.f32 %v324, %v442
      %v460 = vadd.f32 %v325, %v442
      %v461 = vadd.f32 %v326, %v442
      %v462 = vadd.f32 %v327, %v442
      %v463 = vadd.f32 %v328, %v442
      %v464 = vadd.f32 %v329, %v442
      %v465 = vadd.f32 %v330, %v442
      %v466 = vadd.f32 %v331, %v442
      %v467 = vadd.f32 %v332, %v442
      %v468 = vadd.f32 %v333, %v442
      %v469 = vadd.f32 %v334, %v442
      %v470 = vadd.f32 %v335, %v442
      %v471 = vadd.f32 %v336, %v442
      %v472 = vadd.f32 %v337, %v442
      %v473 = vadd.f32 %v338, %v442
      %v474 = vadd.f32 %v339, %v442
      %v475 = vadd.f32 %v340, %v442
      %v476 = vadd.f32 %v341, %v442
      %v477 = vadd.f32 %v342, %v442
      %v478 = vadd.f32 %v343, %v442
      %v479 = vadd.f32 %v344, %v442
      %v480 = vadd.f32 %v345, %v442
      %v481 = vadd.f32 %v346, %v442
      %v482 = vadd.f32 %v347, %v442
      %v483 = vadd.f32 %v348, %v442
      %v484 = vadd.f32 %v349, %v442
      %v485 = vadd.f32 %v350, %v442
      %v486 = vadd.f32 %v351, %v442
      %v487 = vadd.f32 %v352, %v442
      %v488 = vadd.f32 %v353, %v442
      %v489 = vadd.f32 %v354, %v442
      %v490 = vadd.f32 %v355, %v442
      %v491 = vadd.f32 %v356, %v442
      %v492 = vadd.f32 %v357, %v442
      %v493 = vadd.f32 %v358, %v442
      %v494 = vadd.f32 %v359, %v442
      %v495 = vadd.f32 %v360, %v442
      %v496 = vadd.f32 %v361, %v442
      %v497 = vadd.f32 %v362, %v442
      %v498 = vadd.f32 %v363, %v442
      %v499 = vadd.f32 %v364, %v442
      %v500 = vadd.f32 %v365, %v442
      %v501 = vadd.f32 %v366, %v442
      %v502 = vadd.f32 %v367, %v442
      %v503 = vadd.f32 %v368, %v442
      %v504 = vadd.f32 %v369, %v442
      %v505 = vadd.f32 %v370, %v442
      %v506 = vadd.f32 %v371, %v442
      %v507 = vadd.f32 %v372, %v442
      %v508 = vadd.f32 %v373, %v442
      %v509 = vadd.f32 %v374, %v442
      %v510 = vadd.f32 %v375, %v442
      %v511 = vadd.f32 %v376, %v442
      %v512 = vadd.f32 %v377, %v442
      %v513 = vadd.f32 %v378, %v442
      %v514 = vadd.f32 %v379, %v442
      %v515 = vadd.f32 %v380, %v442
      %v516 = vadd.f32 %v381, %v442
      %v517 = vadd.f32 %v382, %v442
      %v518 = vadd.f32 %v383, %v442
      %v519 = vadd.f32 %v384, %v442
      %v520 = vadd.f32 %v385, %v442
      %v521 = vadd.f32 %v386, %v442
      %v522 = vadd.f32 %v387, %v442
      %v523 = vadd.f32 %v388, %v442
      %v524 = vadd.f32 %v389, %v442
      %v525 = vadd.f32 %v390, %v442
      %v526 = vadd.f32 %v391, %v442
      %v527 = vadd.f32 %v392, %v442
      %v528 = vadd.f32 %v393, %v442
      %v529 = vadd.f32 %v394, %v442
      %v530 = vadd.f32 %v395, %v442
      %v531 = vadd.f32 %v396, %v442
      %v532 = vadd.f32 %v397, %v442
      %v533 = vadd.f32 %v398, %v442
      %v534 = vadd.f32 %v399, %v442
      %v535 = vadd.f32 %v400, %v442
      %v536 = vadd.f32 %v401, %v442
      %v537 = vadd.f32 %v402, %v442
      %v538 = vadd.f32 %v403, %v442
      %v539 = vadd.f32 %v404, %v442
      %v540 = vadd.f32 %v405, %v442
      %v541 = vadd.f32 %v406, %v442
      %v542 = vadd.f32 %v407, %v442
      %v543 = vadd.f32 %v408, %v442
      %v544 = vadd.f32 %v409, %v442
      %v545 = vadd.f32 %v410, %v442
      %v546 = vadd.f32 %v411, %v442
      %v547 = vadd.f32 %v412, %v442
      %v548 = vadd.f32 %v413, %v442
      %v549 = vadd.f32 %v414, %v442
      %v550 = vadd.f32 %v415, %v442
      %v551 = vadd.f32 %v416, %v442
      %v552 = vadd.f32 %v417, %v442
      %v553 = vadd.f32 %v418, %v442
      %v554 = vadd.f32 %v419, %v442
      %v555 = vadd.f32 %v420, %v442
      %v556 = vadd.f32 %v421, %v442
      %v557 = vadd.f32 %v422, %v442
      %v558 = vadd.f32 %v423, %v442
      %v559 = vadd.f32 %v424, %v442
      %v560 = vadd.f32 %v425, %v442
      %v561 = vadd.f32 %v426, %v442
      %v562 = vadd.f32 %v427, %v442
      %v563 = vadd.f32 %v428, %v442
      %v564 = vadd.f32 %v429, %v442
      %v565 = vadd.f32 %v430, %v442
      %v566 = vadd.f32 %v431, %v442
      %v567 = vadd.f32 %v432, %v442
      %v568 = vadd.f32 %v433, %v442
      %v569 = vadd.f32 %v434, %v442
      %v570 = vadd.f32 %v435, %v442
      %v571 = vadd.f32 %v436, %v442
      %572 = vst [vmem:[%s172] sm:$0xff] %v444
      %573 = vst [vmem:[%s172 + $0x8] sm:$0xff] %v445
      %574 = vst [vmem:[%s172 + $0x10] sm:$0xff] %v446
      %575 = vst [vmem:[%s172 + $0x18] sm:$0xff] %v447
      %576 = vst [vmem:[%s172 + $0x20] sm:$0xff] %v448
      %577 = vst [vmem:[%s172 + $0x28] sm:$0xff] %v449
      %578 = vst [vmem:[%s172 + $0x30] sm:$0xff] %v450
      %579 = vst [vmem:[%s172 + $0x38] sm:$0xff] %v451
      %580 = vst [vmem:[%s172 + $0x40] sm:$0xff] %v452
      %581 = vst [vmem:[%s172 + $0x48] sm:$0xff] %v453
      %582 = vst [vmem:[%s172 + $0x50] sm:$0xff] %v454
      %583 = vst [vmem:[%s172 + $0x58] sm:$0xff] %v455
      %584 = vst [vmem:[%s172 + $0x60] sm:$0xff] %v456
      %585 = vst [vmem:[%s172 + $0x68] sm:$0xff] %v457
      %586 = vst [vmem:[%s172 + $0x70] sm:$0xff] %v458
      %587 = vst [vmem:[%s172 + $0x78] sm:$0xff] %v459
      %588 = vst [vmem:[%s172 + $0x80] sm:$0xff] %v460
      %589 = vst [vmem:[%s172 + $0x88] sm:$0xff] %v461
      %590 = vst [vmem:[%s172 + $0x90] sm:$0xff] %v462
      %591 = vst [vmem:[%s172 + $0x98] sm:$0xff] %v463
      %592 = vst [vmem:[%s172 + $0xa0] sm:$0xff] %v464
      %593 = vst [vmem:[%s172 + $0xa8] sm:$0xff] %v465
      %594 = vst [vmem:[%s172 + $0xb0] sm:$0xff] %v466
      %595 = vst [vmem:[%s172 + $0xb8] sm:$0xff] %v467
      %596 = vst [vmem:[%s172 + $0xc0] sm:$0xff] %v468
      %597 = vst [vmem:[%s172 + $0xc8] sm:$0xff] %v469
      %598 = vst [vmem:[%s172 + $0xd0] sm:$0xff] %v470
      %599 = vst [vmem:[%s172 + $0xd8] sm:$0xff] %v471
      %600 = vst [vmem:[%s172 + $0xe0] sm:$0xff] %v472
      %601 = vst [vmem:[%s172 + $0xe8] sm:$0xff] %v473
      %602 = vst [vmem:[%s172 + $0xf0] sm:$0xff] %v474
      %603 = vst [vmem:[%s172 + $0xf8] sm:$0xff] %v475
      %604 = vst [vmem:[%s172 + $0x100] sm:$0xff] %v476
      %605 = vst [vmem:[%s172 + $0x108] sm:$0xff] %v477
      %606 = vst [vmem:[%s172 + $0x110] sm:$0xff] %v478
      %607 = vst [vmem:[%s172 + $0x118] sm:$0xff] %v479
      %608 = vst [vmem:[%s172 + $0x120] sm:$0xff] %v480
      %609 = vst [vmem:[%s172 + $0x128] sm:$0xff] %v481
      %610 = vst [vmem:[%s172 + $0x130] sm:$0xff] %v482
      %611 = vst [vmem:[%s172 + $0x138] sm:$0xff] %v483
      %612 = vst [vmem:[%s172 + $0x140] sm:$0xff] %v484
      %613 = vst [vmem:[%s172 + $0x148] sm:$0xff] %v485
      %614 = vst [vmem:[%s172 + $0x150] sm:$0xff] %v486
      %615 = vst [vmem:[%s172 + $0x158] sm:$0xff] %v487
      %616 = vst [vmem:[%s172 + $0x160] sm:$0xff] %v488
      %617 = vst [vmem:[%s172 + $0x168] sm:$0xff] %v489
      %618 = vst [vmem:[%s172 + $0x170] sm:$0xff] %v490
      %619 = vst [vmem:[%s172 + $0x178] sm:$0xff] %v491
      %620 = vst [vmem:[%s172 + $0x180] sm:$0xff] %v492
      %621 = vst [vmem:[%s172 + $0x188] sm:$0xff] %v493
      %622 = vst [vmem:[%s172 + $0x190] sm:$0xff] %v494
      %623 = vst [vmem:[%s172 + $0x198] sm:$0xff] %v495
      %624 = vst [vmem:[%s172 + $0x1a0] sm:$0xff] %v496
      %625 = vst [vmem:[%s172 + $0x1a8] sm:$0xff] %v497
      %626 = vst [vmem:[%s172 + $0x1b0] sm:$0xff] %v498
      %627 = vst [vmem:[%s172 + $0x1b8] sm:$0xff] %v499
      %628 = vst [vmem:[%s172 + $0x1c0] sm:$0xff] %v500
      %629 = vst [vmem:[%s172 + $0x1c8] sm:$0xff] %v501
      %630 = vst [vmem:[%s172 + $0x1d0] sm:$0xff] %v502
      %631 = vst [vmem:[%s172 + $0x1d8] sm:$0xff] %v503
      %632 = vst [vmem:[%s172 + $0x1e0] sm:$0xff] %v504
      %633 = vst [vmem:[%s172 + $0x1e8] sm:$0xff] %v505
      %634 = vst [vmem:[%s172 + $0x1f0] sm:$0xff] %v506
      %635 = vst [vmem:[%s172 + $0x1f8] sm:$0xff] %v507
      %636 = vst [vmem:[%s172 + $0x200] sm:$0xff] %v508
      %637 = vst [vmem:[%s172 + $0x208] sm:$0xff] %v509
      %638 = vst [vmem:[%s172 + $0x210] sm:$0xff] %v510
      %639 = vst [vmem:[%s172 + $0x218] sm:$0xff] %v511
      %640 = vst [vmem:[%s172 + $0x220] sm:$0xff] %v512
      %641 = vst [vmem:[%s172 + $0x228] sm:$0xff] %v513
      %642 = vst [vmem:[%s172 + $0x230] sm:$0xff] %v514
      %643 = vst [vmem:[%s172 + $0x238] sm:$0xff] %v515
      %644 = vst [vmem:[%s172 + $0x240] sm:$0xff] %v516
      %645 = vst [vmem:[%s172 + $0x248] sm:$0xff] %v517
      %646 = vst [vmem:[%s172 + $0x250] sm:$0xff] %v518
      %647 = vst [vmem:[%s172 + $0x258] sm:$0xff] %v519
      %648 = vst [vmem:[%s172 + $0x260] sm:$0xff] %v520
      %649 = vst [vmem:[%s172 + $0x268] sm:$0xff] %v521
      %650 = vst [vmem:[%s172 + $0x270] sm:$0xff] %v522
      %651 = vst [vmem:[%s172 + $0x278] sm:$0xff] %v523
      %652 = vst [vmem:[%s172 + $0x280] sm:$0xff] %v524
      %653 = vst [vmem:[%s172 + $0x288] sm:$0xff] %v525
      %654 = vst [vmem:[%s172 + $0x290] sm:$0xff] %v526
      %655 = vst [vmem:[%s172 + $0x298] sm:$0xff] %v527
      %656 = vst [vmem:[%s172 + $0x2a0] sm:$0xff] %v528
      %657 = vst [vmem:[%s172 + $0x2a8] sm:$0xff] %v529
      %658 = vst [vmem:[%s172 + $0x2b0] sm:$0xff] %v530
      %659 = vst [vmem:[%s172 + $0x2b8] sm:$0xff] %v531
      %660 = vst [vmem:[%s172 + $0x2c0] sm:$0xff] %v532
      %661 = vst [vmem:[%s172 + $0x2c8] sm:$0xff] %v533
      %662 = vst [vmem:[%s172 + $0x2d0] sm:$0xff] %v534
      %663 = vst [vmem:[%s172 + $0x2d8] sm:$0xff] %v535
      %664 = vst [vmem:[%s172 + $0x2e0] sm:$0xff] %v536
      %665 = vst [vmem:[%s172 + $0x2e8] sm:$0xff] %v537
      %666 = vst [vmem:[%s172 + $0x2f0] sm:$0xff] %v538
      %667 = vst [vmem:[%s172 + $0x2f8] sm:$0xff] %v539
      %668 = vst [vmem:[%s172 + $0x300] sm:$0xff] %v540
      %669 = vst [vmem:[%s172 + $0x308] sm:$0xff] %v541
      %670 = vst [vmem:[%s172 + $0x310] sm:$0xff] %v542
      %671 = vst [vmem:[%s172 + $0x318] sm:$0xff] %v543
      %672 = vst [vmem:[%s172 + $0x320] sm:$0xff] %v544
      %673 = vst [vmem:[%s172 + $0x328] sm:$0xff] %v545
      %674 = vst [vmem:[%s172 + $0x330] sm:$0xff] %v546
      %675 = vst [vmem:[%s172 + $0x338] sm:$0xff] %v547
      %676 = vst [vmem:[%s172 + $0x340] sm:$0xff] %v548
      %677 = vst [vmem:[%s172 + $0x348] sm:$0xff] %v549
      %678 = vst [vmem:[%s172 + $0x350] sm:$0xff] %v550
      %679 = vst [vmem:[%s172 + $0x358] sm:$0xff] %v551
      %680 = vst [vmem:[%s172 + $0x360] sm:$0xff] %v552
      %681 = vst [vmem:[%s172 + $0x368] sm:$0xff] %v553
      %682 = vst [vmem:[%s172 + $0x370] sm:$0xff] %v554
      %683 = vst [vmem:[%s172 + $0x378] sm:$0xff] %v555
      %684 = vst [vmem:[%s172 + $0x380] sm:$0xff] %v556
      %685 = vst [vmem:[%s172 + $0x388] sm:$0xff] %v557
      %686 = vst [vmem:[%s172 + $0x390] sm:$0xff] %v558
      %687 = vst [vmem:[%s172 + $0x398] sm:$0xff] %v559
      %688 = vst [vmem:[%s172 + $0x3a0] sm:$0xff] %v560
      %689 = vst [vmem:[%s172 + $0x3a8] sm:$0xff] %v561
      %690 = vst [vmem:[%s172 + $0x3b0] sm:$0xff] %v562
      %691 = vst [vmem:[%s172 + $0x3b8] sm:$0xff] %v563
      %692 = vst [vmem:[%s172 + $0x3c0] sm:$0xff] %v564
      %693 = vst [vmem:[%s172 + $0x3c8] sm:$0xff] %v565
      %694 = vst [vmem:[%s172 + $0x3d0] sm:$0xff] %v566
      %695 = vst [vmem:[%s172 + $0x3d8] sm:$0xff] %v567
      %696 = vst [vmem:[%s172 + $0x3e0] sm:$0xff] %v568
      %697 = vst [vmem:[%s172 + $0x3e8] sm:$0xff] %v569
      %698 = vst [vmem:[%s172 + $0x3f0] sm:$0xff] %v570
      %699 = vst [vmem:[%s172 + $0x3f8] sm:$0xff] %v571
      %s700 = smul.u32 128, %s14
      %p701 = scmp.lt.s32.totalorder %s700, 511
      %s702 = scalar_select %p701, %s700, 511
      %s703 = smul.addr %s702, 8
      %s704 = scalar_lea.vmem %s3, %s703
      // Predicated region
      $region33: #{conv2_1d_forward.5} parent=31 // pred_check
        %p705 = pneg %p100
      $region34: #{conv2_1d_forward.5} parent=31 // pred_check_branch
        %707 = sbr.rel (%p705) target = $region36
      $region35: #{conv2_1d_forward.5} parent=31 // pred_region
        %s708 = smul.u32 128, %s14
      $region36: #{conv2_1d_forward.5} parent=31 // pred_fallthru
        _
    $region32: #{conv2_1d_forward.5} parent=5 // pred_fallthru
      _
    %p709 = scmp.le.s32.totalorder 2, %s9
    // Predicated region
    $region37: #{conv2_1d_forward.5} parent=5 // pred_check
      %p710 = pneg %p709
    $region38: #{conv2_1d_forward.5} parent=5 // pred_check_branch
      %712 = sbr.rel (%p710) target = $region40
    $region39: #{conv2_1d_forward.5} parent=5 // pred_region
      %s713 = ssub.s32 %s9, 2
      // Predicated region
      $region41: #{conv2_1d_forward.5} parent=39 // pred_check
        %p714 = pneg %p106
      $region42: #{conv2_1d_forward.5} parent=39 // pred_check_branch
        %716 = sbr.rel (%p714) target = $region44
      $region43: #{conv2_1d_forward.5} parent=39 // pred_region
        %s717 = smul.u32 128, %s15
        %p718 = scmp.lt.s32.totalorder %s717, 511
        %s719 = scalar_select %p718, %s717, 511
        %s720 = smul.addr %s719, 8
        %s721 = scalar_lea.vmem %s3, %s720
      $region44: #{conv2_1d_forward.5} parent=39 // pred_fallthru
        _
    $region40: #{conv2_1d_forward.5} parent=5 // pred_fallthru
      _
  $region6: #{conv2_1d_forward.5} parent=0 // loop_footer
    %s13 = sadd.s32 1, %s9
  $region7: #{conv2_1d_forward.5} parent=0 // loop_footer_branch
    %8 = sbr.rel target = $region3
  $region8: #{conv2_1d_forward.5} parent=0 // loop_exit
    _

</llo_original>
